<compile_context>
chip_gen: v6e
topology: v6e:2x2x1
jax: 0.10.0
libtpu: 0.0.40
codegen_flags: <defaults>
</compile_context>

<pallas_src>
import jax
import jax.numpy as jnp
import numpy as np
from jax.experimental import pallas as pl
from jax.experimental.pallas import tpu as pltpu

SIGMOID_BIAS = 2.0
LEAKY_SLOPE = 0.01      # nn.LeakyReLU default negative_slope
EPS = 1e-5              # Scaling.eps
UNTOUCHED_BIAS = 40.0   # s_log at untouched features: 1 + exp(-(40+2)) == 1.0 exactly in f32


def _leaky_relu(h):
    return jnp.where(h > 0, h, LEAKY_SLOPE * h)


# ----------------------------------------------------------------------------
# Fused kernel: Scaling(reverse) + all AffineCoupling(reverse) layers for one
# (tile_b, D) batch block.  Features on lanes, batch on sublanes.
# ----------------------------------------------------------------------------
def _fused_nice_kernel(x_ref, inv_scale_ref, w0_ref, b0_ref, wh_ref, bh_ref,
                       ws_ref, bs_ref, wt_ref, bt_ref, z_ref, ldj_ref):
    # x_ref / z_ref : (tile_b, D)
    # inv_scale_ref : (1, D)          == exp(-scale) + eps  (precomputed)
    # w0_ref        : (C, D, MID)     b0_ref : (C, 1, MID)
    # wh_ref        : (C, H, MID, MID) bh_ref : (C, H, 1, MID)
    # ws_ref/wt_ref : (C, MID, D)     bs_ref/bt_ref : (C, 1, D)
    # ldj_ref       : (1, 1) SMEM  — per-batch-block partial sum(log s)
    n_coupling = w0_ref.shape[0]
    n_hidden = wh_ref.shape[1]

    # ---- Scaling (reverse): z = (exp(-scale) + eps) * x ---------------------
    z = x_ref[...] * inv_scale_ref[...]

    log_s_acc = jnp.zeros_like(z)

    # ---- coupling layers, reversed (f_inverse order), fully unrolled --------
    for c in range(n_coupling - 1, -1, -1):
        h = _leaky_relu(jnp.dot(z, w0_ref[c], preferred_element_type=jnp.float32)
                        + b0_ref[c])
        for i in range(n_hidden):
            h = _leaky_relu(jnp.dot(h, wh_ref[c, i], preferred_element_type=jnp.float32)
                            + bh_ref[c, i])
        s_log = jnp.dot(h, ws_ref[c], preferred_element_type=jnp.float32) + bs_ref[c]
        t = jnp.dot(h, wt_ref[c], preferred_element_type=jnp.float32) + bt_ref[c]

        # s = sigmoid(s_log + 2);  1/s = 1 + exp(-a);  log s = -log(1 + exp(-a)).
        # No divide, no log-sigmoid; sigmoid > 0 so |s| == s.  At untouched (x2)
        # positions a == 42 -> inv_s == 1.0 and log_s == 0.0 exactly, so the
        # update below is the identity there (no masks / selects needed).
        # (1 + exp(-a) only overflows for s_log < ~-87; not reachable here.)
        a = s_log + SIGMOID_BIAS
        e = jnp.exp(-a)
        inv_s = 1.0 + e
        log_s_acc = log_s_acc - jnp.log(inv_s)
        z = (z - t) * inv_s

    z_ref[...] = z
    ldj_ref[0, 0] = jnp.sum(log_s_acc)


# ----------------------------------------------------------------------------
# Generation-aware batch tiling
# ----------------------------------------------------------------------------
def _dual_tensorcore():
    try:
        kind = jax.devices()[0].device_kind.lower()
        return ("v7" in kind) or ("7x" in kind)
    except Exception:
        return False


def _choose_tile_b(batch):
    """Single full-batch block on 1-TC chips (v5e/v6e); >=2 parallel blocks on
    dual-TC chips (v7x) so both TensorCores get work.  VMEM is never a concern
    at (tile_b, 16) f32."""
    tile = batch
    if _dual_tensorcore() and batch % 16 == 0 and batch >= 16:
        tile = batch // 2
    # keep very large batches in moderately sized blocks (pipeline granularity)
    while tile > 4096 and tile % 16 == 0 and batch % (tile // 2) == 0:
        tile //= 2
    return tile


# ----------------------------------------------------------------------------
# host wrapper: one pallas_call, no layout ops around it (jit'ed -> 1 dispatch)
# ----------------------------------------------------------------------------
def _nice_forward(x, fp):
    B, D = x.shape
    C, _, MID = fp['w0'].shape
    H = fp['wh'].shape[1]

    tile_b = _choose_tile_b(B)
    grid_b = B // tile_b

    # advisory cost hint for XLA's scheduler (kernel is tiny / latency-bound)
    flops = int(2 * B * C * (D * MID + H * MID * MID + 2 * MID * D))
    transcendentals = int(2 * B * D * C)                      # exp + log per feature/layer
    weight_bytes = 4 * sum(int(np.prod(fp[k].shape)) for k in
                           ('inv_scale', 'w0', 'b0', 'wh', 'bh', 'ws', 'bs', 'wt', 'bt'))
    bytes_accessed = int(2 * B * D * 4 + weight_bytes + grid_b * 4)

    z, ldj_blocks = pl.pallas_call(
        _fused_nice_kernel,
        out_shape=(jax.ShapeDtypeStruct((B, D), jnp.float32),
                   jax.ShapeDtypeStruct((grid_b, 1), jnp.float32)),
        grid=(grid_b,),
        in_specs=[
            pl.BlockSpec((tile_b, D), lambda b: (b, 0)),             # x
            pl.BlockSpec((1, D), lambda b: (0, 0)),                  # exp(-scale)+eps
            pl.BlockSpec((C, D, MID), lambda b: (0, 0, 0)),          # w0 (embedded)
            pl.BlockSpec((C, 1, MID), lambda b: (0, 0, 0)),          # b0
            pl.BlockSpec((C, H, MID, MID), lambda b: (0, 0, 0, 0)),  # wh
            pl.BlockSpec((C, H, 1, MID), lambda b: (0, 0, 0, 0)),    # bh
            pl.BlockSpec((C, MID, D), lambda b: (0, 0, 0)),          # ws (scattered)
            pl.BlockSpec((C, 1, D), lambda b: (0, 0, 0)),            # bs
            pl.BlockSpec((C, MID, D), lambda b: (0, 0, 0)),          # wt (scattered)
            pl.BlockSpec((C, 1, D), lambda b: (0, 0, 0)),            # bt
        ],
        out_specs=(
            pl.BlockSpec((tile_b, D), lambda b: (b, 0)),             # z
            pl.BlockSpec((1, 1), lambda b: (b, 0),
                         memory_space=pltpu.MemorySpace.SMEM),       # ldj partial
        ),
        compiler_params=pltpu.CompilerParams(
            dimension_semantics=("parallel",)),
        cost_estimate=pl.CostEstimate(flops=flops,
                                      transcendentals=transcendentals,
                                      bytes_accessed=bytes_accessed),
    )(x, fp['inv_scale'], fp['w0'], fp['b0'], fp['wh'], fp['bh'],
      fp['ws'], fp['bs'], fp['wt'], fp['bt'])

    # Scaling's -sum(scale) is parameter-only: folded in here, once.
    log_det_J = jnp.sum(ldj_blocks) - fp['sum_scale']
    return z, log_det_J


nice_forward = jax.jit(_nice_forward)


# ----------------------------------------------------------------------------
# parameter init (deterministic, synthetic) + kernel-layout preparation
# ----------------------------------------------------------------------------
def init_nice_params(key, in_out_dim, mid_dim, hidden, coupling):
    half = in_out_dim // 2
    layers = []
    for i in range(coupling):
        key, *ks = jax.random.split(key, 7)
        w0 = 0.1 * jax.random.normal(ks[0], (half, mid_dim), jnp.float32)
        b0 = 0.1 * jax.random.normal(ks[1], (1, mid_dim), jnp.float32)
        wh = 0.1 * jax.random.normal(ks[2], (hidden, mid_dim, mid_dim), jnp.float32)
        bh = 0.1 * jax.random.normal(ks[3], (hidden, 1, mid_dim), jnp.float32)
        wl = 0.1 * jax.random.normal(ks[4], (mid_dim, in_out_dim), jnp.float32)
        bl = 0.1 * jax.random.normal(ks[5], (1, in_out_dim), jnp.float32)
        layers.append(dict(w0=w0, b0=b0, wh=wh, bh=bh, wl=wl, bl=bl,
                           mask_config=i % 2))
    scale = jnp.zeros((1, in_out_dim), jnp.float32)   # Scaling.scale (zeros Parameter)
    return layers, scale


def prepare_fused_params(layers, scale, in_out_dim):
    """One-time repack: fold the even/odd coupling split into the weights so the
    kernel runs on full (batch, feature) tiles with no gathers/selects."""
    D = in_out_dim
    even = np.arange(0, D, 2)
    odd = np.arange(1, D, 2)
    MID = layers[0]['w0'].shape[1]

    w0_l, b0_l, wh_l, bh_l, ws_l, bs_l, wt_l, bt_l = ([] for _ in range(8))
    for p in layers:
        m = p['mask_config']
        x1_pos = odd if m == 1 else even     # transformed half
        x2_pos = even if m == 1 else odd     # MLP-input half

        # first layer: scatter w0 rows onto x2 feature positions (x1 rows -> 0)
        w0e = jnp.zeros((D, MID), jnp.float32).at[x2_pos].set(p['w0'])
        # final layer: split into s/t branches, columns scattered onto x1 positions
        ws = jnp.zeros((MID, D), jnp.float32).at[:, x1_pos].set(p['wl'][:, 0::2])
        wt = jnp.zeros((MID, D), jnp.float32).at[:, x1_pos].set(p['wl'][:, 1::2])
        bs = jnp.full((1, D), UNTOUCHED_BIAS, jnp.float32).at[:, x1_pos].set(p['bl'][:, 0::2])
        bt = jnp.zeros((1, D), jnp.float32).at[:, x1_pos].set(p['bl'][:, 1::2])

        w0_l.append(w0e); b0_l.append(p['b0'])
        wh_l.append(p['wh']); bh_l.append(p['bh'])
        ws_l.append(ws); bs_l.append(bs); wt_l.append(wt); bt_l.append(bt)

    return dict(
        inv_scale=(jnp.exp(-scale) + EPS).astype(jnp.float32),   # (1, D), precomputed
        sum_scale=jnp.sum(scale),
        w0=jnp.stack(w0_l), b0=jnp.stack(b0_l),
        wh=jnp.stack(wh_l), bh=jnp.stack(bh_l),
        ws=jnp.stack(ws_l), bs=jnp.stack(bs_l),
        wt=jnp.stack(wt_l), bt=jnp.stack(bt_l),
    )


# ----------------------------------------------------------------------------
# pure-JAX reference (mirrors the PyTorch code with strided even/odd slicing)
# ----------------------------------------------------------------------------
def split_x1_x2(x, mask_config):
    if mask_config == 1:
        return x[:, 1::2], x[:, 0::2]
    return x[:, 0::2], x[:, 1::2]


def merge_x1_x2(x1, x2, mask_config):
    B = x1.shape[0]
    if mask_config == 1:
        return jnp.stack([x2, x1], axis=-1).reshape(B, -1)
    return jnp.stack([x1, x2], axis=-1).reshape(B, -1)


def _ref_mlp(x2, p):
    h = _leaky_relu(x2 @ p['w0'] + p['b0'])
    for i in range(p['wh'].shape[0]):
        h = _leaky_relu(h @ p['wh'][i] + p['bh'][i])
    return h @ p['wl'] + p['bl']


def ref_forward(x, coupling_layers, scale):
    ldj = jnp.float32(0.0)
    z = (jnp.exp(-scale) + EPS) * x
    ldj = ldj - jnp.sum(scale)
    for p in reversed(coupling_layers):
        m = p['mask_config']
        x1, x2 = split_x1_x2(z, m)
        out = _ref_mlp(x2, p)
        s_log, t = out[:, 0::2], out[:, 1::2]
        s = jax.nn.sigmoid(s_log + SIGMOID_BIAS)
        ldj = ldj + jnp.sum(jnp.log(jnp.abs(s)))
        x1 = (x1 - t) / s
        z = merge_x1_x2(x1, x2, m)
    return z, ldj


# ----------------------------------------------------------------------------
if __name__ == "__main__":
    B, IN_OUT_DIM, MID_DIM, HIDDEN, COUPLING = 256, 16, 32, 2, 4

    key = jax.random.PRNGKey(0)
    k_param, k_x = jax.random.split(key)
    coupling_layers, scale = init_nice_params(k_param, IN_OUT_DIM, MID_DIM,
                                              HIDDEN, COUPLING)
    fused_params = prepare_fused_params(coupling_layers, scale, IN_OUT_DIM)
    x = jax.random.normal(k_x, (B, IN_OUT_DIM), jnp.float32)

    z, log_det_J = nice_forward(x, fused_params)
    z = jax.block_until_ready(z)
    log_det_J = jax.block_until_ready(log_det_J)

    # NOTE: both kernel and reference use default TPU matmul precision; pass
    # precision=HIGHEST in both if bit-closer parity with PyTorch f32 is needed.
    z_ref, ldj_ref = ref_forward(x, coupling_layers, scale)
    np.testing.assert_allclose(np.asarray(z), np.asarray(z_ref), rtol=1e-4, atol=1e-4)
    np.testing.assert_allclose(np.asarray(log_det_J), np.asarray(ldj_ref),
                               rtol=1e-4, atol=1e-4)

    print("KERNEL_OK")
</pallas_src>

<mosaic_0001>
module attributes {stable_mosaic.version = 11 : i64} {
  func.func @_fused_nice_kernel(%arg0: i32, %arg1: memref<256x16xf32, #tpu.memory_space<vmem>>, %arg2: memref<1x16xf32, #tpu.memory_space<vmem>>, %arg3: memref<4x16x32xf32, #tpu.memory_space<vmem>>, %arg4: memref<4x1x32xf32, #tpu.memory_space<vmem>>, %arg5: memref<4x2x32x32xf32, #tpu.memory_space<vmem>>, %arg6: memref<4x2x1x32xf32, #tpu.memory_space<vmem>>, %arg7: memref<4x32x16xf32, #tpu.memory_space<vmem>>, %arg8: memref<4x1x16xf32, #tpu.memory_space<vmem>>, %arg9: memref<4x32x16xf32, #tpu.memory_space<vmem>>, %arg10: memref<4x1x16xf32, #tpu.memory_space<vmem>>, %arg11: memref<256x16xf32, #tpu.memory_space<vmem>>, %arg12: memref<1x1xf32, #tpu.memory_space<smem>>) attributes {dimension_semantics = [#tpu.dimension_semantics<parallel>], iteration_bounds = array<i64: 1>, scalar_prefetch = 0 : i64, scratch_operands = 0 : i64, tpu.core_type = #tpu.core_type<tc>, window_params = [{transform_indices = @transform_0, window_bounds = array<i64: 256, 16>}, {pipeline_mode = #tpu.pipeline_mode<synchronous>, transform_indices = @transform_1, window_bounds = array<i64: 1, 16>}, {pipeline_mode = #tpu.pipeline_mode<synchronous>, transform_indices = @transform_2, window_bounds = array<i64: 4, 16, 32>}, {pipeline_mode = #tpu.pipeline_mode<synchronous>, transform_indices = @transform_3, window_bounds = array<i64: 4, 1, 32>}, {pipeline_mode = #tpu.pipeline_mode<synchronous>, transform_indices = @transform_4, window_bounds = array<i64: 4, 2, 32, 32>}, {pipeline_mode = #tpu.pipeline_mode<synchronous>, transform_indices = @transform_5, window_bounds = array<i64: 4, 2, 1, 32>}, {pipeline_mode = #tpu.pipeline_mode<synchronous>, transform_indices = @transform_6, window_bounds = array<i64: 4, 32, 16>}, {pipeline_mode = #tpu.pipeline_mode<synchronous>, transform_indices = @transform_7, window_bounds = array<i64: 4, 1, 16>}, {pipeline_mode = #tpu.pipeline_mode<synchronous>, transform_indices = @transform_8, window_bounds = array<i64: 4, 32, 16>}, {pipeline_mode = #tpu.pipeline_mode<synchronous>, transform_indices = @transform_9, window_bounds = array<i64: 4, 1, 16>}, {transform_indices = @transform_10, window_bounds = array<i64: 256, 16>}, {transform_indices = @transform_11, window_bounds = array<i64: 1, 1>}]} {
    %c0 = arith.constant 0 : index
    %c0_0 = arith.constant 0 : index
    %0 = vector.load %arg1[%c0, %c0_0] : memref<256x16xf32, #tpu.memory_space<vmem>>, vector<256x16xf32>
    %c0_1 = arith.constant 0 : index
    %c0_2 = arith.constant 0 : index
    %1 = vector.load %arg2[%c0_1, %c0_2] : memref<1x16xf32, #tpu.memory_space<vmem>>, vector<1x16xf32>
    %2 = vector.broadcast %1 : vector<1x16xf32> to vector<256x16xf32>
    %3 = arith.mulf %0, %2 : vector<256x16xf32>
    %cst = arith.constant 0.000000e+00 : f32
    %4 = vector.broadcast %cst : f32 to vector<256x16xf32>
    %c3 = arith.constant 3 : index
    %c0_3 = arith.constant 0 : index
    %c0_4 = arith.constant 0 : index
    %5 = vector.load %arg3[%c3, %c0_3, %c0_4] : memref<4x16x32xf32, #tpu.memory_space<vmem>>, vector<1x16x32xf32>
    %6 = vector.shape_cast %5 : vector<1x16x32xf32> to vector<16x32xf32>
    %cst_5 = arith.constant dense<0.000000e+00> : vector<256x32xf32>
    %7 = tpu.matmul %3, %6, %cst_5 {dimension_numbers = #tpu.dot_dimension_numbers<[1], [0], [0], [1], [0, 0, 1, 1], [], []>} : vector<256x16xf32>, vector<16x32xf32>, vector<256x32xf32> -> vector<256x32xf32>
    %c3_6 = arith.constant 3 : index
    %c0_7 = arith.constant 0 : index
    %c0_8 = arith.constant 0 : index
    %8 = vector.load %arg4[%c3_6, %c0_7, %c0_8] : memref<4x1x32xf32, #tpu.memory_space<vmem>>, vector<1x1x32xf32>
    %9 = vector.shape_cast %8 : vector<1x1x32xf32> to vector<1x32xf32>
    %10 = vector.broadcast %9 : vector<1x32xf32> to vector<256x32xf32>
    %11 = arith.addf %7, %10 : vector<256x32xf32>
    %cst_9 = arith.constant 0.000000e+00 : f32
    %12 = vector.broadcast %cst_9 : f32 to vector<256x32xf32>
    %13 = arith.cmpf ogt, %11, %12 : vector<256x32xf32>
    %cst_10 = arith.constant 0.00999999977 : f32
    %14 = vector.broadcast %cst_10 : f32 to vector<256x32xf32>
    %15 = arith.mulf %14, %11 : vector<256x32xf32>
    %16 = arith.select %13, %11, %15 : vector<256x32xi1>, vector<256x32xf32>
    %c3_11 = arith.constant 3 : index
    %c0_12 = arith.constant 0 : index
    %c0_13 = arith.constant 0 : index
    %c0_14 = arith.constant 0 : index
    %17 = vector.load %arg5[%c3_11, %c0_12, %c0_13, %c0_14] : memref<4x2x32x32xf32, #tpu.memory_space<vmem>>, vector<1x1x32x32xf32>
    %18 = vector.shape_cast %17 : vector<1x1x32x32xf32> to vector<32x32xf32>
    %cst_15 = arith.constant dense<0.000000e+00> : vector<256x32xf32>
    %19 = tpu.matmul %16, %18, %cst_15 {dimension_numbers = #tpu.dot_dimension_numbers<[1], [0], [0], [1], [0, 0, 1, 1], [], []>} : vector<256x32xf32>, vector<32x32xf32>, vector<256x32xf32> -> vector<256x32xf32>
    %c3_16 = arith.constant 3 : index
    %c0_17 = arith.constant 0 : index
    %c0_18 = arith.constant 0 : index
    %c0_19 = arith.constant 0 : index
    %20 = vector.load %arg6[%c3_16, %c0_17, %c0_18, %c0_19] : memref<4x2x1x32xf32, #tpu.memory_space<vmem>>, vector<1x1x1x32xf32>
    %21 = vector.shape_cast %20 : vector<1x1x1x32xf32> to vector<1x32xf32>
    %22 = vector.broadcast %21 : vector<1x32xf32> to vector<256x32xf32>
    %23 = arith.addf %19, %22 : vector<256x32xf32>
    %cst_20 = arith.constant 0.000000e+00 : f32
    %24 = vector.broadcast %cst_20 : f32 to vector<256x32xf32>
    %25 = arith.cmpf ogt, %23, %24 : vector<256x32xf32>
    %cst_21 = arith.constant 0.00999999977 : f32
    %26 = vector.broadcast %cst_21 : f32 to vector<256x32xf32>
    %27 = arith.mulf %26, %23 : vector<256x32xf32>
    %28 = arith.select %25, %23, %27 : vector<256x32xi1>, vector<256x32xf32>
    %c3_22 = arith.constant 3 : index
    %c1 = arith.constant 1 : index
    %c0_23 = arith.constant 0 : index
    %c0_24 = arith.constant 0 : index
    %29 = vector.load %arg5[%c3_22, %c1, %c0_23, %c0_24] : memref<4x2x32x32xf32, #tpu.memory_space<vmem>>, vector<1x1x32x32xf32>
    %30 = vector.shape_cast %29 : vector<1x1x32x32xf32> to vector<32x32xf32>
    %cst_25 = arith.constant dense<0.000000e+00> : vector<256x32xf32>
    %31 = tpu.matmul %28, %30, %cst_25 {dimension_numbers = #tpu.dot_dimension_numbers<[1], [0], [0], [1], [0, 0, 1, 1], [], []>} : vector<256x32xf32>, vector<32x32xf32>, vector<256x32xf32> -> vector<256x32xf32>
    %c3_26 = arith.constant 3 : index
    %c1_27 = arith.constant 1 : index
    %c0_28 = arith.constant 0 : index
    %c0_29 = arith.constant 0 : index
    %32 = vector.load %arg6[%c3_26, %c1_27, %c0_28, %c0_29] : memref<4x2x1x32xf32, #tpu.memory_space<vmem>>, vector<1x1x1x32xf32>
    %33 = vector.shape_cast %32 : vector<1x1x1x32xf32> to vector<1x32xf32>
    %34 = vector.broadcast %33 : vector<1x32xf32> to vector<256x32xf32>
    %35 = arith.addf %31, %34 : vector<256x32xf32>
    %cst_30 = arith.constant 0.000000e+00 : f32
    %36 = vector.broadcast %cst_30 : f32 to vector<256x32xf32>
    %37 = arith.cmpf ogt, %35, %36 : vector<256x32xf32>
    %cst_31 = arith.constant 0.00999999977 : f32
    %38 = vector.broadcast %cst_31 : f32 to vector<256x32xf32>
    %39 = arith.mulf %38, %35 : vector<256x32xf32>
    %40 = arith.select %37, %35, %39 : vector<256x32xi1>, vector<256x32xf32>
    %c3_32 = arith.constant 3 : index
    %c0_33 = arith.constant 0 : index
    %c0_34 = arith.constant 0 : index
    %41 = vector.load %arg7[%c3_32, %c0_33, %c0_34] : memref<4x32x16xf32, #tpu.memory_space<vmem>>, vector<1x32x16xf32>
    %42 = vector.shape_cast %41 : vector<1x32x16xf32> to vector<32x16xf32>
    %cst_35 = arith.constant dense<0.000000e+00> : vector<256x16xf32>
    %43 = tpu.matmul %40, %42, %cst_35 {dimension_numbers = #tpu.dot_dimension_numbers<[1], [0], [0], [1], [0, 0, 1, 1], [], []>} : vector<256x32xf32>, vector<32x16xf32>, vector<256x16xf32> -> vector<256x16xf32>
    %c3_36 = arith.constant 3 : index
    %c0_37 = arith.constant 0 : index
    %c0_38 = arith.constant 0 : index
    %44 = vector.load %arg8[%c3_36, %c0_37, %c0_38] : memref<4x1x16xf32, #tpu.memory_space<vmem>>, vector<1x1x16xf32>
    %45 = vector.shape_cast %44 : vector<1x1x16xf32> to vector<1x16xf32>
    %46 = vector.broadcast %45 : vector<1x16xf32> to vector<256x16xf32>
    %47 = arith.addf %43, %46 : vector<256x16xf32>
    %c3_39 = arith.constant 3 : index
    %c0_40 = arith.constant 0 : index
    %c0_41 = arith.constant 0 : index
    %48 = vector.load %arg9[%c3_39, %c0_40, %c0_41] : memref<4x32x16xf32, #tpu.memory_space<vmem>>, vector<1x32x16xf32>
    %49 = vector.shape_cast %48 : vector<1x32x16xf32> to vector<32x16xf32>
    %cst_42 = arith.constant dense<0.000000e+00> : vector<256x16xf32>
    %50 = tpu.matmul %40, %49, %cst_42 {dimension_numbers = #tpu.dot_dimension_numbers<[1], [0], [0], [1], [0, 0, 1, 1], [], []>} : vector<256x32xf32>, vector<32x16xf32>, vector<256x16xf32> -> vector<256x16xf32>
    %c3_43 = arith.constant 3 : index
    %c0_44 = arith.constant 0 : index
    %c0_45 = arith.constant 0 : index
    %51 = vector.load %arg10[%c3_43, %c0_44, %c0_45] : memref<4x1x16xf32, #tpu.memory_space<vmem>>, vector<1x1x16xf32>
    %52 = vector.shape_cast %51 : vector<1x1x16xf32> to vector<1x16xf32>
    %53 = vector.broadcast %52 : vector<1x16xf32> to vector<256x16xf32>
    %54 = arith.addf %50, %53 : vector<256x16xf32>
    %cst_46 = arith.constant 2.000000e+00 : f32
    %55 = vector.broadcast %cst_46 : f32 to vector<256x16xf32>
    %56 = arith.addf %47, %55 : vector<256x16xf32>
    %cst_47 = arith.constant 0.000000e+00 : f32
    %57 = vector.broadcast %cst_47 : f32 to vector<256x16xf32>
    %58 = arith.subf %57, %56 : vector<256x16xf32>
    %59 = math.exp %58 : vector<256x16xf32>
    %cst_48 = arith.constant 1.000000e+00 : f32
    %60 = vector.broadcast %cst_48 : f32 to vector<256x16xf32>
    %61 = arith.addf %60, %59 : vector<256x16xf32>
    %62 = math.log %61 : vector<256x16xf32>
    %63 = arith.subf %4, %62 : vector<256x16xf32>
    %64 = arith.subf %3, %54 : vector<256x16xf32>
    %65 = arith.mulf %64, %61 : vector<256x16xf32>
    %c2 = arith.constant 2 : index
    %c0_49 = arith.constant 0 : index
    %c0_50 = arith.constant 0 : index
    %66 = vector.load %arg3[%c2, %c0_49, %c0_50] : memref<4x16x32xf32, #tpu.memory_space<vmem>>, vector<1x16x32xf32>
    %67 = vector.shape_cast %66 : vector<1x16x32xf32> to vector<16x32xf32>
    %cst_51 = arith.constant dense<0.000000e+00> : vector<256x32xf32>
    %68 = tpu.matmul %65, %67, %cst_51 {dimension_numbers = #tpu.dot_dimension_numbers<[1], [0], [0], [1], [0, 0, 1, 1], [], []>} : vector<256x16xf32>, vector<16x32xf32>, vector<256x32xf32> -> vector<256x32xf32>
    %c2_52 = arith.constant 2 : index
    %c0_53 = arith.constant 0 : index
    %c0_54 = arith.constant 0 : index
    %69 = vector.load %arg4[%c2_52, %c0_53, %c0_54] : memref<4x1x32xf32, #tpu.memory_space<vmem>>, vector<1x1x32xf32>
    %70 = vector.shape_cast %69 : vector<1x1x32xf32> to vector<1x32xf32>
    %71 = vector.broadcast %70 : vector<1x32xf32> to vector<256x32xf32>
    %72 = arith.addf %68, %71 : vector<256x32xf32>
    %cst_55 = arith.constant 0.000000e+00 : f32
    %73 = vector.broadcast %cst_55 : f32 to vector<256x32xf32>
    %74 = arith.cmpf ogt, %72, %73 : vector<256x32xf32>
    %cst_56 = arith.constant 0.00999999977 : f32
    %75 = vector.broadcast %cst_56 : f32 to vector<256x32xf32>
    %76 = arith.mulf %75, %72 : vector<256x32xf32>
    %77 = arith.select %74, %72, %76 : vector<256x32xi1>, vector<256x32xf32>
    %c2_57 = arith.constant 2 : index
    %c0_58 = arith.constant 0 : index
    %c0_59 = arith.constant 0 : index
    %c0_60 = arith.constant 0 : index
    %78 = vector.load %arg5[%c2_57, %c0_58, %c0_59, %c0_60] : memref<4x2x32x32xf32, #tpu.memory_space<vmem>>, vector<1x1x32x32xf32>
    %79 = vector.shape_cast %78 : vector<1x1x32x32xf32> to vector<32x32xf32>
    %cst_61 = arith.constant dense<0.000000e+00> : vector<256x32xf32>
    %80 = tpu.matmul %77, %79, %cst_61 {dimension_numbers = #tpu.dot_dimension_numbers<[1], [0], [0], [1], [0, 0, 1, 1], [], []>} : vector<256x32xf32>, vector<32x32xf32>, vector<256x32xf32> -> vector<256x32xf32>
    %c2_62 = arith.constant 2 : index
    %c0_63 = arith.constant 0 : index
    %c0_64 = arith.constant 0 : index
    %c0_65 = arith.constant 0 : index
    %81 = vector.load %arg6[%c2_62, %c0_63, %c0_64, %c0_65] : memref<4x2x1x32xf32, #tpu.memory_space<vmem>>, vector<1x1x1x32xf32>
    %82 = vector.shape_cast %81 : vector<1x1x1x32xf32> to vector<1x32xf32>
    %83 = vector.broadcast %82 : vector<1x32xf32> to vector<256x32xf32>
    %84 = arith.addf %80, %83 : vector<256x32xf32>
    %cst_66 = arith.constant 0.000000e+00 : f32
    %85 = vector.broadcast %cst_66 : f32 to vector<256x32xf32>
    %86 = arith.cmpf ogt, %84, %85 : vector<256x32xf32>
    %cst_67 = arith.constant 0.00999999977 : f32
    %87 = vector.broadcast %cst_67 : f32 to vector<256x32xf32>
    %88 = arith.mulf %87, %84 : vector<256x32xf32>
    %89 = arith.select %86, %84, %88 : vector<256x32xi1>, vector<256x32xf32>
    %c2_68 = arith.constant 2 : index
    %c1_69 = arith.constant 1 : index
    %c0_70 = arith.constant 0 : index
    %c0_71 = arith.constant 0 : index
    %90 = vector.load %arg5[%c2_68, %c1_69, %c0_70, %c0_71] : memref<4x2x32x32xf32, #tpu.memory_space<vmem>>, vector<1x1x32x32xf32>
    %91 = vector.shape_cast %90 : vector<1x1x32x32xf32> to vector<32x32xf32>
    %cst_72 = arith.constant dense<0.000000e+00> : vector<256x32xf32>
    %92 = tpu.matmul %89, %91, %cst_72 {dimension_numbers = #tpu.dot_dimension_numbers<[1], [0], [0], [1], [0, 0, 1, 1], [], []>} : vector<256x32xf32>, vector<32x32xf32>, vector<256x32xf32> -> vector<256x32xf32>
    %c2_73 = arith.constant 2 : index
    %c1_74 = arith.constant 1 : index
    %c0_75 = arith.constant 0 : index
    %c0_76 = arith.constant 0 : index
    %93 = vector.load %arg6[%c2_73, %c1_74, %c0_75, %c0_76] : memref<4x2x1x32xf32, #tpu.memory_space<vmem>>, vector<1x1x1x32xf32>
    %94 = vector.shape_cast %93 : vector<1x1x1x32xf32> to vector<1x32xf32>
    %95 = vector.broadcast %94 : vector<1x32xf32> to vector<256x32xf32>
    %96 = arith.addf %92, %95 : vector<256x32xf32>
    %cst_77 = arith.constant 0.000000e+00 : f32
    %97 = vector.broadcast %cst_77 : f32 to vector<256x32xf32>
    %98 = arith.cmpf ogt, %96, %97 : vector<256x32xf32>
    %cst_78 = arith.constant 0.00999999977 : f32
    %99 = vector.broadcast %cst_78 : f32 to vector<256x32xf32>
    %100 = arith.mulf %99, %96 : vector<256x32xf32>
    %101 = arith.select %98, %96, %100 : vector<256x32xi1>, vector<256x32xf32>
    %c2_79 = arith.constant 2 : index
    %c0_80 = arith.constant 0 : index
    %c0_81 = arith.constant 0 : index
    %102 = vector.load %arg7[%c2_79, %c0_80, %c0_81] : memref<4x32x16xf32, #tpu.memory_space<vmem>>, vector<1x32x16xf32>
    %103 = vector.shape_cast %102 : vector<1x32x16xf32> to vector<32x16xf32>
    %cst_82 = arith.constant dense<0.000000e+00> : vector<256x16xf32>
    %104 = tpu.matmul %101, %103, %cst_82 {dimension_numbers = #tpu.dot_dimension_numbers<[1], [0], [0], [1], [0, 0, 1, 1], [], []>} : vector<256x32xf32>, vector<32x16xf32>, vector<256x16xf32> -> vector<256x16xf32>
    %c2_83 = arith.constant 2 : index
    %c0_84 = arith.constant 0 : index
    %c0_85 = arith.constant 0 : index
    %105 = vector.load %arg8[%c2_83, %c0_84, %c0_85] : memref<4x1x16xf32, #tpu.memory_space<vmem>>, vector<1x1x16xf32>
    %106 = vector.shape_cast %105 : vector<1x1x16xf32> to vector<1x16xf32>
    %107 = vector.broadcast %106 : vector<1x16xf32> to vector<256x16xf32>
    %108 = arith.addf %104, %107 : vector<256x16xf32>
    %c2_86 = arith.constant 2 : index
    %c0_87 = arith.constant 0 : index
    %c0_88 = arith.constant 0 : index
    %109 = vector.load %arg9[%c2_86, %c0_87, %c0_88] : memref<4x32x16xf32, #tpu.memory_space<vmem>>, vector<1x32x16xf32>
    %110 = vector.shape_cast %109 : vector<1x32x16xf32> to vector<32x16xf32>
    %cst_89 = arith.constant dense<0.000000e+00> : vector<256x16xf32>
    %111 = tpu.matmul %101, %110, %cst_89 {dimension_numbers = #tpu.dot_dimension_numbers<[1], [0], [0], [1], [0, 0, 1, 1], [], []>} : vector<256x32xf32>, vector<32x16xf32>, vector<256x16xf32> -> vector<256x16xf32>
    %c2_90 = arith.constant 2 : index
    %c0_91 = arith.constant 0 : index
    %c0_92 = arith.constant 0 : index
    %112 = vector.load %arg10[%c2_90, %c0_91, %c0_92] : memref<4x1x16xf32, #tpu.memory_space<vmem>>, vector<1x1x16xf32>
    %113 = vector.shape_cast %112 : vector<1x1x16xf32> to vector<1x16xf32>
    %114 = vector.broadcast %113 : vector<1x16xf32> to vector<256x16xf32>
    %115 = arith.addf %111, %114 : vector<256x16xf32>
    %cst_93 = arith.constant 2.000000e+00 : f32
    %116 = vector.broadcast %cst_93 : f32 to vector<256x16xf32>
    %117 = arith.addf %108, %116 : vector<256x16xf32>
    %cst_94 = arith.constant 0.000000e+00 : f32
    %118 = vector.broadcast %cst_94 : f32 to vector<256x16xf32>
    %119 = arith.subf %118, %117 : vector<256x16xf32>
    %120 = math.exp %119 : vector<256x16xf32>
    %cst_95 = arith.constant 1.000000e+00 : f32
    %121 = vector.broadcast %cst_95 : f32 to vector<256x16xf32>
    %122 = arith.addf %121, %120 : vector<256x16xf32>
    %123 = math.log %122 : vector<256x16xf32>
    %124 = arith.subf %63, %123 : vector<256x16xf32>
    %125 = arith.subf %65, %115 : vector<256x16xf32>
    %126 = arith.mulf %125, %122 : vector<256x16xf32>
    %c1_96 = arith.constant 1 : index
    %c0_97 = arith.constant 0 : index
    %c0_98 = arith.constant 0 : index
    %127 = vector.load %arg3[%c1_96, %c0_97, %c0_98] : memref<4x16x32xf32, #tpu.memory_space<vmem>>, vector<1x16x32xf32>
    %128 = vector.shape_cast %127 : vector<1x16x32xf32> to vector<16x32xf32>
    %cst_99 = arith.constant dense<0.000000e+00> : vector<256x32xf32>
    %129 = tpu.matmul %126, %128, %cst_99 {dimension_numbers = #tpu.dot_dimension_numbers<[1], [0], [0], [1], [0, 0, 1, 1], [], []>} : vector<256x16xf32>, vector<16x32xf32>, vector<256x32xf32> -> vector<256x32xf32>
    %c1_100 = arith.constant 1 : index
    %c0_101 = arith.constant 0 : index
    %c0_102 = arith.constant 0 : index
    %130 = vector.load %arg4[%c1_100, %c0_101, %c0_102] : memref<4x1x32xf32, #tpu.memory_space<vmem>>, vector<1x1x32xf32>
    %131 = vector.shape_cast %130 : vector<1x1x32xf32> to vector<1x32xf32>
    %132 = vector.broadcast %131 : vector<1x32xf32> to vector<256x32xf32>
    %133 = arith.addf %129, %132 : vector<256x32xf32>
    %cst_103 = arith.constant 0.000000e+00 : f32
    %134 = vector.broadcast %cst_103 : f32 to vector<256x32xf32>
    %135 = arith.cmpf ogt, %133, %134 : vector<256x32xf32>
    %cst_104 = arith.constant 0.00999999977 : f32
    %136 = vector.broadcast %cst_104 : f32 to vector<256x32xf32>
    %137 = arith.mulf %136, %133 : vector<256x32xf32>
    %138 = arith.select %135, %133, %137 : vector<256x32xi1>, vector<256x32xf32>
    %c1_105 = arith.constant 1 : index
    %c0_106 = arith.constant 0 : index
    %c0_107 = arith.constant 0 : index
    %c0_108 = arith.constant 0 : index
    %139 = vector.load %arg5[%c1_105, %c0_106, %c0_107, %c0_108] : memref<4x2x32x32xf32, #tpu.memory_space<vmem>>, vector<1x1x32x32xf32>
    %140 = vector.shape_cast %139 : vector<1x1x32x32xf32> to vector<32x32xf32>
    %cst_109 = arith.constant dense<0.000000e+00> : vector<256x32xf32>
    %141 = tpu.matmul %138, %140, %cst_109 {dimension_numbers = #tpu.dot_dimension_numbers<[1], [0], [0], [1], [0, 0, 1, 1], [], []>} : vector<256x32xf32>, vector<32x32xf32>, vector<256x32xf32> -> vector<256x32xf32>
    %c1_110 = arith.constant 1 : index
    %c0_111 = arith.constant 0 : index
    %c0_112 = arith.constant 0 : index
    %c0_113 = arith.constant 0 : index
    %142 = vector.load %arg6[%c1_110, %c0_111, %c0_112, %c0_113] : memref<4x2x1x32xf32, #tpu.memory_space<vmem>>, vector<1x1x1x32xf32>
    %143 = vector.shape_cast %142 : vector<1x1x1x32xf32> to vector<1x32xf32>
    %144 = vector.broadcast %143 : vector<1x32xf32> to vector<256x32xf32>
    %145 = arith.addf %141, %144 : vector<256x32xf32>
    %cst_114 = arith.constant 0.000000e+00 : f32
    %146 = vector.broadcast %cst_114 : f32 to vector<256x32xf32>
    %147 = arith.cmpf ogt, %145, %146 : vector<256x32xf32>
    %cst_115 = arith.constant 0.00999999977 : f32
    %148 = vector.broadcast %cst_115 : f32 to vector<256x32xf32>
    %149 = arith.mulf %148, %145 : vector<256x32xf32>
    %150 = arith.select %147, %145, %149 : vector<256x32xi1>, vector<256x32xf32>
    %c1_116 = arith.constant 1 : index
    %c1_117 = arith.constant 1 : index
    %c0_118 = arith.constant 0 : index
    %c0_119 = arith.constant 0 : index
    %151 = vector.load %arg5[%c1_116, %c1_117, %c0_118, %c0_119] : memref<4x2x32x32xf32, #tpu.memory_space<vmem>>, vector<1x1x32x32xf32>
    %152 = vector.shape_cast %151 : vector<1x1x32x32xf32> to vector<32x32xf32>
    %cst_120 = arith.constant dense<0.000000e+00> : vector<256x32xf32>
    %153 = tpu.matmul %150, %152, %cst_120 {dimension_numbers = #tpu.dot_dimension_numbers<[1], [0], [0], [1], [0, 0, 1, 1], [], []>} : vector<256x32xf32>, vector<32x32xf32>, vector<256x32xf32> -> vector<256x32xf32>
    %c1_121 = arith.constant 1 : index
    %c1_122 = arith.constant 1 : index
    %c0_123 = arith.constant 0 : index
    %c0_124 = arith.constant 0 : index
    %154 = vector.load %arg6[%c1_121, %c1_122, %c0_123, %c0_124] : memref<4x2x1x32xf32, #tpu.memory_space<vmem>>, vector<1x1x1x32xf32>
    %155 = vector.shape_cast %154 : vector<1x1x1x32xf32> to vector<1x32xf32>
    %156 = vector.broadcast %155 : vector<1x32xf32> to vector<256x32xf32>
    %157 = arith.addf %153, %156 : vector<256x32xf32>
    %cst_125 = arith.constant 0.000000e+00 : f32
    %158 = vector.broadcast %cst_125 : f32 to vector<256x32xf32>
    %159 = arith.cmpf ogt, %157, %158 : vector<256x32xf32>
    %cst_126 = arith.constant 0.00999999977 : f32
    %160 = vector.broadcast %cst_126 : f32 to vector<256x32xf32>
    %161 = arith.mulf %160, %157 : vector<256x32xf32>
    %162 = arith.select %159, %157, %161 : vector<256x32xi1>, vector<256x32xf32>
    %c1_127 = arith.constant 1 : index
    %c0_128 = arith.constant 0 : index
    %c0_129 = arith.constant 0 : index
    %163 = vector.load %arg7[%c1_127, %c0_128, %c0_129] : memref<4x32x16xf32, #tpu.memory_space<vmem>>, vector<1x32x16xf32>
    %164 = vector.shape_cast %163 : vector<1x32x16xf32> to vector<32x16xf32>
    %cst_130 = arith.constant dense<0.000000e+00> : vector<256x16xf32>
    %165 = tpu.matmul %162, %164, %cst_130 {dimension_numbers = #tpu.dot_dimension_numbers<[1], [0], [0], [1], [0, 0, 1, 1], [], []>} : vector<256x32xf32>, vector<32x16xf32>, vector<256x16xf32> -> vector<256x16xf32>
    %c1_131 = arith.constant 1 : index
    %c0_132 = arith.constant 0 : index
    %c0_133 = arith.constant 0 : index
    %166 = vector.load %arg8[%c1_131, %c0_132, %c0_133] : memref<4x1x16xf32, #tpu.memory_space<vmem>>, vector<1x1x16xf32>
    %167 = vector.shape_cast %166 : vector<1x1x16xf32> to vector<1x16xf32>
    %168 = vector.broadcast %167 : vector<1x16xf32> to vector<256x16xf32>
    %169 = arith.addf %165, %168 : vector<256x16xf32>
    %c1_134 = arith.constant 1 : index
    %c0_135 = arith.constant 0 : index
    %c0_136 = arith.constant 0 : index
    %170 = vector.load %arg9[%c1_134, %c0_135, %c0_136] : memref<4x32x16xf32, #tpu.memory_space<vmem>>, vector<1x32x16xf32>
    %171 = vector.shape_cast %170 : vector<1x32x16xf32> to vector<32x16xf32>
    %cst_137 = arith.constant dense<0.000000e+00> : vector<256x16xf32>
    %172 = tpu.matmul %162, %171, %cst_137 {dimension_numbers = #tpu.dot_dimension_numbers<[1], [0], [0], [1], [0, 0, 1, 1], [], []>} : vector<256x32xf32>, vector<32x16xf32>, vector<256x16xf32> -> vector<256x16xf32>
    %c1_138 = arith.constant 1 : index
    %c0_139 = arith.constant 0 : index
    %c0_140 = arith.constant 0 : index
    %173 = vector.load %arg10[%c1_138, %c0_139, %c0_140] : memref<4x1x16xf32, #tpu.memory_space<vmem>>, vector<1x1x16xf32>
    %174 = vector.shape_cast %173 : vector<1x1x16xf32> to vector<1x16xf32>
    %175 = vector.broadcast %174 : vector<1x16xf32> to vector<256x16xf32>
    %176 = arith.addf %172, %175 : vector<256x16xf32>
    %cst_141 = arith.constant 2.000000e+00 : f32
    %177 = vector.broadcast %cst_141 : f32 to vector<256x16xf32>
    %178 = arith.addf %169, %177 : vector<256x16xf32>
    %cst_142 = arith.constant 0.000000e+00 : f32
    %179 = vector.broadcast %cst_142 : f32 to vector<256x16xf32>
    %180 = arith.subf %179, %178 : vector<256x16xf32>
    %181 = math.exp %180 : vector<256x16xf32>
    %cst_143 = arith.constant 1.000000e+00 : f32
    %182 = vector.broadcast %cst_143 : f32 to vector<256x16xf32>
    %183 = arith.addf %182, %181 : vector<256x16xf32>
    %184 = math.log %183 : vector<256x16xf32>
    %185 = arith.subf %124, %184 : vector<256x16xf32>
    %186 = arith.subf %126, %176 : vector<256x16xf32>
    %187 = arith.mulf %186, %183 : vector<256x16xf32>
    %c0_144 = arith.constant 0 : index
    %c0_145 = arith.constant 0 : index
    %c0_146 = arith.constant 0 : index
    %188 = vector.load %arg3[%c0_144, %c0_145, %c0_146] : memref<4x16x32xf32, #tpu.memory_space<vmem>>, vector<1x16x32xf32>
    %189 = vector.shape_cast %188 : vector<1x16x32xf32> to vector<16x32xf32>
    %cst_147 = arith.constant dense<0.000000e+00> : vector<256x32xf32>
    %190 = tpu.matmul %187, %189, %cst_147 {dimension_numbers = #tpu.dot_dimension_numbers<[1], [0], [0], [1], [0, 0, 1, 1], [], []>} : vector<256x16xf32>, vector<16x32xf32>, vector<256x32xf32> -> vector<256x32xf32>
    %c0_148 = arith.constant 0 : index
    %c0_149 = arith.constant 0 : index
    %c0_150 = arith.constant 0 : index
    %191 = vector.load %arg4[%c0_148, %c0_149, %c0_150] : memref<4x1x32xf32, #tpu.memory_space<vmem>>, vector<1x1x32xf32>
    %192 = vector.shape_cast %191 : vector<1x1x32xf32> to vector<1x32xf32>
    %193 = vector.broadcast %192 : vector<1x32xf32> to vector<256x32xf32>
    %194 = arith.addf %190, %193 : vector<256x32xf32>
    %cst_151 = arith.constant 0.000000e+00 : f32
    %195 = vector.broadcast %cst_151 : f32 to vector<256x32xf32>
    %196 = arith.cmpf ogt, %194, %195 : vector<256x32xf32>
    %cst_152 = arith.constant 0.00999999977 : f32
    %197 = vector.broadcast %cst_152 : f32 to vector<256x32xf32>
    %198 = arith.mulf %197, %194 : vector<256x32xf32>
    %199 = arith.select %196, %194, %198 : vector<256x32xi1>, vector<256x32xf32>
    %c0_153 = arith.constant 0 : index
    %c0_154 = arith.constant 0 : index
    %c0_155 = arith.constant 0 : index
    %c0_156 = arith.constant 0 : index
    %200 = vector.load %arg5[%c0_153, %c0_154, %c0_155, %c0_156] : memref<4x2x32x32xf32, #tpu.memory_space<vmem>>, vector<1x1x32x32xf32>
    %201 = vector.shape_cast %200 : vector<1x1x32x32xf32> to vector<32x32xf32>
    %cst_157 = arith.constant dense<0.000000e+00> : vector<256x32xf32>
    %202 = tpu.matmul %199, %201, %cst_157 {dimension_numbers = #tpu.dot_dimension_numbers<[1], [0], [0], [1], [0, 0, 1, 1], [], []>} : vector<256x32xf32>, vector<32x32xf32>, vector<256x32xf32> -> vector<256x32xf32>
    %c0_158 = arith.constant 0 : index
    %c0_159 = arith.constant 0 : index
    %c0_160 = arith.constant 0 : index
    %c0_161 = arith.constant 0 : index
    %203 = vector.load %arg6[%c0_158, %c0_159, %c0_160, %c0_161] : memref<4x2x1x32xf32, #tpu.memory_space<vmem>>, vector<1x1x1x32xf32>
    %204 = vector.shape_cast %203 : vector<1x1x1x32xf32> to vector<1x32xf32>
    %205 = vector.broadcast %204 : vector<1x32xf32> to vector<256x32xf32>
    %206 = arith.addf %202, %205 : vector<256x32xf32>
    %cst_162 = arith.constant 0.000000e+00 : f32
    %207 = vector.broadcast %cst_162 : f32 to vector<256x32xf32>
    %208 = arith.cmpf ogt, %206, %207 : vector<256x32xf32>
    %cst_163 = arith.constant 0.00999999977 : f32
    %209 = vector.broadcast %cst_163 : f32 to vector<256x32xf32>
    %210 = arith.mulf %209, %206 : vector<256x32xf32>
    %211 = arith.select %208, %206, %210 : vector<256x32xi1>, vector<256x32xf32>
    %c0_164 = arith.constant 0 : index
    %c1_165 = arith.constant 1 : index
    %c0_166 = arith.constant 0 : index
    %c0_167 = arith.constant 0 : index
    %212 = vector.load %arg5[%c0_164, %c1_165, %c0_166, %c0_167] : memref<4x2x32x32xf32, #tpu.memory_space<vmem>>, vector<1x1x32x32xf32>
    %213 = vector.shape_cast %212 : vector<1x1x32x32xf32> to vector<32x32xf32>
    %cst_168 = arith.constant dense<0.000000e+00> : vector<256x32xf32>
    %214 = tpu.matmul %211, %213, %cst_168 {dimension_numbers = #tpu.dot_dimension_numbers<[1], [0], [0], [1], [0, 0, 1, 1], [], []>} : vector<256x32xf32>, vector<32x32xf32>, vector<256x32xf32> -> vector<256x32xf32>
    %c0_169 = arith.constant 0 : index
    %c1_170 = arith.constant 1 : index
    %c0_171 = arith.constant 0 : index
    %c0_172 = arith.constant 0 : index
    %215 = vector.load %arg6[%c0_169, %c1_170, %c0_171, %c0_172] : memref<4x2x1x32xf32, #tpu.memory_space<vmem>>, vector<1x1x1x32xf32>
    %216 = vector.shape_cast %215 : vector<1x1x1x32xf32> to vector<1x32xf32>
    %217 = vector.broadcast %216 : vector<1x32xf32> to vector<256x32xf32>
    %218 = arith.addf %214, %217 : vector<256x32xf32>
    %cst_173 = arith.constant 0.000000e+00 : f32
    %219 = vector.broadcast %cst_173 : f32 to vector<256x32xf32>
    %220 = arith.cmpf ogt, %218, %219 : vector<256x32xf32>
    %cst_174 = arith.constant 0.00999999977 : f32
    %221 = vector.broadcast %cst_174 : f32 to vector<256x32xf32>
    %222 = arith.mulf %221, %218 : vector<256x32xf32>
    %223 = arith.select %220, %218, %222 : vector<256x32xi1>, vector<256x32xf32>
    %c0_175 = arith.constant 0 : index
    %c0_176 = arith.constant 0 : index
    %c0_177 = arith.constant 0 : index
    %224 = vector.load %arg7[%c0_175, %c0_176, %c0_177] : memref<4x32x16xf32, #tpu.memory_space<vmem>>, vector<1x32x16xf32>
    %225 = vector.shape_cast %224 : vector<1x32x16xf32> to vector<32x16xf32>
    %cst_178 = arith.constant dense<0.000000e+00> : vector<256x16xf32>
    %226 = tpu.matmul %223, %225, %cst_178 {dimension_numbers = #tpu.dot_dimension_numbers<[1], [0], [0], [1], [0, 0, 1, 1], [], []>} : vector<256x32xf32>, vector<32x16xf32>, vector<256x16xf32> -> vector<256x16xf32>
    %c0_179 = arith.constant 0 : index
    %c0_180 = arith.constant 0 : index
    %c0_181 = arith.constant 0 : index
    %227 = vector.load %arg8[%c0_179, %c0_180, %c0_181] : memref<4x1x16xf32, #tpu.memory_space<vmem>>, vector<1x1x16xf32>
    %228 = vector.shape_cast %227 : vector<1x1x16xf32> to vector<1x16xf32>
    %229 = vector.broadcast %228 : vector<1x16xf32> to vector<256x16xf32>
    %230 = arith.addf %226, %229 : vector<256x16xf32>
    %c0_182 = arith.constant 0 : index
    %c0_183 = arith.constant 0 : index
    %c0_184 = arith.constant 0 : index
    %231 = vector.load %arg9[%c0_182, %c0_183, %c0_184] : memref<4x32x16xf32, #tpu.memory_space<vmem>>, vector<1x32x16xf32>
    %232 = vector.shape_cast %231 : vector<1x32x16xf32> to vector<32x16xf32>
    %cst_185 = arith.constant dense<0.000000e+00> : vector<256x16xf32>
    %233 = tpu.matmul %223, %232, %cst_185 {dimension_numbers = #tpu.dot_dimension_numbers<[1], [0], [0], [1], [0, 0, 1, 1], [], []>} : vector<256x32xf32>, vector<32x16xf32>, vector<256x16xf32> -> vector<256x16xf32>
    %c0_186 = arith.constant 0 : index
    %c0_187 = arith.constant 0 : index
    %c0_188 = arith.constant 0 : index
    %234 = vector.load %arg10[%c0_186, %c0_187, %c0_188] : memref<4x1x16xf32, #tpu.memory_space<vmem>>, vector<1x1x16xf32>
    %235 = vector.shape_cast %234 : vector<1x1x16xf32> to vector<1x16xf32>
    %236 = vector.broadcast %235 : vector<1x16xf32> to vector<256x16xf32>
    %237 = arith.addf %233, %236 : vector<256x16xf32>
    %cst_189 = arith.constant 2.000000e+00 : f32
    %238 = vector.broadcast %cst_189 : f32 to vector<256x16xf32>
    %239 = arith.addf %230, %238 : vector<256x16xf32>
    %cst_190 = arith.constant 0.000000e+00 : f32
    %240 = vector.broadcast %cst_190 : f32 to vector<256x16xf32>
    %241 = arith.subf %240, %239 : vector<256x16xf32>
    %242 = math.exp %241 : vector<256x16xf32>
    %cst_191 = arith.constant 1.000000e+00 : f32
    %243 = vector.broadcast %cst_191 : f32 to vector<256x16xf32>
    %244 = arith.addf %243, %242 : vector<256x16xf32>
    %245 = math.log %244 : vector<256x16xf32>
    %246 = arith.subf %185, %245 : vector<256x16xf32>
    %247 = arith.subf %187, %237 : vector<256x16xf32>
    %248 = arith.mulf %247, %244 : vector<256x16xf32>
    %c0_192 = arith.constant 0 : index
    %c0_193 = arith.constant 0 : index
    %249 = vector.load %arg11[%c0_192, %c0_193] : memref<256x16xf32, #tpu.memory_space<vmem>>, vector<256x16xf32>
    tpu.vector_store %arg11[%c0_192, %c0_193], %248 {strides = array<i32>} : memref<256x16xf32, #tpu.memory_space<vmem>>, vector<256x16xf32>,
    %250 = vector.shape_cast %246 : vector<256x16xf32> to vector<1x256x16xf32>
    %cst_194 = arith.constant dense<0.000000e+00> : vector<1xf32>
    %251 = vector.multi_reduction <add>, %250, %cst_194 [1, 2] : vector<1x256x16xf32> to vector<1xf32>
    %252 = vector.shape_cast %251 : vector<1xf32> to vector<1x1x1xf32>
    %253 = vector.extract %252[0, 0, 0] : f32 from vector<1x1x1xf32>
    %c0_195 = arith.constant 0 : index
    %c0_196 = arith.constant 0 : index
    %254 = memref.load %arg12[%c0_195, %c0_196] : memref<1x1xf32, #tpu.memory_space<smem>>
    memref.store %253, %arg12[%c0_195, %c0_196] : memref<1x1xf32, #tpu.memory_space<smem>>
    return
  }
  func.func @transform_0(%arg0: i32) -> (i32, i32) {
    %c0_i32 = arith.constant 0 : i32
    %c0_i32_0 = arith.constant 0 : i32
    return %arg0, %c0_i32 : i32, i32
  }
  func.func @transform_1(%arg0: i32) -> (i32, i32) {
    %c0_i32 = arith.constant 0 : i32
    %c0_i32_0 = arith.constant 0 : i32
    %c0_i32_1 = arith.constant 0 : i32
    return %c0_i32, %c0_i32_0 : i32, i32
  }
  func.func @transform_2(%arg0: i32) -> (i32, i32, i32) {
    %c0_i32 = arith.constant 0 : i32
    %c0_i32_0 = arith.constant 0 : i32
    %c0_i32_1 = arith.constant 0 : i32
    %c0_i32_2 = arith.constant 0 : i32
    return %c0_i32, %c0_i32_0, %c0_i32_1 : i32, i32, i32
  }
  func.func @transform_3(%arg0: i32) -> (i32, i32, i32) {
    %c0_i32 = arith.constant 0 : i32
    %c0_i32_0 = arith.constant 0 : i32
    %c0_i32_1 = arith.constant 0 : i32
    %c0_i32_2 = arith.constant 0 : i32
    return %c0_i32, %c0_i32_0, %c0_i32_1 : i32, i32, i32
  }
  func.func @transform_4(%arg0: i32) -> (i32, i32, i32, i32) {
    %c0_i32 = arith.constant 0 : i32
    %c0_i32_0 = arith.constant 0 : i32
    %c0_i32_1 = arith.constant 0 : i32
    %c0_i32_2 = arith.constant 0 : i32
    %c0_i32_3 = arith.constant 0 : i32
    return %c0_i32, %c0_i32_0, %c0_i32_1, %c0_i32_2 : i32, i32, i32, i32
  }
  func.func @transform_5(%arg0: i32) -> (i32, i32, i32, i32) {
    %c0_i32 = arith.constant 0 : i32
    %c0_i32_0 = arith.constant 0 : i32
    %c0_i32_1 = arith.constant 0 : i32
    %c0_i32_2 = arith.constant 0 : i32
    %c0_i32_3 = arith.constant 0 : i32
    return %c0_i32, %c0_i32_0, %c0_i32_1, %c0_i32_2 : i32, i32, i32, i32
  }
  func.func @transform_6(%arg0: i32) -> (i32, i32, i32) {
    %c0_i32 = arith.constant 0 : i32
    %c0_i32_0 = arith.constant 0 : i32
    %c0_i32_1 = arith.constant 0 : i32
    %c0_i32_2 = arith.constant 0 : i32
    return %c0_i32, %c0_i32_0, %c0_i32_1 : i32, i32, i32
  }
  func.func @transform_7(%arg0: i32) -> (i32, i32, i32) {
    %c0_i32 = arith.constant 0 : i32
    %c0_i32_0 = arith.constant 0 : i32
    %c0_i32_1 = arith.constant 0 : i32
    %c0_i32_2 = arith.constant 0 : i32
    return %c0_i32, %c0_i32_0, %c0_i32_1 : i32, i32, i32
  }
  func.func @transform_8(%arg0: i32) -> (i32, i32, i32) {
    %c0_i32 = arith.constant 0 : i32
    %c0_i32_0 = arith.constant 0 : i32
    %c0_i32_1 = arith.constant 0 : i32
    %c0_i32_2 = arith.constant 0 : i32
    return %c0_i32, %c0_i32_0, %c0_i32_1 : i32, i32, i32
  }
  func.func @transform_9(%arg0: i32) -> (i32, i32, i32) {
    %c0_i32 = arith.constant 0 : i32
    %c0_i32_0 = arith.constant 0 : i32
    %c0_i32_1 = arith.constant 0 : i32
    %c0_i32_2 = arith.constant 0 : i32
    return %c0_i32, %c0_i32_0, %c0_i32_1 : i32, i32, i32
  }
  func.func @transform_10(%arg0: i32) -> (i32, i32) {
    %c0_i32 = arith.constant 0 : i32
    %c0_i32_0 = arith.constant 0 : i32
    return %arg0, %c0_i32 : i32, i32
  }
  func.func @transform_11(%arg0: i32) -> (i32, i32) {
    %c0_i32 = arith.constant 0 : i32
    %c0_i32_0 = arith.constant 0 : i32
    return %arg0, %c0_i32 : i32, i32
  }
}

</mosaic_0001>

<llo_original>
// kernel: _nice_forward.1
$region0: #{_nice_forward.1}
  #allocation0 [shape = 'u32[]', space=smem, size = 0x4, offset = 0x4, fixed_abs, tag = 'smem constant byte address 0x4 - core index']
  #allocation1 [shape = 'u32[144,128]{1,0:T(1,128)}', space=vmem, size = 0x12000, scoped, tag = 'internal scratch']
  %s0 = inlined_call_operand.vmem [shape: f32[256,16], index: 0, kind: input, shape index: {}]
  %s1 = inlined_call_operand.vmem [shape: f32[1,16], index: 1, kind: input, shape index: {}]
  %s2 = inlined_call_operand.vmem [shape: f32[4,16,32], index: 2, kind: input, shape index: {}]
  %s3 = inlined_call_operand.vmem [shape: f32[4,1,32], index: 3, kind: input, shape index: {}]
  %s4 = inlined_call_operand.vmem [shape: f32[4,2,32,32], index: 4, kind: input, shape index: {}]
  %s5 = inlined_call_operand.vmem [shape: f32[4,2,1,32], index: 5, kind: input, shape index: {}]
  %s6 = inlined_call_operand.vmem [shape: f32[4,32,16], index: 6, kind: input, shape index: {}]
  %s7 = inlined_call_operand.vmem [shape: f32[4,1,16], index: 7, kind: input, shape index: {}]
  %s8 = inlined_call_operand.vmem [shape: f32[4,32,16], index: 8, kind: input, shape index: {}]
  %s9 = inlined_call_operand.vmem [shape: f32[4,1,16], index: 9, kind: input, shape index: {}]
  %s10 = inlined_call_operand.vmem [shape: f32[256,16], index: 10, kind: output, shape index: {0}]
  %s11 = inlined_call_operand.hbm [shape: f32[1,1], index: 11, kind: output, shape index: {1}]
  %12 = xla_tuple %s10, %s11
  %s13 = sld [smem:[#allocation0]]
  $region58: #{_nice_forward.1} parent=0
    _
  %s15 = ssub.s32 1, %s13
  %s16 = scalar_select 0, %s15, %s13
  $region1: #{_nice_forward.1} parent=0
    #allocation2 [shape = 'u8[512]{0}', space=smem, size = 0x200, scoped, tag = 'output window, operand 1, single buffered']
    #allocation3 [shape = 's32[1]{0}', space=sflag, size = 0x4, scoped, tag = 'scoped memory for _nice_forward.1']
    %17 = vsyncpa [#allocation3], 0
    // Predicated region
    $region2: #{_nice_forward.1} parent=1 // pred_check
      _
    $region3: #{_nice_forward.1} parent=1 // pred_check_branch
      %19 = sbr.rel (0) target = $region5
    $region4: #{_nice_forward.1} parent=1 // pred_region
      _
    $region5: #{_nice_forward.1} parent=1 // pred_fallthru
      _
    // Predicated region
    $region6: #{_nice_forward.1} parent=1 // pred_check
      _
    $region7: #{_nice_forward.1} parent=1 // pred_check_branch
      %21 = sbr.rel (0) target = $region9
    $region8: #{_nice_forward.1} parent=1 // pred_region
      _
    $region9: #{_nice_forward.1} parent=1 // pred_fallthru
      _
    // Predicated region
    $region10: #{_nice_forward.1} parent=1 // pred_check
      _
    $region11: #{_nice_forward.1} parent=1 // pred_check_branch
      %23 = sbr.rel (0) target = $region13
    $region12: #{_nice_forward.1} parent=1 // pred_region
      _
    $region13: #{_nice_forward.1} parent=1 // pred_fallthru
      _
    // Predicated region
    $region14: #{_nice_forward.1} parent=1 // pred_check
      _
    $region15: #{_nice_forward.1} parent=1 // pred_check_branch
      %25 = sbr.rel (0) target = $region17
    $region16: #{_nice_forward.1} parent=1 // pred_region
      _
    $region17: #{_nice_forward.1} parent=1 // pred_fallthru
      _
    // Predicated region
    $region18: #{_nice_forward.1} parent=1 // pred_check
      _
    $region19: #{_nice_forward.1} parent=1 // pred_check_branch
      %27 = sbr.rel (0) target = $region21
    $region20: #{_nice_forward.1} parent=1 // pred_region
      _
    $region21: #{_nice_forward.1} parent=1 // pred_fallthru
      _
    // Predicated region
    $region22: #{_nice_forward.1} parent=1 // pred_check
      _
    $region23: #{_nice_forward.1} parent=1 // pred_check_branch
      %29 = sbr.rel (0) target = $region25
    $region24: #{_nice_forward.1} parent=1 // pred_region
      _
    $region25: #{_nice_forward.1} parent=1 // pred_fallthru
      _
    // Predicated region
    $region26: #{_nice_forward.1} parent=1 // pred_check
      _
    $region27: #{_nice_forward.1} parent=1 // pred_check_branch
      %31 = sbr.rel (0) target = $region29
    $region28: #{_nice_forward.1} parent=1 // pred_region
      _
    $region29: #{_nice_forward.1} parent=1 // pred_fallthru
      _
    // Predicated region
    $region30: #{_nice_forward.1} parent=1 // pred_check
      _
    $region31: #{_nice_forward.1} parent=1 // pred_check_branch
      %33 = sbr.rel (0) target = $region33
    $region32: #{_nice_forward.1} parent=1 // pred_region
      _
    $region33: #{_nice_forward.1} parent=1 // pred_fallthru
      _
    // Predicated region
    $region34: #{_nice_forward.1} parent=1 // pred_check
      _
    $region35: #{_nice_forward.1} parent=1 // pred_check_branch
      %35 = sbr.rel (0) target = $region37
    $region36: #{_nice_forward.1} parent=1 // pred_region
      _
    $region37: #{_nice_forward.1} parent=1 // pred_fallthru
      _
    // Predicated region
    $region38: #{_nice_forward.1} parent=1 // pred_check
      _
    $region39: #{_nice_forward.1} parent=1 // pred_check_branch
      %37 = sbr.rel (0) target = $region41
    $region40: #{_nice_forward.1} parent=1 // pred_region
      _
    $region41: #{_nice_forward.1} parent=1 // pred_fallthru
      _
    %v38 = vld [vmem:[%s0] sm:$0xff]
    %v39 = vld [vmem:[%s0 + $0x8] sm:$0xff]
    %v40 = vld [vmem:[%s0 + $0x10] sm:$0xff]
    %v41 = vld [vmem:[%s0 + $0x18] sm:$0xff]
    %v42 = vld [vmem:[%s0 + $0x20] sm:$0xff]
    %v43 = vld [vmem:[%s0 + $0x28] sm:$0xff]
    %v44 = vld [vmem:[%s0 + $0x30] sm:$0xff]
    %v45 = vld [vmem:[%s0 + $0x38] sm:$0xff]
    %v46 = vld [vmem:[%s0 + $0x40] sm:$0xff]
    %v47 = vld [vmem:[%s0 + $0x48] sm:$0xff]
    %v48 = vld [vmem:[%s0 + $0x50] sm:$0xff]
    %v49 = vld [vmem:[%s0 + $0x58] sm:$0xff]
    %v50 = vld [vmem:[%s0 + $0x60] sm:$0xff]
    %v51 = vld [vmem:[%s0 + $0x68] sm:$0xff]
    %v52 = vld [vmem:[%s0 + $0x70] sm:$0xff]
    %v53 = vld [vmem:[%s0 + $0x78] sm:$0xff]
    %v54 = vld [vmem:[%s0 + $0x80] sm:$0xff]
    %v55 = vld [vmem:[%s0 + $0x88] sm:$0xff]
    %v56 = vld [vmem:[%s0 + $0x90] sm:$0xff]
    %v57 = vld [vmem:[%s0 + $0x98] sm:$0xff]
    %v58 = vld [vmem:[%s0 + $0xa0] sm:$0xff]
    %v59 = vld [vmem:[%s0 + $0xa8] sm:$0xff]
    %v60 = vld [vmem:[%s0 + $0xb0] sm:$0xff]
    %v61 = vld [vmem:[%s0 + $0xb8] sm:$0xff]
    %v62 = vld [vmem:[%s0 + $0xc0] sm:$0xff]
    %v63 = vld [vmem:[%s0 + $0xc8] sm:$0xff]
    %v64 = vld [vmem:[%s0 + $0xd0] sm:$0xff]
    %v65 = vld [vmem:[%s0 + $0xd8] sm:$0xff]
    %v66 = vld [vmem:[%s0 + $0xe0] sm:$0xff]
    %v67 = vld [vmem:[%s0 + $0xe8] sm:$0xff]
    %v68 = vld [vmem:[%s0 + $0xf0] sm:$0xff]
    %v69 = vld [vmem:[%s0 + $0xf8] sm:$0xff]
    %v70 = vld [vmem:[%s1] sm:$0x1]
    %v72 = vlaneseq
    %v73 = vshrl.u32 %v72, 7
    %v74 = vsub.s32 0, %v73
    %v75 = vrot.slane %v70, %v74
    %v77 = vmul.f32 %v38, %v75
    %v78 = vmul.f32 %v39, %v75
    %v79 = vmul.f32 %v40, %v75
    %v80 = vmul.f32 %v41, %v75
    %v81 = vmul.f32 %v42, %v75
    %v82 = vmul.f32 %v43, %v75
    %v83 = vmul.f32 %v44, %v75
    %v84 = vmul.f32 %v45, %v75
    %v85 = vmul.f32 %v46, %v75
    %v86 = vmul.f32 %v47, %v75
    %v87 = vmul.f32 %v48, %v75
    %v88 = vmul.f32 %v49, %v75
    %v89 = vmul.f32 %v50, %v75
    %v90 = vmul.f32 %v51, %v75
    %v91 = vmul.f32 %v52, %v75
    %v92 = vmul.f32 %v53, %v75
    %v93 = vmul.f32 %v54, %v75
    %v94 = vmul.f32 %v55, %v75
    %v95 = vmul.f32 %v56, %v75
    %v96 = vmul.f32 %v57, %v75
    %v97 = vmul.f32 %v58, %v75
    %v98 = vmul.f32 %v59, %v75
    %v99 = vmul.f32 %v60, %v75
    %v100 = vmul.f32 %v61, %v75
    %v101 = vmul.f32 %v62, %v75
    %v102 = vmul.f32 %v63, %v75
    %v103 = vmul.f32 %v64, %v75
    %v104 = vmul.f32 %v65, %v75
    %v105 = vmul.f32 %v66, %v75
    %v106 = vmul.f32 %v67, %v75
    %v107 = vmul.f32 %v68, %v75
    %v108 = vmul.f32 %v69, %v75
    %s109 = scalar_lea.vmem %s2, 48
    %v110 = vld [vmem:[%s109] sm:$0xff]
    %v111 = vld [vmem:[%s109 + $0x8] sm:$0xff]
    %s112 = scalar_lea.vmem %s3, 3
    %v113 = vld [vmem:[%s112] sm:$0x1]
    %v115 = vlaneseq
    %v116 = vshrl.u32 %v115, 7
    %v117 = vsub.s32 0, %v116
    %v118 = vrot.slane %v113, %v117
    %vm120 = vcmask 130048
    %v122 = vsel %vm120, %v77, 0
    %v125 = vsel %vm120, %v78, 0
    %v128 = vsel %vm120, %v79, 0
    %v131 = vsel %vm120, %v80, 0
    %v134 = vsel %vm120, %v81, 0
    %v137 = vsel %vm120, %v82, 0
    %v140 = vsel %vm120, %v83, 0
    %v143 = vsel %vm120, %v84, 0
    %v146 = vsel %vm120, %v85, 0
    %v149 = vsel %vm120, %v86, 0
    %v152 = vsel %vm120, %v87, 0
    %v155 = vsel %vm120, %v88, 0
    %v158 = vsel %vm120, %v89, 0
    %v161 = vsel %vm120, %v90, 0
    %v164 = vsel %vm120, %v91, 0
    %v167 = vsel %vm120, %v92, 0
    %v170 = vsel %vm120, %v93, 0
    %v173 = vsel %vm120, %v94, 0
    %v176 = vsel %vm120, %v95, 0
    %v179 = vsel %vm120, %v96, 0
    %v182 = vsel %vm120, %v97, 0
    %v185 = vsel %vm120, %v98, 0
    %v188 = vsel %vm120, %v99, 0
    %v191 = vsel %vm120, %v100, 0
    %v194 = vsel %vm120, %v101, 0
    %v197 = vsel %vm120, %v102, 0
    %v200 = vsel %vm120, %v103, 0
    %v203 = vsel %vm120, %v104, 0
    %v206 = vsel %vm120, %v105, 0
    %v209 = vsel %vm120, %v106, 0
    %v212 = vsel %vm120, %v107, 0
    %v215 = vsel %vm120, %v108, 0
    %217 = vmatprep.subr.mxu0 0.0
    %218 = vmatpush1.msra.mxu0 0.0
    %219 = vmatprep.subr.mxu0 0.0
    %220 = vmatpush1.msra.mxu0 0.0
    %221 = vmatprep.subr.mxu0 0.0
    %222 = vmatpush1.msra.mxu0 0.0
    %223 = vmatprep.subr.mxu0 0.0
    %224 = vmatpush1.msra.mxu0 0.0
    %225 = vmatprep.subr.mxu0 0.0
    %226 = vmatpush1.msra.mxu0 0.0
    %227 = vmatprep.subr.mxu0 0.0
    %228 = vmatpush1.msra.mxu0 0.0
    %229 = vmatprep.subr.mxu0 0.0
    %230 = vmatpush1.msra.mxu0 0.0
    %231 = vmatprep.subr.mxu0 0.0
    %232 = vmatpush1.msra.mxu0 0.0
    %233 = vmatprep.subr.mxu0 0.0
    %234 = vmatpush1.msra.mxu0 0.0
    %235 = vmatprep.subr.mxu0 0.0
    %236 = vmatpush1.msra.mxu0 0.0
    %237 = vmatprep.subr.mxu0 0.0
    %238 = vmatpush1.msra.mxu0 0.0
    %239 = vmatprep.subr.mxu0 0.0
    %240 = vmatpush1.msra.mxu0 0.0
    %241 = vmatprep.subr.mxu0 0.0
    %242 = vmatpush1.msra.mxu0 0.0
    %243 = vmatprep.subr.mxu0 0.0
    %244 = vmatpush1.msra.mxu0 0.0
    %245 = vmatprep.subr.mxu0 0.0
    %246 = vmatpush1.msra.mxu0 %v111
    %247 = vmatprep.subr.mxu0 0.0
    %248 = vmatpush1.msra.mxu0 %v110
    %249 = vmatprep.subr.mxu0 0.0
    %250 = vmatpush2.msra.mxu0 0.0
    %251 = vmatprep.subr.mxu0 0.0
    %252 = vmatpush2.msra.mxu0 0.0
    %253 = vmatprep.subr.mxu0 0.0
    %254 = vmatpush2.msra.mxu0 0.0
    %255 = vmatprep.subr.mxu0 0.0
    %256 = vmatpush2.msra.mxu0 0.0
    %257 = vmatprep.subr.mxu0 0.0
    %258 = vmatpush2.msra.mxu0 0.0
    %259 = vmatprep.subr.mxu0 0.0
    %260 = vmatpush2.msra.mxu0 0.0
    %261 = vmatprep.subr.mxu0 0.0
    %262 = vmatpush2.msra.mxu0 0.0
    %263 = vmatprep.subr.mxu0 0.0
    %264 = vmatpush2.msra.mxu0 0.0
    %265 = vmatprep.subr.mxu0 0.0
    %266 = vmatpush2.msra.mxu0 0.0
    %267 = vmatprep.subr.mxu0 0.0
    %268 = vmatpush2.msra.mxu0 0.0
    %269 = vmatprep.subr.mxu0 0.0
    %270 = vmatpush2.msra.mxu0 0.0
    %271 = vmatprep.subr.mxu0 0.0
    %272 = vmatpush2.msra.mxu0 0.0
    %273 = vmatprep.subr.mxu0 0.0
    %274 = vmatpush2.msra.mxu0 0.0
    %275 = vmatprep.subr.mxu0 0.0
    %276 = vmatpush2.msra.mxu0 0.0
    %277 = vmatprep.subr.mxu0 0.0
    %278 = vmatpush2.msra.mxu0 0.0
    %279 = vmatprep.subr.mxu0 0.0
    %280 = vmatpush2.msra.mxu0 0.0
    %281 = vmatprep.mubr.f32.mxu0 0.0
    %282 = vmatmul.mubr.f32.gmra.mxu0 %v122
    %v283 = vpop.f32.mrf.mxu0
    %v284 = vadd.f32 %v118, %v283
    %v285 = vpop.f32.mrf.mxu0
    %286 = vmatprep.mubr.f32.mxu0 0.0
    %287 = vmatmul.mubr.f32.gmra.mxu0 %v125
    %v288 = vpop.f32.mrf.mxu0
    %v289 = vadd.f32 %v118, %v288
    %v290 = vpop.f32.mrf.mxu0
    %291 = vmatprep.mubr.f32.mxu0 0.0
    %292 = vmatmul.mubr.f32.gmra.mxu0 %v128
    %v293 = vpop.f32.mrf.mxu0
    %v294 = vadd.f32 %v118, %v293
    %v295 = vpop.f32.mrf.mxu0
    %296 = vmatprep.mubr.f32.mxu0 0.0
    %297 = vmatmul.mubr.f32.gmra.mxu0 %v131
    %v298 = vpop.f32.mrf.mxu0
    %v299 = vadd.f32 %v118, %v298
    %v300 = vpop.f32.mrf.mxu0
    %301 = vmatprep.mubr.f32.mxu0 0.0
    %302 = vmatmul.mubr.f32.gmra.mxu0 %v134
    %v303 = vpop.f32.mrf.mxu0
    %v304 = vadd.f32 %v118, %v303
    %v305 = vpop.f32.mrf.mxu0
    %306 = vmatprep.mubr.f32.mxu0 0.0
    %307 = vmatmul.mubr.f32.gmra.mxu0 %v137
    %v308 = vpop.f32.mrf.mxu0
    %v309 = vadd.f32 %v118, %v308
    %v310 = vpop.f32.mrf.mxu0
    %311 = vmatprep.mubr.f32.mxu0 0.0
    %312 = vmatmul.mubr.f32.gmra.mxu0 %v140
    %v313 = vpop.f32.mrf.mxu0
    %v314 = vadd.f32 %v118, %v313
    %v315 = vpop.f32.mrf.mxu0
    %316 = vmatprep.mubr.f32.mxu0 0.0
    %317 = vmatmul.mubr.f32.gmra.mxu0 %v143
    %v318 = vpop.f32.mrf.mxu0
    %v319 = vadd.f32 %v118, %v318
    %v320 = vpop.f32.mrf.mxu0
    %321 = vmatprep.mubr.f32.mxu0 0.0
    %322 = vmatmul.mubr.f32.gmra.mxu0 %v146
    %v323 = vpop.f32.mrf.mxu0
    %v324 = vadd.f32 %v118, %v323
    %v325 = vpop.f32.mrf.mxu0
    %326 = vmatprep.mubr.f32.mxu0 0.0
    %327 = vmatmul.mubr.f32.gmra.mxu0 %v149
    %v328 = vpop.f32.mrf.mxu0
    %v329 = vadd.f32 %v118, %v328
    %v330 = vpop.f32.mrf.mxu0
    %331 = vmatprep.mubr.f32.mxu0 0.0
    %332 = vmatmul.mubr.f32.gmra.mxu0 %v152
    %v333 = vpop.f32.mrf.mxu0
    %v334 = vadd.f32 %v118, %v333
    %v335 = vpop.f32.mrf.mxu0
    %336 = vmatprep.mubr.f32.mxu0 0.0
    %337 = vmatmul.mubr.f32.gmra.mxu0 %v155
    %v338 = vpop.f32.mrf.mxu0
    %v339 = vadd.f32 %v118, %v338
    %v340 = vpop.f32.mrf.mxu0
    %341 = vmatprep.mubr.f32.mxu0 0.0
    %342 = vmatmul.mubr.f32.gmra.mxu0 %v158
    %v343 = vpop.f32.mrf.mxu0
    %v344 = vadd.f32 %v118, %v343
    %v345 = vpop.f32.mrf.mxu0
    %346 = vmatprep.mubr.f32.mxu0 0.0
    %347 = vmatmul.mubr.f32.gmra.mxu0 %v161
    %v348 = vpop.f32.mrf.mxu0
    %v349 = vadd.f32 %v118, %v348
    %v350 = vpop.f32.mrf.mxu0
    %351 = vmatprep.mubr.f32.mxu0 0.0
    %352 = vmatmul.mubr.f32.gmra.mxu0 %v164
    %v353 = vpop.f32.mrf.mxu0
    %v354 = vadd.f32 %v118, %v353
    %v355 = vpop.f32.mrf.mxu0
    %356 = vmatprep.mubr.f32.mxu0 0.0
    %357 = vmatmul.mubr.f32.gmra.mxu0 %v167
    %v358 = vpop.f32.mrf.mxu0
    %v359 = vadd.f32 %v118, %v358
    %v360 = vpop.f32.mrf.mxu0
    %361 = vmatprep.mubr.f32.mxu0 0.0
    %362 = vmatmul.mubr.f32.gmra.mxu0 %v170
    %v363 = vpop.f32.mrf.mxu0
    %v364 = vadd.f32 %v118, %v363
    %v365 = vpop.f32.mrf.mxu0
    %366 = vmatprep.mubr.f32.mxu0 0.0
    %367 = vmatmul.mubr.f32.gmra.mxu0 %v173
    %v368 = vpop.f32.mrf.mxu0
    %v369 = vadd.f32 %v118, %v368
    %v370 = vpop.f32.mrf.mxu0
    %371 = vmatprep.mubr.f32.mxu0 0.0
    %372 = vmatmul.mubr.f32.gmra.mxu0 %v176
    %v373 = vpop.f32.mrf.mxu0
    %v374 = vadd.f32 %v118, %v373
    %v375 = vpop.f32.mrf.mxu0
    %376 = vmatprep.mubr.f32.mxu0 0.0
    %377 = vmatmul.mubr.f32.gmra.mxu0 %v179
    %v378 = vpop.f32.mrf.mxu0
    %v379 = vadd.f32 %v118, %v378
    %v380 = vpop.f32.mrf.mxu0
    %381 = vmatprep.mubr.f32.mxu0 0.0
    %382 = vmatmul.mubr.f32.gmra.mxu0 %v182
    %v383 = vpop.f32.mrf.mxu0
    %v384 = vadd.f32 %v118, %v383
    %v385 = vpop.f32.mrf.mxu0
    %386 = vmatprep.mubr.f32.mxu0 0.0
    %387 = vmatmul.mubr.f32.gmra.mxu0 %v185
    %v388 = vpop.f32.mrf.mxu0
    %v389 = vadd.f32 %v118, %v388
    %v390 = vpop.f32.mrf.mxu0
    %391 = vmatprep.mubr.f32.mxu0 0.0
    %392 = vmatmul.mubr.f32.gmra.mxu0 %v188
    %v393 = vpop.f32.mrf.mxu0
    %v394 = vadd.f32 %v118, %v393
    %v395 = vpop.f32.mrf.mxu0
    %396 = vmatprep.mubr.f32.mxu0 0.0
    %397 = vmatmul.mubr.f32.gmra.mxu0 %v191
    %v398 = vpop.f32.mrf.mxu0
    %v399 = vadd.f32 %v118, %v398
    %v400 = vpop.f32.mrf.mxu0
    %401 = vmatprep.mubr.f32.mxu0 0.0
    %402 = vmatmul.mubr.f32.gmra.mxu0 %v194
    %v403 = vpop.f32.mrf.mxu0
    %v404 = vadd.f32 %v118, %v403
    %v405 = vpop.f32.mrf.mxu0
    %406 = vmatprep.mubr.f32.mxu0 0.0
    %407 = vmatmul.mubr.f32.gmra.mxu0 %v197
    %v408 = vpop.f32.mrf.mxu0
    %v409 = vadd.f32 %v118, %v408
    %v410 = vpop.f32.mrf.mxu0
    %411 = vmatprep.mubr.f32.mxu0 0.0
    %412 = vmatmul.mubr.f32.gmra.mxu0 %v200
    %v413 = vpop.f32.mrf.mxu0
    %v414 = vadd.f32 %v118, %v413
    %v415 = vpop.f32.mrf.mxu0
    %416 = vmatprep.mubr.f32.mxu0 0.0
    %417 = vmatmul.mubr.f32.gmra.mxu0 %v203
    %v418 = vpop.f32.mrf.mxu0
    %v419 = vadd.f32 %v118, %v418
    %v420 = vpop.f32.mrf.mxu0
    %421 = vmatprep.mubr.f32.mxu0 0.0
    %422 = vmatmul.mubr.f32.gmra.mxu0 %v206
    %v423 = vpop.f32.mrf.mxu0
    %v424 = vadd.f32 %v118, %v423
    %v425 = vpop.f32.mrf.mxu0
    %426 = vmatprep.mubr.f32.mxu0 0.0
    %427 = vmatmul.mubr.f32.gmra.mxu0 %v209
    %v428 = vpop.f32.mrf.mxu0
    %v429 = vadd.f32 %v118, %v428
    %v430 = vpop.f32.mrf.mxu0
    %431 = vmatprep.mubr.f32.mxu0 0.0
    %432 = vmatmul.mubr.f32.gmra.mxu0 %v212
    %v433 = vpop.f32.mrf.mxu0
    %v434 = vadd.f32 %v118, %v433
    %v435 = vpop.f32.mrf.mxu0
    %436 = vmatprep.mubr.f32.mxu0 0.0
    %437 = vmatmul.mubr.f32.gmra.mxu0 %v215
    %v438 = vpop.f32.mrf.mxu0
    %v439 = vadd.f32 %v118, %v438
    %v440 = vpop.f32.mrf.mxu0
    %441 = vdwg.mxu0
    %vm442 = vcmp.gt.f32.partialorder %v284, 0.0
    %vm443 = vcmp.gt.f32.partialorder %v289, 0.0
    %vm444 = vcmp.gt.f32.partialorder %v294, 0.0
    %vm445 = vcmp.gt.f32.partialorder %v299, 0.0
    %vm446 = vcmp.gt.f32.partialorder %v304, 0.0
    %vm447 = vcmp.gt.f32.partialorder %v309, 0.0
    %vm448 = vcmp.gt.f32.partialorder %v314, 0.0
    %vm449 = vcmp.gt.f32.partialorder %v319, 0.0
    %vm450 = vcmp.gt.f32.partialorder %v324, 0.0
    %vm451 = vcmp.gt.f32.partialorder %v329, 0.0
    %vm452 = vcmp.gt.f32.partialorder %v334, 0.0
    %vm453 = vcmp.gt.f32.partialorder %v339, 0.0
    %vm454 = vcmp.gt.f32.partialorder %v344, 0.0
    %vm455 = vcmp.gt.f32.partialorder %v349, 0.0
    %vm456 = vcmp.gt.f32.partialorder %v354, 0.0
    %vm457 = vcmp.gt.f32.partialorder %v359, 0.0
    %vm458 = vcmp.gt.f32.partialorder %v364, 0.0
    %vm459 = vcmp.gt.f32.partialorder %v369, 0.0
    %vm460 = vcmp.gt.f32.partialorder %v374, 0.0
    %vm461 = vcmp.gt.f32.partialorder %v379, 0.0
    %vm462 = vcmp.gt.f32.partialorder %v384, 0.0
    %vm463 = vcmp.gt.f32.partialorder %v389, 0.0
    %vm464 = vcmp.gt.f32.partialorder %v394, 0.0
    %vm465 = vcmp.gt.f32.partialorder %v399, 0.0
    %vm466 = vcmp.gt.f32.partialorder %v404, 0.0
    %vm467 = vcmp.gt.f32.partialorder %v409, 0.0
    %vm468 = vcmp.gt.f32.partialorder %v414, 0.0
    %vm469 = vcmp.gt.f32.partialorder %v419, 0.0
    %vm470 = vcmp.gt.f32.partialorder %v424, 0.0
    %vm471 = vcmp.gt.f32.partialorder %v429, 0.0
    %vm472 = vcmp.gt.f32.partialorder %v434, 0.0
    %vm473 = vcmp.gt.f32.partialorder %v439, 0.0
    %v474 = vmul.f32 %v284, 0.01
    %v475 = vmul.f32 %v289, 0.01
    %v476 = vmul.f32 %v294, 0.01
    %v477 = vmul.f32 %v299, 0.01
    %v478 = vmul.f32 %v304, 0.01
    %v479 = vmul.f32 %v309, 0.01
    %v480 = vmul.f32 %v314, 0.01
    %v481 = vmul.f32 %v319, 0.01
    %v482 = vmul.f32 %v324, 0.01
    %v483 = vmul.f32 %v329, 0.01
    %v484 = vmul.f32 %v334, 0.01
    %v485 = vmul.f32 %v339, 0.01
    %v486 = vmul.f32 %v344, 0.01
    %v487 = vmul.f32 %v349, 0.01
    %v488 = vmul.f32 %v354, 0.01
    %v489 = vmul.f32 %v359, 0.01
    %v490 = vmul.f32 %v364, 0.01
    %v491 = vmul.f32 %v369, 0.01
    %v492 = vmul.f32 %v374, 0.01
    %v493 = vmul.f32 %v379, 0.01
    %v494 = vmul.f32 %v384, 0.01
    %v495 = vmul.f32 %v389, 0.01
    %v496 = vmul.f32 %v394, 0.01
    %v497 = vmul.f32 %v399, 0.01
    %v498 = vmul.f32 %v404, 0.01
    %v499 = vmul.f32 %v409, 0.01
    %v500 = vmul.f32 %v414, 0.01
    %v501 = vmul.f32 %v419, 0.01
    %v502 = vmul.f32 %v424, 0.01
    %v503 = vmul.f32 %v429, 0.01
    %v504 = vmul.f32 %v434, 0.01
    %v505 = vmul.f32 %v439, 0.01
    %v506 = vsel %vm442, %v284, %v474
    %v507 = vsel %vm443, %v289, %v475
    %v508 = vsel %vm444, %v294, %v476
    %v509 = vsel %vm445, %v299, %v477
    %v510 = vsel %vm446, %v304, %v478
    %v511 = vsel %vm447, %v309, %v479
    %v512 = vsel %vm448, %v314, %v480
    %v513 = vsel %vm449, %v319, %v481
    %v514 = vsel %vm450, %v324, %v482
    %v515 = vsel %vm451, %v329, %v483
    %v516 = vsel %vm452, %v334, %v484
    %v517 = vsel %vm453, %v339, %v485
    %v518 = vsel %vm454, %v344, %v486
    %v519 = vsel %vm455, %v349, %v487
    %v520 = vsel %vm456, %v354, %v488
    %v521 = vsel %vm457, %v359, %v489
    %v522 = vsel %vm458, %v364, %v490
    %v523 = vsel %vm459, %v369, %v491
    %v524 = vsel %vm460, %v374, %v492
    %v525 = vsel %vm461, %v379, %v493
    %v526 = vsel %vm462, %v384, %v494
    %v527 = vsel %vm463, %v389, %v495
    %v528 = vsel %vm464, %v394, %v496
    %v529 = vsel %vm465, %v399, %v497
    %v530 = vsel %vm466, %v404, %v498
    %v531 = vsel %vm467, %v409, %v499
    %v532 = vsel %vm468, %v414, %v500
    %v533 = vsel %vm469, %v419, %v501
    %v534 = vsel %vm470, %v424, %v502
    %v535 = vsel %vm471, %v429, %v503
    %v536 = vsel %vm472, %v434, %v504
    %v537 = vsel %vm473, %v439, %v505
    %s538 = scalar_lea.vmem %s4, 192
    %v539 = vld [vmem:[%s538] sm:$0xff]
    %v540 = vld [vmem:[%s538 + $0x8] sm:$0xff]
    %v541 = vld [vmem:[%s538 + $0x10] sm:$0xff]
    %v542 = vld [vmem:[%s538 + $0x18] sm:$0xff]
    %s543 = scalar_lea.vmem %s5, 6
    %v544 = vld [vmem:[%s543] sm:$0x1]
    %v546 = vlaneseq
    %v547 = vshrl.u32 %v546, 7
    %v548 = vsub.s32 0, %v547
    %v549 = vrot.slane %v544, %v548
    %vm551 = vcmask 261120
    %v553 = vsel %vm551, %v506, 0
    %v556 = vsel %vm551, %v507, 0
    %v559 = vsel %vm551, %v508, 0
    %v562 = vsel %vm551, %v509, 0
    %v565 = vsel %vm551, %v510, 0
    %v568 = vsel %vm551, %v511, 0
    %v571 = vsel %vm551, %v512, 0
    %v574 = vsel %vm551, %v513, 0
    %v577 = vsel %vm551, %v514, 0
    %v580 = vsel %vm551, %v515, 0
    %v583 = vsel %vm551, %v516, 0
    %v586 = vsel %vm551, %v517, 0
    %v589 = vsel %vm551, %v518, 0
    %v592 = vsel %vm551, %v519, 0
    %v595 = vsel %vm551, %v520, 0
    %v598 = vsel %vm551, %v521, 0
    %v601 = vsel %vm551, %v522, 0
    %v604 = vsel %vm551, %v523, 0
    %v607 = vsel %vm551, %v524, 0
    %v610 = vsel %vm551, %v525, 0
    %v613 = vsel %vm551, %v526, 0
    %v616 = vsel %vm551, %v527, 0
    %v619 = vsel %vm551, %v528, 0
    %v622 = vsel %vm551, %v529, 0
    %v625 = vsel %vm551, %v530, 0
    %v628 = vsel %vm551, %v531, 0
    %v631 = vsel %vm551, %v532, 0
    %v634 = vsel %vm551, %v533, 0
    %v637 = vsel %vm551, %v534, 0
    %v640 = vsel %vm551, %v535, 0
    %v643 = vsel %vm551, %v536, 0
    %v646 = vsel %vm551, %v537, 0
    %648 = vmatprep.subr.mxu0 0.0
    %649 = vmatpush1.msra.mxu0 0.0
    %650 = vmatprep.subr.mxu0 0.0
    %651 = vmatpush1.msra.mxu0 0.0
    %652 = vmatprep.subr.mxu0 0.0
    %653 = vmatpush1.msra.mxu0 0.0
    %654 = vmatprep.subr.mxu0 0.0
    %655 = vmatpush1.msra.mxu0 0.0
    %656 = vmatprep.subr.mxu0 0.0
    %657 = vmatpush1.msra.mxu0 0.0
    %658 = vmatprep.subr.mxu0 0.0
    %659 = vmatpush1.msra.mxu0 0.0
    %660 = vmatprep.subr.mxu0 0.0
    %661 = vmatpush1.msra.mxu0 0.0
    %662 = vmatprep.subr.mxu0 0.0
    %663 = vmatpush1.msra.mxu0 0.0
    %664 = vmatprep.subr.mxu0 0.0
    %665 = vmatpush1.msra.mxu0 0.0
    %666 = vmatprep.subr.mxu0 0.0
    %667 = vmatpush1.msra.mxu0 0.0
    %668 = vmatprep.subr.mxu0 0.0
    %669 = vmatpush1.msra.mxu0 0.0
    %670 = vmatprep.subr.mxu0 0.0
    %671 = vmatpush1.msra.mxu0 0.0
    %672 = vmatprep.subr.mxu0 0.0
    %673 = vmatpush1.msra.mxu0 %v542
    %674 = vmatprep.subr.mxu0 0.0
    %675 = vmatpush1.msra.mxu0 %v541
    %676 = vmatprep.subr.mxu0 0.0
    %677 = vmatpush1.msra.mxu0 %v540
    %678 = vmatprep.subr.mxu0 0.0
    %679 = vmatpush1.msra.mxu0 %v539
    %680 = vmatprep.subr.mxu0 0.0
    %681 = vmatpush2.msra.mxu0 0.0
    %682 = vmatprep.subr.mxu0 0.0
    %683 = vmatpush2.msra.mxu0 0.0
    %684 = vmatprep.subr.mxu0 0.0
    %685 = vmatpush2.msra.mxu0 0.0
    %686 = vmatprep.subr.mxu0 0.0
    %687 = vmatpush2.msra.mxu0 0.0
    %688 = vmatprep.subr.mxu0 0.0
    %689 = vmatpush2.msra.mxu0 0.0
    %690 = vmatprep.subr.mxu0 0.0
    %691 = vmatpush2.msra.mxu0 0.0
    %692 = vmatprep.subr.mxu0 0.0
    %693 = vmatpush2.msra.mxu0 0.0
    %694 = vmatprep.subr.mxu0 0.0
    %695 = vmatpush2.msra.mxu0 0.0
    %696 = vmatprep.subr.mxu0 0.0
    %697 = vmatpush2.msra.mxu0 0.0
    %698 = vmatprep.subr.mxu0 0.0
    %699 = vmatpush2.msra.mxu0 0.0
    %700 = vmatprep.subr.mxu0 0.0
    %701 = vmatpush2.msra.mxu0 0.0
    %702 = vmatprep.subr.mxu0 0.0
    %703 = vmatpush2.msra.mxu0 0.0
    %704 = vmatprep.subr.mxu0 0.0
    %705 = vmatpush2.msra.mxu0 0.0
    %706 = vmatprep.subr.mxu0 0.0
    %707 = vmatpush2.msra.mxu0 0.0
    %708 = vmatprep.subr.mxu0 0.0
    %709 = vmatpush2.msra.mxu0 0.0
    %710 = vmatprep.subr.mxu0 0.0
    %711 = vmatpush2.msra.mxu0 0.0
    %712 = vmatprep.mubr.f32.mxu0 0.0
    %713 = vmatmul.mubr.f32.gmra.mxu0 %v553
    %v714 = vpop.f32.mrf.mxu0
    %v715 = vadd.f32 %v549, %v714
    %v716 = vpop.f32.mrf.mxu0
    %717 = vmatprep.mubr.f32.mxu0 0.0
    %718 = vmatmul.mubr.f32.gmra.mxu0 %v556
    %v719 = vpop.f32.mrf.mxu0
    %v720 = vadd.f32 %v549, %v719
    %v721 = vpop.f32.mrf.mxu0
    %722 = vmatprep.mubr.f32.mxu0 0.0
    %723 = vmatmul.mubr.f32.gmra.mxu0 %v559
    %v724 = vpop.f32.mrf.mxu0
    %v725 = vadd.f32 %v549, %v724
    %v726 = vpop.f32.mrf.mxu0
    %727 = vmatprep.mubr.f32.mxu0 0.0
    %728 = vmatmul.mubr.f32.gmra.mxu0 %v562
    %v729 = vpop.f32.mrf.mxu0
    %v730 = vadd.f32 %v549, %v729
    %v731 = vpop.f32.mrf.mxu0
    %732 = vmatprep.mubr.f32.mxu0 0.0
    %733 = vmatmul.mubr.f32.gmra.mxu0 %v565
    %v734 = vpop.f32.mrf.mxu0
    %v735 = vadd.f32 %v549, %v734
    %v736 = vpop.f32.mrf.mxu0
    %737 = vmatprep.mubr.f32.mxu0 0.0
    %738 = vmatmul.mubr.f32.gmra.mxu0 %v568
    %v739 = vpop.f32.mrf.mxu0
    %v740 = vadd.f32 %v549, %v739
    %v741 = vpop.f32.mrf.mxu0
    %742 = vmatprep.mubr.f32.mxu0 0.0
    %743 = vmatmul.mubr.f32.gmra.mxu0 %v571
    %v744 = vpop.f32.mrf.mxu0
    %v745 = vadd.f32 %v549, %v744
    %v746 = vpop.f32.mrf.mxu0
    %747 = vmatprep.mubr.f32.mxu0 0.0
    %748 = vmatmul.mubr.f32.gmra.mxu0 %v574
    %v749 = vpop.f32.mrf.mxu0
    %v750 = vadd.f32 %v549, %v749
    %v751 = vpop.f32.mrf.mxu0
    %752 = vmatprep.mubr.f32.mxu0 0.0
    %753 = vmatmul.mubr.f32.gmra.mxu0 %v577
    %v754 = vpop.f32.mrf.mxu0
    %v755 = vadd.f32 %v549, %v754
    %v756 = vpop.f32.mrf.mxu0
    %757 = vmatprep.mubr.f32.mxu0 0.0
    %758 = vmatmul.mubr.f32.gmra.mxu0 %v580
    %v759 = vpop.f32.mrf.mxu0
    %v760 = vadd.f32 %v549, %v759
    %v761 = vpop.f32.mrf.mxu0
    %762 = vmatprep.mubr.f32.mxu0 0.0
    %763 = vmatmul.mubr.f32.gmra.mxu0 %v583
    %v764 = vpop.f32.mrf.mxu0
    %v765 = vadd.f32 %v549, %v764
    %v766 = vpop.f32.mrf.mxu0
    %767 = vmatprep.mubr.f32.mxu0 0.0
    %768 = vmatmul.mubr.f32.gmra.mxu0 %v586
    %v769 = vpop.f32.mrf.mxu0
    %v770 = vadd.f32 %v549, %v769
    %v771 = vpop.f32.mrf.mxu0
    %772 = vmatprep.mubr.f32.mxu0 0.0
    %773 = vmatmul.mubr.f32.gmra.mxu0 %v589
    %v774 = vpop.f32.mrf.mxu0
    %v775 = vadd.f32 %v549, %v774
    %v776 = vpop.f32.mrf.mxu0
    %777 = vmatprep.mubr.f32.mxu0 0.0
    %778 = vmatmul.mubr.f32.gmra.mxu0 %v592
    %v779 = vpop.f32.mrf.mxu0
    %v780 = vadd.f32 %v549, %v779
    %v781 = vpop.f32.mrf.mxu0
    %782 = vmatprep.mubr.f32.mxu0 0.0
    %783 = vmatmul.mubr.f32.gmra.mxu0 %v595
    %v784 = vpop.f32.mrf.mxu0
    %v785 = vadd.f32 %v549, %v784
    %v786 = vpop.f32.mrf.mxu0
    %787 = vmatprep.mubr.f32.mxu0 0.0
    %788 = vmatmul.mubr.f32.gmra.mxu0 %v598
    %v789 = vpop.f32.mrf.mxu0
    %v790 = vadd.f32 %v549, %v789
    %v791 = vpop.f32.mrf.mxu0
    %792 = vmatprep.mubr.f32.mxu0 0.0
    %793 = vmatmul.mubr.f32.gmra.mxu0 %v601
    %v794 = vpop.f32.mrf.mxu0
    %v795 = vadd.f32 %v549, %v794
    %v796 = vpop.f32.mrf.mxu0
    %797 = vmatprep.mubr.f32.mxu0 0.0
    %798 = vmatmul.mubr.f32.gmra.mxu0 %v604
    %v799 = vpop.f32.mrf.mxu0
    %v800 = vadd.f32 %v549, %v799
    %v801 = vpop.f32.mrf.mxu0
    %802 = vmatprep.mubr.f32.mxu0 0.0
    %803 = vmatmul.mubr.f32.gmra.mxu0 %v607
    %v804 = vpop.f32.mrf.mxu0
    %v805 = vadd.f32 %v549, %v804
    %v806 = vpop.f32.mrf.mxu0
    %807 = vmatprep.mubr.f32.mxu0 0.0
    %808 = vmatmul.mubr.f32.gmra.mxu0 %v610
    %v809 = vpop.f32.mrf.mxu0
    %v810 = vadd.f32 %v549, %v809
    %v811 = vpop.f32.mrf.mxu0
    %812 = vmatprep.mubr.f32.mxu0 0.0
    %813 = vmatmul.mubr.f32.gmra.mxu0 %v613
    %v814 = vpop.f32.mrf.mxu0
    %v815 = vadd.f32 %v549, %v814
    %v816 = vpop.f32.mrf.mxu0
    %817 = vmatprep.mubr.f32.mxu0 0.0
    %818 = vmatmul.mubr.f32.gmra.mxu0 %v616
    %v819 = vpop.f32.mrf.mxu0
    %v820 = vadd.f32 %v549, %v819
    %v821 = vpop.f32.mrf.mxu0
    %822 = vmatprep.mubr.f32.mxu0 0.0
    %823 = vmatmul.mubr.f32.gmra.mxu0 %v619
    %v824 = vpop.f32.mrf.mxu0
    %v825 = vadd.f32 %v549, %v824
    %v826 = vpop.f32.mrf.mxu0
    %827 = vmatprep.mubr.f32.mxu0 0.0
    %828 = vmatmul.mubr.f32.gmra.mxu0 %v622
    %v829 = vpop.f32.mrf.mxu0
    %v830 = vadd.f32 %v549, %v829
    %v831 = vpop.f32.mrf.mxu0
    %832 = vmatprep.mubr.f32.mxu0 0.0
    %833 = vmatmul.mubr.f32.gmra.mxu0 %v625
    %v834 = vpop.f32.mrf.mxu0
    %v835 = vadd.f32 %v549, %v834
    %v836 = vpop.f32.mrf.mxu0
    %837 = vmatprep.mubr.f32.mxu0 0.0
    %838 = vmatmul.mubr.f32.gmra.mxu0 %v628
    %v839 = vpop.f32.mrf.mxu0
    %v840 = vadd.f32 %v549, %v839
    %v841 = vpop.f32.mrf.mxu0
    %842 = vmatprep.mubr.f32.mxu0 0.0
    %843 = vmatmul.mubr.f32.gmra.mxu0 %v631
    %v844 = vpop.f32.mrf.mxu0
    %v845 = vadd.f32 %v549, %v844
    %v846 = vpop.f32.mrf.mxu0
    %847 = vmatprep.mubr.f32.mxu0 0.0
    %848 = vmatmul.mubr.f32.gmra.mxu0 %v634
    %v849 = vpop.f32.mrf.mxu0
    %v850 = vadd.f32 %v549, %v849
    %v851 = vpop.f32.mrf.mxu0
    %852 = vmatprep.mubr.f32.mxu0 0.0
    %853 = vmatmul.mubr.f32.gmra.mxu0 %v637
    %v854 = vpop.f32.mrf.mxu0
    %v855 = vadd.f32 %v549, %v854
    %v856 = vpop.f32.mrf.mxu0
    %857 = vmatprep.mubr.f32.mxu0 0.0
    %858 = vmatmul.mubr.f32.gmra.mxu0 %v640
    %v859 = vpop.f32.mrf.mxu0
    %v860 = vadd.f32 %v549, %v859
    %v861 = vpop.f32.mrf.mxu0
    %862 = vmatprep.mubr.f32.mxu0 0.0
    %863 = vmatmul.mubr.f32.gmra.mxu0 %v643
    %v864 = vpop.f32.mrf.mxu0
    %v865 = vadd.f32 %v549, %v864
    %v866 = vpop.f32.mrf.mxu0
    %867 = vmatprep.mubr.f32.mxu0 0.0
    %868 = vmatmul.mubr.f32.gmra.mxu0 %v646
    %v869 = vpop.f32.mrf.mxu0
    %v870 = vadd.f32 %v549, %v869
    %v871 = vpop.f32.mrf.mxu0
    %872 = vdwg.mxu0
    %vm873 = vcmp.gt.f32.partialorder %v715, 0.0
    %vm874 = vcmp.gt.f32.partialorder %v720, 0.0
    %vm875 = vcmp.gt.f32.partialorder %v725, 0.0
    %vm876 = vcmp.gt.f32.partialorder %v730, 0.0
    %vm877 = vcmp.gt.f32.partialorder %v735, 0.0
    %vm878 = vcmp.gt.f32.partialorder %v740, 0.0
    %vm879 = vcmp.gt.f32.partialorder %v745, 0.0
    %vm880 = vcmp.gt.f32.partialorder %v750, 0.0
    %vm881 = vcmp.gt.f32.partialorder %v755, 0.0
    %vm882 = vcmp.gt.f32.partialorder %v760, 0.0
    %vm883 = vcmp.gt.f32.partialorder %v765, 0.0
    %vm884 = vcmp.gt.f32.partialorder %v770, 0.0
    %vm885 = vcmp.gt.f32.partialorder %v775, 0.0
    %vm886 = vcmp.gt.f32.partialorder %v780, 0.0
    %vm887 = vcmp.gt.f32.partialorder %v785, 0.0
    %vm888 = vcmp.gt.f32.partialorder %v790, 0.0
    %vm889 = vcmp.gt.f32.partialorder %v795, 0.0
    %vm890 = vcmp.gt.f32.partialorder %v800, 0.0
    %vm891 = vcmp.gt.f32.partialorder %v805, 0.0
    %vm892 = vcmp.gt.f32.partialorder %v810, 0.0
    %vm893 = vcmp.gt.f32.partialorder %v815, 0.0
    %vm894 = vcmp.gt.f32.partialorder %v820, 0.0
    %vm895 = vcmp.gt.f32.partialorder %v825, 0.0
    %vm896 = vcmp.gt.f32.partialorder %v830, 0.0
    %vm897 = vcmp.gt.f32.partialorder %v835, 0.0
    %vm898 = vcmp.gt.f32.partialorder %v840, 0.0
    %vm899 = vcmp.gt.f32.partialorder %v845, 0.0
    %vm900 = vcmp.gt.f32.partialorder %v850, 0.0
    %vm901 = vcmp.gt.f32.partialorder %v855, 0.0
    %vm902 = vcmp.gt.f32.partialorder %v860, 0.0
    %vm903 = vcmp.gt.f32.partialorder %v865, 0.0
    %vm904 = vcmp.gt.f32.partialorder %v870, 0.0
    %v905 = vmul.f32 %v715, 0.01
    %v906 = vmul.f32 %v720, 0.01
    %v907 = vmul.f32 %v725, 0.01
    %v908 = vmul.f32 %v730, 0.01
    %v909 = vmul.f32 %v735, 0.01
    %v910 = vmul.f32 %v740, 0.01
    %v911 = vmul.f32 %v745, 0.01
    %v912 = vmul.f32 %v750, 0.01
    %v913 = vmul.f32 %v755, 0.01
    %v914 = vmul.f32 %v760, 0.01
    %v915 = vmul.f32 %v765, 0.01
    %v916 = vmul.f32 %v770, 0.01
    %v917 = vmul.f32 %v775, 0.01
    %v918 = vmul.f32 %v780, 0.01
    %v919 = vmul.f32 %v785, 0.01
    %v920 = vmul.f32 %v790, 0.01
    %v921 = vmul.f32 %v795, 0.01
    %v922 = vmul.f32 %v800, 0.01
    %v923 = vmul.f32 %v805, 0.01
    %v924 = vmul.f32 %v810, 0.01
    %v925 = vmul.f32 %v815, 0.01
    %v926 = vmul.f32 %v820, 0.01
    %v927 = vmul.f32 %v825, 0.01
    %v928 = vmul.f32 %v830, 0.01
    %v929 = vmul.f32 %v835, 0.01
    %v930 = vmul.f32 %v840, 0.01
    %v931 = vmul.f32 %v845, 0.01
    %v932 = vmul.f32 %v850, 0.01
    %v933 = vmul.f32 %v855, 0.01
    %v934 = vmul.f32 %v860, 0.01
    %v935 = vmul.f32 %v865, 0.01
    %v936 = vmul.f32 %v870, 0.01
    %v937 = vsel %vm873, %v715, %v905
    %v938 = vsel %vm874, %v720, %v906
    %v939 = vsel %vm875, %v725, %v907
    %v940 = vsel %vm876, %v730, %v908
    %v941 = vsel %vm877, %v735, %v909
    %v942 = vsel %vm878, %v740, %v910
    %v943 = vsel %vm879, %v745, %v911
    %v944 = vsel %vm880, %v750, %v912
    %v945 = vsel %vm881, %v755, %v913
    %v946 = vsel %vm882, %v760, %v914
    %v947 = vsel %vm883, %v765, %v915
    %v948 = vsel %vm884, %v770, %v916
    %v949 = vsel %vm885, %v775, %v917
    %v950 = vsel %vm886, %v780, %v918
    %v951 = vsel %vm887, %v785, %v919
    %v952 = vsel %vm888, %v790, %v920
    %v953 = vsel %vm889, %v795, %v921
    %v954 = vsel %vm890, %v800, %v922
    %v955 = vsel %vm891, %v805, %v923
    %v956 = vsel %vm892, %v810, %v924
    %v957 = vsel %vm893, %v815, %v925
    %v958 = vsel %vm894, %v820, %v926
    %v959 = vsel %vm895, %v825, %v927
    %v960 = vsel %vm896, %v830, %v928
    %v961 = vsel %vm897, %v835, %v929
    %v962 = vsel %vm898, %v840, %v930
    %v963 = vsel %vm899, %v845, %v931
    %v964 = vsel %vm900, %v850, %v932
    %v965 = vsel %vm901, %v855, %v933
    %v966 = vsel %vm902, %v860, %v934
    %v967 = vsel %vm903, %v865, %v935
    %v968 = vsel %vm904, %v870, %v936
    %s969 = scalar_lea.vmem %s4, 224
    %v970 = vld [vmem:[%s969] sm:$0xff]
    %v971 = vld [vmem:[%s969 + $0x8] sm:$0xff]
    %v972 = vld [vmem:[%s969 + $0x10] sm:$0xff]
    %v973 = vld [vmem:[%s969 + $0x18] sm:$0xff]
    %s974 = scalar_lea.vmem %s5, 7
    %v975 = vld [vmem:[%s974] sm:$0x1]
    %v977 = vlaneseq
    %v978 = vshrl.u32 %v977, 7
    %v979 = vsub.s32 0, %v978
    %v980 = vrot.slane %v975, %v979
    %v983 = vsel %vm551, %v937, 0
    %v986 = vsel %vm551, %v938, 0
    %v989 = vsel %vm551, %v939, 0
    %v992 = vsel %vm551, %v940, 0
    %v995 = vsel %vm551, %v941, 0
    %v998 = vsel %vm551, %v942, 0
    %v1001 = vsel %vm551, %v943, 0
    %v1004 = vsel %vm551, %v944, 0
    %v1007 = vsel %vm551, %v945, 0
    %v1010 = vsel %vm551, %v946, 0
    %v1013 = vsel %vm551, %v947, 0
    %v1016 = vsel %vm551, %v948, 0
    %v1019 = vsel %vm551, %v949, 0
    %v1022 = vsel %vm551, %v950, 0
    %v1025 = vsel %vm551, %v951, 0
    %v1028 = vsel %vm551, %v952, 0
    %v1031 = vsel %vm551, %v953, 0
    %v1034 = vsel %vm551, %v954, 0
    %v1037 = vsel %vm551, %v955, 0
    %v1040 = vsel %vm551, %v956, 0
    %v1043 = vsel %vm551, %v957, 0
    %v1046 = vsel %vm551, %v958, 0
    %v1049 = vsel %vm551, %v959, 0
    %v1052 = vsel %vm551, %v960, 0
    %v1055 = vsel %vm551, %v961, 0
    %v1058 = vsel %vm551, %v962, 0
    %v1061 = vsel %vm551, %v963, 0
    %v1064 = vsel %vm551, %v964, 0
    %v1067 = vsel %vm551, %v965, 0
    %v1070 = vsel %vm551, %v966, 0
    %v1073 = vsel %vm551, %v967, 0
    %v1076 = vsel %vm551, %v968, 0
    %1078 = vmatprep.subr.mxu0 0.0
    %1079 = vmatpush1.msra.mxu0 0.0
    %1080 = vmatprep.subr.mxu0 0.0
    %1081 = vmatpush1.msra.mxu0 0.0
    %1082 = vmatprep.subr.mxu0 0.0
    %1083 = vmatpush1.msra.mxu0 0.0
    %1084 = vmatprep.subr.mxu0 0.0
    %1085 = vmatpush1.msra.mxu0 0.0
    %1086 = vmatprep.subr.mxu0 0.0
    %1087 = vmatpush1.msra.mxu0 0.0
    %1088 = vmatprep.subr.mxu0 0.0
    %1089 = vmatpush1.msra.mxu0 0.0
    %1090 = vmatprep.subr.mxu0 0.0
    %1091 = vmatpush1.msra.mxu0 0.0
    %1092 = vmatprep.subr.mxu0 0.0
    %1093 = vmatpush1.msra.mxu0 0.0
    %1094 = vmatprep.subr.mxu0 0.0
    %1095 = vmatpush1.msra.mxu0 0.0
    %1096 = vmatprep.subr.mxu0 0.0
    %1097 = vmatpush1.msra.mxu0 0.0
    %1098 = vmatprep.subr.mxu0 0.0
    %1099 = vmatpush1.msra.mxu0 0.0
    %1100 = vmatprep.subr.mxu0 0.0
    %1101 = vmatpush1.msra.mxu0 0.0
    %1102 = vmatprep.subr.mxu0 0.0
    %1103 = vmatpush1.msra.mxu0 %v973
    %1104 = vmatprep.subr.mxu0 0.0
    %1105 = vmatpush1.msra.mxu0 %v972
    %1106 = vmatprep.subr.mxu0 0.0
    %1107 = vmatpush1.msra.mxu0 %v971
    %1108 = vmatprep.subr.mxu0 0.0
    %1109 = vmatpush1.msra.mxu0 %v970
    %1110 = vmatprep.subr.mxu0 0.0
    %1111 = vmatpush2.msra.mxu0 0.0
    %1112 = vmatprep.subr.mxu0 0.0
    %1113 = vmatpush2.msra.mxu0 0.0
    %1114 = vmatprep.subr.mxu0 0.0
    %1115 = vmatpush2.msra.mxu0 0.0
    %1116 = vmatprep.subr.mxu0 0.0
    %1117 = vmatpush2.msra.mxu0 0.0
    %1118 = vmatprep.subr.mxu0 0.0
    %1119 = vmatpush2.msra.mxu0 0.0
    %1120 = vmatprep.subr.mxu0 0.0
    %1121 = vmatpush2.msra.mxu0 0.0
    %1122 = vmatprep.subr.mxu0 0.0
    %1123 = vmatpush2.msra.mxu0 0.0
    %1124 = vmatprep.subr.mxu0 0.0
    %1125 = vmatpush2.msra.mxu0 0.0
    %1126 = vmatprep.subr.mxu0 0.0
    %1127 = vmatpush2.msra.mxu0 0.0
    %1128 = vmatprep.subr.mxu0 0.0
    %1129 = vmatpush2.msra.mxu0 0.0
    %1130 = vmatprep.subr.mxu0 0.0
    %1131 = vmatpush2.msra.mxu0 0.0
    %1132 = vmatprep.subr.mxu0 0.0
    %1133 = vmatpush2.msra.mxu0 0.0
    %1134 = vmatprep.subr.mxu0 0.0
    %1135 = vmatpush2.msra.mxu0 0.0
    %1136 = vmatprep.subr.mxu0 0.0
    %1137 = vmatpush2.msra.mxu0 0.0
    %1138 = vmatprep.subr.mxu0 0.0
    %1139 = vmatpush2.msra.mxu0 0.0
    %1140 = vmatprep.subr.mxu0 0.0
    %1141 = vmatpush2.msra.mxu0 0.0
    %1142 = vmatprep.mubr.f32.mxu0 0.0
    %1143 = vmatmul.mubr.f32.gmra.mxu0 %v983
    %v1144 = vpop.f32.mrf.mxu0
    %v1145 = vadd.f32 %v980, %v1144
    %v1146 = vpop.f32.mrf.mxu0
    %1147 = vmatprep.mubr.f32.mxu0 0.0
    %1148 = vmatmul.mubr.f32.gmra.mxu0 %v986
    %v1149 = vpop.f32.mrf.mxu0
    %v1150 = vadd.f32 %v980, %v1149
    %v1151 = vpop.f32.mrf.mxu0
    %1152 = vmatprep.mubr.f32.mxu0 0.0
    %1153 = vmatmul.mubr.f32.gmra.mxu0 %v989
    %v1154 = vpop.f32.mrf.mxu0
    %v1155 = vadd.f32 %v980, %v1154
    %v1156 = vpop.f32.mrf.mxu0
    %1157 = vmatprep.mubr.f32.mxu0 0.0
    %1158 = vmatmul.mubr.f32.gmra.mxu0 %v992
    %v1159 = vpop.f32.mrf.mxu0
    %v1160 = vadd.f32 %v980, %v1159
    %v1161 = vpop.f32.mrf.mxu0
    %1162 = vmatprep.mubr.f32.mxu0 0.0
    %1163 = vmatmul.mubr.f32.gmra.mxu0 %v995
    %v1164 = vpop.f32.mrf.mxu0
    %v1165 = vadd.f32 %v980, %v1164
    %v1166 = vpop.f32.mrf.mxu0
    %1167 = vmatprep.mubr.f32.mxu0 0.0
    %1168 = vmatmul.mubr.f32.gmra.mxu0 %v998
    %v1169 = vpop.f32.mrf.mxu0
    %v1170 = vadd.f32 %v980, %v1169
    %v1171 = vpop.f32.mrf.mxu0
    %1172 = vmatprep.mubr.f32.mxu0 0.0
    %1173 = vmatmul.mubr.f32.gmra.mxu0 %v1001
    %v1174 = vpop.f32.mrf.mxu0
    %v1175 = vadd.f32 %v980, %v1174
    %v1176 = vpop.f32.mrf.mxu0
    %1177 = vmatprep.mubr.f32.mxu0 0.0
    %1178 = vmatmul.mubr.f32.gmra.mxu0 %v1004
    %v1179 = vpop.f32.mrf.mxu0
    %v1180 = vadd.f32 %v980, %v1179
    %v1181 = vpop.f32.mrf.mxu0
    %1182 = vmatprep.mubr.f32.mxu0 0.0
    %1183 = vmatmul.mubr.f32.gmra.mxu0 %v1007
    %v1184 = vpop.f32.mrf.mxu0
    %v1185 = vadd.f32 %v980, %v1184
    %v1186 = vpop.f32.mrf.mxu0
    %1187 = vmatprep.mubr.f32.mxu0 0.0
    %1188 = vmatmul.mubr.f32.gmra.mxu0 %v1010
    %v1189 = vpop.f32.mrf.mxu0
    %v1190 = vadd.f32 %v980, %v1189
    %v1191 = vpop.f32.mrf.mxu0
    %1192 = vmatprep.mubr.f32.mxu0 0.0
    %1193 = vmatmul.mubr.f32.gmra.mxu0 %v1013
    %v1194 = vpop.f32.mrf.mxu0
    %v1195 = vadd.f32 %v980, %v1194
    %v1196 = vpop.f32.mrf.mxu0
    %1197 = vmatprep.mubr.f32.mxu0 0.0
    %1198 = vmatmul.mubr.f32.gmra.mxu0 %v1016
    %v1199 = vpop.f32.mrf.mxu0
    %v1200 = vadd.f32 %v980, %v1199
    %v1201 = vpop.f32.mrf.mxu0
    %1202 = vmatprep.mubr.f32.mxu0 0.0
    %1203 = vmatmul.mubr.f32.gmra.mxu0 %v1019
    %v1204 = vpop.f32.mrf.mxu0
    %v1205 = vadd.f32 %v980, %v1204
    %v1206 = vpop.f32.mrf.mxu0
    %1207 = vmatprep.mubr.f32.mxu0 0.0
    %1208 = vmatmul.mubr.f32.gmra.mxu0 %v1022
    %v1209 = vpop.f32.mrf.mxu0
    %v1210 = vadd.f32 %v980, %v1209
    %v1211 = vpop.f32.mrf.mxu0
    %1212 = vmatprep.mubr.f32.mxu0 0.0
    %1213 = vmatmul.mubr.f32.gmra.mxu0 %v1025
    %v1214 = vpop.f32.mrf.mxu0
    %v1215 = vadd.f32 %v980, %v1214
    %v1216 = vpop.f32.mrf.mxu0
    %1217 = vmatprep.mubr.f32.mxu0 0.0
    %1218 = vmatmul.mubr.f32.gmra.mxu0 %v1028
    %v1219 = vpop.f32.mrf.mxu0
    %v1220 = vadd.f32 %v980, %v1219
    %v1221 = vpop.f32.mrf.mxu0
    %1222 = vmatprep.mubr.f32.mxu0 0.0
    %1223 = vmatmul.mubr.f32.gmra.mxu0 %v1031
    %v1224 = vpop.f32.mrf.mxu0
    %v1225 = vadd.f32 %v980, %v1224
    %v1226 = vpop.f32.mrf.mxu0
    %1227 = vmatprep.mubr.f32.mxu0 0.0
    %1228 = vmatmul.mubr.f32.gmra.mxu0 %v1034
    %v1229 = vpop.f32.mrf.mxu0
    %v1230 = vadd.f32 %v980, %v1229
    %v1231 = vpop.f32.mrf.mxu0
    %1232 = vmatprep.mubr.f32.mxu0 0.0
    %1233 = vmatmul.mubr.f32.gmra.mxu0 %v1037
    %v1234 = vpop.f32.mrf.mxu0
    %v1235 = vadd.f32 %v980, %v1234
    %v1236 = vpop.f32.mrf.mxu0
    %1237 = vmatprep.mubr.f32.mxu0 0.0
    %1238 = vmatmul.mubr.f32.gmra.mxu0 %v1040
    %v1239 = vpop.f32.mrf.mxu0
    %v1240 = vadd.f32 %v980, %v1239
    %v1241 = vpop.f32.mrf.mxu0
    %1242 = vmatprep.mubr.f32.mxu0 0.0
    %1243 = vmatmul.mubr.f32.gmra.mxu0 %v1043
    %v1244 = vpop.f32.mrf.mxu0
    %v1245 = vadd.f32 %v980, %v1244
    %v1246 = vpop.f32.mrf.mxu0
    %1247 = vmatprep.mubr.f32.mxu0 0.0
    %1248 = vmatmul.mubr.f32.gmra.mxu0 %v1046
    %v1249 = vpop.f32.mrf.mxu0
    %v1250 = vadd.f32 %v980, %v1249
    %v1251 = vpop.f32.mrf.mxu0
    %1252 = vmatprep.mubr.f32.mxu0 0.0
    %1253 = vmatmul.mubr.f32.gmra.mxu0 %v1049
    %v1254 = vpop.f32.mrf.mxu0
    %v1255 = vadd.f32 %v980, %v1254
    %v1256 = vpop.f32.mrf.mxu0
    %1257 = vmatprep.mubr.f32.mxu0 0.0
    %1258 = vmatmul.mubr.f32.gmra.mxu0 %v1052
    %v1259 = vpop.f32.mrf.mxu0
    %v1260 = vadd.f32 %v980, %v1259
    %v1261 = vpop.f32.mrf.mxu0
    %1262 = vmatprep.mubr.f32.mxu0 0.0
    %1263 = vmatmul.mubr.f32.gmra.mxu0 %v1055
    %v1264 = vpop.f32.mrf.mxu0
    %v1265 = vadd.f32 %v980, %v1264
    %v1266 = vpop.f32.mrf.mxu0
    %1267 = vmatprep.mubr.f32.mxu0 0.0
    %1268 = vmatmul.mubr.f32.gmra.mxu0 %v1058
    %v1269 = vpop.f32.mrf.mxu0
    %v1270 = vadd.f32 %v980, %v1269
    %v1271 = vpop.f32.mrf.mxu0
    %1272 = vmatprep.mubr.f32.mxu0 0.0
    %1273 = vmatmul.mubr.f32.gmra.mxu0 %v1061
    %v1274 = vpop.f32.mrf.mxu0
    %v1275 = vadd.f32 %v980, %v1274
    %v1276 = vpop.f32.mrf.mxu0
    %1277 = vmatprep.mubr.f32.mxu0 0.0
    %1278 = vmatmul.mubr.f32.gmra.mxu0 %v1064
    %v1279 = vpop.f32.mrf.mxu0
    %v1280 = vadd.f32 %v980, %v1279
    %v1281 = vpop.f32.mrf.mxu0
    %1282 = vmatprep.mubr.f32.mxu0 0.0
    %1283 = vmatmul.mubr.f32.gmra.mxu0 %v1067
    %v1284 = vpop.f32.mrf.mxu0
    %v1285 = vadd.f32 %v980, %v1284
    %v1286 = vpop.f32.mrf.mxu0
    %1287 = vmatprep.mubr.f32.mxu0 0.0
    %1288 = vmatmul.mubr.f32.gmra.mxu0 %v1070
    %v1289 = vpop.f32.mrf.mxu0
    %v1290 = vadd.f32 %v980, %v1289
    %v1291 = vpop.f32.mrf.mxu0
    %1292 = vmatprep.mubr.f32.mxu0 0.0
    %1293 = vmatmul.mubr.f32.gmra.mxu0 %v1073
    %v1294 = vpop.f32.mrf.mxu0
    %v1295 = vadd.f32 %v980, %v1294
    %v1296 = vpop.f32.mrf.mxu0
    %1297 = vmatprep.mubr.f32.mxu0 0.0
    %1298 = vmatmul.mubr.f32.gmra.mxu0 %v1076
    %v1299 = vpop.f32.mrf.mxu0
    %v1300 = vadd.f32 %v980, %v1299
    %v1301 = vpop.f32.mrf.mxu0
    %1302 = vdwg.mxu0
    %vm1303 = vcmp.gt.f32.partialorder %v1145, 0.0
    %vm1304 = vcmp.gt.f32.partialorder %v1150, 0.0
    %vm1305 = vcmp.gt.f32.partialorder %v1155, 0.0
    %vm1306 = vcmp.gt.f32.partialorder %v1160, 0.0
    %vm1307 = vcmp.gt.f32.partialorder %v1165, 0.0
    %vm1308 = vcmp.gt.f32.partialorder %v1170, 0.0
    %vm1309 = vcmp.gt.f32.partialorder %v1175, 0.0
    %vm1310 = vcmp.gt.f32.partialorder %v1180, 0.0
    %vm1311 = vcmp.gt.f32.partialorder %v1185, 0.0
    %vm1312 = vcmp.gt.f32.partialorder %v1190, 0.0
    %vm1313 = vcmp.gt.f32.partialorder %v1195, 0.0
    %vm1314 = vcmp.gt.f32.partialorder %v1200, 0.0
    %vm1315 = vcmp.gt.f32.partialorder %v1205, 0.0
    %vm1316 = vcmp.gt.f32.partialorder %v1210, 0.0
    %vm1317 = vcmp.gt.f32.partialorder %v1215, 0.0
    %vm1318 = vcmp.gt.f32.partialorder %v1220, 0.0
    %vm1319 = vcmp.gt.f32.partialorder %v1225, 0.0
    %vm1320 = vcmp.gt.f32.partialorder %v1230, 0.0
    %vm1321 = vcmp.gt.f32.partialorder %v1235, 0.0
    %vm1322 = vcmp.gt.f32.partialorder %v1240, 0.0
    %vm1323 = vcmp.gt.f32.partialorder %v1245, 0.0
    %vm1324 = vcmp.gt.f32.partialorder %v1250, 0.0
    %vm1325 = vcmp.gt.f32.partialorder %v1255, 0.0
    %vm1326 = vcmp.gt.f32.partialorder %v1260, 0.0
    %vm1327 = vcmp.gt.f32.partialorder %v1265, 0.0
    %vm1328 = vcmp.gt.f32.partialorder %v1270, 0.0
    %vm1329 = vcmp.gt.f32.partialorder %v1275, 0.0
    %vm1330 = vcmp.gt.f32.partialorder %v1280, 0.0
    %vm1331 = vcmp.gt.f32.partialorder %v1285, 0.0
    %vm1332 = vcmp.gt.f32.partialorder %v1290, 0.0
    %vm1333 = vcmp.gt.f32.partialorder %v1295, 0.0
    %vm1334 = vcmp.gt.f32.partialorder %v1300, 0.0
    %v1335 = vmul.f32 %v1145, 0.01
    %v1336 = vmul.f32 %v1150, 0.01
    %v1337 = vmul.f32 %v1155, 0.01
    %v1338 = vmul.f32 %v1160, 0.01
    %v1339 = vmul.f32 %v1165, 0.01
    %v1340 = vmul.f32 %v1170, 0.01
    %v1341 = vmul.f32 %v1175, 0.01
    %v1342 = vmul.f32 %v1180, 0.01
    %v1343 = vmul.f32 %v1185, 0.01
    %v1344 = vmul.f32 %v1190, 0.01
    %v1345 = vmul.f32 %v1195, 0.01
    %v1346 = vmul.f32 %v1200, 0.01
    %v1347 = vmul.f32 %v1205, 0.01
    %v1348 = vmul.f32 %v1210, 0.01
    %v1349 = vmul.f32 %v1215, 0.01
    %v1350 = vmul.f32 %v1220, 0.01
    %v1351 = vmul.f32 %v1225, 0.01
    %v1352 = vmul.f32 %v1230, 0.01
    %v1353 = vmul.f32 %v1235, 0.01
    %v1354 = vmul.f32 %v1240, 0.01
    %v1355 = vmul.f32 %v1245, 0.01
    %v1356 = vmul.f32 %v1250, 0.01
    %v1357 = vmul.f32 %v1255, 0.01
    %v1358 = vmul.f32 %v1260, 0.01
    %v1359 = vmul.f32 %v1265, 0.01
    %v1360 = vmul.f32 %v1270, 0.01
    %v1361 = vmul.f32 %v1275, 0.01
    %v1362 = vmul.f32 %v1280, 0.01
    %v1363 = vmul.f32 %v1285, 0.01
    %v1364 = vmul.f32 %v1290, 0.01
    %v1365 = vmul.f32 %v1295, 0.01
    %v1366 = vmul.f32 %v1300, 0.01
    %v1367 = vsel %vm1303, %v1145, %v1335
    %v1368 = vsel %vm1304, %v1150, %v1336
    %v1369 = vsel %vm1305, %v1155, %v1337
    %v1370 = vsel %vm1306, %v1160, %v1338
    %v1371 = vsel %vm1307, %v1165, %v1339
    %v1372 = vsel %vm1308, %v1170, %v1340
    %v1373 = vsel %vm1309, %v1175, %v1341
    %v1374 = vsel %vm1310, %v1180, %v1342
    %v1375 = vsel %vm1311, %v1185, %v1343
    %v1376 = vsel %vm1312, %v1190, %v1344
    %v1377 = vsel %vm1313, %v1195, %v1345
    %v1378 = vsel %vm1314, %v1200, %v1346
    %v1379 = vsel %vm1315, %v1205, %v1347
    %v1380 = vsel %vm1316, %v1210, %v1348
    %v1381 = vsel %vm1317, %v1215, %v1349
    %v1382 = vsel %vm1318, %v1220, %v1350
    %v1383 = vsel %vm1319, %v1225, %v1351
    %v1384 = vsel %vm1320, %v1230, %v1352
    %v1385 = vsel %vm1321, %v1235, %v1353
    %v1386 = vsel %vm1322, %v1240, %v1354
    %v1387 = vsel %vm1323, %v1245, %v1355
    %v1388 = vsel %vm1324, %v1250, %v1356
    %v1389 = vsel %vm1325, %v1255, %v1357
    %v1390 = vsel %vm1326, %v1260, %v1358
    %v1391 = vsel %vm1327, %v1265, %v1359
    %v1392 = vsel %vm1328, %v1270, %v1360
    %v1393 = vsel %vm1329, %v1275, %v1361
    %v1394 = vsel %vm1330, %v1280, %v1362
    %v1395 = vsel %vm1331, %v1285, %v1363
    %v1396 = vsel %vm1332, %v1290, %v1364
    %v1397 = vsel %vm1333, %v1295, %v1365
    %v1398 = vsel %vm1334, %v1300, %v1366
    %s1399 = scalar_lea.vmem %s6, 96
    %v1400 = vld [vmem:[%s1399] sm:$0xff]
    %v1401 = vld [vmem:[%s1399 + $0x8] sm:$0xff]
    %v1402 = vld [vmem:[%s1399 + $0x10] sm:$0xff]
    %v1403 = vld [vmem:[%s1399 + $0x18] sm:$0xff]
    %s1404 = scalar_lea.vmem %s7, 3
    %v1405 = vld [vmem:[%s1404] sm:$0x1]
    %v1407 = vlaneseq
    %v1408 = vshrl.u32 %v1407, 7
    %v1409 = vsub.s32 0, %v1408
    %v1410 = vrot.slane %v1405, %v1409
    %v1413 = vsel %vm551, %v1367, 0
    %v1416 = vsel %vm551, %v1368, 0
    %v1419 = vsel %vm551, %v1369, 0
    %v1422 = vsel %vm551, %v1370, 0
    %v1425 = vsel %vm551, %v1371, 0
    %v1428 = vsel %vm551, %v1372, 0
    %v1431 = vsel %vm551, %v1373, 0
    %v1434 = vsel %vm551, %v1374, 0
    %v1437 = vsel %vm551, %v1375, 0
    %v1440 = vsel %vm551, %v1376, 0
    %v1443 = vsel %vm551, %v1377, 0
    %v1446 = vsel %vm551, %v1378, 0
    %v1449 = vsel %vm551, %v1379, 0
    %v1452 = vsel %vm551, %v1380, 0
    %v1455 = vsel %vm551, %v1381, 0
    %v1458 = vsel %vm551, %v1382, 0
    %v1461 = vsel %vm551, %v1383, 0
    %v1464 = vsel %vm551, %v1384, 0
    %v1467 = vsel %vm551, %v1385, 0
    %v1470 = vsel %vm551, %v1386, 0
    %v1473 = vsel %vm551, %v1387, 0
    %v1476 = vsel %vm551, %v1388, 0
    %v1479 = vsel %vm551, %v1389, 0
    %v1482 = vsel %vm551, %v1390, 0
    %v1485 = vsel %vm551, %v1391, 0
    %v1488 = vsel %vm551, %v1392, 0
    %v1491 = vsel %vm551, %v1393, 0
    %v1494 = vsel %vm551, %v1394, 0
    %v1497 = vsel %vm551, %v1395, 0
    %v1500 = vsel %vm551, %v1396, 0
    %v1503 = vsel %vm551, %v1397, 0
    %v1506 = vsel %vm551, %v1398, 0
    %1508 = vmatprep.subr.mxu0 0.0
    %1509 = vmatpush1.msra.mxu0 0.0
    %1510 = vmatprep.subr.mxu0 0.0
    %1511 = vmatpush1.msra.mxu0 0.0
    %1512 = vmatprep.subr.mxu0 0.0
    %1513 = vmatpush1.msra.mxu0 0.0
    %1514 = vmatprep.subr.mxu0 0.0
    %1515 = vmatpush1.msra.mxu0 0.0
    %1516 = vmatprep.subr.mxu0 0.0
    %1517 = vmatpush1.msra.mxu0 0.0
    %1518 = vmatprep.subr.mxu0 0.0
    %1519 = vmatpush1.msra.mxu0 0.0
    %1520 = vmatprep.subr.mxu0 0.0
    %1521 = vmatpush1.msra.mxu0 0.0
    %1522 = vmatprep.subr.mxu0 0.0
    %1523 = vmatpush1.msra.mxu0 0.0
    %1524 = vmatprep.subr.mxu0 0.0
    %1525 = vmatpush1.msra.mxu0 0.0
    %1526 = vmatprep.subr.mxu0 0.0
    %1527 = vmatpush1.msra.mxu0 0.0
    %1528 = vmatprep.subr.mxu0 0.0
    %1529 = vmatpush1.msra.mxu0 0.0
    %1530 = vmatprep.subr.mxu0 0.0
    %1531 = vmatpush1.msra.mxu0 0.0
    %1532 = vmatprep.subr.mxu0 0.0
    %1533 = vmatpush1.msra.mxu0 %v1403
    %1534 = vmatprep.subr.mxu0 0.0
    %1535 = vmatpush1.msra.mxu0 %v1402
    %1536 = vmatprep.subr.mxu0 0.0
    %1537 = vmatpush1.msra.mxu0 %v1401
    %1538 = vmatprep.subr.mxu0 0.0
    %1539 = vmatpush1.msra.mxu0 %v1400
    %1540 = vmatprep.subr.mxu0 0.0
    %1541 = vmatpush2.msra.mxu0 0.0
    %1542 = vmatprep.subr.mxu0 0.0
    %1543 = vmatpush2.msra.mxu0 0.0
    %1544 = vmatprep.subr.mxu0 0.0
    %1545 = vmatpush2.msra.mxu0 0.0
    %1546 = vmatprep.subr.mxu0 0.0
    %1547 = vmatpush2.msra.mxu0 0.0
    %1548 = vmatprep.subr.mxu0 0.0
    %1549 = vmatpush2.msra.mxu0 0.0
    %1550 = vmatprep.subr.mxu0 0.0
    %1551 = vmatpush2.msra.mxu0 0.0
    %1552 = vmatprep.subr.mxu0 0.0
    %1553 = vmatpush2.msra.mxu0 0.0
    %1554 = vmatprep.subr.mxu0 0.0
    %1555 = vmatpush2.msra.mxu0 0.0
    %1556 = vmatprep.subr.mxu0 0.0
    %1557 = vmatpush2.msra.mxu0 0.0
    %1558 = vmatprep.subr.mxu0 0.0
    %1559 = vmatpush2.msra.mxu0 0.0
    %1560 = vmatprep.subr.mxu0 0.0
    %1561 = vmatpush2.msra.mxu0 0.0
    %1562 = vmatprep.subr.mxu0 0.0
    %1563 = vmatpush2.msra.mxu0 0.0
    %1564 = vmatprep.subr.mxu0 0.0
    %1565 = vmatpush2.msra.mxu0 0.0
    %1566 = vmatprep.subr.mxu0 0.0
    %1567 = vmatpush2.msra.mxu0 0.0
    %1568 = vmatprep.subr.mxu0 0.0
    %1569 = vmatpush2.msra.mxu0 0.0
    %1570 = vmatprep.subr.mxu0 0.0
    %1571 = vmatpush2.msra.mxu0 0.0
    %1572 = vmatprep.mubr.f32.mxu0 0.0
    %1573 = vmatmul.mubr.f32.gmra.mxu0 %v1413
    %v1574 = vpop.f32.mrf.mxu0
    %v1575 = vadd.f32 %v1410, %v1574
    %v1576 = vpop.f32.mrf.mxu0
    %1577 = vmatprep.mubr.f32.mxu0 0.0
    %1578 = vmatmul.mubr.f32.gmra.mxu0 %v1416
    %v1579 = vpop.f32.mrf.mxu0
    %v1580 = vadd.f32 %v1410, %v1579
    %v1581 = vpop.f32.mrf.mxu0
    %1582 = vmatprep.mubr.f32.mxu0 0.0
    %1583 = vmatmul.mubr.f32.gmra.mxu0 %v1419
    %v1584 = vpop.f32.mrf.mxu0
    %v1585 = vadd.f32 %v1410, %v1584
    %v1586 = vpop.f32.mrf.mxu0
    %1587 = vmatprep.mubr.f32.mxu0 0.0
    %1588 = vmatmul.mubr.f32.gmra.mxu0 %v1422
    %v1589 = vpop.f32.mrf.mxu0
    %v1590 = vadd.f32 %v1410, %v1589
    %v1591 = vpop.f32.mrf.mxu0
    %1592 = vmatprep.mubr.f32.mxu0 0.0
    %1593 = vmatmul.mubr.f32.gmra.mxu0 %v1425
    %v1594 = vpop.f32.mrf.mxu0
    %v1595 = vadd.f32 %v1410, %v1594
    %v1596 = vpop.f32.mrf.mxu0
    %1597 = vmatprep.mubr.f32.mxu0 0.0
    %1598 = vmatmul.mubr.f32.gmra.mxu0 %v1428
    %v1599 = vpop.f32.mrf.mxu0
    %v1600 = vadd.f32 %v1410, %v1599
    %v1601 = vpop.f32.mrf.mxu0
    %1602 = vmatprep.mubr.f32.mxu0 0.0
    %1603 = vmatmul.mubr.f32.gmra.mxu0 %v1431
    %v1604 = vpop.f32.mrf.mxu0
    %v1605 = vadd.f32 %v1410, %v1604
    %v1606 = vpop.f32.mrf.mxu0
    %1607 = vmatprep.mubr.f32.mxu0 0.0
    %1608 = vmatmul.mubr.f32.gmra.mxu0 %v1434
    %v1609 = vpop.f32.mrf.mxu0
    %v1610 = vadd.f32 %v1410, %v1609
    %v1611 = vpop.f32.mrf.mxu0
    %1612 = vmatprep.mubr.f32.mxu0 0.0
    %1613 = vmatmul.mubr.f32.gmra.mxu0 %v1437
    %v1614 = vpop.f32.mrf.mxu0
    %v1615 = vadd.f32 %v1410, %v1614
    %v1616 = vpop.f32.mrf.mxu0
    %1617 = vmatprep.mubr.f32.mxu0 0.0
    %1618 = vmatmul.mubr.f32.gmra.mxu0 %v1440
    %v1619 = vpop.f32.mrf.mxu0
    %v1620 = vadd.f32 %v1410, %v1619
    %v1621 = vpop.f32.mrf.mxu0
    %1622 = vmatprep.mubr.f32.mxu0 0.0
    %1623 = vmatmul.mubr.f32.gmra.mxu0 %v1443
    %v1624 = vpop.f32.mrf.mxu0
    %v1625 = vadd.f32 %v1410, %v1624
    %v1626 = vpop.f32.mrf.mxu0
    %1627 = vmatprep.mubr.f32.mxu0 0.0
    %1628 = vmatmul.mubr.f32.gmra.mxu0 %v1446
    %v1629 = vpop.f32.mrf.mxu0
    %v1630 = vadd.f32 %v1410, %v1629
    %v1631 = vpop.f32.mrf.mxu0
    %1632 = vmatprep.mubr.f32.mxu0 0.0
    %1633 = vmatmul.mubr.f32.gmra.mxu0 %v1449
    %v1634 = vpop.f32.mrf.mxu0
    %v1635 = vadd.f32 %v1410, %v1634
    %v1636 = vpop.f32.mrf.mxu0
    %1637 = vmatprep.mubr.f32.mxu0 0.0
    %1638 = vmatmul.mubr.f32.gmra.mxu0 %v1452
    %v1639 = vpop.f32.mrf.mxu0
    %v1640 = vadd.f32 %v1410, %v1639
    %v1641 = vpop.f32.mrf.mxu0
    %1642 = vmatprep.mubr.f32.mxu0 0.0
    %1643 = vmatmul.mubr.f32.gmra.mxu0 %v1455
    %v1644 = vpop.f32.mrf.mxu0
    %v1645 = vadd.f32 %v1410, %v1644
    %v1646 = vpop.f32.mrf.mxu0
    %1647 = vmatprep.mubr.f32.mxu0 0.0
    %1648 = vmatmul.mubr.f32.gmra.mxu0 %v1458
    %v1649 = vpop.f32.mrf.mxu0
    %v1650 = vadd.f32 %v1410, %v1649
    %v1651 = vpop.f32.mrf.mxu0
    %1652 = vmatprep.mubr.f32.mxu0 0.0
    %1653 = vmatmul.mubr.f32.gmra.mxu0 %v1461
    %v1654 = vpop.f32.mrf.mxu0
    %v1655 = vadd.f32 %v1410, %v1654
    %v1656 = vpop.f32.mrf.mxu0
    %1657 = vmatprep.mubr.f32.mxu0 0.0
    %1658 = vmatmul.mubr.f32.gmra.mxu0 %v1464
    %v1659 = vpop.f32.mrf.mxu0
    %v1660 = vadd.f32 %v1410, %v1659
    %v1661 = vpop.f32.mrf.mxu0
    %1662 = vmatprep.mubr.f32.mxu0 0.0
    %1663 = vmatmul.mubr.f32.gmra.mxu0 %v1467
    %v1664 = vpop.f32.mrf.mxu0
    %v1665 = vadd.f32 %v1410, %v1664
    %v1666 = vpop.f32.mrf.mxu0
    %1667 = vmatprep.mubr.f32.mxu0 0.0
    %1668 = vmatmul.mubr.f32.gmra.mxu0 %v1470
    %v1669 = vpop.f32.mrf.mxu0
    %v1670 = vadd.f32 %v1410, %v1669
    %v1671 = vpop.f32.mrf.mxu0
    %1672 = vmatprep.mubr.f32.mxu0 0.0
    %1673 = vmatmul.mubr.f32.gmra.mxu0 %v1473
    %v1674 = vpop.f32.mrf.mxu0
    %v1675 = vadd.f32 %v1410, %v1674
    %v1676 = vpop.f32.mrf.mxu0
    %1677 = vmatprep.mubr.f32.mxu0 0.0
    %1678 = vmatmul.mubr.f32.gmra.mxu0 %v1476
    %v1679 = vpop.f32.mrf.mxu0
    %v1680 = vadd.f32 %v1410, %v1679
    %v1681 = vpop.f32.mrf.mxu0
    %1682 = vmatprep.mubr.f32.mxu0 0.0
    %1683 = vmatmul.mubr.f32.gmra.mxu0 %v1479
    %v1684 = vpop.f32.mrf.mxu0
    %v1685 = vadd.f32 %v1410, %v1684
    %v1686 = vpop.f32.mrf.mxu0
    %1687 = vmatprep.mubr.f32.mxu0 0.0
    %1688 = vmatmul.mubr.f32.gmra.mxu0 %v1482
    %v1689 = vpop.f32.mrf.mxu0
    %v1690 = vadd.f32 %v1410, %v1689
    %v1691 = vpop.f32.mrf.mxu0
    %1692 = vmatprep.mubr.f32.mxu0 0.0
    %1693 = vmatmul.mubr.f32.gmra.mxu0 %v1485
    %v1694 = vpop.f32.mrf.mxu0
    %v1695 = vadd.f32 %v1410, %v1694
    %v1696 = vpop.f32.mrf.mxu0
    %1697 = vmatprep.mubr.f32.mxu0 0.0
    %1698 = vmatmul.mubr.f32.gmra.mxu0 %v1488
    %v1699 = vpop.f32.mrf.mxu0
    %v1700 = vadd.f32 %v1410, %v1699
    %v1701 = vpop.f32.mrf.mxu0
    %1702 = vmatprep.mubr.f32.mxu0 0.0
    %1703 = vmatmul.mubr.f32.gmra.mxu0 %v1491
    %v1704 = vpop.f32.mrf.mxu0
    %v1705 = vadd.f32 %v1410, %v1704
    %v1706 = vpop.f32.mrf.mxu0
    %1707 = vmatprep.mubr.f32.mxu0 0.0
    %1708 = vmatmul.mubr.f32.gmra.mxu0 %v1494
    %v1709 = vpop.f32.mrf.mxu0
    %v1710 = vadd.f32 %v1410, %v1709
    %v1711 = vpop.f32.mrf.mxu0
    %1712 = vmatprep.mubr.f32.mxu0 0.0
    %1713 = vmatmul.mubr.f32.gmra.mxu0 %v1497
    %v1714 = vpop.f32.mrf.mxu0
    %v1715 = vadd.f32 %v1410, %v1714
    %v1716 = vpop.f32.mrf.mxu0
    %1717 = vmatprep.mubr.f32.mxu0 0.0
    %1718 = vmatmul.mubr.f32.gmra.mxu0 %v1500
    %v1719 = vpop.f32.mrf.mxu0
    %v1720 = vadd.f32 %v1410, %v1719
    %v1721 = vpop.f32.mrf.mxu0
    %1722 = vmatprep.mubr.f32.mxu0 0.0
    %1723 = vmatmul.mubr.f32.gmra.mxu0 %v1503
    %v1724 = vpop.f32.mrf.mxu0
    %v1725 = vadd.f32 %v1410, %v1724
    %v1726 = vpop.f32.mrf.mxu0
    %1727 = vmatprep.mubr.f32.mxu0 0.0
    %1728 = vmatmul.mubr.f32.gmra.mxu0 %v1506
    %v1729 = vpop.f32.mrf.mxu0
    %v1730 = vadd.f32 %v1410, %v1729
    %v1731 = vpop.f32.mrf.mxu0
    %1732 = vdwg.mxu0
    %s1733 = scalar_lea.vmem %s8, 96
    %v1734 = vld [vmem:[%s1733] sm:$0xff]
    %v1735 = vld [vmem:[%s1733 + $0x8] sm:$0xff]
    %v1736 = vld [vmem:[%s1733 + $0x10] sm:$0xff]
    %v1737 = vld [vmem:[%s1733 + $0x18] sm:$0xff]
    %s1738 = scalar_lea.vmem %s9, 3
    %v1739 = vld [vmem:[%s1738] sm:$0x1]
    %v1741 = vlaneseq
    %v1742 = vshrl.u32 %v1741, 7
    %v1743 = vsub.s32 0, %v1742
    %v1744 = vrot.slane %v1739, %v1743
    %1746 = vmatprep.subr.mxu0 0.0
    %1747 = vmatpush1.msra.mxu0 0.0
    %1748 = vmatprep.subr.mxu0 0.0
    %1749 = vmatpush1.msra.mxu0 0.0
    %1750 = vmatprep.subr.mxu0 0.0
    %1751 = vmatpush1.msra.mxu0 0.0
    %1752 = vmatprep.subr.mxu0 0.0
    %1753 = vmatpush1.msra.mxu0 0.0
    %1754 = vmatprep.subr.mxu0 0.0
    %1755 = vmatpush1.msra.mxu0 0.0
    %1756 = vmatprep.subr.mxu0 0.0
    %1757 = vmatpush1.msra.mxu0 0.0
    %1758 = vmatprep.subr.mxu0 0.0
    %1759 = vmatpush1.msra.mxu0 0.0
    %1760 = vmatprep.subr.mxu0 0.0
    %1761 = vmatpush1.msra.mxu0 0.0
    %1762 = vmatprep.subr.mxu0 0.0
    %1763 = vmatpush1.msra.mxu0 0.0
    %1764 = vmatprep.subr.mxu0 0.0
    %1765 = vmatpush1.msra.mxu0 0.0
    %1766 = vmatprep.subr.mxu0 0.0
    %1767 = vmatpush1.msra.mxu0 0.0
    %1768 = vmatprep.subr.mxu0 0.0
    %1769 = vmatpush1.msra.mxu0 0.0
    %1770 = vmatprep.subr.mxu0 0.0
    %1771 = vmatpush1.msra.mxu0 %v1737
    %1772 = vmatprep.subr.mxu0 0.0
    %1773 = vmatpush1.msra.mxu0 %v1736
    %1774 = vmatprep.subr.mxu0 0.0
    %1775 = vmatpush1.msra.mxu0 %v1735
    %1776 = vmatprep.subr.mxu0 0.0
    %1777 = vmatpush1.msra.mxu0 %v1734
    %1778 = vmatprep.subr.mxu0 0.0
    %1779 = vmatpush2.msra.mxu0 0.0
    %1780 = vmatprep.subr.mxu0 0.0
    %1781 = vmatpush2.msra.mxu0 0.0
    %1782 = vmatprep.subr.mxu0 0.0
    %1783 = vmatpush2.msra.mxu0 0.0
    %1784 = vmatprep.subr.mxu0 0.0
    %1785 = vmatpush2.msra.mxu0 0.0
    %1786 = vmatprep.subr.mxu0 0.0
    %1787 = vmatpush2.msra.mxu0 0.0
    %1788 = vmatprep.subr.mxu0 0.0
    %1789 = vmatpush2.msra.mxu0 0.0
    %1790 = vmatprep.subr.mxu0 0.0
    %1791 = vmatpush2.msra.mxu0 0.0
    %1792 = vmatprep.subr.mxu0 0.0
    %1793 = vmatpush2.msra.mxu0 0.0
    %1794 = vmatprep.subr.mxu0 0.0
    %1795 = vmatpush2.msra.mxu0 0.0
    %1796 = vmatprep.subr.mxu0 0.0
    %1797 = vmatpush2.msra.mxu0 0.0
    %1798 = vmatprep.subr.mxu0 0.0
    %1799 = vmatpush2.msra.mxu0 0.0
    %1800 = vmatprep.subr.mxu0 0.0
    %1801 = vmatpush2.msra.mxu0 0.0
    %1802 = vmatprep.subr.mxu0 0.0
    %1803 = vmatpush2.msra.mxu0 0.0
    %1804 = vmatprep.subr.mxu0 0.0
    %1805 = vmatpush2.msra.mxu0 0.0
    %1806 = vmatprep.subr.mxu0 0.0
    %1807 = vmatpush2.msra.mxu0 0.0
    %1808 = vmatprep.subr.mxu0 0.0
    %1809 = vmatpush2.msra.mxu0 0.0
    %1810 = vmatprep.mubr.f32.mxu0 0.0
    %1811 = vmatmul.mubr.f32.gmra.mxu0 %v1413
    %v1812 = vpop.f32.mrf.mxu0
    %v1813 = vadd.f32 %v1744, %v1812
    %v1814 = vpop.f32.mrf.mxu0
    %1815 = vmatprep.mubr.f32.mxu0 0.0
    %1816 = vmatmul.mubr.f32.gmra.mxu0 %v1416
    %v1817 = vpop.f32.mrf.mxu0
    %v1818 = vadd.f32 %v1744, %v1817
    %v1819 = vpop.f32.mrf.mxu0
    %1820 = vmatprep.mubr.f32.mxu0 0.0
    %1821 = vmatmul.mubr.f32.gmra.mxu0 %v1419
    %v1822 = vpop.f32.mrf.mxu0
    %v1823 = vadd.f32 %v1744, %v1822
    %v1824 = vpop.f32.mrf.mxu0
    %1825 = vmatprep.mubr.f32.mxu0 0.0
    %1826 = vmatmul.mubr.f32.gmra.mxu0 %v1422
    %v1827 = vpop.f32.mrf.mxu0
    %v1828 = vadd.f32 %v1744, %v1827
    %v1829 = vpop.f32.mrf.mxu0
    %1830 = vmatprep.mubr.f32.mxu0 0.0
    %1831 = vmatmul.mubr.f32.gmra.mxu0 %v1425
    %v1832 = vpop.f32.mrf.mxu0
    %v1833 = vadd.f32 %v1744, %v1832
    %v1834 = vpop.f32.mrf.mxu0
    %1835 = vmatprep.mubr.f32.mxu0 0.0
    %1836 = vmatmul.mubr.f32.gmra.mxu0 %v1428
    %v1837 = vpop.f32.mrf.mxu0
    %v1838 = vadd.f32 %v1744, %v1837
    %v1839 = vpop.f32.mrf.mxu0
    %1840 = vmatprep.mubr.f32.mxu0 0.0
    %1841 = vmatmul.mubr.f32.gmra.mxu0 %v1431
    %v1842 = vpop.f32.mrf.mxu0
    %v1843 = vadd.f32 %v1744, %v1842
    %v1844 = vpop.f32.mrf.mxu0
    %1845 = vmatprep.mubr.f32.mxu0 0.0
    %1846 = vmatmul.mubr.f32.gmra.mxu0 %v1434
    %v1847 = vpop.f32.mrf.mxu0
    %v1848 = vadd.f32 %v1744, %v1847
    %v1849 = vpop.f32.mrf.mxu0
    %1850 = vmatprep.mubr.f32.mxu0 0.0
    %1851 = vmatmul.mubr.f32.gmra.mxu0 %v1437
    %v1852 = vpop.f32.mrf.mxu0
    %v1853 = vadd.f32 %v1744, %v1852
    %v1854 = vpop.f32.mrf.mxu0
    %1855 = vmatprep.mubr.f32.mxu0 0.0
    %1856 = vmatmul.mubr.f32.gmra.mxu0 %v1440
    %v1857 = vpop.f32.mrf.mxu0
    %v1858 = vadd.f32 %v1744, %v1857
    %v1859 = vpop.f32.mrf.mxu0
    %1860 = vmatprep.mubr.f32.mxu0 0.0
    %1861 = vmatmul.mubr.f32.gmra.mxu0 %v1443
    %v1862 = vpop.f32.mrf.mxu0
    %v1863 = vadd.f32 %v1744, %v1862
    %v1864 = vpop.f32.mrf.mxu0
    %1865 = vmatprep.mubr.f32.mxu0 0.0
    %1866 = vmatmul.mubr.f32.gmra.mxu0 %v1446
    %v1867 = vpop.f32.mrf.mxu0
    %v1868 = vadd.f32 %v1744, %v1867
    %v1869 = vpop.f32.mrf.mxu0
    %1870 = vmatprep.mubr.f32.mxu0 0.0
    %1871 = vmatmul.mubr.f32.gmra.mxu0 %v1449
    %v1872 = vpop.f32.mrf.mxu0
    %v1873 = vadd.f32 %v1744, %v1872
    %v1874 = vpop.f32.mrf.mxu0
    %1875 = vmatprep.mubr.f32.mxu0 0.0
    %1876 = vmatmul.mubr.f32.gmra.mxu0 %v1452
    %v1877 = vpop.f32.mrf.mxu0
    %v1878 = vadd.f32 %v1744, %v1877
    %v1879 = vpop.f32.mrf.mxu0
    %1880 = vmatprep.mubr.f32.mxu0 0.0
    %1881 = vmatmul.mubr.f32.gmra.mxu0 %v1455
    %v1882 = vpop.f32.mrf.mxu0
    %v1883 = vadd.f32 %v1744, %v1882
    %v1884 = vpop.f32.mrf.mxu0
    %1885 = vmatprep.mubr.f32.mxu0 0.0
    %1886 = vmatmul.mubr.f32.gmra.mxu0 %v1458
    %v1887 = vpop.f32.mrf.mxu0
    %v1888 = vadd.f32 %v1744, %v1887
    %v1889 = vpop.f32.mrf.mxu0
    %1890 = vmatprep.mubr.f32.mxu0 0.0
    %1891 = vmatmul.mubr.f32.gmra.mxu0 %v1461
    %v1892 = vpop.f32.mrf.mxu0
    %v1893 = vadd.f32 %v1744, %v1892
    %v1894 = vpop.f32.mrf.mxu0
    %1895 = vmatprep.mubr.f32.mxu0 0.0
    %1896 = vmatmul.mubr.f32.gmra.mxu0 %v1464
    %v1897 = vpop.f32.mrf.mxu0
    %v1898 = vadd.f32 %v1744, %v1897
    %v1899 = vpop.f32.mrf.mxu0
    %1900 = vmatprep.mubr.f32.mxu0 0.0
    %1901 = vmatmul.mubr.f32.gmra.mxu0 %v1467
    %v1902 = vpop.f32.mrf.mxu0
    %v1903 = vadd.f32 %v1744, %v1902
    %v1904 = vpop.f32.mrf.mxu0
    %1905 = vmatprep.mubr.f32.mxu0 0.0
    %1906 = vmatmul.mubr.f32.gmra.mxu0 %v1470
    %v1907 = vpop.f32.mrf.mxu0
    %v1908 = vadd.f32 %v1744, %v1907
    %v1909 = vpop.f32.mrf.mxu0
    %1910 = vmatprep.mubr.f32.mxu0 0.0
    %1911 = vmatmul.mubr.f32.gmra.mxu0 %v1473
    %v1912 = vpop.f32.mrf.mxu0
    %v1913 = vadd.f32 %v1744, %v1912
    %v1914 = vpop.f32.mrf.mxu0
    %1915 = vmatprep.mubr.f32.mxu0 0.0
    %1916 = vmatmul.mubr.f32.gmra.mxu0 %v1476
    %v1917 = vpop.f32.mrf.mxu0
    %v1918 = vadd.f32 %v1744, %v1917
    %v1919 = vpop.f32.mrf.mxu0
    %1920 = vmatprep.mubr.f32.mxu0 0.0
    %1921 = vmatmul.mubr.f32.gmra.mxu0 %v1479
    %v1922 = vpop.f32.mrf.mxu0
    %v1923 = vadd.f32 %v1744, %v1922
    %v1924 = vpop.f32.mrf.mxu0
    %1925 = vmatprep.mubr.f32.mxu0 0.0
    %1926 = vmatmul.mubr.f32.gmra.mxu0 %v1482
    %v1927 = vpop.f32.mrf.mxu0
    %v1928 = vadd.f32 %v1744, %v1927
    %v1929 = vpop.f32.mrf.mxu0
    %1930 = vmatprep.mubr.f32.mxu0 0.0
    %1931 = vmatmul.mubr.f32.gmra.mxu0 %v1485
    %v1932 = vpop.f32.mrf.mxu0
    %v1933 = vadd.f32 %v1744, %v1932
    %v1934 = vpop.f32.mrf.mxu0
    %1935 = vmatprep.mubr.f32.mxu0 0.0
    %1936 = vmatmul.mubr.f32.gmra.mxu0 %v1488
    %v1937 = vpop.f32.mrf.mxu0
    %v1938 = vadd.f32 %v1744, %v1937
    %v1939 = vpop.f32.mrf.mxu0
    %1940 = vmatprep.mubr.f32.mxu0 0.0
    %1941 = vmatmul.mubr.f32.gmra.mxu0 %v1491
    %v1942 = vpop.f32.mrf.mxu0
    %v1943 = vadd.f32 %v1744, %v1942
    %v1944 = vpop.f32.mrf.mxu0
    %1945 = vmatprep.mubr.f32.mxu0 0.0
    %1946 = vmatmul.mubr.f32.gmra.mxu0 %v1494
    %v1947 = vpop.f32.mrf.mxu0
    %v1948 = vadd.f32 %v1744, %v1947
    %v1949 = vpop.f32.mrf.mxu0
    %1950 = vmatprep.mubr.f32.mxu0 0.0
    %1951 = vmatmul.mubr.f32.gmra.mxu0 %v1497
    %v1952 = vpop.f32.mrf.mxu0
    %v1953 = vadd.f32 %v1744, %v1952
    %v1954 = vpop.f32.mrf.mxu0
    %1955 = vmatprep.mubr.f32.mxu0 0.0
    %1956 = vmatmul.mubr.f32.gmra.mxu0 %v1500
    %v1957 = vpop.f32.mrf.mxu0
    %v1958 = vadd.f32 %v1744, %v1957
    %v1959 = vpop.f32.mrf.mxu0
    %1960 = vmatprep.mubr.f32.mxu0 0.0
    %1961 = vmatmul.mubr.f32.gmra.mxu0 %v1503
    %v1962 = vpop.f32.mrf.mxu0
    %v1963 = vadd.f32 %v1744, %v1962
    %v1964 = vpop.f32.mrf.mxu0
    %1965 = vmatprep.mubr.f32.mxu0 0.0
    %1966 = vmatmul.mubr.f32.gmra.mxu0 %v1506
    %v1967 = vpop.f32.mrf.mxu0
    %v1968 = vadd.f32 %v1744, %v1967
    %v1969 = vpop.f32.mrf.mxu0
    %1970 = vdwg.mxu0
    %v1971 = vadd.f32 %v1575, 2.0
    %v1972 = vadd.f32 %v1580, 2.0
    %v1973 = vadd.f32 %v1585, 2.0
    %v1974 = vadd.f32 %v1590, 2.0
    %v1975 = vadd.f32 %v1595, 2.0
    %v1976 = vadd.f32 %v1600, 2.0
    %v1977 = vadd.f32 %v1605, 2.0
    %v1978 = vadd.f32 %v1610, 2.0
    %v1979 = vadd.f32 %v1615, 2.0
    %v1980 = vadd.f32 %v1620, 2.0
    %v1981 = vadd.f32 %v1625, 2.0
    %v1982 = vadd.f32 %v1630, 2.0
    %v1983 = vadd.f32 %v1635, 2.0
    %v1984 = vadd.f32 %v1640, 2.0
    %v1985 = vadd.f32 %v1645, 2.0
    %v1986 = vadd.f32 %v1650, 2.0
    %v1987 = vadd.f32 %v1655, 2.0
    %v1988 = vadd.f32 %v1660, 2.0
    %v1989 = vadd.f32 %v1665, 2.0
    %v1990 = vadd.f32 %v1670, 2.0
    %v1991 = vadd.f32 %v1675, 2.0
    %v1992 = vadd.f32 %v1680, 2.0
    %v1993 = vadd.f32 %v1685, 2.0
    %v1994 = vadd.f32 %v1690, 2.0
    %v1995 = vadd.f32 %v1695, 2.0
    %v1996 = vadd.f32 %v1700, 2.0
    %v1997 = vadd.f32 %v1705, 2.0
    %v1998 = vadd.f32 %v1710, 2.0
    %v1999 = vadd.f32 %v1715, 2.0
    %v2000 = vadd.f32 %v1720, 2.0
    %v2001 = vadd.f32 %v1725, 2.0
    %v2002 = vadd.f32 %v1730, 2.0
    %v2003 = vsub.f32 0.0, %v1971
    %v2004 = vsub.f32 0.0, %v1972
    %v2005 = vsub.f32 0.0, %v1973
    %v2006 = vsub.f32 0.0, %v1974
    %v2007 = vsub.f32 0.0, %v1975
    %v2008 = vsub.f32 0.0, %v1976
    %v2009 = vsub.f32 0.0, %v1977
    %v2010 = vsub.f32 0.0, %v1978
    %v2011 = vsub.f32 0.0, %v1979
    %v2012 = vsub.f32 0.0, %v1980
    %v2013 = vsub.f32 0.0, %v1981
    %v2014 = vsub.f32 0.0, %v1982
    %v2015 = vsub.f32 0.0, %v1983
    %v2016 = vsub.f32 0.0, %v1984
    %v2017 = vsub.f32 0.0, %v1985
    %v2018 = vsub.f32 0.0, %v1986
    %v2019 = vsub.f32 0.0, %v1987
    %v2020 = vsub.f32 0.0, %v1988
    %v2021 = vsub.f32 0.0, %v1989
    %v2022 = vsub.f32 0.0, %v1990
    %v2023 = vsub.f32 0.0, %v1991
    %v2024 = vsub.f32 0.0, %v1992
    %v2025 = vsub.f32 0.0, %v1993
    %v2026 = vsub.f32 0.0, %v1994
    %v2027 = vsub.f32 0.0, %v1995
    %v2028 = vsub.f32 0.0, %v1996
    %v2029 = vsub.f32 0.0, %v1997
    %v2030 = vsub.f32 0.0, %v1998
    %v2031 = vsub.f32 0.0, %v1999
    %v2032 = vsub.f32 0.0, %v2000
    %v2033 = vsub.f32 0.0, %v2001
    %v2034 = vsub.f32 0.0, %v2002
    %v2035 = vmul.f32 %v2003, 1.442695
    %v2036 = vpow.pop %v2035
    %v2037 = vmul.f32 %v2004, 1.442695
    %v2038 = vpow.pop %v2037
    %v2039 = vmul.f32 %v2005, 1.442695
    %v2040 = vpow.pop %v2039
    %v2041 = vmul.f32 %v2006, 1.442695
    %v2042 = vpow.pop %v2041
    %v2043 = vmul.f32 %v2007, 1.442695
    %v2044 = vpow.pop %v2043
    %v2045 = vmul.f32 %v2008, 1.442695
    %v2046 = vpow.pop %v2045
    %v2047 = vmul.f32 %v2009, 1.442695
    %v2048 = vpow.pop %v2047
    %v2049 = vmul.f32 %v2010, 1.442695
    %v2050 = vpow.pop %v2049
    %v2051 = vmul.f32 %v2011, 1.442695
    %v2052 = vpow.pop %v2051
    %v2053 = vmul.f32 %v2012, 1.442695
    %v2054 = vpow.pop %v2053
    %v2055 = vmul.f32 %v2013, 1.442695
    %v2056 = vpow.pop %v2055
    %v2057 = vmul.f32 %v2014, 1.442695
    %v2058 = vpow.pop %v2057
    %v2059 = vmul.f32 %v2015, 1.442695
    %v2060 = vpow.pop %v2059
    %v2061 = vmul.f32 %v2016, 1.442695
    %v2062 = vpow.pop %v2061
    %v2063 = vmul.f32 %v2017, 1.442695
    %v2064 = vpow.pop %v2063
    %v2065 = vmul.f32 %v2018, 1.442695
    %v2066 = vpow.pop %v2065
    %v2067 = vmul.f32 %v2019, 1.442695
    %v2068 = vpow.pop %v2067
    %v2069 = vmul.f32 %v2020, 1.442695
    %v2070 = vpow.pop %v2069
    %v2071 = vmul.f32 %v2021, 1.442695
    %v2072 = vpow.pop %v2071
    %v2073 = vmul.f32 %v2022, 1.442695
    %v2074 = vpow.pop %v2073
    %v2075 = vmul.f32 %v2023, 1.442695
    %v2076 = vpow.pop %v2075
    %v2077 = vmul.f32 %v2024, 1.442695
    %v2078 = vpow.pop %v2077
    %v2079 = vmul.f32 %v2025, 1.442695
    %v2080 = vpow.pop %v2079
    %v2081 = vmul.f32 %v2026, 1.442695
    %v2082 = vpow.pop %v2081
    %v2083 = vmul.f32 %v2027, 1.442695
    %v2084 = vpow.pop %v2083
    %v2085 = vmul.f32 %v2028, 1.442695
    %v2086 = vpow.pop %v2085
    %v2087 = vmul.f32 %v2029, 1.442695
    %v2088 = vpow.pop %v2087
    %v2089 = vmul.f32 %v2030, 1.442695
    %v2090 = vpow.pop %v2089
    %v2091 = vmul.f32 %v2031, 1.442695
    %v2092 = vpow.pop %v2091
    %v2093 = vmul.f32 %v2032, 1.442695
    %v2094 = vpow.pop %v2093
    %v2095 = vmul.f32 %v2033, 1.442695
    %v2096 = vpow.pop %v2095
    %v2097 = vmul.f32 %v2034, 1.442695
    %v2098 = vpow.pop %v2097
    %v2099 = vadd.f32 %v2036, 1.0
    %v2100 = vadd.f32 %v2038, 1.0
    %v2101 = vadd.f32 %v2040, 1.0
    %v2102 = vadd.f32 %v2042, 1.0
    %v2103 = vadd.f32 %v2044, 1.0
    %v2104 = vadd.f32 %v2046, 1.0
    %v2105 = vadd.f32 %v2048, 1.0
    %v2106 = vadd.f32 %v2050, 1.0
    %v2107 = vadd.f32 %v2052, 1.0
    %v2108 = vadd.f32 %v2054, 1.0
    %v2109 = vadd.f32 %v2056, 1.0
    %v2110 = vadd.f32 %v2058, 1.0
    %v2111 = vadd.f32 %v2060, 1.0
    %v2112 = vadd.f32 %v2062, 1.0
    %v2113 = vadd.f32 %v2064, 1.0
    %v2114 = vadd.f32 %v2066, 1.0
    %v2115 = vadd.f32 %v2068, 1.0
    %v2116 = vadd.f32 %v2070, 1.0
    %v2117 = vadd.f32 %v2072, 1.0
    %v2118 = vadd.f32 %v2074, 1.0
    %v2119 = vadd.f32 %v2076, 1.0
    %v2120 = vadd.f32 %v2078, 1.0
    %v2121 = vadd.f32 %v2080, 1.0
    %v2122 = vadd.f32 %v2082, 1.0
    %v2123 = vadd.f32 %v2084, 1.0
    %v2124 = vadd.f32 %v2086, 1.0
    %v2125 = vadd.f32 %v2088, 1.0
    %v2126 = vadd.f32 %v2090, 1.0
    %v2127 = vadd.f32 %v2092, 1.0
    %v2128 = vadd.f32 %v2094, 1.0
    %v2129 = vadd.f32 %v2096, 1.0
    %v2130 = vadd.f32 %v2098, 1.0
    %v2131 = vlog2.pop %v2099
    %v2132 = vmul.f32 %v2131, 0.6931472
    %v2133 = vlog2.pop %v2100
    %v2134 = vmul.f32 %v2133, 0.6931472
    %v2135 = vlog2.pop %v2101
    %v2136 = vmul.f32 %v2135, 0.6931472
    %v2137 = vlog2.pop %v2102
    %v2138 = vmul.f32 %v2137, 0.6931472
    %v2139 = vlog2.pop %v2103
    %v2140 = vmul.f32 %v2139, 0.6931472
    %v2141 = vlog2.pop %v2104
    %v2142 = vmul.f32 %v2141, 0.6931472
    %v2143 = vlog2.pop %v2105
    %v2144 = vmul.f32 %v2143, 0.6931472
    %v2145 = vlog2.pop %v2106
    %v2146 = vmul.f32 %v2145, 0.6931472
    %v2147 = vlog2.pop %v2107
    %v2148 = vmul.f32 %v2147, 0.6931472
    %v2149 = vlog2.pop %v2108
    %v2150 = vmul.f32 %v2149, 0.6931472
    %v2151 = vlog2.pop %v2109
    %v2152 = vmul.f32 %v2151, 0.6931472
    %v2153 = vlog2.pop %v2110
    %v2154 = vmul.f32 %v2153, 0.6931472
    %v2155 = vlog2.pop %v2111
    %v2156 = vmul.f32 %v2155, 0.6931472
    %v2157 = vlog2.pop %v2112
    %v2158 = vmul.f32 %v2157, 0.6931472
    %v2159 = vlog2.pop %v2113
    %v2160 = vmul.f32 %v2159, 0.6931472
    %v2161 = vlog2.pop %v2114
    %v2162 = vmul.f32 %v2161, 0.6931472
    %v2163 = vlog2.pop %v2115
    %v2164 = vmul.f32 %v2163, 0.6931472
    %v2165 = vlog2.pop %v2116
    %v2166 = vmul.f32 %v2165, 0.6931472
    %v2167 = vlog2.pop %v2117
    %v2168 = vmul.f32 %v2167, 0.6931472
    %v2169 = vlog2.pop %v2118
    %v2170 = vmul.f32 %v2169, 0.6931472
    %v2171 = vlog2.pop %v2119
    %v2172 = vmul.f32 %v2171, 0.6931472
    %v2173 = vlog2.pop %v2120
    %v2174 = vmul.f32 %v2173, 0.6931472
    %v2175 = vlog2.pop %v2121
    %v2176 = vmul.f32 %v2175, 0.6931472
    %v2177 = vlog2.pop %v2122
    %v2178 = vmul.f32 %v2177, 0.6931472
    %v2179 = vlog2.pop %v2123
    %v2180 = vmul.f32 %v2179, 0.6931472
    %v2181 = vlog2.pop %v2124
    %v2182 = vmul.f32 %v2181, 0.6931472
    %v2183 = vlog2.pop %v2125
    %v2184 = vmul.f32 %v2183, 0.6931472
    %v2185 = vlog2.pop %v2126
    %v2186 = vmul.f32 %v2185, 0.6931472
    %v2187 = vlog2.pop %v2127
    %v2188 = vmul.f32 %v2187, 0.6931472
    %v2189 = vlog2.pop %v2128
    %v2190 = vmul.f32 %v2189, 0.6931472
    %v2191 = vlog2.pop %v2129
    %v2192 = vmul.f32 %v2191, 0.6931472
    %v2193 = vlog2.pop %v2130
    %v2194 = vmul.f32 %v2193, 0.6931472
    %v2195 = vsub.f32 0.0, %v2132
    %v2196 = vsub.f32 0.0, %v2134
    %v2197 = vsub.f32 0.0, %v2136
    %v2198 = vsub.f32 0.0, %v2138
    %v2199 = vsub.f32 0.0, %v2140
    %v2200 = vsub.f32 0.0, %v2142
    %v2201 = vsub.f32 0.0, %v2144
    %v2202 = vsub.f32 0.0, %v2146
    %v2203 = vsub.f32 0.0, %v2148
    %v2204 = vsub.f32 0.0, %v2150
    %v2205 = vsub.f32 0.0, %v2152
    %v2206 = vsub.f32 0.0, %v2154
    %v2207 = vsub.f32 0.0, %v2156
    %v2208 = vsub.f32 0.0, %v2158
    %v2209 = vsub.f32 0.0, %v2160
    %v2210 = vsub.f32 0.0, %v2162
    %v2211 = vsub.f32 0.0, %v2164
    %v2212 = vsub.f32 0.0, %v2166
    %v2213 = vsub.f32 0.0, %v2168
    %v2214 = vsub.f32 0.0, %v2170
    %v2215 = vsub.f32 0.0, %v2172
    %v2216 = vsub.f32 0.0, %v2174
    %v2217 = vsub.f32 0.0, %v2176
    %v2218 = vsub.f32 0.0, %v2178
    %v2219 = vsub.f32 0.0, %v2180
    %v2220 = vsub.f32 0.0, %v2182
    %v2221 = vsub.f32 0.0, %v2184
    %v2222 = vsub.f32 0.0, %v2186
    %v2223 = vsub.f32 0.0, %v2188
    %v2224 = vsub.f32 0.0, %v2190
    %v2225 = vsub.f32 0.0, %v2192
    %v2226 = vsub.f32 0.0, %v2194
    %v2227 = vsub.f32 %v77, %v1813
    %v2228 = vsub.f32 %v78, %v1818
    %v2229 = vsub.f32 %v79, %v1823
    %v2230 = vsub.f32 %v80, %v1828
    %v2231 = vsub.f32 %v81, %v1833
    %v2232 = vsub.f32 %v82, %v1838
    %v2233 = vsub.f32 %v83, %v1843
    %v2234 = vsub.f32 %v84, %v1848
    %v2235 = vsub.f32 %v85, %v1853
    %v2236 = vsub.f32 %v86, %v1858
    %v2237 = vsub.f32 %v87, %v1863
    %v2238 = vsub.f32 %v88, %v1868
    %v2239 = vsub.f32 %v89, %v1873
    %v2240 = vsub.f32 %v90, %v1878
    %v2241 = vsub.f32 %v91, %v1883
    %v2242 = vsub.f32 %v92, %v1888
    %v2243 = vsub.f32 %v93, %v1893
    %v2244 = vsub.f32 %v94, %v1898
    %v2245 = vsub.f32 %v95, %v1903
    %v2246 = vsub.f32 %v96, %v1908
    %v2247 = vsub.f32 %v97, %v1913
    %v2248 = vsub.f32 %v98, %v1918
    %v2249 = vsub.f32 %v99, %v1923
    %v2250 = vsub.f32 %v100, %v1928
    %v2251 = vsub.f32 %v101, %v1933
    %v2252 = vsub.f32 %v102, %v1938
    %v2253 = vsub.f32 %v103, %v1943
    %v2254 = vsub.f32 %v104, %v1948
    %v2255 = vsub.f32 %v105, %v1953
    %v2256 = vsub.f32 %v106, %v1958
    %v2257 = vsub.f32 %v107, %v1963
    %v2258 = vsub.f32 %v108, %v1968
    %v2259 = vmul.f32 %v2227, %v2099
    %v2260 = vmul.f32 %v2228, %v2100
    %v2261 = vmul.f32 %v2229, %v2101
    %v2262 = vmul.f32 %v2230, %v2102
    %v2263 = vmul.f32 %v2231, %v2103
    %v2264 = vmul.f32 %v2232, %v2104
    %v2265 = vmul.f32 %v2233, %v2105
    %v2266 = vmul.f32 %v2234, %v2106
    %v2267 = vmul.f32 %v2235, %v2107
    %v2268 = vmul.f32 %v2236, %v2108
    %v2269 = vmul.f32 %v2237, %v2109
    %v2270 = vmul.f32 %v2238, %v2110
    %v2271 = vmul.f32 %v2239, %v2111
    %v2272 = vmul.f32 %v2240, %v2112
    %v2273 = vmul.f32 %v2241, %v2113
    %v2274 = vmul.f32 %v2242, %v2114
    %v2275 = vmul.f32 %v2243, %v2115
    %v2276 = vmul.f32 %v2244, %v2116
    %v2277 = vmul.f32 %v2245, %v2117
    %v2278 = vmul.f32 %v2246, %v2118
    %v2279 = vmul.f32 %v2247, %v2119
    %v2280 = vmul.f32 %v2248, %v2120
    %v2281 = vmul.f32 %v2249, %v2121
    %v2282 = vmul.f32 %v2250, %v2122
    %v2283 = vmul.f32 %v2251, %v2123
    %v2284 = vmul.f32 %v2252, %v2124
    %v2285 = vmul.f32 %v2253, %v2125
    %v2286 = vmul.f32 %v2254, %v2126
    %v2287 = vmul.f32 %v2255, %v2127
    %v2288 = vmul.f32 %v2256, %v2128
    %v2289 = vmul.f32 %v2257, %v2129
    %v2290 = vmul.f32 %v2258, %v2130
    %s2291 = scalar_lea.vmem %s2, 32
    %v2292 = vld [vmem:[%s2291] sm:$0xff]
    %v2293 = vld [vmem:[%s2291 + $0x8] sm:$0xff]
    %s2294 = scalar_lea.vmem %s3, 2
    %v2295 = vld [vmem:[%s2294] sm:$0x1]
    %v2297 = vlaneseq
    %v2298 = vshrl.u32 %v2297, 7
    %v2299 = vsub.s32 0, %v2298
    %v2300 = vrot.slane %v2295, %v2299
    %v2303 = vsel %vm120, %v2259, 0
    %v2306 = vsel %vm120, %v2260, 0
    %v2309 = vsel %vm120, %v2261, 0
    %v2312 = vsel %vm120, %v2262, 0
    %v2315 = vsel %vm120, %v2263, 0
    %v2318 = vsel %vm120, %v2264, 0
    %v2321 = vsel %vm120, %v2265, 0
    %v2324 = vsel %vm120, %v2266, 0
    %v2327 = vsel %vm120, %v2267, 0
    %v2330 = vsel %vm120, %v2268, 0
    %v2333 = vsel %vm120, %v2269, 0
    %v2336 = vsel %vm120, %v2270, 0
    %v2339 = vsel %vm120, %v2271, 0
    %v2342 = vsel %vm120, %v2272, 0
    %v2345 = vsel %vm120, %v2273, 0
    %v2348 = vsel %vm120, %v2274, 0
    %v2351 = vsel %vm120, %v2275, 0
    %v2354 = vsel %vm120, %v2276, 0
    %v2357 = vsel %vm120, %v2277, 0
    %v2360 = vsel %vm120, %v2278, 0
    %v2363 = vsel %vm120, %v2279, 0
    %v2366 = vsel %vm120, %v2280, 0
    %v2369 = vsel %vm120, %v2281, 0
    %v2372 = vsel %vm120, %v2282, 0
    %v2375 = vsel %vm120, %v2283, 0
    %v2378 = vsel %vm120, %v2284, 0
    %v2381 = vsel %vm120, %v2285, 0
    %v2384 = vsel %vm120, %v2286, 0
    %v2387 = vsel %vm120, %v2287, 0
    %v2390 = vsel %vm120, %v2288, 0
    %v2393 = vsel %vm120, %v2289, 0
    %v2396 = vsel %vm120, %v2290, 0
    %2398 = vmatprep.subr.mxu0 0.0
    %2399 = vmatpush1.msra.mxu0 0.0
    %2400 = vmatprep.subr.mxu0 0.0
    %2401 = vmatpush1.msra.mxu0 0.0
    %2402 = vmatprep.subr.mxu0 0.0
    %2403 = vmatpush1.msra.mxu0 0.0
    %2404 = vmatprep.subr.mxu0 0.0
    %2405 = vmatpush1.msra.mxu0 0.0
    %2406 = vmatprep.subr.mxu0 0.0
    %2407 = vmatpush1.msra.mxu0 0.0
    %2408 = vmatprep.subr.mxu0 0.0
    %2409 = vmatpush1.msra.mxu0 0.0
    %2410 = vmatprep.subr.mxu0 0.0
    %2411 = vmatpush1.msra.mxu0 0.0
    %2412 = vmatprep.subr.mxu0 0.0
    %2413 = vmatpush1.msra.mxu0 0.0
    %2414 = vmatprep.subr.mxu0 0.0
    %2415 = vmatpush1.msra.mxu0 0.0
    %2416 = vmatprep.subr.mxu0 0.0
    %2417 = vmatpush1.msra.mxu0 0.0
    %2418 = vmatprep.subr.mxu0 0.0
    %2419 = vmatpush1.msra.mxu0 0.0
    %2420 = vmatprep.subr.mxu0 0.0
    %2421 = vmatpush1.msra.mxu0 0.0
    %2422 = vmatprep.subr.mxu0 0.0
    %2423 = vmatpush1.msra.mxu0 0.0
    %2424 = vmatprep.subr.mxu0 0.0
    %2425 = vmatpush1.msra.mxu0 0.0
    %2426 = vmatprep.subr.mxu0 0.0
    %2427 = vmatpush1.msra.mxu0 %v2293
    %2428 = vmatprep.subr.mxu0 0.0
    %2429 = vmatpush1.msra.mxu0 %v2292
    %2430 = vmatprep.subr.mxu0 0.0
    %2431 = vmatpush2.msra.mxu0 0.0
    %2432 = vmatprep.subr.mxu0 0.0
    %2433 = vmatpush2.msra.mxu0 0.0
    %2434 = vmatprep.subr.mxu0 0.0
    %2435 = vmatpush2.msra.mxu0 0.0
    %2436 = vmatprep.subr.mxu0 0.0
    %2437 = vmatpush2.msra.mxu0 0.0
    %2438 = vmatprep.subr.mxu0 0.0
    %2439 = vmatpush2.msra.mxu0 0.0
    %2440 = vmatprep.subr.mxu0 0.0
    %2441 = vmatpush2.msra.mxu0 0.0
    %2442 = vmatprep.subr.mxu0 0.0
    %2443 = vmatpush2.msra.mxu0 0.0
    %2444 = vmatprep.subr.mxu0 0.0
    %2445 = vmatpush2.msra.mxu0 0.0
    %2446 = vmatprep.subr.mxu0 0.0
    %2447 = vmatpush2.msra.mxu0 0.0
    %2448 = vmatprep.subr.mxu0 0.0
    %2449 = vmatpush2.msra.mxu0 0.0
    %2450 = vmatprep.subr.mxu0 0.0
    %2451 = vmatpush2.msra.mxu0 0.0
    %2452 = vmatprep.subr.mxu0 0.0
    %2453 = vmatpush2.msra.mxu0 0.0
    %2454 = vmatprep.subr.mxu0 0.0
    %2455 = vmatpush2.msra.mxu0 0.0
    %2456 = vmatprep.subr.mxu0 0.0
    %2457 = vmatpush2.msra.mxu0 0.0
    %2458 = vmatprep.subr.mxu0 0.0
    %2459 = vmatpush2.msra.mxu0 0.0
    %2460 = vmatprep.subr.mxu0 0.0
    %2461 = vmatpush2.msra.mxu0 0.0
    %2462 = vmatprep.mubr.f32.mxu0 0.0
    %2463 = vmatmul.mubr.f32.gmra.mxu0 %v2303
    %v2464 = vpop.f32.mrf.mxu0
    %v2465 = vadd.f32 %v2300, %v2464
    %v2466 = vpop.f32.mrf.mxu0
    %2467 = vmatprep.mubr.f32.mxu0 0.0
    %2468 = vmatmul.mubr.f32.gmra.mxu0 %v2306
    %v2469 = vpop.f32.mrf.mxu0
    %v2470 = vadd.f32 %v2300, %v2469
    %v2471 = vpop.f32.mrf.mxu0
    %2472 = vmatprep.mubr.f32.mxu0 0.0
    %2473 = vmatmul.mubr.f32.gmra.mxu0 %v2309
    %v2474 = vpop.f32.mrf.mxu0
    %v2475 = vadd.f32 %v2300, %v2474
    %v2476 = vpop.f32.mrf.mxu0
    %2477 = vmatprep.mubr.f32.mxu0 0.0
    %2478 = vmatmul.mubr.f32.gmra.mxu0 %v2312
    %v2479 = vpop.f32.mrf.mxu0
    %v2480 = vadd.f32 %v2300, %v2479
    %v2481 = vpop.f32.mrf.mxu0
    %2482 = vmatprep.mubr.f32.mxu0 0.0
    %2483 = vmatmul.mubr.f32.gmra.mxu0 %v2315
    %v2484 = vpop.f32.mrf.mxu0
    %v2485 = vadd.f32 %v2300, %v2484
    %v2486 = vpop.f32.mrf.mxu0
    %2487 = vmatprep.mubr.f32.mxu0 0.0
    %2488 = vmatmul.mubr.f32.gmra.mxu0 %v2318
    %v2489 = vpop.f32.mrf.mxu0
    %v2490 = vadd.f32 %v2300, %v2489
    %v2491 = vpop.f32.mrf.mxu0
    %2492 = vmatprep.mubr.f32.mxu0 0.0
    %2493 = vmatmul.mubr.f32.gmra.mxu0 %v2321
    %v2494 = vpop.f32.mrf.mxu0
    %v2495 = vadd.f32 %v2300, %v2494
    %v2496 = vpop.f32.mrf.mxu0
    %2497 = vmatprep.mubr.f32.mxu0 0.0
    %2498 = vmatmul.mubr.f32.gmra.mxu0 %v2324
    %v2499 = vpop.f32.mrf.mxu0
    %v2500 = vadd.f32 %v2300, %v2499
    %v2501 = vpop.f32.mrf.mxu0
    %2502 = vmatprep.mubr.f32.mxu0 0.0
    %2503 = vmatmul.mubr.f32.gmra.mxu0 %v2327
    %v2504 = vpop.f32.mrf.mxu0
    %v2505 = vadd.f32 %v2300, %v2504
    %v2506 = vpop.f32.mrf.mxu0
    %2507 = vmatprep.mubr.f32.mxu0 0.0
    %2508 = vmatmul.mubr.f32.gmra.mxu0 %v2330
    %v2509 = vpop.f32.mrf.mxu0
    %v2510 = vadd.f32 %v2300, %v2509
    %v2511 = vpop.f32.mrf.mxu0
    %2512 = vmatprep.mubr.f32.mxu0 0.0
    %2513 = vmatmul.mubr.f32.gmra.mxu0 %v2333
    %v2514 = vpop.f32.mrf.mxu0
    %v2515 = vadd.f32 %v2300, %v2514
    %v2516 = vpop.f32.mrf.mxu0
    %2517 = vmatprep.mubr.f32.mxu0 0.0
    %2518 = vmatmul.mubr.f32.gmra.mxu0 %v2336
    %v2519 = vpop.f32.mrf.mxu0
    %v2520 = vadd.f32 %v2300, %v2519
    %v2521 = vpop.f32.mrf.mxu0
    %2522 = vmatprep.mubr.f32.mxu0 0.0
    %2523 = vmatmul.mubr.f32.gmra.mxu0 %v2339
    %v2524 = vpop.f32.mrf.mxu0
    %v2525 = vadd.f32 %v2300, %v2524
    %v2526 = vpop.f32.mrf.mxu0
    %2527 = vmatprep.mubr.f32.mxu0 0.0
    %2528 = vmatmul.mubr.f32.gmra.mxu0 %v2342
    %v2529 = vpop.f32.mrf.mxu0
    %v2530 = vadd.f32 %v2300, %v2529
    %v2531 = vpop.f32.mrf.mxu0
    %2532 = vmatprep.mubr.f32.mxu0 0.0
    %2533 = vmatmul.mubr.f32.gmra.mxu0 %v2345
    %v2534 = vpop.f32.mrf.mxu0
    %v2535 = vadd.f32 %v2300, %v2534
    %v2536 = vpop.f32.mrf.mxu0
    %2537 = vmatprep.mubr.f32.mxu0 0.0
    %2538 = vmatmul.mubr.f32.gmra.mxu0 %v2348
    %v2539 = vpop.f32.mrf.mxu0
    %v2540 = vadd.f32 %v2300, %v2539
    %v2541 = vpop.f32.mrf.mxu0
    %2542 = vmatprep.mubr.f32.mxu0 0.0
    %2543 = vmatmul.mubr.f32.gmra.mxu0 %v2351
    %v2544 = vpop.f32.mrf.mxu0
    %v2545 = vadd.f32 %v2300, %v2544
    %v2546 = vpop.f32.mrf.mxu0
    %2547 = vmatprep.mubr.f32.mxu0 0.0
    %2548 = vmatmul.mubr.f32.gmra.mxu0 %v2354
    %v2549 = vpop.f32.mrf.mxu0
    %v2550 = vadd.f32 %v2300, %v2549
    %v2551 = vpop.f32.mrf.mxu0
    %2552 = vmatprep.mubr.f32.mxu0 0.0
    %2553 = vmatmul.mubr.f32.gmra.mxu0 %v2357
    %v2554 = vpop.f32.mrf.mxu0
    %v2555 = vadd.f32 %v2300, %v2554
    %v2556 = vpop.f32.mrf.mxu0
    %2557 = vmatprep.mubr.f32.mxu0 0.0
    %2558 = vmatmul.mubr.f32.gmra.mxu0 %v2360
    %v2559 = vpop.f32.mrf.mxu0
    %v2560 = vadd.f32 %v2300, %v2559
    %v2561 = vpop.f32.mrf.mxu0
    %2562 = vmatprep.mubr.f32.mxu0 0.0
    %2563 = vmatmul.mubr.f32.gmra.mxu0 %v2363
    %v2564 = vpop.f32.mrf.mxu0
    %v2565 = vadd.f32 %v2300, %v2564
    %v2566 = vpop.f32.mrf.mxu0
    %2567 = vmatprep.mubr.f32.mxu0 0.0
    %2568 = vmatmul.mubr.f32.gmra.mxu0 %v2366
    %v2569 = vpop.f32.mrf.mxu0
    %v2570 = vadd.f32 %v2300, %v2569
    %v2571 = vpop.f32.mrf.mxu0
    %2572 = vmatprep.mubr.f32.mxu0 0.0
    %2573 = vmatmul.mubr.f32.gmra.mxu0 %v2369
    %v2574 = vpop.f32.mrf.mxu0
    %v2575 = vadd.f32 %v2300, %v2574
    %v2576 = vpop.f32.mrf.mxu0
    %2577 = vmatprep.mubr.f32.mxu0 0.0
    %2578 = vmatmul.mubr.f32.gmra.mxu0 %v2372
    %v2579 = vpop.f32.mrf.mxu0
    %v2580 = vadd.f32 %v2300, %v2579
    %v2581 = vpop.f32.mrf.mxu0
    %2582 = vmatprep.mubr.f32.mxu0 0.0
    %2583 = vmatmul.mubr.f32.gmra.mxu0 %v2375
    %v2584 = vpop.f32.mrf.mxu0
    %v2585 = vadd.f32 %v2300, %v2584
    %v2586 = vpop.f32.mrf.mxu0
    %2587 = vmatprep.mubr.f32.mxu0 0.0
    %2588 = vmatmul.mubr.f32.gmra.mxu0 %v2378
    %v2589 = vpop.f32.mrf.mxu0
    %v2590 = vadd.f32 %v2300, %v2589
    %v2591 = vpop.f32.mrf.mxu0
    %2592 = vmatprep.mubr.f32.mxu0 0.0
    %2593 = vmatmul.mubr.f32.gmra.mxu0 %v2381
    %v2594 = vpop.f32.mrf.mxu0
    %v2595 = vadd.f32 %v2300, %v2594
    %v2596 = vpop.f32.mrf.mxu0
    %2597 = vmatprep.mubr.f32.mxu0 0.0
    %2598 = vmatmul.mubr.f32.gmra.mxu0 %v2384
    %v2599 = vpop.f32.mrf.mxu0
    %v2600 = vadd.f32 %v2300, %v2599
    %v2601 = vpop.f32.mrf.mxu0
    %2602 = vmatprep.mubr.f32.mxu0 0.0
    %2603 = vmatmul.mubr.f32.gmra.mxu0 %v2387
    %v2604 = vpop.f32.mrf.mxu0
    %v2605 = vadd.f32 %v2300, %v2604
    %v2606 = vpop.f32.mrf.mxu0
    %2607 = vmatprep.mubr.f32.mxu0 0.0
    %2608 = vmatmul.mubr.f32.gmra.mxu0 %v2390
    %v2609 = vpop.f32.mrf.mxu0
    %v2610 = vadd.f32 %v2300, %v2609
    %v2611 = vpop.f32.mrf.mxu0
    %2612 = vmatprep.mubr.f32.mxu0 0.0
    %2613 = vmatmul.mubr.f32.gmra.mxu0 %v2393
    %v2614 = vpop.f32.mrf.mxu0
    %v2615 = vadd.f32 %v2300, %v2614
    %v2616 = vpop.f32.mrf.mxu0
    %2617 = vmatprep.mubr.f32.mxu0 0.0
    %2618 = vmatmul.mubr.f32.gmra.mxu0 %v2396
    %v2619 = vpop.f32.mrf.mxu0
    %v2620 = vadd.f32 %v2300, %v2619
    %v2621 = vpop.f32.mrf.mxu0
    %2622 = vdwg.mxu0
    %vm2623 = vcmp.gt.f32.partialorder %v2465, 0.0
    %vm2624 = vcmp.gt.f32.partialorder %v2470, 0.0
    %vm2625 = vcmp.gt.f32.partialorder %v2475, 0.0
    %vm2626 = vcmp.gt.f32.partialorder %v2480, 0.0
    %vm2627 = vcmp.gt.f32.partialorder %v2485, 0.0
    %vm2628 = vcmp.gt.f32.partialorder %v2490, 0.0
    %vm2629 = vcmp.gt.f32.partialorder %v2495, 0.0
    %vm2630 = vcmp.gt.f32.partialorder %v2500, 0.0
    %vm2631 = vcmp.gt.f32.partialorder %v2505, 0.0
    %vm2632 = vcmp.gt.f32.partialorder %v2510, 0.0
    %vm2633 = vcmp.gt.f32.partialorder %v2515, 0.0
    %vm2634 = vcmp.gt.f32.partialorder %v2520, 0.0
    %vm2635 = vcmp.gt.f32.partialorder %v2525, 0.0
    %vm2636 = vcmp.gt.f32.partialorder %v2530, 0.0
    %vm2637 = vcmp.gt.f32.partialorder %v2535, 0.0
    %vm2638 = vcmp.gt.f32.partialorder %v2540, 0.0
    %vm2639 = vcmp.gt.f32.partialorder %v2545, 0.0
    %vm2640 = vcmp.gt.f32.partialorder %v2550, 0.0
    %vm2641 = vcmp.gt.f32.partialorder %v2555, 0.0
    %vm2642 = vcmp.gt.f32.partialorder %v2560, 0.0
    %vm2643 = vcmp.gt.f32.partialorder %v2565, 0.0
    %vm2644 = vcmp.gt.f32.partialorder %v2570, 0.0
    %vm2645 = vcmp.gt.f32.partialorder %v2575, 0.0
    %vm2646 = vcmp.gt.f32.partialorder %v2580, 0.0
    %vm2647 = vcmp.gt.f32.partialorder %v2585, 0.0
    %vm2648 = vcmp.gt.f32.partialorder %v2590, 0.0
    %vm2649 = vcmp.gt.f32.partialorder %v2595, 0.0
    %vm2650 = vcmp.gt.f32.partialorder %v2600, 0.0
    %vm2651 = vcmp.gt.f32.partialorder %v2605, 0.0
    %vm2652 = vcmp.gt.f32.partialorder %v2610, 0.0
    %vm2653 = vcmp.gt.f32.partialorder %v2615, 0.0
    %vm2654 = vcmp.gt.f32.partialorder %v2620, 0.0
    %v2655 = vmul.f32 %v2465, 0.01
    %v2656 = vmul.f32 %v2470, 0.01
    %v2657 = vmul.f32 %v2475, 0.01
    %v2658 = vmul.f32 %v2480, 0.01
    %v2659 = vmul.f32 %v2485, 0.01
    %v2660 = vmul.f32 %v2490, 0.01
    %v2661 = vmul.f32 %v2495, 0.01
    %v2662 = vmul.f32 %v2500, 0.01
    %v2663 = vmul.f32 %v2505, 0.01
    %v2664 = vmul.f32 %v2510, 0.01
    %v2665 = vmul.f32 %v2515, 0.01
    %v2666 = vmul.f32 %v2520, 0.01
    %v2667 = vmul.f32 %v2525, 0.01
    %v2668 = vmul.f32 %v2530, 0.01
    %v2669 = vmul.f32 %v2535, 0.01
    %v2670 = vmul.f32 %v2540, 0.01
    %v2671 = vmul.f32 %v2545, 0.01
    %v2672 = vmul.f32 %v2550, 0.01
    %v2673 = vmul.f32 %v2555, 0.01
    %v2674 = vmul.f32 %v2560, 0.01
    %v2675 = vmul.f32 %v2565, 0.01
    %v2676 = vmul.f32 %v2570, 0.01
    %v2677 = vmul.f32 %v2575, 0.01
    %v2678 = vmul.f32 %v2580, 0.01
    %v2679 = vmul.f32 %v2585, 0.01
    %v2680 = vmul.f32 %v2590, 0.01
    %v2681 = vmul.f32 %v2595, 0.01
    %v2682 = vmul.f32 %v2600, 0.01
    %v2683 = vmul.f32 %v2605, 0.01
    %v2684 = vmul.f32 %v2610, 0.01
    %v2685 = vmul.f32 %v2615, 0.01
    %v2686 = vmul.f32 %v2620, 0.01
    %v2687 = vsel %vm2623, %v2465, %v2655
    %v2688 = vsel %vm2624, %v2470, %v2656
    %v2689 = vsel %vm2625, %v2475, %v2657
    %v2690 = vsel %vm2626, %v2480, %v2658
    %v2691 = vsel %vm2627, %v2485, %v2659
    %v2692 = vsel %vm2628, %v2490, %v2660
    %v2693 = vsel %vm2629, %v2495, %v2661
    %v2694 = vsel %vm2630, %v2500, %v2662
    %v2695 = vsel %vm2631, %v2505, %v2663
    %v2696 = vsel %vm2632, %v2510, %v2664
    %v2697 = vsel %vm2633, %v2515, %v2665
    %v2698 = vsel %vm2634, %v2520, %v2666
    %v2699 = vsel %vm2635, %v2525, %v2667
    %v2700 = vsel %vm2636, %v2530, %v2668
    %v2701 = vsel %vm2637, %v2535, %v2669
    %v2702 = vsel %vm2638, %v2540, %v2670
    %v2703 = vsel %vm2639, %v2545, %v2671
    %v2704 = vsel %vm2640, %v2550, %v2672
    %v2705 = vsel %vm2641, %v2555, %v2673
    %v2706 = vsel %vm2642, %v2560, %v2674
    %v2707 = vsel %vm2643, %v2565, %v2675
    %v2708 = vsel %vm2644, %v2570, %v2676
    %v2709 = vsel %vm2645, %v2575, %v2677
    %v2710 = vsel %vm2646, %v2580, %v2678
    %v2711 = vsel %vm2647, %v2585, %v2679
    %v2712 = vsel %vm2648, %v2590, %v2680
    %v2713 = vsel %vm2649, %v2595, %v2681
    %v2714 = vsel %vm2650, %v2600, %v2682
    %v2715 = vsel %vm2651, %v2605, %v2683
    %v2716 = vsel %vm2652, %v2610, %v2684
    %v2717 = vsel %vm2653, %v2615, %v2685
    %v2718 = vsel %vm2654, %v2620, %v2686
    %s2719 = scalar_lea.vmem %s4, 128
    %v2720 = vld [vmem:[%s2719] sm:$0xff]
    %v2721 = vld [vmem:[%s2719 + $0x8] sm:$0xff]
    %v2722 = vld [vmem:[%s2719 + $0x10] sm:$0xff]
    %v2723 = vld [vmem:[%s2719 + $0x18] sm:$0xff]
    %s2724 = scalar_lea.vmem %s5, 4
    %v2725 = vld [vmem:[%s2724] sm:$0x1]
    %v2727 = vlaneseq
    %v2728 = vshrl.u32 %v2727, 7
    %v2729 = vsub.s32 0, %v2728
    %v2730 = vrot.slane %v2725, %v2729
    %v2733 = vsel %vm551, %v2687, 0
    %v2736 = vsel %vm551, %v2688, 0
    %v2739 = vsel %vm551, %v2689, 0
    %v2742 = vsel %vm551, %v2690, 0
    %v2745 = vsel %vm551, %v2691, 0
    %v2748 = vsel %vm551, %v2692, 0
    %v2751 = vsel %vm551, %v2693, 0
    %v2754 = vsel %vm551, %v2694, 0
    %v2757 = vsel %vm551, %v2695, 0
    %v2760 = vsel %vm551, %v2696, 0
    %v2763 = vsel %vm551, %v2697, 0
    %v2766 = vsel %vm551, %v2698, 0
    %v2769 = vsel %vm551, %v2699, 0
    %v2772 = vsel %vm551, %v2700, 0
    %v2775 = vsel %vm551, %v2701, 0
    %v2778 = vsel %vm551, %v2702, 0
    %v2781 = vsel %vm551, %v2703, 0
    %v2784 = vsel %vm551, %v2704, 0
    %v2787 = vsel %vm551, %v2705, 0
    %v2790 = vsel %vm551, %v2706, 0
    %v2793 = vsel %vm551, %v2707, 0
    %v2796 = vsel %vm551, %v2708, 0
    %v2799 = vsel %vm551, %v2709, 0
    %v2802 = vsel %vm551, %v2710, 0
    %v2805 = vsel %vm551, %v2711, 0
    %v2808 = vsel %vm551, %v2712, 0
    %v2811 = vsel %vm551, %v2713, 0
    %v2814 = vsel %vm551, %v2714, 0
    %v2817 = vsel %vm551, %v2715, 0
    %v2820 = vsel %vm551, %v2716, 0
    %v2823 = vsel %vm551, %v2717, 0
    %v2826 = vsel %vm551, %v2718, 0
    %2828 = vmatprep.subr.mxu0 0.0
    %2829 = vmatpush1.msra.mxu0 0.0
    %2830 = vmatprep.subr.mxu0 0.0
    %2831 = vmatpush1.msra.mxu0 0.0
    %2832 = vmatprep.subr.mxu0 0.0
    %2833 = vmatpush1.msra.mxu0 0.0
    %2834 = vmatprep.subr.mxu0 0.0
    %2835 = vmatpush1.msra.mxu0 0.0
    %2836 = vmatprep.subr.mxu0 0.0
    %2837 = vmatpush1.msra.mxu0 0.0
    %2838 = vmatprep.subr.mxu0 0.0
    %2839 = vmatpush1.msra.mxu0 0.0
    %2840 = vmatprep.subr.mxu0 0.0
    %2841 = vmatpush1.msra.mxu0 0.0
    %2842 = vmatprep.subr.mxu0 0.0
    %2843 = vmatpush1.msra.mxu0 0.0
    %2844 = vmatprep.subr.mxu0 0.0
    %2845 = vmatpush1.msra.mxu0 0.0
    %2846 = vmatprep.subr.mxu0 0.0
    %2847 = vmatpush1.msra.mxu0 0.0
    %2848 = vmatprep.subr.mxu0 0.0
    %2849 = vmatpush1.msra.mxu0 0.0
    %2850 = vmatprep.subr.mxu0 0.0
    %2851 = vmatpush1.msra.mxu0 0.0
    %2852 = vmatprep.subr.mxu0 0.0
    %2853 = vmatpush1.msra.mxu0 %v2723
    %2854 = vmatprep.subr.mxu0 0.0
    %2855 = vmatpush1.msra.mxu0 %v2722
    %2856 = vmatprep.subr.mxu0 0.0
    %2857 = vmatpush1.msra.mxu0 %v2721
    %2858 = vmatprep.subr.mxu0 0.0
    %2859 = vmatpush1.msra.mxu0 %v2720
    %2860 = vmatprep.subr.mxu0 0.0
    %2861 = vmatpush2.msra.mxu0 0.0
    %2862 = vmatprep.subr.mxu0 0.0
    %2863 = vmatpush2.msra.mxu0 0.0
    %2864 = vmatprep.subr.mxu0 0.0
    %2865 = vmatpush2.msra.mxu0 0.0
    %2866 = vmatprep.subr.mxu0 0.0
    %2867 = vmatpush2.msra.mxu0 0.0
    %2868 = vmatprep.subr.mxu0 0.0
    %2869 = vmatpush2.msra.mxu0 0.0
    %2870 = vmatprep.subr.mxu0 0.0
    %2871 = vmatpush2.msra.mxu0 0.0
    %2872 = vmatprep.subr.mxu0 0.0
    %2873 = vmatpush2.msra.mxu0 0.0
    %2874 = vmatprep.subr.mxu0 0.0
    %2875 = vmatpush2.msra.mxu0 0.0
    %2876 = vmatprep.subr.mxu0 0.0
    %2877 = vmatpush2.msra.mxu0 0.0
    %2878 = vmatprep.subr.mxu0 0.0
    %2879 = vmatpush2.msra.mxu0 0.0
    %2880 = vmatprep.subr.mxu0 0.0
    %2881 = vmatpush2.msra.mxu0 0.0
    %2882 = vmatprep.subr.mxu0 0.0
    %2883 = vmatpush2.msra.mxu0 0.0
    %2884 = vmatprep.subr.mxu0 0.0
    %2885 = vmatpush2.msra.mxu0 0.0
    %2886 = vmatprep.subr.mxu0 0.0
    %2887 = vmatpush2.msra.mxu0 0.0
    %2888 = vmatprep.subr.mxu0 0.0
    %2889 = vmatpush2.msra.mxu0 0.0
    %2890 = vmatprep.subr.mxu0 0.0
    %2891 = vmatpush2.msra.mxu0 0.0
    %2892 = vmatprep.mubr.f32.mxu0 0.0
    %2893 = vmatmul.mubr.f32.gmra.mxu0 %v2733
    %v2894 = vpop.f32.mrf.mxu0
    %v2895 = vadd.f32 %v2730, %v2894
    %v2896 = vpop.f32.mrf.mxu0
    %2897 = vmatprep.mubr.f32.mxu0 0.0
    %2898 = vmatmul.mubr.f32.gmra.mxu0 %v2736
    %v2899 = vpop.f32.mrf.mxu0
    %v2900 = vadd.f32 %v2730, %v2899
    %v2901 = vpop.f32.mrf.mxu0
    %2902 = vmatprep.mubr.f32.mxu0 0.0
    %2903 = vmatmul.mubr.f32.gmra.mxu0 %v2739
    %v2904 = vpop.f32.mrf.mxu0
    %v2905 = vadd.f32 %v2730, %v2904
    %v2906 = vpop.f32.mrf.mxu0
    %2907 = vmatprep.mubr.f32.mxu0 0.0
    %2908 = vmatmul.mubr.f32.gmra.mxu0 %v2742
    %v2909 = vpop.f32.mrf.mxu0
    %v2910 = vadd.f32 %v2730, %v2909
    %v2911 = vpop.f32.mrf.mxu0
    %2912 = vmatprep.mubr.f32.mxu0 0.0
    %2913 = vmatmul.mubr.f32.gmra.mxu0 %v2745
    %v2914 = vpop.f32.mrf.mxu0
    %v2915 = vadd.f32 %v2730, %v2914
    %v2916 = vpop.f32.mrf.mxu0
    %2917 = vmatprep.mubr.f32.mxu0 0.0
    %2918 = vmatmul.mubr.f32.gmra.mxu0 %v2748
    %v2919 = vpop.f32.mrf.mxu0
    %v2920 = vadd.f32 %v2730, %v2919
    %v2921 = vpop.f32.mrf.mxu0
    %2922 = vmatprep.mubr.f32.mxu0 0.0
    %2923 = vmatmul.mubr.f32.gmra.mxu0 %v2751
    %v2924 = vpop.f32.mrf.mxu0
    %v2925 = vadd.f32 %v2730, %v2924
    %v2926 = vpop.f32.mrf.mxu0
    %2927 = vmatprep.mubr.f32.mxu0 0.0
    %2928 = vmatmul.mubr.f32.gmra.mxu0 %v2754
    %v2929 = vpop.f32.mrf.mxu0
    %v2930 = vadd.f32 %v2730, %v2929
    %v2931 = vpop.f32.mrf.mxu0
    %2932 = vmatprep.mubr.f32.mxu0 0.0
    %2933 = vmatmul.mubr.f32.gmra.mxu0 %v2757
    %v2934 = vpop.f32.mrf.mxu0
    %v2935 = vadd.f32 %v2730, %v2934
    %v2936 = vpop.f32.mrf.mxu0
    %2937 = vmatprep.mubr.f32.mxu0 0.0
    %2938 = vmatmul.mubr.f32.gmra.mxu0 %v2760
    %v2939 = vpop.f32.mrf.mxu0
    %v2940 = vadd.f32 %v2730, %v2939
    %v2941 = vpop.f32.mrf.mxu0
    %2942 = vmatprep.mubr.f32.mxu0 0.0
    %2943 = vmatmul.mubr.f32.gmra.mxu0 %v2763
    %v2944 = vpop.f32.mrf.mxu0
    %v2945 = vadd.f32 %v2730, %v2944
    %v2946 = vpop.f32.mrf.mxu0
    %2947 = vmatprep.mubr.f32.mxu0 0.0
    %2948 = vmatmul.mubr.f32.gmra.mxu0 %v2766
    %v2949 = vpop.f32.mrf.mxu0
    %v2950 = vadd.f32 %v2730, %v2949
    %v2951 = vpop.f32.mrf.mxu0
    %2952 = vmatprep.mubr.f32.mxu0 0.0
    %2953 = vmatmul.mubr.f32.gmra.mxu0 %v2769
    %v2954 = vpop.f32.mrf.mxu0
    %v2955 = vadd.f32 %v2730, %v2954
    %v2956 = vpop.f32.mrf.mxu0
    %2957 = vmatprep.mubr.f32.mxu0 0.0
    %2958 = vmatmul.mubr.f32.gmra.mxu0 %v2772
    %v2959 = vpop.f32.mrf.mxu0
    %v2960 = vadd.f32 %v2730, %v2959
    %v2961 = vpop.f32.mrf.mxu0
    %2962 = vmatprep.mubr.f32.mxu0 0.0
    %2963 = vmatmul.mubr.f32.gmra.mxu0 %v2775
    %v2964 = vpop.f32.mrf.mxu0
    %v2965 = vadd.f32 %v2730, %v2964
    %v2966 = vpop.f32.mrf.mxu0
    %2967 = vmatprep.mubr.f32.mxu0 0.0
    %2968 = vmatmul.mubr.f32.gmra.mxu0 %v2778
    %v2969 = vpop.f32.mrf.mxu0
    %v2970 = vadd.f32 %v2730, %v2969
    %v2971 = vpop.f32.mrf.mxu0
    %2972 = vmatprep.mubr.f32.mxu0 0.0
    %2973 = vmatmul.mubr.f32.gmra.mxu0 %v2781
    %v2974 = vpop.f32.mrf.mxu0
    %v2975 = vadd.f32 %v2730, %v2974
    %v2976 = vpop.f32.mrf.mxu0
    %2977 = vmatprep.mubr.f32.mxu0 0.0
    %2978 = vmatmul.mubr.f32.gmra.mxu0 %v2784
    %v2979 = vpop.f32.mrf.mxu0
    %v2980 = vadd.f32 %v2730, %v2979
    %v2981 = vpop.f32.mrf.mxu0
    %2982 = vmatprep.mubr.f32.mxu0 0.0
    %2983 = vmatmul.mubr.f32.gmra.mxu0 %v2787
    %v2984 = vpop.f32.mrf.mxu0
    %v2985 = vadd.f32 %v2730, %v2984
    %v2986 = vpop.f32.mrf.mxu0
    %2987 = vmatprep.mubr.f32.mxu0 0.0
    %2988 = vmatmul.mubr.f32.gmra.mxu0 %v2790
    %v2989 = vpop.f32.mrf.mxu0
    %v2990 = vadd.f32 %v2730, %v2989
    %v2991 = vpop.f32.mrf.mxu0
    %2992 = vmatprep.mubr.f32.mxu0 0.0
    %2993 = vmatmul.mubr.f32.gmra.mxu0 %v2793
    %v2994 = vpop.f32.mrf.mxu0
    %v2995 = vadd.f32 %v2730, %v2994
    %v2996 = vpop.f32.mrf.mxu0
    %2997 = vmatprep.mubr.f32.mxu0 0.0
    %2998 = vmatmul.mubr.f32.gmra.mxu0 %v2796
    %v2999 = vpop.f32.mrf.mxu0
    %v3000 = vadd.f32 %v2730, %v2999
    %v3001 = vpop.f32.mrf.mxu0
    %3002 = vmatprep.mubr.f32.mxu0 0.0
    %3003 = vmatmul.mubr.f32.gmra.mxu0 %v2799
    %v3004 = vpop.f32.mrf.mxu0
    %v3005 = vadd.f32 %v2730, %v3004
    %v3006 = vpop.f32.mrf.mxu0
    %3007 = vmatprep.mubr.f32.mxu0 0.0
    %3008 = vmatmul.mubr.f32.gmra.mxu0 %v2802
    %v3009 = vpop.f32.mrf.mxu0
    %v3010 = vadd.f32 %v2730, %v3009
    %v3011 = vpop.f32.mrf.mxu0
    %3012 = vmatprep.mubr.f32.mxu0 0.0
    %3013 = vmatmul.mubr.f32.gmra.mxu0 %v2805
    %v3014 = vpop.f32.mrf.mxu0
    %v3015 = vadd.f32 %v2730, %v3014
    %v3016 = vpop.f32.mrf.mxu0
    %3017 = vmatprep.mubr.f32.mxu0 0.0
    %3018 = vmatmul.mubr.f32.gmra.mxu0 %v2808
    %v3019 = vpop.f32.mrf.mxu0
    %v3020 = vadd.f32 %v2730, %v3019
    %v3021 = vpop.f32.mrf.mxu0
    %3022 = vmatprep.mubr.f32.mxu0 0.0
    %3023 = vmatmul.mubr.f32.gmra.mxu0 %v2811
    %v3024 = vpop.f32.mrf.mxu0
    %v3025 = vadd.f32 %v2730, %v3024
    %v3026 = vpop.f32.mrf.mxu0
    %3027 = vmatprep.mubr.f32.mxu0 0.0
    %3028 = vmatmul.mubr.f32.gmra.mxu0 %v2814
    %v3029 = vpop.f32.mrf.mxu0
    %v3030 = vadd.f32 %v2730, %v3029
    %v3031 = vpop.f32.mrf.mxu0
    %3032 = vmatprep.mubr.f32.mxu0 0.0
    %3033 = vmatmul.mubr.f32.gmra.mxu0 %v2817
    %v3034 = vpop.f32.mrf.mxu0
    %v3035 = vadd.f32 %v2730, %v3034
    %v3036 = vpop.f32.mrf.mxu0
    %3037 = vmatprep.mubr.f32.mxu0 0.0
    %3038 = vmatmul.mubr.f32.gmra.mxu0 %v2820
    %v3039 = vpop.f32.mrf.mxu0
    %v3040 = vadd.f32 %v2730, %v3039
    %v3041 = vpop.f32.mrf.mxu0
    %3042 = vmatprep.mubr.f32.mxu0 0.0
    %3043 = vmatmul.mubr.f32.gmra.mxu0 %v2823
    %v3044 = vpop.f32.mrf.mxu0
    %v3045 = vadd.f32 %v2730, %v3044
    %v3046 = vpop.f32.mrf.mxu0
    %3047 = vmatprep.mubr.f32.mxu0 0.0
    %3048 = vmatmul.mubr.f32.gmra.mxu0 %v2826
    %v3049 = vpop.f32.mrf.mxu0
    %v3050 = vadd.f32 %v2730, %v3049
    %v3051 = vpop.f32.mrf.mxu0
    %3052 = vdwg.mxu0
    %vm3053 = vcmp.gt.f32.partialorder %v2895, 0.0
    %vm3054 = vcmp.gt.f32.partialorder %v2900, 0.0
    %vm3055 = vcmp.gt.f32.partialorder %v2905, 0.0
    %vm3056 = vcmp.gt.f32.partialorder %v2910, 0.0
    %vm3057 = vcmp.gt.f32.partialorder %v2915, 0.0
    %vm3058 = vcmp.gt.f32.partialorder %v2920, 0.0
    %vm3059 = vcmp.gt.f32.partialorder %v2925, 0.0
    %vm3060 = vcmp.gt.f32.partialorder %v2930, 0.0
    %vm3061 = vcmp.gt.f32.partialorder %v2935, 0.0
    %vm3062 = vcmp.gt.f32.partialorder %v2940, 0.0
    %vm3063 = vcmp.gt.f32.partialorder %v2945, 0.0
    %vm3064 = vcmp.gt.f32.partialorder %v2950, 0.0
    %vm3065 = vcmp.gt.f32.partialorder %v2955, 0.0
    %vm3066 = vcmp.gt.f32.partialorder %v2960, 0.0
    %vm3067 = vcmp.gt.f32.partialorder %v2965, 0.0
    %vm3068 = vcmp.gt.f32.partialorder %v2970, 0.0
    %vm3069 = vcmp.gt.f32.partialorder %v2975, 0.0
    %vm3070 = vcmp.gt.f32.partialorder %v2980, 0.0
    %vm3071 = vcmp.gt.f32.partialorder %v2985, 0.0
    %vm3072 = vcmp.gt.f32.partialorder %v2990, 0.0
    %vm3073 = vcmp.gt.f32.partialorder %v2995, 0.0
    %vm3074 = vcmp.gt.f32.partialorder %v3000, 0.0
    %vm3075 = vcmp.gt.f32.partialorder %v3005, 0.0
    %vm3076 = vcmp.gt.f32.partialorder %v3010, 0.0
    %vm3077 = vcmp.gt.f32.partialorder %v3015, 0.0
    %vm3078 = vcmp.gt.f32.partialorder %v3020, 0.0
    %vm3079 = vcmp.gt.f32.partialorder %v3025, 0.0
    %vm3080 = vcmp.gt.f32.partialorder %v3030, 0.0
    %vm3081 = vcmp.gt.f32.partialorder %v3035, 0.0
    %vm3082 = vcmp.gt.f32.partialorder %v3040, 0.0
    %vm3083 = vcmp.gt.f32.partialorder %v3045, 0.0
    %vm3084 = vcmp.gt.f32.partialorder %v3050, 0.0
    %v3085 = vmul.f32 %v2895, 0.01
    %v3086 = vmul.f32 %v2900, 0.01
    %v3087 = vmul.f32 %v2905, 0.01
    %v3088 = vmul.f32 %v2910, 0.01
    %v3089 = vmul.f32 %v2915, 0.01
    %v3090 = vmul.f32 %v2920, 0.01
    %v3091 = vmul.f32 %v2925, 0.01
    %v3092 = vmul.f32 %v2930, 0.01
    %v3093 = vmul.f32 %v2935, 0.01
    %v3094 = vmul.f32 %v2940, 0.01
    %v3095 = vmul.f32 %v2945, 0.01
    %v3096 = vmul.f32 %v2950, 0.01
    %v3097 = vmul.f32 %v2955, 0.01
    %v3098 = vmul.f32 %v2960, 0.01
    %v3099 = vmul.f32 %v2965, 0.01
    %v3100 = vmul.f32 %v2970, 0.01
    %v3101 = vmul.f32 %v2975, 0.01
    %v3102 = vmul.f32 %v2980, 0.01
    %v3103 = vmul.f32 %v2985, 0.01
    %v3104 = vmul.f32 %v2990, 0.01
    %v3105 = vmul.f32 %v2995, 0.01
    %v3106 = vmul.f32 %v3000, 0.01
    %v3107 = vmul.f32 %v3005, 0.01
    %v3108 = vmul.f32 %v3010, 0.01
    %v3109 = vmul.f32 %v3015, 0.01
    %v3110 = vmul.f32 %v3020, 0.01
    %v3111 = vmul.f32 %v3025, 0.01
    %v3112 = vmul.f32 %v3030, 0.01
    %v3113 = vmul.f32 %v3035, 0.01
    %v3114 = vmul.f32 %v3040, 0.01
    %v3115 = vmul.f32 %v3045, 0.01
    %v3116 = vmul.f32 %v3050, 0.01
    %v3117 = vsel %vm3053, %v2895, %v3085
    %v3118 = vsel %vm3054, %v2900, %v3086
    %v3119 = vsel %vm3055, %v2905, %v3087
    %v3120 = vsel %vm3056, %v2910, %v3088
    %v3121 = vsel %vm3057, %v2915, %v3089
    %v3122 = vsel %vm3058, %v2920, %v3090
    %v3123 = vsel %vm3059, %v2925, %v3091
    %v3124 = vsel %vm3060, %v2930, %v3092
    %v3125 = vsel %vm3061, %v2935, %v3093
    %v3126 = vsel %vm3062, %v2940, %v3094
    %v3127 = vsel %vm3063, %v2945, %v3095
    %v3128 = vsel %vm3064, %v2950, %v3096
    %v3129 = vsel %vm3065, %v2955, %v3097
    %v3130 = vsel %vm3066, %v2960, %v3098
    %v3131 = vsel %vm3067, %v2965, %v3099
    %v3132 = vsel %vm3068, %v2970, %v3100
    %v3133 = vsel %vm3069, %v2975, %v3101
    %v3134 = vsel %vm3070, %v2980, %v3102
    %v3135 = vsel %vm3071, %v2985, %v3103
    %v3136 = vsel %vm3072, %v2990, %v3104
    %v3137 = vsel %vm3073, %v2995, %v3105
    %v3138 = vsel %vm3074, %v3000, %v3106
    %v3139 = vsel %vm3075, %v3005, %v3107
    %v3140 = vsel %vm3076, %v3010, %v3108
    %v3141 = vsel %vm3077, %v3015, %v3109
    %v3142 = vsel %vm3078, %v3020, %v3110
    %v3143 = vsel %vm3079, %v3025, %v3111
    %v3144 = vsel %vm3080, %v3030, %v3112
    %v3145 = vsel %vm3081, %v3035, %v3113
    %v3146 = vsel %vm3082, %v3040, %v3114
    %v3147 = vsel %vm3083, %v3045, %v3115
    %v3148 = vsel %vm3084, %v3050, %v3116
    %s3149 = scalar_lea.vmem %s4, 160
    %v3150 = vld [vmem:[%s3149] sm:$0xff]
    %v3151 = vld [vmem:[%s3149 + $0x8] sm:$0xff]
    %v3152 = vld [vmem:[%s3149 + $0x10] sm:$0xff]
    %v3153 = vld [vmem:[%s3149 + $0x18] sm:$0xff]
    %s3154 = scalar_lea.vmem %s5, 5
    %v3155 = vld [vmem:[%s3154] sm:$0x1]
    %v3157 = vlaneseq
    %v3158 = vshrl.u32 %v3157, 7
    %v3159 = vsub.s32 0, %v3158
    %v3160 = vrot.slane %v3155, %v3159
    %v3163 = vsel %vm551, %v3117, 0
    %v3166 = vsel %vm551, %v3118, 0
    %v3169 = vsel %vm551, %v3119, 0
    %v3172 = vsel %vm551, %v3120, 0
    %v3175 = vsel %vm551, %v3121, 0
    %v3178 = vsel %vm551, %v3122, 0
    %v3181 = vsel %vm551, %v3123, 0
    %v3184 = vsel %vm551, %v3124, 0
    %v3187 = vsel %vm551, %v3125, 0
    %v3190 = vsel %vm551, %v3126, 0
    %v3193 = vsel %vm551, %v3127, 0
    %v3196 = vsel %vm551, %v3128, 0
    %v3199 = vsel %vm551, %v3129, 0
    %v3202 = vsel %vm551, %v3130, 0
    %v3205 = vsel %vm551, %v3131, 0
    %v3208 = vsel %vm551, %v3132, 0
    %v3211 = vsel %vm551, %v3133, 0
    %v3214 = vsel %vm551, %v3134, 0
    %v3217 = vsel %vm551, %v3135, 0
    %v3220 = vsel %vm551, %v3136, 0
    %v3223 = vsel %vm551, %v3137, 0
    %v3226 = vsel %vm551, %v3138, 0
    %v3229 = vsel %vm551, %v3139, 0
    %v3232 = vsel %vm551, %v3140, 0
    %v3235 = vsel %vm551, %v3141, 0
    %v3238 = vsel %vm551, %v3142, 0
    %v3241 = vsel %vm551, %v3143, 0
    %v3244 = vsel %vm551, %v3144, 0
    %v3247 = vsel %vm551, %v3145, 0
    %v3250 = vsel %vm551, %v3146, 0
    %v3253 = vsel %vm551, %v3147, 0
    %v3256 = vsel %vm551, %v3148, 0
    %3258 = vmatprep.subr.mxu0 0.0
    %3259 = vmatpush1.msra.mxu0 0.0
    %3260 = vmatprep.subr.mxu0 0.0
    %3261 = vmatpush1.msra.mxu0 0.0
    %3262 = vmatprep.subr.mxu0 0.0
    %3263 = vmatpush1.msra.mxu0 0.0
    %3264 = vmatprep.subr.mxu0 0.0
    %3265 = vmatpush1.msra.mxu0 0.0
    %3266 = vmatprep.subr.mxu0 0.0
    %3267 = vmatpush1.msra.mxu0 0.0
    %3268 = vmatprep.subr.mxu0 0.0
    %3269 = vmatpush1.msra.mxu0 0.0
    %3270 = vmatprep.subr.mxu0 0.0
    %3271 = vmatpush1.msra.mxu0 0.0
    %3272 = vmatprep.subr.mxu0 0.0
    %3273 = vmatpush1.msra.mxu0 0.0
    %3274 = vmatprep.subr.mxu0 0.0
    %3275 = vmatpush1.msra.mxu0 0.0
    %3276 = vmatprep.subr.mxu0 0.0
    %3277 = vmatpush1.msra.mxu0 0.0
    %3278 = vmatprep.subr.mxu0 0.0
    %3279 = vmatpush1.msra.mxu0 0.0
    %3280 = vmatprep.subr.mxu0 0.0
    %3281 = vmatpush1.msra.mxu0 0.0
    %3282 = vmatprep.subr.mxu0 0.0
    %3283 = vmatpush1.msra.mxu0 %v3153
    %3284 = vmatprep.subr.mxu0 0.0
    %3285 = vmatpush1.msra.mxu0 %v3152
    %3286 = vmatprep.subr.mxu0 0.0
    %3287 = vmatpush1.msra.mxu0 %v3151
    %3288 = vmatprep.subr.mxu0 0.0
    %3289 = vmatpush1.msra.mxu0 %v3150
    %3290 = vmatprep.subr.mxu0 0.0
    %3291 = vmatpush2.msra.mxu0 0.0
    %3292 = vmatprep.subr.mxu0 0.0
    %3293 = vmatpush2.msra.mxu0 0.0
    %3294 = vmatprep.subr.mxu0 0.0
    %3295 = vmatpush2.msra.mxu0 0.0
    %3296 = vmatprep.subr.mxu0 0.0
    %3297 = vmatpush2.msra.mxu0 0.0
    %3298 = vmatprep.subr.mxu0 0.0
    %3299 = vmatpush2.msra.mxu0 0.0
    %3300 = vmatprep.subr.mxu0 0.0
    %3301 = vmatpush2.msra.mxu0 0.0
    %3302 = vmatprep.subr.mxu0 0.0
    %3303 = vmatpush2.msra.mxu0 0.0
    %3304 = vmatprep.subr.mxu0 0.0
    %3305 = vmatpush2.msra.mxu0 0.0
    %3306 = vmatprep.subr.mxu0 0.0
    %3307 = vmatpush2.msra.mxu0 0.0
    %3308 = vmatprep.subr.mxu0 0.0
    %3309 = vmatpush2.msra.mxu0 0.0
    %3310 = vmatprep.subr.mxu0 0.0
    %3311 = vmatpush2.msra.mxu0 0.0
    %3312 = vmatprep.subr.mxu0 0.0
    %3313 = vmatpush2.msra.mxu0 0.0
    %3314 = vmatprep.subr.mxu0 0.0
    %3315 = vmatpush2.msra.mxu0 0.0
    %3316 = vmatprep.subr.mxu0 0.0
    %3317 = vmatpush2.msra.mxu0 0.0
    %3318 = vmatprep.subr.mxu0 0.0
    %3319 = vmatpush2.msra.mxu0 0.0
    %3320 = vmatprep.subr.mxu0 0.0
    %3321 = vmatpush2.msra.mxu0 0.0
    %3322 = vmatprep.mubr.f32.mxu0 0.0
    %3323 = vmatmul.mubr.f32.gmra.mxu0 %v3163
    %v3324 = vpop.f32.mrf.mxu0
    %v3325 = vadd.f32 %v3160, %v3324
    %v3326 = vpop.f32.mrf.mxu0
    %3327 = vmatprep.mubr.f32.mxu0 0.0
    %3328 = vmatmul.mubr.f32.gmra.mxu0 %v3166
    %v3329 = vpop.f32.mrf.mxu0
    %v3330 = vadd.f32 %v3160, %v3329
    %v3331 = vpop.f32.mrf.mxu0
    %3332 = vmatprep.mubr.f32.mxu0 0.0
    %3333 = vmatmul.mubr.f32.gmra.mxu0 %v3169
    %v3334 = vpop.f32.mrf.mxu0
    %v3335 = vadd.f32 %v3160, %v3334
    %v3336 = vpop.f32.mrf.mxu0
    %3337 = vmatprep.mubr.f32.mxu0 0.0
    %3338 = vmatmul.mubr.f32.gmra.mxu0 %v3172
    %v3339 = vpop.f32.mrf.mxu0
    %v3340 = vadd.f32 %v3160, %v3339
    %v3341 = vpop.f32.mrf.mxu0
    %3342 = vmatprep.mubr.f32.mxu0 0.0
    %3343 = vmatmul.mubr.f32.gmra.mxu0 %v3175
    %v3344 = vpop.f32.mrf.mxu0
    %v3345 = vadd.f32 %v3160, %v3344
    %v3346 = vpop.f32.mrf.mxu0
    %3347 = vmatprep.mubr.f32.mxu0 0.0
    %3348 = vmatmul.mubr.f32.gmra.mxu0 %v3178
    %v3349 = vpop.f32.mrf.mxu0
    %v3350 = vadd.f32 %v3160, %v3349
    %v3351 = vpop.f32.mrf.mxu0
    %3352 = vmatprep.mubr.f32.mxu0 0.0
    %3353 = vmatmul.mubr.f32.gmra.mxu0 %v3181
    %v3354 = vpop.f32.mrf.mxu0
    %v3355 = vadd.f32 %v3160, %v3354
    %v3356 = vpop.f32.mrf.mxu0
    %3357 = vmatprep.mubr.f32.mxu0 0.0
    %3358 = vmatmul.mubr.f32.gmra.mxu0 %v3184
    %v3359 = vpop.f32.mrf.mxu0
    %v3360 = vadd.f32 %v3160, %v3359
    %v3361 = vpop.f32.mrf.mxu0
    %3362 = vmatprep.mubr.f32.mxu0 0.0
    %3363 = vmatmul.mubr.f32.gmra.mxu0 %v3187
    %v3364 = vpop.f32.mrf.mxu0
    %v3365 = vadd.f32 %v3160, %v3364
    %v3366 = vpop.f32.mrf.mxu0
    %3367 = vmatprep.mubr.f32.mxu0 0.0
    %3368 = vmatmul.mubr.f32.gmra.mxu0 %v3190
    %v3369 = vpop.f32.mrf.mxu0
    %v3370 = vadd.f32 %v3160, %v3369
    %v3371 = vpop.f32.mrf.mxu0
    %3372 = vmatprep.mubr.f32.mxu0 0.0
    %3373 = vmatmul.mubr.f32.gmra.mxu0 %v3193
    %v3374 = vpop.f32.mrf.mxu0
    %v3375 = vadd.f32 %v3160, %v3374
    %v3376 = vpop.f32.mrf.mxu0
    %3377 = vmatprep.mubr.f32.mxu0 0.0
    %3378 = vmatmul.mubr.f32.gmra.mxu0 %v3196
    %v3379 = vpop.f32.mrf.mxu0
    %v3380 = vadd.f32 %v3160, %v3379
    %v3381 = vpop.f32.mrf.mxu0
    %3382 = vmatprep.mubr.f32.mxu0 0.0
    %3383 = vmatmul.mubr.f32.gmra.mxu0 %v3199
    %v3384 = vpop.f32.mrf.mxu0
    %v3385 = vadd.f32 %v3160, %v3384
    %v3386 = vpop.f32.mrf.mxu0
    %3387 = vmatprep.mubr.f32.mxu0 0.0
    %3388 = vmatmul.mubr.f32.gmra.mxu0 %v3202
    %v3389 = vpop.f32.mrf.mxu0
    %v3390 = vadd.f32 %v3160, %v3389
    %v3391 = vpop.f32.mrf.mxu0
    %3392 = vmatprep.mubr.f32.mxu0 0.0
    %3393 = vmatmul.mubr.f32.gmra.mxu0 %v3205
    %v3394 = vpop.f32.mrf.mxu0
    %v3395 = vadd.f32 %v3160, %v3394
    %v3396 = vpop.f32.mrf.mxu0
    %3397 = vmatprep.mubr.f32.mxu0 0.0
    %3398 = vmatmul.mubr.f32.gmra.mxu0 %v3208
    %v3399 = vpop.f32.mrf.mxu0
    %v3400 = vadd.f32 %v3160, %v3399
    %v3401 = vpop.f32.mrf.mxu0
    %3402 = vmatprep.mubr.f32.mxu0 0.0
    %3403 = vmatmul.mubr.f32.gmra.mxu0 %v3211
    %v3404 = vpop.f32.mrf.mxu0
    %v3405 = vadd.f32 %v3160, %v3404
    %v3406 = vpop.f32.mrf.mxu0
    %3407 = vmatprep.mubr.f32.mxu0 0.0
    %3408 = vmatmul.mubr.f32.gmra.mxu0 %v3214
    %v3409 = vpop.f32.mrf.mxu0
    %v3410 = vadd.f32 %v3160, %v3409
    %v3411 = vpop.f32.mrf.mxu0
    %3412 = vmatprep.mubr.f32.mxu0 0.0
    %3413 = vmatmul.mubr.f32.gmra.mxu0 %v3217
    %v3414 = vpop.f32.mrf.mxu0
    %v3415 = vadd.f32 %v3160, %v3414
    %v3416 = vpop.f32.mrf.mxu0
    %3417 = vmatprep.mubr.f32.mxu0 0.0
    %3418 = vmatmul.mubr.f32.gmra.mxu0 %v3220
    %v3419 = vpop.f32.mrf.mxu0
    %v3420 = vadd.f32 %v3160, %v3419
    %v3421 = vpop.f32.mrf.mxu0
    %3422 = vmatprep.mubr.f32.mxu0 0.0
    %3423 = vmatmul.mubr.f32.gmra.mxu0 %v3223
    %v3424 = vpop.f32.mrf.mxu0
    %v3425 = vadd.f32 %v3160, %v3424
    %v3426 = vpop.f32.mrf.mxu0
    %3427 = vmatprep.mubr.f32.mxu0 0.0
    %3428 = vmatmul.mubr.f32.gmra.mxu0 %v3226
    %v3429 = vpop.f32.mrf.mxu0
    %v3430 = vadd.f32 %v3160, %v3429
    %v3431 = vpop.f32.mrf.mxu0
    %3432 = vmatprep.mubr.f32.mxu0 0.0
    %3433 = vmatmul.mubr.f32.gmra.mxu0 %v3229
    %v3434 = vpop.f32.mrf.mxu0
    %v3435 = vadd.f32 %v3160, %v3434
    %v3436 = vpop.f32.mrf.mxu0
    %3437 = vmatprep.mubr.f32.mxu0 0.0
    %3438 = vmatmul.mubr.f32.gmra.mxu0 %v3232
    %v3439 = vpop.f32.mrf.mxu0
    %v3440 = vadd.f32 %v3160, %v3439
    %v3441 = vpop.f32.mrf.mxu0
    %3442 = vmatprep.mubr.f32.mxu0 0.0
    %3443 = vmatmul.mubr.f32.gmra.mxu0 %v3235
    %v3444 = vpop.f32.mrf.mxu0
    %v3445 = vadd.f32 %v3160, %v3444
    %v3446 = vpop.f32.mrf.mxu0
    %3447 = vmatprep.mubr.f32.mxu0 0.0
    %3448 = vmatmul.mubr.f32.gmra.mxu0 %v3238
    %v3449 = vpop.f32.mrf.mxu0
    %v3450 = vadd.f32 %v3160, %v3449
    %v3451 = vpop.f32.mrf.mxu0
    %3452 = vmatprep.mubr.f32.mxu0 0.0
    %3453 = vmatmul.mubr.f32.gmra.mxu0 %v3241
    %v3454 = vpop.f32.mrf.mxu0
    %v3455 = vadd.f32 %v3160, %v3454
    %v3456 = vpop.f32.mrf.mxu0
    %3457 = vmatprep.mubr.f32.mxu0 0.0
    %3458 = vmatmul.mubr.f32.gmra.mxu0 %v3244
    %v3459 = vpop.f32.mrf.mxu0
    %v3460 = vadd.f32 %v3160, %v3459
    %v3461 = vpop.f32.mrf.mxu0
    %3462 = vmatprep.mubr.f32.mxu0 0.0
    %3463 = vmatmul.mubr.f32.gmra.mxu0 %v3247
    %v3464 = vpop.f32.mrf.mxu0
    %v3465 = vadd.f32 %v3160, %v3464
    %v3466 = vpop.f32.mrf.mxu0
    %3467 = vmatprep.mubr.f32.mxu0 0.0
    %3468 = vmatmul.mubr.f32.gmra.mxu0 %v3250
    %v3469 = vpop.f32.mrf.mxu0
    %v3470 = vadd.f32 %v3160, %v3469
    %v3471 = vpop.f32.mrf.mxu0
    %3472 = vmatprep.mubr.f32.mxu0 0.0
    %3473 = vmatmul.mubr.f32.gmra.mxu0 %v3253
    %v3474 = vpop.f32.mrf.mxu0
    %v3475 = vadd.f32 %v3160, %v3474
    %v3476 = vpop.f32.mrf.mxu0
    %3477 = vmatprep.mubr.f32.mxu0 0.0
    %3478 = vmatmul.mubr.f32.gmra.mxu0 %v3256
    %v3479 = vpop.f32.mrf.mxu0
    %v3480 = vadd.f32 %v3160, %v3479
    %v3481 = vpop.f32.mrf.mxu0
    %3482 = vdwg.mxu0
    %vm3483 = vcmp.gt.f32.partialorder %v3325, 0.0
    %vm3484 = vcmp.gt.f32.partialorder %v3330, 0.0
    %vm3485 = vcmp.gt.f32.partialorder %v3335, 0.0
    %vm3486 = vcmp.gt.f32.partialorder %v3340, 0.0
    %vm3487 = vcmp.gt.f32.partialorder %v3345, 0.0
    %vm3488 = vcmp.gt.f32.partialorder %v3350, 0.0
    %vm3489 = vcmp.gt.f32.partialorder %v3355, 0.0
    %vm3490 = vcmp.gt.f32.partialorder %v3360, 0.0
    %vm3491 = vcmp.gt.f32.partialorder %v3365, 0.0
    %vm3492 = vcmp.gt.f32.partialorder %v3370, 0.0
    %vm3493 = vcmp.gt.f32.partialorder %v3375, 0.0
    %vm3494 = vcmp.gt.f32.partialorder %v3380, 0.0
    %vm3495 = vcmp.gt.f32.partialorder %v3385, 0.0
    %vm3496 = vcmp.gt.f32.partialorder %v3390, 0.0
    %vm3497 = vcmp.gt.f32.partialorder %v3395, 0.0
    %vm3498 = vcmp.gt.f32.partialorder %v3400, 0.0
    %vm3499 = vcmp.gt.f32.partialorder %v3405, 0.0
    %vm3500 = vcmp.gt.f32.partialorder %v3410, 0.0
    %vm3501 = vcmp.gt.f32.partialorder %v3415, 0.0
    %vm3502 = vcmp.gt.f32.partialorder %v3420, 0.0
    %vm3503 = vcmp.gt.f32.partialorder %v3425, 0.0
    %vm3504 = vcmp.gt.f32.partialorder %v3430, 0.0
    %vm3505 = vcmp.gt.f32.partialorder %v3435, 0.0
    %vm3506 = vcmp.gt.f32.partialorder %v3440, 0.0
    %vm3507 = vcmp.gt.f32.partialorder %v3445, 0.0
    %vm3508 = vcmp.gt.f32.partialorder %v3450, 0.0
    %vm3509 = vcmp.gt.f32.partialorder %v3455, 0.0
    %vm3510 = vcmp.gt.f32.partialorder %v3460, 0.0
    %vm3511 = vcmp.gt.f32.partialorder %v3465, 0.0
    %vm3512 = vcmp.gt.f32.partialorder %v3470, 0.0
    %vm3513 = vcmp.gt.f32.partialorder %v3475, 0.0
    %vm3514 = vcmp.gt.f32.partialorder %v3480, 0.0
    %v3515 = vmul.f32 %v3325, 0.01
    %v3516 = vmul.f32 %v3330, 0.01
    %v3517 = vmul.f32 %v3335, 0.01
    %v3518 = vmul.f32 %v3340, 0.01
    %v3519 = vmul.f32 %v3345, 0.01
    %v3520 = vmul.f32 %v3350, 0.01
    %v3521 = vmul.f32 %v3355, 0.01
    %v3522 = vmul.f32 %v3360, 0.01
    %v3523 = vmul.f32 %v3365, 0.01
    %v3524 = vmul.f32 %v3370, 0.01
    %v3525 = vmul.f32 %v3375, 0.01
    %v3526 = vmul.f32 %v3380, 0.01
    %v3527 = vmul.f32 %v3385, 0.01
    %v3528 = vmul.f32 %v3390, 0.01
    %v3529 = vmul.f32 %v3395, 0.01
    %v3530 = vmul.f32 %v3400, 0.01
    %v3531 = vmul.f32 %v3405, 0.01
    %v3532 = vmul.f32 %v3410, 0.01
    %v3533 = vmul.f32 %v3415, 0.01
    %v3534 = vmul.f32 %v3420, 0.01
    %v3535 = vmul.f32 %v3425, 0.01
    %v3536 = vmul.f32 %v3430, 0.01
    %v3537 = vmul.f32 %v3435, 0.01
    %v3538 = vmul.f32 %v3440, 0.01
    %v3539 = vmul.f32 %v3445, 0.01
    %v3540 = vmul.f32 %v3450, 0.01
    %v3541 = vmul.f32 %v3455, 0.01
    %v3542 = vmul.f32 %v3460, 0.01
    %v3543 = vmul.f32 %v3465, 0.01
    %v3544 = vmul.f32 %v3470, 0.01
    %v3545 = vmul.f32 %v3475, 0.01
    %v3546 = vmul.f32 %v3480, 0.01
    %v3547 = vsel %vm3483, %v3325, %v3515
    %v3548 = vsel %vm3484, %v3330, %v3516
    %v3549 = vsel %vm3485, %v3335, %v3517
    %v3550 = vsel %vm3486, %v3340, %v3518
    %v3551 = vsel %vm3487, %v3345, %v3519
    %v3552 = vsel %vm3488, %v3350, %v3520
    %v3553 = vsel %vm3489, %v3355, %v3521
    %v3554 = vsel %vm3490, %v3360, %v3522
    %v3555 = vsel %vm3491, %v3365, %v3523
    %v3556 = vsel %vm3492, %v3370, %v3524
    %v3557 = vsel %vm3493, %v3375, %v3525
    %v3558 = vsel %vm3494, %v3380, %v3526
    %v3559 = vsel %vm3495, %v3385, %v3527
    %v3560 = vsel %vm3496, %v3390, %v3528
    %v3561 = vsel %vm3497, %v3395, %v3529
    %v3562 = vsel %vm3498, %v3400, %v3530
    %v3563 = vsel %vm3499, %v3405, %v3531
    %v3564 = vsel %vm3500, %v3410, %v3532
    %v3565 = vsel %vm3501, %v3415, %v3533
    %v3566 = vsel %vm3502, %v3420, %v3534
    %v3567 = vsel %vm3503, %v3425, %v3535
    %v3568 = vsel %vm3504, %v3430, %v3536
    %v3569 = vsel %vm3505, %v3435, %v3537
    %v3570 = vsel %vm3506, %v3440, %v3538
    %v3571 = vsel %vm3507, %v3445, %v3539
    %v3572 = vsel %vm3508, %v3450, %v3540
    %v3573 = vsel %vm3509, %v3455, %v3541
    %v3574 = vsel %vm3510, %v3460, %v3542
    %v3575 = vsel %vm3511, %v3465, %v3543
    %v3576 = vsel %vm3512, %v3470, %v3544
    %v3577 = vsel %vm3513, %v3475, %v3545
    %v3578 = vsel %vm3514, %v3480, %v3546
    %s3579 = scalar_lea.vmem %s6, 64
    %v3580 = vld [vmem:[%s3579] sm:$0xff]
    %v3581 = vld [vmem:[%s3579 + $0x8] sm:$0xff]
    %v3582 = vld [vmem:[%s3579 + $0x10] sm:$0xff]
    %v3583 = vld [vmem:[%s3579 + $0x18] sm:$0xff]
    %s3584 = scalar_lea.vmem %s7, 2
    %v3585 = vld [vmem:[%s3584] sm:$0x1]
    %v3587 = vlaneseq
    %v3588 = vshrl.u32 %v3587, 7
    %v3589 = vsub.s32 0, %v3588
    %v3590 = vrot.slane %v3585, %v3589
    %v3593 = vsel %vm551, %v3547, 0
    %v3596 = vsel %vm551, %v3548, 0
    %v3599 = vsel %vm551, %v3549, 0
    %v3602 = vsel %vm551, %v3550, 0
    %v3605 = vsel %vm551, %v3551, 0
    %v3608 = vsel %vm551, %v3552, 0
    %v3611 = vsel %vm551, %v3553, 0
    %v3614 = vsel %vm551, %v3554, 0
    %v3617 = vsel %vm551, %v3555, 0
    %v3620 = vsel %vm551, %v3556, 0
    %v3623 = vsel %vm551, %v3557, 0
    %v3626 = vsel %vm551, %v3558, 0
    %v3629 = vsel %vm551, %v3559, 0
    %v3632 = vsel %vm551, %v3560, 0
    %v3635 = vsel %vm551, %v3561, 0
    %v3638 = vsel %vm551, %v3562, 0
    %v3641 = vsel %vm551, %v3563, 0
    %v3644 = vsel %vm551, %v3564, 0
    %v3647 = vsel %vm551, %v3565, 0
    %v3650 = vsel %vm551, %v3566, 0
    %v3653 = vsel %vm551, %v3567, 0
    %v3656 = vsel %vm551, %v3568, 0
    %v3659 = vsel %vm551, %v3569, 0
    %v3662 = vsel %vm551, %v3570, 0
    %v3665 = vsel %vm551, %v3571, 0
    %v3668 = vsel %vm551, %v3572, 0
    %v3671 = vsel %vm551, %v3573, 0
    %v3674 = vsel %vm551, %v3574, 0
    %v3677 = vsel %vm551, %v3575, 0
    %v3680 = vsel %vm551, %v3576, 0
    %v3683 = vsel %vm551, %v3577, 0
    %v3686 = vsel %vm551, %v3578, 0
    %3688 = vmatprep.subr.mxu0 0.0
    %3689 = vmatpush1.msra.mxu0 0.0
    %3690 = vmatprep.subr.mxu0 0.0
    %3691 = vmatpush1.msra.mxu0 0.0
    %3692 = vmatprep.subr.mxu0 0.0
    %3693 = vmatpush1.msra.mxu0 0.0
    %3694 = vmatprep.subr.mxu0 0.0
    %3695 = vmatpush1.msra.mxu0 0.0
    %3696 = vmatprep.subr.mxu0 0.0
    %3697 = vmatpush1.msra.mxu0 0.0
    %3698 = vmatprep.subr.mxu0 0.0
    %3699 = vmatpush1.msra.mxu0 0.0
    %3700 = vmatprep.subr.mxu0 0.0
    %3701 = vmatpush1.msra.mxu0 0.0
    %3702 = vmatprep.subr.mxu0 0.0
    %3703 = vmatpush1.msra.mxu0 0.0
    %3704 = vmatprep.subr.mxu0 0.0
    %3705 = vmatpush1.msra.mxu0 0.0
    %3706 = vmatprep.subr.mxu0 0.0
    %3707 = vmatpush1.msra.mxu0 0.0
    %3708 = vmatprep.subr.mxu0 0.0
    %3709 = vmatpush1.msra.mxu0 0.0
    %3710 = vmatprep.subr.mxu0 0.0
    %3711 = vmatpush1.msra.mxu0 0.0
    %3712 = vmatprep.subr.mxu0 0.0
    %3713 = vmatpush1.msra.mxu0 %v3583
    %3714 = vmatprep.subr.mxu0 0.0
    %3715 = vmatpush1.msra.mxu0 %v3582
    %3716 = vmatprep.subr.mxu0 0.0
    %3717 = vmatpush1.msra.mxu0 %v3581
    %3718 = vmatprep.subr.mxu0 0.0
    %3719 = vmatpush1.msra.mxu0 %v3580
    %3720 = vmatprep.subr.mxu0 0.0
    %3721 = vmatpush2.msra.mxu0 0.0
    %3722 = vmatprep.subr.mxu0 0.0
    %3723 = vmatpush2.msra.mxu0 0.0
    %3724 = vmatprep.subr.mxu0 0.0
    %3725 = vmatpush2.msra.mxu0 0.0
    %3726 = vmatprep.subr.mxu0 0.0
    %3727 = vmatpush2.msra.mxu0 0.0
    %3728 = vmatprep.subr.mxu0 0.0
    %3729 = vmatpush2.msra.mxu0 0.0
    %3730 = vmatprep.subr.mxu0 0.0
    %3731 = vmatpush2.msra.mxu0 0.0
    %3732 = vmatprep.subr.mxu0 0.0
    %3733 = vmatpush2.msra.mxu0 0.0
    %3734 = vmatprep.subr.mxu0 0.0
    %3735 = vmatpush2.msra.mxu0 0.0
    %3736 = vmatprep.subr.mxu0 0.0
    %3737 = vmatpush2.msra.mxu0 0.0
    %3738 = vmatprep.subr.mxu0 0.0
    %3739 = vmatpush2.msra.mxu0 0.0
    %3740 = vmatprep.subr.mxu0 0.0
    %3741 = vmatpush2.msra.mxu0 0.0
    %3742 = vmatprep.subr.mxu0 0.0
    %3743 = vmatpush2.msra.mxu0 0.0
    %3744 = vmatprep.subr.mxu0 0.0
    %3745 = vmatpush2.msra.mxu0 0.0
    %3746 = vmatprep.subr.mxu0 0.0
    %3747 = vmatpush2.msra.mxu0 0.0
    %3748 = vmatprep.subr.mxu0 0.0
    %3749 = vmatpush2.msra.mxu0 0.0
    %3750 = vmatprep.subr.mxu0 0.0
    %3751 = vmatpush2.msra.mxu0 0.0
    %3752 = vmatprep.mubr.f32.mxu0 0.0
    %3753 = vmatmul.mubr.f32.gmra.mxu0 %v3593
    %v3754 = vpop.f32.mrf.mxu0
    %v3755 = vadd.f32 %v3590, %v3754
    %v3756 = vpop.f32.mrf.mxu0
    %3757 = vmatprep.mubr.f32.mxu0 0.0
    %3758 = vmatmul.mubr.f32.gmra.mxu0 %v3596
    %v3759 = vpop.f32.mrf.mxu0
    %v3760 = vadd.f32 %v3590, %v3759
    %v3761 = vpop.f32.mrf.mxu0
    %3762 = vmatprep.mubr.f32.mxu0 0.0
    %3763 = vmatmul.mubr.f32.gmra.mxu0 %v3599
    %v3764 = vpop.f32.mrf.mxu0
    %v3765 = vadd.f32 %v3590, %v3764
    %v3766 = vpop.f32.mrf.mxu0
    %3767 = vmatprep.mubr.f32.mxu0 0.0
    %3768 = vmatmul.mubr.f32.gmra.mxu0 %v3602
    %v3769 = vpop.f32.mrf.mxu0
    %v3770 = vadd.f32 %v3590, %v3769
    %v3771 = vpop.f32.mrf.mxu0
    %3772 = vmatprep.mubr.f32.mxu0 0.0
    %3773 = vmatmul.mubr.f32.gmra.mxu0 %v3605
    %v3774 = vpop.f32.mrf.mxu0
    %v3775 = vadd.f32 %v3590, %v3774
    %v3776 = vpop.f32.mrf.mxu0
    %3777 = vmatprep.mubr.f32.mxu0 0.0
    %3778 = vmatmul.mubr.f32.gmra.mxu0 %v3608
    %v3779 = vpop.f32.mrf.mxu0
    %v3780 = vadd.f32 %v3590, %v3779
    %v3781 = vpop.f32.mrf.mxu0
    %3782 = vmatprep.mubr.f32.mxu0 0.0
    %3783 = vmatmul.mubr.f32.gmra.mxu0 %v3611
    %v3784 = vpop.f32.mrf.mxu0
    %v3785 = vadd.f32 %v3590, %v3784
    %v3786 = vpop.f32.mrf.mxu0
    %3787 = vmatprep.mubr.f32.mxu0 0.0
    %3788 = vmatmul.mubr.f32.gmra.mxu0 %v3614
    %v3789 = vpop.f32.mrf.mxu0
    %v3790 = vadd.f32 %v3590, %v3789
    %v3791 = vpop.f32.mrf.mxu0
    %3792 = vmatprep.mubr.f32.mxu0 0.0
    %3793 = vmatmul.mubr.f32.gmra.mxu0 %v3617
    %v3794 = vpop.f32.mrf.mxu0
    %v3795 = vadd.f32 %v3590, %v3794
    %v3796 = vpop.f32.mrf.mxu0
    %3797 = vmatprep.mubr.f32.mxu0 0.0
    %3798 = vmatmul.mubr.f32.gmra.mxu0 %v3620
    %v3799 = vpop.f32.mrf.mxu0
    %v3800 = vadd.f32 %v3590, %v3799
    %v3801 = vpop.f32.mrf.mxu0
    %3802 = vmatprep.mubr.f32.mxu0 0.0
    %3803 = vmatmul.mubr.f32.gmra.mxu0 %v3623
    %v3804 = vpop.f32.mrf.mxu0
    %v3805 = vadd.f32 %v3590, %v3804
    %v3806 = vpop.f32.mrf.mxu0
    %3807 = vmatprep.mubr.f32.mxu0 0.0
    %3808 = vmatmul.mubr.f32.gmra.mxu0 %v3626
    %v3809 = vpop.f32.mrf.mxu0
    %v3810 = vadd.f32 %v3590, %v3809
    %v3811 = vpop.f32.mrf.mxu0
    %3812 = vmatprep.mubr.f32.mxu0 0.0
    %3813 = vmatmul.mubr.f32.gmra.mxu0 %v3629
    %v3814 = vpop.f32.mrf.mxu0
    %v3815 = vadd.f32 %v3590, %v3814
    %v3816 = vpop.f32.mrf.mxu0
    %3817 = vmatprep.mubr.f32.mxu0 0.0
    %3818 = vmatmul.mubr.f32.gmra.mxu0 %v3632
    %v3819 = vpop.f32.mrf.mxu0
    %v3820 = vadd.f32 %v3590, %v3819
    %v3821 = vpop.f32.mrf.mxu0
    %3822 = vmatprep.mubr.f32.mxu0 0.0
    %3823 = vmatmul.mubr.f32.gmra.mxu0 %v3635
    %v3824 = vpop.f32.mrf.mxu0
    %v3825 = vadd.f32 %v3590, %v3824
    %v3826 = vpop.f32.mrf.mxu0
    %3827 = vmatprep.mubr.f32.mxu0 0.0
    %3828 = vmatmul.mubr.f32.gmra.mxu0 %v3638
    %v3829 = vpop.f32.mrf.mxu0
    %v3830 = vadd.f32 %v3590, %v3829
    %v3831 = vpop.f32.mrf.mxu0
    %3832 = vmatprep.mubr.f32.mxu0 0.0
    %3833 = vmatmul.mubr.f32.gmra.mxu0 %v3641
    %v3834 = vpop.f32.mrf.mxu0
    %v3835 = vadd.f32 %v3590, %v3834
    %v3836 = vpop.f32.mrf.mxu0
    %3837 = vmatprep.mubr.f32.mxu0 0.0
    %3838 = vmatmul.mubr.f32.gmra.mxu0 %v3644
    %v3839 = vpop.f32.mrf.mxu0
    %v3840 = vadd.f32 %v3590, %v3839
    %v3841 = vpop.f32.mrf.mxu0
    %3842 = vmatprep.mubr.f32.mxu0 0.0
    %3843 = vmatmul.mubr.f32.gmra.mxu0 %v3647
    %v3844 = vpop.f32.mrf.mxu0
    %v3845 = vadd.f32 %v3590, %v3844
    %v3846 = vpop.f32.mrf.mxu0
    %3847 = vmatprep.mubr.f32.mxu0 0.0
    %3848 = vmatmul.mubr.f32.gmra.mxu0 %v3650
    %v3849 = vpop.f32.mrf.mxu0
    %v3850 = vadd.f32 %v3590, %v3849
    %v3851 = vpop.f32.mrf.mxu0
    %3852 = vmatprep.mubr.f32.mxu0 0.0
    %3853 = vmatmul.mubr.f32.gmra.mxu0 %v3653
    %v3854 = vpop.f32.mrf.mxu0
    %v3855 = vadd.f32 %v3590, %v3854
    %v3856 = vpop.f32.mrf.mxu0
    %3857 = vmatprep.mubr.f32.mxu0 0.0
    %3858 = vmatmul.mubr.f32.gmra.mxu0 %v3656
    %v3859 = vpop.f32.mrf.mxu0
    %v3860 = vadd.f32 %v3590, %v3859
    %v3861 = vpop.f32.mrf.mxu0
    %3862 = vmatprep.mubr.f32.mxu0 0.0
    %3863 = vmatmul.mubr.f32.gmra.mxu0 %v3659
    %v3864 = vpop.f32.mrf.mxu0
    %v3865 = vadd.f32 %v3590, %v3864
    %v3866 = vpop.f32.mrf.mxu0
    %3867 = vmatprep.mubr.f32.mxu0 0.0
    %3868 = vmatmul.mubr.f32.gmra.mxu0 %v3662
    %v3869 = vpop.f32.mrf.mxu0
    %v3870 = vadd.f32 %v3590, %v3869
    %v3871 = vpop.f32.mrf.mxu0
    %3872 = vmatprep.mubr.f32.mxu0 0.0
    %3873 = vmatmul.mubr.f32.gmra.mxu0 %v3665
    %v3874 = vpop.f32.mrf.mxu0
    %v3875 = vadd.f32 %v3590, %v3874
    %v3876 = vpop.f32.mrf.mxu0
    %3877 = vmatprep.mubr.f32.mxu0 0.0
    %3878 = vmatmul.mubr.f32.gmra.mxu0 %v3668
    %v3879 = vpop.f32.mrf.mxu0
    %v3880 = vadd.f32 %v3590, %v3879
    %v3881 = vpop.f32.mrf.mxu0
    %3882 = vmatprep.mubr.f32.mxu0 0.0
    %3883 = vmatmul.mubr.f32.gmra.mxu0 %v3671
    %v3884 = vpop.f32.mrf.mxu0
    %v3885 = vadd.f32 %v3590, %v3884
    %v3886 = vpop.f32.mrf.mxu0
    %3887 = vmatprep.mubr.f32.mxu0 0.0
    %3888 = vmatmul.mubr.f32.gmra.mxu0 %v3674
    %v3889 = vpop.f32.mrf.mxu0
    %v3890 = vadd.f32 %v3590, %v3889
    %v3891 = vpop.f32.mrf.mxu0
    %3892 = vmatprep.mubr.f32.mxu0 0.0
    %3893 = vmatmul.mubr.f32.gmra.mxu0 %v3677
    %v3894 = vpop.f32.mrf.mxu0
    %v3895 = vadd.f32 %v3590, %v3894
    %v3896 = vpop.f32.mrf.mxu0
    %3897 = vmatprep.mubr.f32.mxu0 0.0
    %3898 = vmatmul.mubr.f32.gmra.mxu0 %v3680
    %v3899 = vpop.f32.mrf.mxu0
    %v3900 = vadd.f32 %v3590, %v3899
    %v3901 = vpop.f32.mrf.mxu0
    %3902 = vmatprep.mubr.f32.mxu0 0.0
    %3903 = vmatmul.mubr.f32.gmra.mxu0 %v3683
    %v3904 = vpop.f32.mrf.mxu0
    %v3905 = vadd.f32 %v3590, %v3904
    %v3906 = vpop.f32.mrf.mxu0
    %3907 = vmatprep.mubr.f32.mxu0 0.0
    %3908 = vmatmul.mubr.f32.gmra.mxu0 %v3686
    %v3909 = vpop.f32.mrf.mxu0
    %v3910 = vadd.f32 %v3590, %v3909
    %v3911 = vpop.f32.mrf.mxu0
    %3912 = vdwg.mxu0
    %s3913 = scalar_lea.vmem %s8, 64
    %v3914 = vld [vmem:[%s3913] sm:$0xff]
    %v3915 = vld [vmem:[%s3913 + $0x8] sm:$0xff]
    %v3916 = vld [vmem:[%s3913 + $0x10] sm:$0xff]
    %v3917 = vld [vmem:[%s3913 + $0x18] sm:$0xff]
    %s3918 = scalar_lea.vmem %s9, 2
    %v3919 = vld [vmem:[%s3918] sm:$0x1]
    %v3921 = vlaneseq
    %v3922 = vshrl.u32 %v3921, 7
    %v3923 = vsub.s32 0, %v3922
    %v3924 = vrot.slane %v3919, %v3923
    %3926 = vmatprep.subr.mxu0 0.0
    %3927 = vmatpush1.msra.mxu0 0.0
    %3928 = vmatprep.subr.mxu0 0.0
    %3929 = vmatpush1.msra.mxu0 0.0
    %3930 = vmatprep.subr.mxu0 0.0
    %3931 = vmatpush1.msra.mxu0 0.0
    %3932 = vmatprep.subr.mxu0 0.0
    %3933 = vmatpush1.msra.mxu0 0.0
    %3934 = vmatprep.subr.mxu0 0.0
    %3935 = vmatpush1.msra.mxu0 0.0
    %3936 = vmatprep.subr.mxu0 0.0
    %3937 = vmatpush1.msra.mxu0 0.0
    %3938 = vmatprep.subr.mxu0 0.0
    %3939 = vmatpush1.msra.mxu0 0.0
    %3940 = vmatprep.subr.mxu0 0.0
    %3941 = vmatpush1.msra.mxu0 0.0
    %3942 = vmatprep.subr.mxu0 0.0
    %3943 = vmatpush1.msra.mxu0 0.0
    %3944 = vmatprep.subr.mxu0 0.0
    %3945 = vmatpush1.msra.mxu0 0.0
    %3946 = vmatprep.subr.mxu0 0.0
    %3947 = vmatpush1.msra.mxu0 0.0
    %3948 = vmatprep.subr.mxu0 0.0
    %3949 = vmatpush1.msra.mxu0 0.0
    %3950 = vmatprep.subr.mxu0 0.0
    %3951 = vmatpush1.msra.mxu0 %v3917
    %3952 = vmatprep.subr.mxu0 0.0
    %3953 = vmatpush1.msra.mxu0 %v3916
    %3954 = vmatprep.subr.mxu0 0.0
    %3955 = vmatpush1.msra.mxu0 %v3915
    %3956 = vmatprep.subr.mxu0 0.0
    %3957 = vmatpush1.msra.mxu0 %v3914
    %3958 = vmatprep.subr.mxu0 0.0
    %3959 = vmatpush2.msra.mxu0 0.0
    %3960 = vmatprep.subr.mxu0 0.0
    %3961 = vmatpush2.msra.mxu0 0.0
    %3962 = vmatprep.subr.mxu0 0.0
    %3963 = vmatpush2.msra.mxu0 0.0
    %3964 = vmatprep.subr.mxu0 0.0
    %3965 = vmatpush2.msra.mxu0 0.0
    %3966 = vmatprep.subr.mxu0 0.0
    %3967 = vmatpush2.msra.mxu0 0.0
    %3968 = vmatprep.subr.mxu0 0.0
    %3969 = vmatpush2.msra.mxu0 0.0
    %3970 = vmatprep.subr.mxu0 0.0
    %3971 = vmatpush2.msra.mxu0 0.0
    %3972 = vmatprep.subr.mxu0 0.0
    %3973 = vmatpush2.msra.mxu0 0.0
    %3974 = vmatprep.subr.mxu0 0.0
    %3975 = vmatpush2.msra.mxu0 0.0
    %3976 = vmatprep.subr.mxu0 0.0
    %3977 = vmatpush2.msra.mxu0 0.0
    %3978 = vmatprep.subr.mxu0 0.0
    %3979 = vmatpush2.msra.mxu0 0.0
    %3980 = vmatprep.subr.mxu0 0.0
    %3981 = vmatpush2.msra.mxu0 0.0
    %3982 = vmatprep.subr.mxu0 0.0
    %3983 = vmatpush2.msra.mxu0 0.0
    %3984 = vmatprep.subr.mxu0 0.0
    %3985 = vmatpush2.msra.mxu0 0.0
    %3986 = vmatprep.subr.mxu0 0.0
    %3987 = vmatpush2.msra.mxu0 0.0
    %3988 = vmatprep.subr.mxu0 0.0
    %3989 = vmatpush2.msra.mxu0 0.0
    %3990 = vmatprep.mubr.f32.mxu0 0.0
    %3991 = vmatmul.mubr.f32.gmra.mxu0 %v3593
    %v3992 = vpop.f32.mrf.mxu0
    %v3993 = vadd.f32 %v3924, %v3992
    %v3994 = vpop.f32.mrf.mxu0
    %3995 = vmatprep.mubr.f32.mxu0 0.0
    %3996 = vmatmul.mubr.f32.gmra.mxu0 %v3596
    %v3997 = vpop.f32.mrf.mxu0
    %v3998 = vadd.f32 %v3924, %v3997
    %v3999 = vpop.f32.mrf.mxu0
    %4000 = vmatprep.mubr.f32.mxu0 0.0
    %4001 = vmatmul.mubr.f32.gmra.mxu0 %v3599
    %v4002 = vpop.f32.mrf.mxu0
    %v4003 = vadd.f32 %v3924, %v4002
    %v4004 = vpop.f32.mrf.mxu0
    %4005 = vmatprep.mubr.f32.mxu0 0.0
    %4006 = vmatmul.mubr.f32.gmra.mxu0 %v3602
    %v4007 = vpop.f32.mrf.mxu0
    %v4008 = vadd.f32 %v3924, %v4007
    %v4009 = vpop.f32.mrf.mxu0
    %4010 = vmatprep.mubr.f32.mxu0 0.0
    %4011 = vmatmul.mubr.f32.gmra.mxu0 %v3605
    %v4012 = vpop.f32.mrf.mxu0
    %v4013 = vadd.f32 %v3924, %v4012
    %v4014 = vpop.f32.mrf.mxu0
    %4015 = vmatprep.mubr.f32.mxu0 0.0
    %4016 = vmatmul.mubr.f32.gmra.mxu0 %v3608
    %v4017 = vpop.f32.mrf.mxu0
    %v4018 = vadd.f32 %v3924, %v4017
    %v4019 = vpop.f32.mrf.mxu0
    %4020 = vmatprep.mubr.f32.mxu0 0.0
    %4021 = vmatmul.mubr.f32.gmra.mxu0 %v3611
    %v4022 = vpop.f32.mrf.mxu0
    %v4023 = vadd.f32 %v3924, %v4022
    %v4024 = vpop.f32.mrf.mxu0
    %4025 = vmatprep.mubr.f32.mxu0 0.0
    %4026 = vmatmul.mubr.f32.gmra.mxu0 %v3614
    %v4027 = vpop.f32.mrf.mxu0
    %v4028 = vadd.f32 %v3924, %v4027
    %v4029 = vpop.f32.mrf.mxu0
    %4030 = vmatprep.mubr.f32.mxu0 0.0
    %4031 = vmatmul.mubr.f32.gmra.mxu0 %v3617
    %v4032 = vpop.f32.mrf.mxu0
    %v4033 = vadd.f32 %v3924, %v4032
    %v4034 = vpop.f32.mrf.mxu0
    %4035 = vmatprep.mubr.f32.mxu0 0.0
    %4036 = vmatmul.mubr.f32.gmra.mxu0 %v3620
    %v4037 = vpop.f32.mrf.mxu0
    %v4038 = vadd.f32 %v3924, %v4037
    %v4039 = vpop.f32.mrf.mxu0
    %4040 = vmatprep.mubr.f32.mxu0 0.0
    %4041 = vmatmul.mubr.f32.gmra.mxu0 %v3623
    %v4042 = vpop.f32.mrf.mxu0
    %v4043 = vadd.f32 %v3924, %v4042
    %v4044 = vpop.f32.mrf.mxu0
    %4045 = vmatprep.mubr.f32.mxu0 0.0
    %4046 = vmatmul.mubr.f32.gmra.mxu0 %v3626
    %v4047 = vpop.f32.mrf.mxu0
    %v4048 = vadd.f32 %v3924, %v4047
    %v4049 = vpop.f32.mrf.mxu0
    %4050 = vmatprep.mubr.f32.mxu0 0.0
    %4051 = vmatmul.mubr.f32.gmra.mxu0 %v3629
    %v4052 = vpop.f32.mrf.mxu0
    %v4053 = vadd.f32 %v3924, %v4052
    %v4054 = vpop.f32.mrf.mxu0
    %4055 = vmatprep.mubr.f32.mxu0 0.0
    %4056 = vmatmul.mubr.f32.gmra.mxu0 %v3632
    %v4057 = vpop.f32.mrf.mxu0
    %v4058 = vadd.f32 %v3924, %v4057
    %v4059 = vpop.f32.mrf.mxu0
    %4060 = vmatprep.mubr.f32.mxu0 0.0
    %4061 = vmatmul.mubr.f32.gmra.mxu0 %v3635
    %v4062 = vpop.f32.mrf.mxu0
    %v4063 = vadd.f32 %v3924, %v4062
    %v4064 = vpop.f32.mrf.mxu0
    %4065 = vmatprep.mubr.f32.mxu0 0.0
    %4066 = vmatmul.mubr.f32.gmra.mxu0 %v3638
    %v4067 = vpop.f32.mrf.mxu0
    %v4068 = vadd.f32 %v3924, %v4067
    %v4069 = vpop.f32.mrf.mxu0
    %4070 = vmatprep.mubr.f32.mxu0 0.0
    %4071 = vmatmul.mubr.f32.gmra.mxu0 %v3641
    %v4072 = vpop.f32.mrf.mxu0
    %v4073 = vadd.f32 %v3924, %v4072
    %v4074 = vpop.f32.mrf.mxu0
    %4075 = vmatprep.mubr.f32.mxu0 0.0
    %4076 = vmatmul.mubr.f32.gmra.mxu0 %v3644
    %v4077 = vpop.f32.mrf.mxu0
    %v4078 = vadd.f32 %v3924, %v4077
    %v4079 = vpop.f32.mrf.mxu0
    %4080 = vmatprep.mubr.f32.mxu0 0.0
    %4081 = vmatmul.mubr.f32.gmra.mxu0 %v3647
    %v4082 = vpop.f32.mrf.mxu0
    %v4083 = vadd.f32 %v3924, %v4082
    %v4084 = vpop.f32.mrf.mxu0
    %4085 = vmatprep.mubr.f32.mxu0 0.0
    %4086 = vmatmul.mubr.f32.gmra.mxu0 %v3650
    %v4087 = vpop.f32.mrf.mxu0
    %v4088 = vadd.f32 %v3924, %v4087
    %v4089 = vpop.f32.mrf.mxu0
    %4090 = vmatprep.mubr.f32.mxu0 0.0
    %4091 = vmatmul.mubr.f32.gmra.mxu0 %v3653
    %v4092 = vpop.f32.mrf.mxu0
    %v4093 = vadd.f32 %v3924, %v4092
    %v4094 = vpop.f32.mrf.mxu0
    %4095 = vmatprep.mubr.f32.mxu0 0.0
    %4096 = vmatmul.mubr.f32.gmra.mxu0 %v3656
    %v4097 = vpop.f32.mrf.mxu0
    %v4098 = vadd.f32 %v3924, %v4097
    %v4099 = vpop.f32.mrf.mxu0
    %4100 = vmatprep.mubr.f32.mxu0 0.0
    %4101 = vmatmul.mubr.f32.gmra.mxu0 %v3659
    %v4102 = vpop.f32.mrf.mxu0
    %v4103 = vadd.f32 %v3924, %v4102
    %v4104 = vpop.f32.mrf.mxu0
    %4105 = vmatprep.mubr.f32.mxu0 0.0
    %4106 = vmatmul.mubr.f32.gmra.mxu0 %v3662
    %v4107 = vpop.f32.mrf.mxu0
    %v4108 = vadd.f32 %v3924, %v4107
    %v4109 = vpop.f32.mrf.mxu0
    %4110 = vmatprep.mubr.f32.mxu0 0.0
    %4111 = vmatmul.mubr.f32.gmra.mxu0 %v3665
    %v4112 = vpop.f32.mrf.mxu0
    %v4113 = vadd.f32 %v3924, %v4112
    %v4114 = vpop.f32.mrf.mxu0
    %4115 = vmatprep.mubr.f32.mxu0 0.0
    %4116 = vmatmul.mubr.f32.gmra.mxu0 %v3668
    %v4117 = vpop.f32.mrf.mxu0
    %v4118 = vadd.f32 %v3924, %v4117
    %v4119 = vpop.f32.mrf.mxu0
    %4120 = vmatprep.mubr.f32.mxu0 0.0
    %4121 = vmatmul.mubr.f32.gmra.mxu0 %v3671
    %v4122 = vpop.f32.mrf.mxu0
    %v4123 = vadd.f32 %v3924, %v4122
    %v4124 = vpop.f32.mrf.mxu0
    %4125 = vmatprep.mubr.f32.mxu0 0.0
    %4126 = vmatmul.mubr.f32.gmra.mxu0 %v3674
    %v4127 = vpop.f32.mrf.mxu0
    %v4128 = vadd.f32 %v3924, %v4127
    %v4129 = vpop.f32.mrf.mxu0
    %4130 = vmatprep.mubr.f32.mxu0 0.0
    %4131 = vmatmul.mubr.f32.gmra.mxu0 %v3677
    %v4132 = vpop.f32.mrf.mxu0
    %v4133 = vadd.f32 %v3924, %v4132
    %v4134 = vpop.f32.mrf.mxu0
    %4135 = vmatprep.mubr.f32.mxu0 0.0
    %4136 = vmatmul.mubr.f32.gmra.mxu0 %v3680
    %v4137 = vpop.f32.mrf.mxu0
    %v4138 = vadd.f32 %v3924, %v4137
    %v4139 = vpop.f32.mrf.mxu0
    %4140 = vmatprep.mubr.f32.mxu0 0.0
    %4141 = vmatmul.mubr.f32.gmra.mxu0 %v3683
    %v4142 = vpop.f32.mrf.mxu0
    %v4143 = vadd.f32 %v3924, %v4142
    %v4144 = vpop.f32.mrf.mxu0
    %4145 = vmatprep.mubr.f32.mxu0 0.0
    %4146 = vmatmul.mubr.f32.gmra.mxu0 %v3686
    %v4147 = vpop.f32.mrf.mxu0
    %v4148 = vadd.f32 %v3924, %v4147
    %v4149 = vpop.f32.mrf.mxu0
    %4150 = vdwg.mxu0
    %v4151 = vadd.f32 %v3755, 2.0
    %v4152 = vadd.f32 %v3760, 2.0
    %v4153 = vadd.f32 %v3765, 2.0
    %v4154 = vadd.f32 %v3770, 2.0
    %v4155 = vadd.f32 %v3775, 2.0
    %v4156 = vadd.f32 %v3780, 2.0
    %v4157 = vadd.f32 %v3785, 2.0
    %v4158 = vadd.f32 %v3790, 2.0
    %v4159 = vadd.f32 %v3795, 2.0
    %v4160 = vadd.f32 %v3800, 2.0
    %v4161 = vadd.f32 %v3805, 2.0
    %v4162 = vadd.f32 %v3810, 2.0
    %v4163 = vadd.f32 %v3815, 2.0
    %v4164 = vadd.f32 %v3820, 2.0
    %v4165 = vadd.f32 %v3825, 2.0
    %v4166 = vadd.f32 %v3830, 2.0
    %v4167 = vadd.f32 %v3835, 2.0
    %v4168 = vadd.f32 %v3840, 2.0
    %v4169 = vadd.f32 %v3845, 2.0
    %v4170 = vadd.f32 %v3850, 2.0
    %v4171 = vadd.f32 %v3855, 2.0
    %v4172 = vadd.f32 %v3860, 2.0
    %v4173 = vadd.f32 %v3865, 2.0
    %v4174 = vadd.f32 %v3870, 2.0
    %v4175 = vadd.f32 %v3875, 2.0
    %v4176 = vadd.f32 %v3880, 2.0
    %v4177 = vadd.f32 %v3885, 2.0
    %v4178 = vadd.f32 %v3890, 2.0
    %v4179 = vadd.f32 %v3895, 2.0
    %v4180 = vadd.f32 %v3900, 2.0
    %v4181 = vadd.f32 %v3905, 2.0
    %v4182 = vadd.f32 %v3910, 2.0
    %v4183 = vsub.f32 0.0, %v4151
    %v4184 = vsub.f32 0.0, %v4152
    %v4185 = vsub.f32 0.0, %v4153
    %v4186 = vsub.f32 0.0, %v4154
    %v4187 = vsub.f32 0.0, %v4155
    %v4188 = vsub.f32 0.0, %v4156
    %v4189 = vsub.f32 0.0, %v4157
    %v4190 = vsub.f32 0.0, %v4158
    %v4191 = vsub.f32 0.0, %v4159
    %v4192 = vsub.f32 0.0, %v4160
    %v4193 = vsub.f32 0.0, %v4161
    %v4194 = vsub.f32 0.0, %v4162
    %v4195 = vsub.f32 0.0, %v4163
    %v4196 = vsub.f32 0.0, %v4164
    %v4197 = vsub.f32 0.0, %v4165
    %v4198 = vsub.f32 0.0, %v4166
    %v4199 = vsub.f32 0.0, %v4167
    %v4200 = vsub.f32 0.0, %v4168
    %v4201 = vsub.f32 0.0, %v4169
    %v4202 = vsub.f32 0.0, %v4170
    %v4203 = vsub.f32 0.0, %v4171
    %v4204 = vsub.f32 0.0, %v4172
    %v4205 = vsub.f32 0.0, %v4173
    %v4206 = vsub.f32 0.0, %v4174
    %v4207 = vsub.f32 0.0, %v4175
    %v4208 = vsub.f32 0.0, %v4176
    %v4209 = vsub.f32 0.0, %v4177
    %v4210 = vsub.f32 0.0, %v4178
    %v4211 = vsub.f32 0.0, %v4179
    %v4212 = vsub.f32 0.0, %v4180
    %v4213 = vsub.f32 0.0, %v4181
    %v4214 = vsub.f32 0.0, %v4182
    %v4215 = vmul.f32 %v4183, 1.442695
    %v4216 = vpow.pop %v4215
    %v4217 = vmul.f32 %v4184, 1.442695
    %v4218 = vpow.pop %v4217
    %v4219 = vmul.f32 %v4185, 1.442695
    %v4220 = vpow.pop %v4219
    %v4221 = vmul.f32 %v4186, 1.442695
    %v4222 = vpow.pop %v4221
    %v4223 = vmul.f32 %v4187, 1.442695
    %v4224 = vpow.pop %v4223
    %v4225 = vmul.f32 %v4188, 1.442695
    %v4226 = vpow.pop %v4225
    %v4227 = vmul.f32 %v4189, 1.442695
    %v4228 = vpow.pop %v4227
    %v4229 = vmul.f32 %v4190, 1.442695
    %v4230 = vpow.pop %v4229
    %v4231 = vmul.f32 %v4191, 1.442695
    %v4232 = vpow.pop %v4231
    %v4233 = vmul.f32 %v4192, 1.442695
    %v4234 = vpow.pop %v4233
    %v4235 = vmul.f32 %v4193, 1.442695
    %v4236 = vpow.pop %v4235
    %v4237 = vmul.f32 %v4194, 1.442695
    %v4238 = vpow.pop %v4237
    %v4239 = vmul.f32 %v4195, 1.442695
    %v4240 = vpow.pop %v4239
    %v4241 = vmul.f32 %v4196, 1.442695
    %v4242 = vpow.pop %v4241
    %v4243 = vmul.f32 %v4197, 1.442695
    %v4244 = vpow.pop %v4243
    %v4245 = vmul.f32 %v4198, 1.442695
    %v4246 = vpow.pop %v4245
    %v4247 = vmul.f32 %v4199, 1.442695
    %v4248 = vpow.pop %v4247
    %v4249 = vmul.f32 %v4200, 1.442695
    %v4250 = vpow.pop %v4249
    %v4251 = vmul.f32 %v4201, 1.442695
    %v4252 = vpow.pop %v4251
    %v4253 = vmul.f32 %v4202, 1.442695
    %v4254 = vpow.pop %v4253
    %v4255 = vmul.f32 %v4203, 1.442695
    %v4256 = vpow.pop %v4255
    %v4257 = vmul.f32 %v4204, 1.442695
    %v4258 = vpow.pop %v4257
    %v4259 = vmul.f32 %v4205, 1.442695
    %v4260 = vpow.pop %v4259
    %v4261 = vmul.f32 %v4206, 1.442695
    %v4262 = vpow.pop %v4261
    %v4263 = vmul.f32 %v4207, 1.442695
    %v4264 = vpow.pop %v4263
    %v4265 = vmul.f32 %v4208, 1.442695
    %v4266 = vpow.pop %v4265
    %v4267 = vmul.f32 %v4209, 1.442695
    %v4268 = vpow.pop %v4267
    %v4269 = vmul.f32 %v4210, 1.442695
    %v4270 = vpow.pop %v4269
    %v4271 = vmul.f32 %v4211, 1.442695
    %v4272 = vpow.pop %v4271
    %v4273 = vmul.f32 %v4212, 1.442695
    %v4274 = vpow.pop %v4273
    %v4275 = vmul.f32 %v4213, 1.442695
    %v4276 = vpow.pop %v4275
    %v4277 = vmul.f32 %v4214, 1.442695
    %v4278 = vpow.pop %v4277
    %v4279 = vadd.f32 %v4216, 1.0
    %v4280 = vadd.f32 %v4218, 1.0
    %v4281 = vadd.f32 %v4220, 1.0
    %v4282 = vadd.f32 %v4222, 1.0
    %v4283 = vadd.f32 %v4224, 1.0
    %v4284 = vadd.f32 %v4226, 1.0
    %v4285 = vadd.f32 %v4228, 1.0
    %v4286 = vadd.f32 %v4230, 1.0
    %v4287 = vadd.f32 %v4232, 1.0
    %v4288 = vadd.f32 %v4234, 1.0
    %v4289 = vadd.f32 %v4236, 1.0
    %v4290 = vadd.f32 %v4238, 1.0
    %v4291 = vadd.f32 %v4240, 1.0
    %v4292 = vadd.f32 %v4242, 1.0
    %v4293 = vadd.f32 %v4244, 1.0
    %v4294 = vadd.f32 %v4246, 1.0
    %v4295 = vadd.f32 %v4248, 1.0
    %v4296 = vadd.f32 %v4250, 1.0
    %v4297 = vadd.f32 %v4252, 1.0
    %v4298 = vadd.f32 %v4254, 1.0
    %v4299 = vadd.f32 %v4256, 1.0
    %v4300 = vadd.f32 %v4258, 1.0
    %v4301 = vadd.f32 %v4260, 1.0
    %v4302 = vadd.f32 %v4262, 1.0
    %v4303 = vadd.f32 %v4264, 1.0
    %v4304 = vadd.f32 %v4266, 1.0
    %v4305 = vadd.f32 %v4268, 1.0
    %v4306 = vadd.f32 %v4270, 1.0
    %v4307 = vadd.f32 %v4272, 1.0
    %v4308 = vadd.f32 %v4274, 1.0
    %v4309 = vadd.f32 %v4276, 1.0
    %v4310 = vadd.f32 %v4278, 1.0
    %v4311 = vlog2.pop %v4279
    %v4312 = vmul.f32 %v4311, 0.6931472
    %v4313 = vlog2.pop %v4280
    %v4314 = vmul.f32 %v4313, 0.6931472
    %v4315 = vlog2.pop %v4281
    %v4316 = vmul.f32 %v4315, 0.6931472
    %v4317 = vlog2.pop %v4282
    %v4318 = vmul.f32 %v4317, 0.6931472
    %v4319 = vlog2.pop %v4283
    %v4320 = vmul.f32 %v4319, 0.6931472
    %v4321 = vlog2.pop %v4284
    %v4322 = vmul.f32 %v4321, 0.6931472
    %v4323 = vlog2.pop %v4285
    %v4324 = vmul.f32 %v4323, 0.6931472
    %v4325 = vlog2.pop %v4286
    %v4326 = vmul.f32 %v4325, 0.6931472
    %v4327 = vlog2.pop %v4287
    %v4328 = vmul.f32 %v4327, 0.6931472
    %v4329 = vlog2.pop %v4288
    %v4330 = vmul.f32 %v4329, 0.6931472
    %v4331 = vlog2.pop %v4289
    %v4332 = vmul.f32 %v4331, 0.6931472
    %v4333 = vlog2.pop %v4290
    %v4334 = vmul.f32 %v4333, 0.6931472
    %v4335 = vlog2.pop %v4291
    %v4336 = vmul.f32 %v4335, 0.6931472
    %v4337 = vlog2.pop %v4292
    %v4338 = vmul.f32 %v4337, 0.6931472
    %v4339 = vlog2.pop %v4293
    %v4340 = vmul.f32 %v4339, 0.6931472
    %v4341 = vlog2.pop %v4294
    %v4342 = vmul.f32 %v4341, 0.6931472
    %v4343 = vlog2.pop %v4295
    %v4344 = vmul.f32 %v4343, 0.6931472
    %v4345 = vlog2.pop %v4296
    %v4346 = vmul.f32 %v4345, 0.6931472
    %v4347 = vlog2.pop %v4297
    %v4348 = vmul.f32 %v4347, 0.6931472
    %v4349 = vlog2.pop %v4298
    %v4350 = vmul.f32 %v4349, 0.6931472
    %v4351 = vlog2.pop %v4299
    %v4352 = vmul.f32 %v4351, 0.6931472
    %v4353 = vlog2.pop %v4300
    %v4354 = vmul.f32 %v4353, 0.6931472
    %v4355 = vlog2.pop %v4301
    %v4356 = vmul.f32 %v4355, 0.6931472
    %v4357 = vlog2.pop %v4302
    %v4358 = vmul.f32 %v4357, 0.6931472
    %v4359 = vlog2.pop %v4303
    %v4360 = vmul.f32 %v4359, 0.6931472
    %v4361 = vlog2.pop %v4304
    %v4362 = vmul.f32 %v4361, 0.6931472
    %v4363 = vlog2.pop %v4305
    %v4364 = vmul.f32 %v4363, 0.6931472
    %v4365 = vlog2.pop %v4306
    %v4366 = vmul.f32 %v4365, 0.6931472
    %v4367 = vlog2.pop %v4307
    %v4368 = vmul.f32 %v4367, 0.6931472
    %v4369 = vlog2.pop %v4308
    %v4370 = vmul.f32 %v4369, 0.6931472
    %v4371 = vlog2.pop %v4309
    %v4372 = vmul.f32 %v4371, 0.6931472
    %v4373 = vlog2.pop %v4310
    %v4374 = vmul.f32 %v4373, 0.6931472
    %v4375 = vsub.f32 %v2195, %v4312
    %v4376 = vsub.f32 %v2196, %v4314
    %v4377 = vsub.f32 %v2197, %v4316
    %v4378 = vsub.f32 %v2198, %v4318
    %v4379 = vsub.f32 %v2199, %v4320
    %v4380 = vsub.f32 %v2200, %v4322
    %v4381 = vsub.f32 %v2201, %v4324
    %v4382 = vsub.f32 %v2202, %v4326
    %v4383 = vsub.f32 %v2203, %v4328
    %v4384 = vsub.f32 %v2204, %v4330
    %v4385 = vsub.f32 %v2205, %v4332
    %v4386 = vsub.f32 %v2206, %v4334
    %v4387 = vsub.f32 %v2207, %v4336
    %v4388 = vsub.f32 %v2208, %v4338
    %v4389 = vsub.f32 %v2209, %v4340
    %v4390 = vsub.f32 %v2210, %v4342
    %v4391 = vsub.f32 %v2211, %v4344
    %v4392 = vsub.f32 %v2212, %v4346
    %v4393 = vsub.f32 %v2213, %v4348
    %v4394 = vsub.f32 %v2214, %v4350
    %v4395 = vsub.f32 %v2215, %v4352
    %v4396 = vsub.f32 %v2216, %v4354
    %v4397 = vsub.f32 %v2217, %v4356
    %v4398 = vsub.f32 %v2218, %v4358
    %v4399 = vsub.f32 %v2219, %v4360
    %v4400 = vsub.f32 %v2220, %v4362
    %v4401 = vsub.f32 %v2221, %v4364
    %v4402 = vsub.f32 %v2222, %v4366
    %v4403 = vsub.f32 %v2223, %v4368
    %v4404 = vsub.f32 %v2224, %v4370
    %v4405 = vsub.f32 %v2225, %v4372
    %v4406 = vsub.f32 %v2226, %v4374
    %v4407 = vsub.f32 %v2259, %v3993
    %v4408 = vsub.f32 %v2260, %v3998
    %v4409 = vsub.f32 %v2261, %v4003
    %v4410 = vsub.f32 %v2262, %v4008
    %v4411 = vsub.f32 %v2263, %v4013
    %v4412 = vsub.f32 %v2264, %v4018
    %v4413 = vsub.f32 %v2265, %v4023
    %v4414 = vsub.f32 %v2266, %v4028
    %v4415 = vsub.f32 %v2267, %v4033
    %v4416 = vsub.f32 %v2268, %v4038
    %v4417 = vsub.f32 %v2269, %v4043
    %v4418 = vsub.f32 %v2270, %v4048
    %v4419 = vsub.f32 %v2271, %v4053
    %v4420 = vsub.f32 %v2272, %v4058
    %v4421 = vsub.f32 %v2273, %v4063
    %v4422 = vsub.f32 %v2274, %v4068
    %v4423 = vsub.f32 %v2275, %v4073
    %v4424 = vsub.f32 %v2276, %v4078
    %v4425 = vsub.f32 %v2277, %v4083
    %v4426 = vsub.f32 %v2278, %v4088
    %v4427 = vsub.f32 %v2279, %v4093
    %v4428 = vsub.f32 %v2280, %v4098
    %v4429 = vsub.f32 %v2281, %v4103
    %v4430 = vsub.f32 %v2282, %v4108
    %v4431 = vsub.f32 %v2283, %v4113
    %v4432 = vsub.f32 %v2284, %v4118
    %v4433 = vsub.f32 %v2285, %v4123
    %v4434 = vsub.f32 %v2286, %v4128
    %v4435 = vsub.f32 %v2287, %v4133
    %v4436 = vsub.f32 %v2288, %v4138
    %v4437 = vsub.f32 %v2289, %v4143
    %v4438 = vsub.f32 %v2290, %v4148
    %v4439 = vmul.f32 %v4407, %v4279
    %v4440 = vmul.f32 %v4408, %v4280
    %v4441 = vmul.f32 %v4409, %v4281
    %v4442 = vmul.f32 %v4410, %v4282
    %v4443 = vmul.f32 %v4411, %v4283
    %v4444 = vmul.f32 %v4412, %v4284
    %v4445 = vmul.f32 %v4413, %v4285
    %v4446 = vmul.f32 %v4414, %v4286
    %v4447 = vmul.f32 %v4415, %v4287
    %v4448 = vmul.f32 %v4416, %v4288
    %v4449 = vmul.f32 %v4417, %v4289
    %v4450 = vmul.f32 %v4418, %v4290
    %v4451 = vmul.f32 %v4419, %v4291
    %v4452 = vmul.f32 %v4420, %v4292
    %v4453 = vmul.f32 %v4421, %v4293
    %v4454 = vmul.f32 %v4422, %v4294
    %v4455 = vmul.f32 %v4423, %v4295
    %v4456 = vmul.f32 %v4424, %v4296
    %v4457 = vmul.f32 %v4425, %v4297
    %v4458 = vmul.f32 %v4426, %v4298
    %v4459 = vmul.f32 %v4427, %v4299
    %v4460 = vmul.f32 %v4428, %v4300
    %v4461 = vmul.f32 %v4429, %v4301
    %v4462 = vmul.f32 %v4430, %v4302
    %v4463 = vmul.f32 %v4431, %v4303
    %v4464 = vmul.f32 %v4432, %v4304
    %v4465 = vmul.f32 %v4433, %v4305
    %v4466 = vmul.f32 %v4434, %v4306
    %v4467 = vmul.f32 %v4435, %v4307
    %v4468 = vmul.f32 %v4436, %v4308
    %v4469 = vmul.f32 %v4437, %v4309
    %v4470 = vmul.f32 %v4438, %v4310
    %s4471 = scalar_lea.vmem %s2, 16
    %v4472 = vld [vmem:[%s4471] sm:$0xff]
    %v4473 = vld [vmem:[%s4471 + $0x8] sm:$0xff]
    %s4474 = scalar_lea.vmem %s3, 1
    %v4475 = vld [vmem:[%s4474] sm:$0x1]
    %v4477 = vlaneseq
    %v4478 = vshrl.u32 %v4477, 7
    %v4479 = vsub.s32 0, %v4478
    %v4480 = vrot.slane %v4475, %v4479
    %v4483 = vsel %vm120, %v4439, 0
    %v4486 = vsel %vm120, %v4440, 0
    %v4489 = vsel %vm120, %v4441, 0
    %v4492 = vsel %vm120, %v4442, 0
    %v4495 = vsel %vm120, %v4443, 0
    %v4498 = vsel %vm120, %v4444, 0
    %v4501 = vsel %vm120, %v4445, 0
    %v4504 = vsel %vm120, %v4446, 0
    %v4507 = vsel %vm120, %v4447, 0
    %v4510 = vsel %vm120, %v4448, 0
    %v4513 = vsel %vm120, %v4449, 0
    %v4516 = vsel %vm120, %v4450, 0
    %v4519 = vsel %vm120, %v4451, 0
    %v4522 = vsel %vm120, %v4452, 0
    %v4525 = vsel %vm120, %v4453, 0
    %v4528 = vsel %vm120, %v4454, 0
    %v4531 = vsel %vm120, %v4455, 0
    %v4534 = vsel %vm120, %v4456, 0
    %v4537 = vsel %vm120, %v4457, 0
    %v4540 = vsel %vm120, %v4458, 0
    %v4543 = vsel %vm120, %v4459, 0
    %v4546 = vsel %vm120, %v4460, 0
    %v4549 = vsel %vm120, %v4461, 0
    %v4552 = vsel %vm120, %v4462, 0
    %v4555 = vsel %vm120, %v4463, 0
    %v4558 = vsel %vm120, %v4464, 0
    %v4561 = vsel %vm120, %v4465, 0
    %v4564 = vsel %vm120, %v4466, 0
    %v4567 = vsel %vm120, %v4467, 0
    %v4570 = vsel %vm120, %v4468, 0
    %v4573 = vsel %vm120, %v4469, 0
    %v4576 = vsel %vm120, %v4470, 0
    %4578 = vmatprep.subr.mxu0 0.0
    %4579 = vmatpush1.msra.mxu0 0.0
    %4580 = vmatprep.subr.mxu0 0.0
    %4581 = vmatpush1.msra.mxu0 0.0
    %4582 = vmatprep.subr.mxu0 0.0
    %4583 = vmatpush1.msra.mxu0 0.0
    %4584 = vmatprep.subr.mxu0 0.0
    %4585 = vmatpush1.msra.mxu0 0.0
    %4586 = vmatprep.subr.mxu0 0.0
    %4587 = vmatpush1.msra.mxu0 0.0
    %4588 = vmatprep.subr.mxu0 0.0
    %4589 = vmatpush1.msra.mxu0 0.0
    %4590 = vmatprep.subr.mxu0 0.0
    %4591 = vmatpush1.msra.mxu0 0.0
    %4592 = vmatprep.subr.mxu0 0.0
    %4593 = vmatpush1.msra.mxu0 0.0
    %4594 = vmatprep.subr.mxu0 0.0
    %4595 = vmatpush1.msra.mxu0 0.0
    %4596 = vmatprep.subr.mxu0 0.0
    %4597 = vmatpush1.msra.mxu0 0.0
    %4598 = vmatprep.subr.mxu0 0.0
    %4599 = vmatpush1.msra.mxu0 0.0
    %4600 = vmatprep.subr.mxu0 0.0
    %4601 = vmatpush1.msra.mxu0 0.0
    %4602 = vmatprep.subr.mxu0 0.0
    %4603 = vmatpush1.msra.mxu0 0.0
    %4604 = vmatprep.subr.mxu0 0.0
    %4605 = vmatpush1.msra.mxu0 0.0
    %4606 = vmatprep.subr.mxu0 0.0
    %4607 = vmatpush1.msra.mxu0 %v4473
    %4608 = vmatprep.subr.mxu0 0.0
    %4609 = vmatpush1.msra.mxu0 %v4472
    %4610 = vmatprep.subr.mxu0 0.0
    %4611 = vmatpush2.msra.mxu0 0.0
    %4612 = vmatprep.subr.mxu0 0.0
    %4613 = vmatpush2.msra.mxu0 0.0
    %4614 = vmatprep.subr.mxu0 0.0
    %4615 = vmatpush2.msra.mxu0 0.0
    %4616 = vmatprep.subr.mxu0 0.0
    %4617 = vmatpush2.msra.mxu0 0.0
    %4618 = vmatprep.subr.mxu0 0.0
    %4619 = vmatpush2.msra.mxu0 0.0
    %4620 = vmatprep.subr.mxu0 0.0
    %4621 = vmatpush2.msra.mxu0 0.0
    %4622 = vmatprep.subr.mxu0 0.0
    %4623 = vmatpush2.msra.mxu0 0.0
    %4624 = vmatprep.subr.mxu0 0.0
    %4625 = vmatpush2.msra.mxu0 0.0
    %4626 = vmatprep.subr.mxu0 0.0
    %4627 = vmatpush2.msra.mxu0 0.0
    %4628 = vmatprep.subr.mxu0 0.0
    %4629 = vmatpush2.msra.mxu0 0.0
    %4630 = vmatprep.subr.mxu0 0.0
    %4631 = vmatpush2.msra.mxu0 0.0
    %4632 = vmatprep.subr.mxu0 0.0
    %4633 = vmatpush2.msra.mxu0 0.0
    %4634 = vmatprep.subr.mxu0 0.0
    %4635 = vmatpush2.msra.mxu0 0.0
    %4636 = vmatprep.subr.mxu0 0.0
    %4637 = vmatpush2.msra.mxu0 0.0
    %4638 = vmatprep.subr.mxu0 0.0
    %4639 = vmatpush2.msra.mxu0 0.0
    %4640 = vmatprep.subr.mxu0 0.0
    %4641 = vmatpush2.msra.mxu0 0.0
    %4642 = vmatprep.mubr.f32.mxu0 0.0
    %4643 = vmatmul.mubr.f32.gmra.mxu0 %v4483
    %v4644 = vpop.f32.mrf.mxu0
    %v4645 = vadd.f32 %v4480, %v4644
    %v4646 = vpop.f32.mrf.mxu0
    %4647 = vmatprep.mubr.f32.mxu0 0.0
    %4648 = vmatmul.mubr.f32.gmra.mxu0 %v4486
    %v4649 = vpop.f32.mrf.mxu0
    %v4650 = vadd.f32 %v4480, %v4649
    %v4651 = vpop.f32.mrf.mxu0
    %4652 = vmatprep.mubr.f32.mxu0 0.0
    %4653 = vmatmul.mubr.f32.gmra.mxu0 %v4489
    %v4654 = vpop.f32.mrf.mxu0
    %v4655 = vadd.f32 %v4480, %v4654
    %v4656 = vpop.f32.mrf.mxu0
    %4657 = vmatprep.mubr.f32.mxu0 0.0
    %4658 = vmatmul.mubr.f32.gmra.mxu0 %v4492
    %v4659 = vpop.f32.mrf.mxu0
    %v4660 = vadd.f32 %v4480, %v4659
    %v4661 = vpop.f32.mrf.mxu0
    %4662 = vmatprep.mubr.f32.mxu0 0.0
    %4663 = vmatmul.mubr.f32.gmra.mxu0 %v4495
    %v4664 = vpop.f32.mrf.mxu0
    %v4665 = vadd.f32 %v4480, %v4664
    %v4666 = vpop.f32.mrf.mxu0
    %4667 = vmatprep.mubr.f32.mxu0 0.0
    %4668 = vmatmul.mubr.f32.gmra.mxu0 %v4498
    %v4669 = vpop.f32.mrf.mxu0
    %v4670 = vadd.f32 %v4480, %v4669
    %v4671 = vpop.f32.mrf.mxu0
    %4672 = vmatprep.mubr.f32.mxu0 0.0
    %4673 = vmatmul.mubr.f32.gmra.mxu0 %v4501
    %v4674 = vpop.f32.mrf.mxu0
    %v4675 = vadd.f32 %v4480, %v4674
    %v4676 = vpop.f32.mrf.mxu0
    %4677 = vmatprep.mubr.f32.mxu0 0.0
    %4678 = vmatmul.mubr.f32.gmra.mxu0 %v4504
    %v4679 = vpop.f32.mrf.mxu0
    %v4680 = vadd.f32 %v4480, %v4679
    %v4681 = vpop.f32.mrf.mxu0
    %4682 = vmatprep.mubr.f32.mxu0 0.0
    %4683 = vmatmul.mubr.f32.gmra.mxu0 %v4507
    %v4684 = vpop.f32.mrf.mxu0
    %v4685 = vadd.f32 %v4480, %v4684
    %v4686 = vpop.f32.mrf.mxu0
    %4687 = vmatprep.mubr.f32.mxu0 0.0
    %4688 = vmatmul.mubr.f32.gmra.mxu0 %v4510
    %v4689 = vpop.f32.mrf.mxu0
    %v4690 = vadd.f32 %v4480, %v4689
    %v4691 = vpop.f32.mrf.mxu0
    %4692 = vmatprep.mubr.f32.mxu0 0.0
    %4693 = vmatmul.mubr.f32.gmra.mxu0 %v4513
    %v4694 = vpop.f32.mrf.mxu0
    %v4695 = vadd.f32 %v4480, %v4694
    %v4696 = vpop.f32.mrf.mxu0
    %4697 = vmatprep.mubr.f32.mxu0 0.0
    %4698 = vmatmul.mubr.f32.gmra.mxu0 %v4516
    %v4699 = vpop.f32.mrf.mxu0
    %v4700 = vadd.f32 %v4480, %v4699
    %v4701 = vpop.f32.mrf.mxu0
    %4702 = vmatprep.mubr.f32.mxu0 0.0
    %4703 = vmatmul.mubr.f32.gmra.mxu0 %v4519
    %v4704 = vpop.f32.mrf.mxu0
    %v4705 = vadd.f32 %v4480, %v4704
    %v4706 = vpop.f32.mrf.mxu0
    %4707 = vmatprep.mubr.f32.mxu0 0.0
    %4708 = vmatmul.mubr.f32.gmra.mxu0 %v4522
    %v4709 = vpop.f32.mrf.mxu0
    %v4710 = vadd.f32 %v4480, %v4709
    %v4711 = vpop.f32.mrf.mxu0
    %4712 = vmatprep.mubr.f32.mxu0 0.0
    %4713 = vmatmul.mubr.f32.gmra.mxu0 %v4525
    %v4714 = vpop.f32.mrf.mxu0
    %v4715 = vadd.f32 %v4480, %v4714
    %v4716 = vpop.f32.mrf.mxu0
    %4717 = vmatprep.mubr.f32.mxu0 0.0
    %4718 = vmatmul.mubr.f32.gmra.mxu0 %v4528
    %v4719 = vpop.f32.mrf.mxu0
    %v4720 = vadd.f32 %v4480, %v4719
    %v4721 = vpop.f32.mrf.mxu0
    %4722 = vmatprep.mubr.f32.mxu0 0.0
    %4723 = vmatmul.mubr.f32.gmra.mxu0 %v4531
    %v4724 = vpop.f32.mrf.mxu0
    %v4725 = vadd.f32 %v4480, %v4724
    %v4726 = vpop.f32.mrf.mxu0
    %4727 = vmatprep.mubr.f32.mxu0 0.0
    %4728 = vmatmul.mubr.f32.gmra.mxu0 %v4534
    %v4729 = vpop.f32.mrf.mxu0
    %v4730 = vadd.f32 %v4480, %v4729
    %v4731 = vpop.f32.mrf.mxu0
    %4732 = vmatprep.mubr.f32.mxu0 0.0
    %4733 = vmatmul.mubr.f32.gmra.mxu0 %v4537
    %v4734 = vpop.f32.mrf.mxu0
    %v4735 = vadd.f32 %v4480, %v4734
    %v4736 = vpop.f32.mrf.mxu0
    %4737 = vmatprep.mubr.f32.mxu0 0.0
    %4738 = vmatmul.mubr.f32.gmra.mxu0 %v4540
    %v4739 = vpop.f32.mrf.mxu0
    %v4740 = vadd.f32 %v4480, %v4739
    %v4741 = vpop.f32.mrf.mxu0
    %4742 = vmatprep.mubr.f32.mxu0 0.0
    %4743 = vmatmul.mubr.f32.gmra.mxu0 %v4543
    %v4744 = vpop.f32.mrf.mxu0
    %v4745 = vadd.f32 %v4480, %v4744
    %v4746 = vpop.f32.mrf.mxu0
    %4747 = vmatprep.mubr.f32.mxu0 0.0
    %4748 = vmatmul.mubr.f32.gmra.mxu0 %v4546
    %v4749 = vpop.f32.mrf.mxu0
    %v4750 = vadd.f32 %v4480, %v4749
    %v4751 = vpop.f32.mrf.mxu0
    %4752 = vmatprep.mubr.f32.mxu0 0.0
    %4753 = vmatmul.mubr.f32.gmra.mxu0 %v4549
    %v4754 = vpop.f32.mrf.mxu0
    %v4755 = vadd.f32 %v4480, %v4754
    %v4756 = vpop.f32.mrf.mxu0
    %4757 = vmatprep.mubr.f32.mxu0 0.0
    %4758 = vmatmul.mubr.f32.gmra.mxu0 %v4552
    %v4759 = vpop.f32.mrf.mxu0
    %v4760 = vadd.f32 %v4480, %v4759
    %v4761 = vpop.f32.mrf.mxu0
    %4762 = vmatprep.mubr.f32.mxu0 0.0
    %4763 = vmatmul.mubr.f32.gmra.mxu0 %v4555
    %v4764 = vpop.f32.mrf.mxu0
    %v4765 = vadd.f32 %v4480, %v4764
    %v4766 = vpop.f32.mrf.mxu0
    %4767 = vmatprep.mubr.f32.mxu0 0.0
    %4768 = vmatmul.mubr.f32.gmra.mxu0 %v4558
    %v4769 = vpop.f32.mrf.mxu0
    %v4770 = vadd.f32 %v4480, %v4769
    %v4771 = vpop.f32.mrf.mxu0
    %4772 = vmatprep.mubr.f32.mxu0 0.0
    %4773 = vmatmul.mubr.f32.gmra.mxu0 %v4561
    %v4774 = vpop.f32.mrf.mxu0
    %v4775 = vadd.f32 %v4480, %v4774
    %v4776 = vpop.f32.mrf.mxu0
    %4777 = vmatprep.mubr.f32.mxu0 0.0
    %4778 = vmatmul.mubr.f32.gmra.mxu0 %v4564
    %v4779 = vpop.f32.mrf.mxu0
    %v4780 = vadd.f32 %v4480, %v4779
    %v4781 = vpop.f32.mrf.mxu0
    %4782 = vmatprep.mubr.f32.mxu0 0.0
    %4783 = vmatmul.mubr.f32.gmra.mxu0 %v4567
    %v4784 = vpop.f32.mrf.mxu0
    %v4785 = vadd.f32 %v4480, %v4784
    %v4786 = vpop.f32.mrf.mxu0
    %4787 = vmatprep.mubr.f32.mxu0 0.0
    %4788 = vmatmul.mubr.f32.gmra.mxu0 %v4570
    %v4789 = vpop.f32.mrf.mxu0
    %v4790 = vadd.f32 %v4480, %v4789
    %v4791 = vpop.f32.mrf.mxu0
    %4792 = vmatprep.mubr.f32.mxu0 0.0
    %4793 = vmatmul.mubr.f32.gmra.mxu0 %v4573
    %v4794 = vpop.f32.mrf.mxu0
    %v4795 = vadd.f32 %v4480, %v4794
    %v4796 = vpop.f32.mrf.mxu0
    %4797 = vmatprep.mubr.f32.mxu0 0.0
    %4798 = vmatmul.mubr.f32.gmra.mxu0 %v4576
    %v4799 = vpop.f32.mrf.mxu0
    %v4800 = vadd.f32 %v4480, %v4799
    %v4801 = vpop.f32.mrf.mxu0
    %4802 = vdwg.mxu0
    %vm4803 = vcmp.gt.f32.partialorder %v4645, 0.0
    %vm4804 = vcmp.gt.f32.partialorder %v4650, 0.0
    %vm4805 = vcmp.gt.f32.partialorder %v4655, 0.0
    %vm4806 = vcmp.gt.f32.partialorder %v4660, 0.0
    %vm4807 = vcmp.gt.f32.partialorder %v4665, 0.0
    %vm4808 = vcmp.gt.f32.partialorder %v4670, 0.0
    %vm4809 = vcmp.gt.f32.partialorder %v4675, 0.0
    %vm4810 = vcmp.gt.f32.partialorder %v4680, 0.0
    %vm4811 = vcmp.gt.f32.partialorder %v4685, 0.0
    %vm4812 = vcmp.gt.f32.partialorder %v4690, 0.0
    %vm4813 = vcmp.gt.f32.partialorder %v4695, 0.0
    %vm4814 = vcmp.gt.f32.partialorder %v4700, 0.0
    %vm4815 = vcmp.gt.f32.partialorder %v4705, 0.0
    %vm4816 = vcmp.gt.f32.partialorder %v4710, 0.0
    %vm4817 = vcmp.gt.f32.partialorder %v4715, 0.0
    %vm4818 = vcmp.gt.f32.partialorder %v4720, 0.0
    %vm4819 = vcmp.gt.f32.partialorder %v4725, 0.0
    %vm4820 = vcmp.gt.f32.partialorder %v4730, 0.0
    %vm4821 = vcmp.gt.f32.partialorder %v4735, 0.0
    %vm4822 = vcmp.gt.f32.partialorder %v4740, 0.0
    %vm4823 = vcmp.gt.f32.partialorder %v4745, 0.0
    %vm4824 = vcmp.gt.f32.partialorder %v4750, 0.0
    %vm4825 = vcmp.gt.f32.partialorder %v4755, 0.0
    %vm4826 = vcmp.gt.f32.partialorder %v4760, 0.0
    %vm4827 = vcmp.gt.f32.partialorder %v4765, 0.0
    %vm4828 = vcmp.gt.f32.partialorder %v4770, 0.0
    %vm4829 = vcmp.gt.f32.partialorder %v4775, 0.0
    %vm4830 = vcmp.gt.f32.partialorder %v4780, 0.0
    %vm4831 = vcmp.gt.f32.partialorder %v4785, 0.0
    %vm4832 = vcmp.gt.f32.partialorder %v4790, 0.0
    %vm4833 = vcmp.gt.f32.partialorder %v4795, 0.0
    %vm4834 = vcmp.gt.f32.partialorder %v4800, 0.0
    %v4835 = vmul.f32 %v4645, 0.01
    %v4836 = vmul.f32 %v4650, 0.01
    %v4837 = vmul.f32 %v4655, 0.01
    %v4838 = vmul.f32 %v4660, 0.01
    %v4839 = vmul.f32 %v4665, 0.01
    %v4840 = vmul.f32 %v4670, 0.01
    %v4841 = vmul.f32 %v4675, 0.01
    %v4842 = vmul.f32 %v4680, 0.01
    %v4843 = vmul.f32 %v4685, 0.01
    %v4844 = vmul.f32 %v4690, 0.01
    %v4845 = vmul.f32 %v4695, 0.01
    %v4846 = vmul.f32 %v4700, 0.01
    %v4847 = vmul.f32 %v4705, 0.01
    %v4848 = vmul.f32 %v4710, 0.01
    %v4849 = vmul.f32 %v4715, 0.01
    %v4850 = vmul.f32 %v4720, 0.01
    %v4851 = vmul.f32 %v4725, 0.01
    %v4852 = vmul.f32 %v4730, 0.01
    %v4853 = vmul.f32 %v4735, 0.01
    %v4854 = vmul.f32 %v4740, 0.01
    %v4855 = vmul.f32 %v4745, 0.01
    %v4856 = vmul.f32 %v4750, 0.01
    %v4857 = vmul.f32 %v4755, 0.01
    %v4858 = vmul.f32 %v4760, 0.01
    %v4859 = vmul.f32 %v4765, 0.01
    %v4860 = vmul.f32 %v4770, 0.01
    %v4861 = vmul.f32 %v4775, 0.01
    %v4862 = vmul.f32 %v4780, 0.01
    %v4863 = vmul.f32 %v4785, 0.01
    %v4864 = vmul.f32 %v4790, 0.01
    %v4865 = vmul.f32 %v4795, 0.01
    %v4866 = vmul.f32 %v4800, 0.01
    %v4867 = vsel %vm4803, %v4645, %v4835
    %v4868 = vsel %vm4804, %v4650, %v4836
    %v4869 = vsel %vm4805, %v4655, %v4837
    %v4870 = vsel %vm4806, %v4660, %v4838
    %v4871 = vsel %vm4807, %v4665, %v4839
    %v4872 = vsel %vm4808, %v4670, %v4840
    %v4873 = vsel %vm4809, %v4675, %v4841
    %v4874 = vsel %vm4810, %v4680, %v4842
    %v4875 = vsel %vm4811, %v4685, %v4843
    %v4876 = vsel %vm4812, %v4690, %v4844
    %v4877 = vsel %vm4813, %v4695, %v4845
    %v4878 = vsel %vm4814, %v4700, %v4846
    %v4879 = vsel %vm4815, %v4705, %v4847
    %v4880 = vsel %vm4816, %v4710, %v4848
    %v4881 = vsel %vm4817, %v4715, %v4849
    %v4882 = vsel %vm4818, %v4720, %v4850
    %v4883 = vsel %vm4819, %v4725, %v4851
    %v4884 = vsel %vm4820, %v4730, %v4852
    %v4885 = vsel %vm4821, %v4735, %v4853
    %v4886 = vsel %vm4822, %v4740, %v4854
    %v4887 = vsel %vm4823, %v4745, %v4855
    %v4888 = vsel %vm4824, %v4750, %v4856
    %v4889 = vsel %vm4825, %v4755, %v4857
    %v4890 = vsel %vm4826, %v4760, %v4858
    %v4891 = vsel %vm4827, %v4765, %v4859
    %v4892 = vsel %vm4828, %v4770, %v4860
    %v4893 = vsel %vm4829, %v4775, %v4861
    %v4894 = vsel %vm4830, %v4780, %v4862
    %v4895 = vsel %vm4831, %v4785, %v4863
    %v4896 = vsel %vm4832, %v4790, %v4864
    %v4897 = vsel %vm4833, %v4795, %v4865
    %v4898 = vsel %vm4834, %v4800, %v4866
    %s4899 = scalar_lea.vmem %s4, 64
    %v4900 = vld [vmem:[%s4899] sm:$0xff]
    %v4901 = vld [vmem:[%s4899 + $0x8] sm:$0xff]
    %v4902 = vld [vmem:[%s4899 + $0x10] sm:$0xff]
    %v4903 = vld [vmem:[%s4899 + $0x18] sm:$0xff]
    %s4904 = scalar_lea.vmem %s5, 2
    %v4905 = vld [vmem:[%s4904] sm:$0x1]
    %v4907 = vlaneseq
    %v4908 = vshrl.u32 %v4907, 7
    %v4909 = vsub.s32 0, %v4908
    %v4910 = vrot.slane %v4905, %v4909
    %v4913 = vsel %vm551, %v4867, 0
    %v4916 = vsel %vm551, %v4868, 0
    %v4919 = vsel %vm551, %v4869, 0
    %v4922 = vsel %vm551, %v4870, 0
    %v4925 = vsel %vm551, %v4871, 0
    %v4928 = vsel %vm551, %v4872, 0
    %v4931 = vsel %vm551, %v4873, 0
    %v4934 = vsel %vm551, %v4874, 0
    %v4937 = vsel %vm551, %v4875, 0
    %v4940 = vsel %vm551, %v4876, 0
    %v4943 = vsel %vm551, %v4877, 0
    %v4946 = vsel %vm551, %v4878, 0
    %v4949 = vsel %vm551, %v4879, 0
    %v4952 = vsel %vm551, %v4880, 0
    %v4955 = vsel %vm551, %v4881, 0
    %v4958 = vsel %vm551, %v4882, 0
    %v4961 = vsel %vm551, %v4883, 0
    %v4964 = vsel %vm551, %v4884, 0
    %v4967 = vsel %vm551, %v4885, 0
    %v4970 = vsel %vm551, %v4886, 0
    %v4973 = vsel %vm551, %v4887, 0
    %v4976 = vsel %vm551, %v4888, 0
    %v4979 = vsel %vm551, %v4889, 0
    %v4982 = vsel %vm551, %v4890, 0
    %v4985 = vsel %vm551, %v4891, 0
    %v4988 = vsel %vm551, %v4892, 0
    %v4991 = vsel %vm551, %v4893, 0
    %v4994 = vsel %vm551, %v4894, 0
    %v4997 = vsel %vm551, %v4895, 0
    %v5000 = vsel %vm551, %v4896, 0
    %v5003 = vsel %vm551, %v4897, 0
    %v5006 = vsel %vm551, %v4898, 0
    %5008 = vmatprep.subr.mxu0 0.0
    %5009 = vmatpush1.msra.mxu0 0.0
    %5010 = vmatprep.subr.mxu0 0.0
    %5011 = vmatpush1.msra.mxu0 0.0
    %5012 = vmatprep.subr.mxu0 0.0
    %5013 = vmatpush1.msra.mxu0 0.0
    %5014 = vmatprep.subr.mxu0 0.0
    %5015 = vmatpush1.msra.mxu0 0.0
    %5016 = vmatprep.subr.mxu0 0.0
    %5017 = vmatpush1.msra.mxu0 0.0
    %5018 = vmatprep.subr.mxu0 0.0
    %5019 = vmatpush1.msra.mxu0 0.0
    %5020 = vmatprep.subr.mxu0 0.0
    %5021 = vmatpush1.msra.mxu0 0.0
    %5022 = vmatprep.subr.mxu0 0.0
    %5023 = vmatpush1.msra.mxu0 0.0
    %5024 = vmatprep.subr.mxu0 0.0
    %5025 = vmatpush1.msra.mxu0 0.0
    %5026 = vmatprep.subr.mxu0 0.0
    %5027 = vmatpush1.msra.mxu0 0.0
    %5028 = vmatprep.subr.mxu0 0.0
    %5029 = vmatpush1.msra.mxu0 0.0
    %5030 = vmatprep.subr.mxu0 0.0
    %5031 = vmatpush1.msra.mxu0 0.0
    %5032 = vmatprep.subr.mxu0 0.0
    %5033 = vmatpush1.msra.mxu0 %v4903
    %5034 = vmatprep.subr.mxu0 0.0
    %5035 = vmatpush1.msra.mxu0 %v4902
    %5036 = vmatprep.subr.mxu0 0.0
    %5037 = vmatpush1.msra.mxu0 %v4901
    %5038 = vmatprep.subr.mxu0 0.0
    %5039 = vmatpush1.msra.mxu0 %v4900
    %5040 = vmatprep.subr.mxu0 0.0
    %5041 = vmatpush2.msra.mxu0 0.0
    %5042 = vmatprep.subr.mxu0 0.0
    %5043 = vmatpush2.msra.mxu0 0.0
    %5044 = vmatprep.subr.mxu0 0.0
    %5045 = vmatpush2.msra.mxu0 0.0
    %5046 = vmatprep.subr.mxu0 0.0
    %5047 = vmatpush2.msra.mxu0 0.0
    %5048 = vmatprep.subr.mxu0 0.0
    %5049 = vmatpush2.msra.mxu0 0.0
    %5050 = vmatprep.subr.mxu0 0.0
    %5051 = vmatpush2.msra.mxu0 0.0
    %5052 = vmatprep.subr.mxu0 0.0
    %5053 = vmatpush2.msra.mxu0 0.0
    %5054 = vmatprep.subr.mxu0 0.0
    %5055 = vmatpush2.msra.mxu0 0.0
    %5056 = vmatprep.subr.mxu0 0.0
    %5057 = vmatpush2.msra.mxu0 0.0
    %5058 = vmatprep.subr.mxu0 0.0
    %5059 = vmatpush2.msra.mxu0 0.0
    %5060 = vmatprep.subr.mxu0 0.0
    %5061 = vmatpush2.msra.mxu0 0.0
    %5062 = vmatprep.subr.mxu0 0.0
    %5063 = vmatpush2.msra.mxu0 0.0
    %5064 = vmatprep.subr.mxu0 0.0
    %5065 = vmatpush2.msra.mxu0 0.0
    %5066 = vmatprep.subr.mxu0 0.0
    %5067 = vmatpush2.msra.mxu0 0.0
    %5068 = vmatprep.subr.mxu0 0.0
    %5069 = vmatpush2.msra.mxu0 0.0
    %5070 = vmatprep.subr.mxu0 0.0
    %5071 = vmatpush2.msra.mxu0 0.0
    %5072 = vmatprep.mubr.f32.mxu0 0.0
    %5073 = vmatmul.mubr.f32.gmra.mxu0 %v4913
    %v5074 = vpop.f32.mrf.mxu0
    %v5075 = vadd.f32 %v4910, %v5074
    %v5076 = vpop.f32.mrf.mxu0
    %5077 = vmatprep.mubr.f32.mxu0 0.0
    %5078 = vmatmul.mubr.f32.gmra.mxu0 %v4916
    %v5079 = vpop.f32.mrf.mxu0
    %v5080 = vadd.f32 %v4910, %v5079
    %v5081 = vpop.f32.mrf.mxu0
    %5082 = vmatprep.mubr.f32.mxu0 0.0
    %5083 = vmatmul.mubr.f32.gmra.mxu0 %v4919
    %v5084 = vpop.f32.mrf.mxu0
    %v5085 = vadd.f32 %v4910, %v5084
    %v5086 = vpop.f32.mrf.mxu0
    %5087 = vmatprep.mubr.f32.mxu0 0.0
    %5088 = vmatmul.mubr.f32.gmra.mxu0 %v4922
    %v5089 = vpop.f32.mrf.mxu0
    %v5090 = vadd.f32 %v4910, %v5089
    %v5091 = vpop.f32.mrf.mxu0
    %5092 = vmatprep.mubr.f32.mxu0 0.0
    %5093 = vmatmul.mubr.f32.gmra.mxu0 %v4925
    %v5094 = vpop.f32.mrf.mxu0
    %v5095 = vadd.f32 %v4910, %v5094
    %v5096 = vpop.f32.mrf.mxu0
    %5097 = vmatprep.mubr.f32.mxu0 0.0
    %5098 = vmatmul.mubr.f32.gmra.mxu0 %v4928
    %v5099 = vpop.f32.mrf.mxu0
    %v5100 = vadd.f32 %v4910, %v5099
    %v5101 = vpop.f32.mrf.mxu0
    %5102 = vmatprep.mubr.f32.mxu0 0.0
    %5103 = vmatmul.mubr.f32.gmra.mxu0 %v4931
    %v5104 = vpop.f32.mrf.mxu0
    %v5105 = vadd.f32 %v4910, %v5104
    %v5106 = vpop.f32.mrf.mxu0
    %5107 = vmatprep.mubr.f32.mxu0 0.0
    %5108 = vmatmul.mubr.f32.gmra.mxu0 %v4934
    %v5109 = vpop.f32.mrf.mxu0
    %v5110 = vadd.f32 %v4910, %v5109
    %v5111 = vpop.f32.mrf.mxu0
    %5112 = vmatprep.mubr.f32.mxu0 0.0
    %5113 = vmatmul.mubr.f32.gmra.mxu0 %v4937
    %v5114 = vpop.f32.mrf.mxu0
    %v5115 = vadd.f32 %v4910, %v5114
    %v5116 = vpop.f32.mrf.mxu0
    %5117 = vmatprep.mubr.f32.mxu0 0.0
    %5118 = vmatmul.mubr.f32.gmra.mxu0 %v4940
    %v5119 = vpop.f32.mrf.mxu0
    %v5120 = vadd.f32 %v4910, %v5119
    %v5121 = vpop.f32.mrf.mxu0
    %5122 = vmatprep.mubr.f32.mxu0 0.0
    %5123 = vmatmul.mubr.f32.gmra.mxu0 %v4943
    %v5124 = vpop.f32.mrf.mxu0
    %v5125 = vadd.f32 %v4910, %v5124
    %v5126 = vpop.f32.mrf.mxu0
    %5127 = vmatprep.mubr.f32.mxu0 0.0
    %5128 = vmatmul.mubr.f32.gmra.mxu0 %v4946
    %v5129 = vpop.f32.mrf.mxu0
    %v5130 = vadd.f32 %v4910, %v5129
    %v5131 = vpop.f32.mrf.mxu0
    %5132 = vmatprep.mubr.f32.mxu0 0.0
    %5133 = vmatmul.mubr.f32.gmra.mxu0 %v4949
    %v5134 = vpop.f32.mrf.mxu0
    %v5135 = vadd.f32 %v4910, %v5134
    %v5136 = vpop.f32.mrf.mxu0
    %5137 = vmatprep.mubr.f32.mxu0 0.0
    %5138 = vmatmul.mubr.f32.gmra.mxu0 %v4952
    %v5139 = vpop.f32.mrf.mxu0
    %v5140 = vadd.f32 %v4910, %v5139
    %v5141 = vpop.f32.mrf.mxu0
    %5142 = vmatprep.mubr.f32.mxu0 0.0
    %5143 = vmatmul.mubr.f32.gmra.mxu0 %v4955
    %v5144 = vpop.f32.mrf.mxu0
    %v5145 = vadd.f32 %v4910, %v5144
    %v5146 = vpop.f32.mrf.mxu0
    %5147 = vmatprep.mubr.f32.mxu0 0.0
    %5148 = vmatmul.mubr.f32.gmra.mxu0 %v4958
    %v5149 = vpop.f32.mrf.mxu0
    %v5150 = vadd.f32 %v4910, %v5149
    %v5151 = vpop.f32.mrf.mxu0
    %5152 = vmatprep.mubr.f32.mxu0 0.0
    %5153 = vmatmul.mubr.f32.gmra.mxu0 %v4961
    %v5154 = vpop.f32.mrf.mxu0
    %v5155 = vadd.f32 %v4910, %v5154
    %v5156 = vpop.f32.mrf.mxu0
    %5157 = vmatprep.mubr.f32.mxu0 0.0
    %5158 = vmatmul.mubr.f32.gmra.mxu0 %v4964
    %v5159 = vpop.f32.mrf.mxu0
    %v5160 = vadd.f32 %v4910, %v5159
    %v5161 = vpop.f32.mrf.mxu0
    %5162 = vmatprep.mubr.f32.mxu0 0.0
    %5163 = vmatmul.mubr.f32.gmra.mxu0 %v4967
    %v5164 = vpop.f32.mrf.mxu0
    %v5165 = vadd.f32 %v4910, %v5164
    %v5166 = vpop.f32.mrf.mxu0
    %5167 = vmatprep.mubr.f32.mxu0 0.0
    %5168 = vmatmul.mubr.f32.gmra.mxu0 %v4970
    %v5169 = vpop.f32.mrf.mxu0
    %v5170 = vadd.f32 %v4910, %v5169
    %v5171 = vpop.f32.mrf.mxu0
    %5172 = vmatprep.mubr.f32.mxu0 0.0
    %5173 = vmatmul.mubr.f32.gmra.mxu0 %v4973
    %v5174 = vpop.f32.mrf.mxu0
    %v5175 = vadd.f32 %v4910, %v5174
    %v5176 = vpop.f32.mrf.mxu0
    %5177 = vmatprep.mubr.f32.mxu0 0.0
    %5178 = vmatmul.mubr.f32.gmra.mxu0 %v4976
    %v5179 = vpop.f32.mrf.mxu0
    %v5180 = vadd.f32 %v4910, %v5179
    %v5181 = vpop.f32.mrf.mxu0
    %5182 = vmatprep.mubr.f32.mxu0 0.0
    %5183 = vmatmul.mubr.f32.gmra.mxu0 %v4979
    %v5184 = vpop.f32.mrf.mxu0
    %v5185 = vadd.f32 %v4910, %v5184
    %v5186 = vpop.f32.mrf.mxu0
    %5187 = vmatprep.mubr.f32.mxu0 0.0
    %5188 = vmatmul.mubr.f32.gmra.mxu0 %v4982
    %v5189 = vpop.f32.mrf.mxu0
    %v5190 = vadd.f32 %v4910, %v5189
    %v5191 = vpop.f32.mrf.mxu0
    %5192 = vmatprep.mubr.f32.mxu0 0.0
    %5193 = vmatmul.mubr.f32.gmra.mxu0 %v4985
    %v5194 = vpop.f32.mrf.mxu0
    %v5195 = vadd.f32 %v4910, %v5194
    %v5196 = vpop.f32.mrf.mxu0
    %5197 = vmatprep.mubr.f32.mxu0 0.0
    %5198 = vmatmul.mubr.f32.gmra.mxu0 %v4988
    %v5199 = vpop.f32.mrf.mxu0
    %v5200 = vadd.f32 %v4910, %v5199
    %v5201 = vpop.f32.mrf.mxu0
    %5202 = vmatprep.mubr.f32.mxu0 0.0
    %5203 = vmatmul.mubr.f32.gmra.mxu0 %v4991
    %v5204 = vpop.f32.mrf.mxu0
    %v5205 = vadd.f32 %v4910, %v5204
    %v5206 = vpop.f32.mrf.mxu0
    %5207 = vmatprep.mubr.f32.mxu0 0.0
    %5208 = vmatmul.mubr.f32.gmra.mxu0 %v4994
    %v5209 = vpop.f32.mrf.mxu0
    %v5210 = vadd.f32 %v4910, %v5209
    %v5211 = vpop.f32.mrf.mxu0
    %5212 = vmatprep.mubr.f32.mxu0 0.0
    %5213 = vmatmul.mubr.f32.gmra.mxu0 %v4997
    %v5214 = vpop.f32.mrf.mxu0
    %v5215 = vadd.f32 %v4910, %v5214
    %v5216 = vpop.f32.mrf.mxu0
    %5217 = vmatprep.mubr.f32.mxu0 0.0
    %5218 = vmatmul.mubr.f32.gmra.mxu0 %v5000
    %v5219 = vpop.f32.mrf.mxu0
    %v5220 = vadd.f32 %v4910, %v5219
    %v5221 = vpop.f32.mrf.mxu0
    %5222 = vmatprep.mubr.f32.mxu0 0.0
    %5223 = vmatmul.mubr.f32.gmra.mxu0 %v5003
    %v5224 = vpop.f32.mrf.mxu0
    %v5225 = vadd.f32 %v4910, %v5224
    %v5226 = vpop.f32.mrf.mxu0
    %5227 = vmatprep.mubr.f32.mxu0 0.0
    %5228 = vmatmul.mubr.f32.gmra.mxu0 %v5006
    %v5229 = vpop.f32.mrf.mxu0
    %v5230 = vadd.f32 %v4910, %v5229
    %v5231 = vpop.f32.mrf.mxu0
    %5232 = vdwg.mxu0
    %vm5233 = vcmp.gt.f32.partialorder %v5075, 0.0
    %vm5234 = vcmp.gt.f32.partialorder %v5080, 0.0
    %vm5235 = vcmp.gt.f32.partialorder %v5085, 0.0
    %vm5236 = vcmp.gt.f32.partialorder %v5090, 0.0
    %vm5237 = vcmp.gt.f32.partialorder %v5095, 0.0
    %vm5238 = vcmp.gt.f32.partialorder %v5100, 0.0
    %vm5239 = vcmp.gt.f32.partialorder %v5105, 0.0
    %vm5240 = vcmp.gt.f32.partialorder %v5110, 0.0
    %vm5241 = vcmp.gt.f32.partialorder %v5115, 0.0
    %vm5242 = vcmp.gt.f32.partialorder %v5120, 0.0
    %vm5243 = vcmp.gt.f32.partialorder %v5125, 0.0
    %vm5244 = vcmp.gt.f32.partialorder %v5130, 0.0
    %vm5245 = vcmp.gt.f32.partialorder %v5135, 0.0
    %vm5246 = vcmp.gt.f32.partialorder %v5140, 0.0
    %vm5247 = vcmp.gt.f32.partialorder %v5145, 0.0
    %vm5248 = vcmp.gt.f32.partialorder %v5150, 0.0
    %vm5249 = vcmp.gt.f32.partialorder %v5155, 0.0
    %vm5250 = vcmp.gt.f32.partialorder %v5160, 0.0
    %vm5251 = vcmp.gt.f32.partialorder %v5165, 0.0
    %vm5252 = vcmp.gt.f32.partialorder %v5170, 0.0
    %vm5253 = vcmp.gt.f32.partialorder %v5175, 0.0
    %vm5254 = vcmp.gt.f32.partialorder %v5180, 0.0
    %vm5255 = vcmp.gt.f32.partialorder %v5185, 0.0
    %vm5256 = vcmp.gt.f32.partialorder %v5190, 0.0
    %vm5257 = vcmp.gt.f32.partialorder %v5195, 0.0
    %vm5258 = vcmp.gt.f32.partialorder %v5200, 0.0
    %vm5259 = vcmp.gt.f32.partialorder %v5205, 0.0
    %vm5260 = vcmp.gt.f32.partialorder %v5210, 0.0
    %vm5261 = vcmp.gt.f32.partialorder %v5215, 0.0
    %vm5262 = vcmp.gt.f32.partialorder %v5220, 0.0
    %vm5263 = vcmp.gt.f32.partialorder %v5225, 0.0
    %vm5264 = vcmp.gt.f32.partialorder %v5230, 0.0
    %v5265 = vmul.f32 %v5075, 0.01
    %v5266 = vmul.f32 %v5080, 0.01
    %v5267 = vmul.f32 %v5085, 0.01
    %v5268 = vmul.f32 %v5090, 0.01
    %v5269 = vmul.f32 %v5095, 0.01
    %v5270 = vmul.f32 %v5100, 0.01
    %v5271 = vmul.f32 %v5105, 0.01
    %v5272 = vmul.f32 %v5110, 0.01
    %v5273 = vmul.f32 %v5115, 0.01
    %v5274 = vmul.f32 %v5120, 0.01
    %v5275 = vmul.f32 %v5125, 0.01
    %v5276 = vmul.f32 %v5130, 0.01
    %v5277 = vmul.f32 %v5135, 0.01
    %v5278 = vmul.f32 %v5140, 0.01
    %v5279 = vmul.f32 %v5145, 0.01
    %v5280 = vmul.f32 %v5150, 0.01
    %v5281 = vmul.f32 %v5155, 0.01
    %v5282 = vmul.f32 %v5160, 0.01
    %v5283 = vmul.f32 %v5165, 0.01
    %v5284 = vmul.f32 %v5170, 0.01
    %v5285 = vmul.f32 %v5175, 0.01
    %v5286 = vmul.f32 %v5180, 0.01
    %v5287 = vmul.f32 %v5185, 0.01
    %v5288 = vmul.f32 %v5190, 0.01
    %v5289 = vmul.f32 %v5195, 0.01
    %v5290 = vmul.f32 %v5200, 0.01
    %v5291 = vmul.f32 %v5205, 0.01
    %v5292 = vmul.f32 %v5210, 0.01
    %v5293 = vmul.f32 %v5215, 0.01
    %v5294 = vmul.f32 %v5220, 0.01
    %v5295 = vmul.f32 %v5225, 0.01
    %v5296 = vmul.f32 %v5230, 0.01
    %v5297 = vsel %vm5233, %v5075, %v5265
    %v5298 = vsel %vm5234, %v5080, %v5266
    %v5299 = vsel %vm5235, %v5085, %v5267
    %v5300 = vsel %vm5236, %v5090, %v5268
    %v5301 = vsel %vm5237, %v5095, %v5269
    %v5302 = vsel %vm5238, %v5100, %v5270
    %v5303 = vsel %vm5239, %v5105, %v5271
    %v5304 = vsel %vm5240, %v5110, %v5272
    %v5305 = vsel %vm5241, %v5115, %v5273
    %v5306 = vsel %vm5242, %v5120, %v5274
    %v5307 = vsel %vm5243, %v5125, %v5275
    %v5308 = vsel %vm5244, %v5130, %v5276
    %v5309 = vsel %vm5245, %v5135, %v5277
    %v5310 = vsel %vm5246, %v5140, %v5278
    %v5311 = vsel %vm5247, %v5145, %v5279
    %v5312 = vsel %vm5248, %v5150, %v5280
    %v5313 = vsel %vm5249, %v5155, %v5281
    %v5314 = vsel %vm5250, %v5160, %v5282
    %v5315 = vsel %vm5251, %v5165, %v5283
    %v5316 = vsel %vm5252, %v5170, %v5284
    %v5317 = vsel %vm5253, %v5175, %v5285
    %v5318 = vsel %vm5254, %v5180, %v5286
    %v5319 = vsel %vm5255, %v5185, %v5287
    %v5320 = vsel %vm5256, %v5190, %v5288
    %v5321 = vsel %vm5257, %v5195, %v5289
    %v5322 = vsel %vm5258, %v5200, %v5290
    %v5323 = vsel %vm5259, %v5205, %v5291
    %v5324 = vsel %vm5260, %v5210, %v5292
    %v5325 = vsel %vm5261, %v5215, %v5293
    %v5326 = vsel %vm5262, %v5220, %v5294
    %v5327 = vsel %vm5263, %v5225, %v5295
    %v5328 = vsel %vm5264, %v5230, %v5296
    %s5329 = scalar_lea.vmem %s4, 96
    %v5330 = vld [vmem:[%s5329] sm:$0xff]
    %v5331 = vld [vmem:[%s5329 + $0x8] sm:$0xff]
    %v5332 = vld [vmem:[%s5329 + $0x10] sm:$0xff]
    %v5333 = vld [vmem:[%s5329 + $0x18] sm:$0xff]
    %s5334 = scalar_lea.vmem %s5, 3
    %v5335 = vld [vmem:[%s5334] sm:$0x1]
    %v5337 = vlaneseq
    %v5338 = vshrl.u32 %v5337, 7
    %v5339 = vsub.s32 0, %v5338
    %v5340 = vrot.slane %v5335, %v5339
    %v5343 = vsel %vm551, %v5297, 0
    %v5346 = vsel %vm551, %v5298, 0
    %v5349 = vsel %vm551, %v5299, 0
    %v5352 = vsel %vm551, %v5300, 0
    %v5355 = vsel %vm551, %v5301, 0
    %v5358 = vsel %vm551, %v5302, 0
    %v5361 = vsel %vm551, %v5303, 0
    %v5364 = vsel %vm551, %v5304, 0
    %v5367 = vsel %vm551, %v5305, 0
    %v5370 = vsel %vm551, %v5306, 0
    %v5373 = vsel %vm551, %v5307, 0
    %v5376 = vsel %vm551, %v5308, 0
    %v5379 = vsel %vm551, %v5309, 0
    %v5382 = vsel %vm551, %v5310, 0
    %v5385 = vsel %vm551, %v5311, 0
    %v5388 = vsel %vm551, %v5312, 0
    %v5391 = vsel %vm551, %v5313, 0
    %v5394 = vsel %vm551, %v5314, 0
    %v5397 = vsel %vm551, %v5315, 0
    %v5400 = vsel %vm551, %v5316, 0
    %v5403 = vsel %vm551, %v5317, 0
    %v5406 = vsel %vm551, %v5318, 0
    %v5409 = vsel %vm551, %v5319, 0
    %v5412 = vsel %vm551, %v5320, 0
    %v5415 = vsel %vm551, %v5321, 0
    %v5418 = vsel %vm551, %v5322, 0
    %v5421 = vsel %vm551, %v5323, 0
    %v5424 = vsel %vm551, %v5324, 0
    %v5427 = vsel %vm551, %v5325, 0
    %v5430 = vsel %vm551, %v5326, 0
    %v5433 = vsel %vm551, %v5327, 0
    %v5436 = vsel %vm551, %v5328, 0
    %5438 = vmatprep.subr.mxu0 0.0
    %5439 = vmatpush1.msra.mxu0 0.0
    %5440 = vmatprep.subr.mxu0 0.0
    %5441 = vmatpush1.msra.mxu0 0.0
    %5442 = vmatprep.subr.mxu0 0.0
    %5443 = vmatpush1.msra.mxu0 0.0
    %5444 = vmatprep.subr.mxu0 0.0
    %5445 = vmatpush1.msra.mxu0 0.0
    %5446 = vmatprep.subr.mxu0 0.0
    %5447 = vmatpush1.msra.mxu0 0.0
    %5448 = vmatprep.subr.mxu0 0.0
    %5449 = vmatpush1.msra.mxu0 0.0
    %5450 = vmatprep.subr.mxu0 0.0
    %5451 = vmatpush1.msra.mxu0 0.0
    %5452 = vmatprep.subr.mxu0 0.0
    %5453 = vmatpush1.msra.mxu0 0.0
    %5454 = vmatprep.subr.mxu0 0.0
    %5455 = vmatpush1.msra.mxu0 0.0
    %5456 = vmatprep.subr.mxu0 0.0
    %5457 = vmatpush1.msra.mxu0 0.0
    %5458 = vmatprep.subr.mxu0 0.0
    %5459 = vmatpush1.msra.mxu0 0.0
    %5460 = vmatprep.subr.mxu0 0.0
    %5461 = vmatpush1.msra.mxu0 0.0
    %5462 = vmatprep.subr.mxu0 0.0
    %5463 = vmatpush1.msra.mxu0 %v5333
    %5464 = vmatprep.subr.mxu0 0.0
    %5465 = vmatpush1.msra.mxu0 %v5332
    %5466 = vmatprep.subr.mxu0 0.0
    %5467 = vmatpush1.msra.mxu0 %v5331
    %5468 = vmatprep.subr.mxu0 0.0
    %5469 = vmatpush1.msra.mxu0 %v5330
    %5470 = vmatprep.subr.mxu0 0.0
    %5471 = vmatpush2.msra.mxu0 0.0
    %5472 = vmatprep.subr.mxu0 0.0
    %5473 = vmatpush2.msra.mxu0 0.0
    %5474 = vmatprep.subr.mxu0 0.0
    %5475 = vmatpush2.msra.mxu0 0.0
    %5476 = vmatprep.subr.mxu0 0.0
    %5477 = vmatpush2.msra.mxu0 0.0
    %5478 = vmatprep.subr.mxu0 0.0
    %5479 = vmatpush2.msra.mxu0 0.0
    %5480 = vmatprep.subr.mxu0 0.0
    %5481 = vmatpush2.msra.mxu0 0.0
    %5482 = vmatprep.subr.mxu0 0.0
    %5483 = vmatpush2.msra.mxu0 0.0
    %5484 = vmatprep.subr.mxu0 0.0
    %5485 = vmatpush2.msra.mxu0 0.0
    %5486 = vmatprep.subr.mxu0 0.0
    %5487 = vmatpush2.msra.mxu0 0.0
    %5488 = vmatprep.subr.mxu0 0.0
    %5489 = vmatpush2.msra.mxu0 0.0
    %5490 = vmatprep.subr.mxu0 0.0
    %5491 = vmatpush2.msra.mxu0 0.0
    %5492 = vmatprep.subr.mxu0 0.0
    %5493 = vmatpush2.msra.mxu0 0.0
    %5494 = vmatprep.subr.mxu0 0.0
    %5495 = vmatpush2.msra.mxu0 0.0
    %5496 = vmatprep.subr.mxu0 0.0
    %5497 = vmatpush2.msra.mxu0 0.0
    %5498 = vmatprep.subr.mxu0 0.0
    %5499 = vmatpush2.msra.mxu0 0.0
    %5500 = vmatprep.subr.mxu0 0.0
    %5501 = vmatpush2.msra.mxu0 0.0
    %5502 = vmatprep.mubr.f32.mxu0 0.0
    %5503 = vmatmul.mubr.f32.gmra.mxu0 %v5343
    %v5504 = vpop.f32.mrf.mxu0
    %v5505 = vadd.f32 %v5340, %v5504
    %v5506 = vpop.f32.mrf.mxu0
    %5507 = vmatprep.mubr.f32.mxu0 0.0
    %5508 = vmatmul.mubr.f32.gmra.mxu0 %v5346
    %v5509 = vpop.f32.mrf.mxu0
    %v5510 = vadd.f32 %v5340, %v5509
    %v5511 = vpop.f32.mrf.mxu0
    %5512 = vmatprep.mubr.f32.mxu0 0.0
    %5513 = vmatmul.mubr.f32.gmra.mxu0 %v5349
    %v5514 = vpop.f32.mrf.mxu0
    %v5515 = vadd.f32 %v5340, %v5514
    %v5516 = vpop.f32.mrf.mxu0
    %5517 = vmatprep.mubr.f32.mxu0 0.0
    %5518 = vmatmul.mubr.f32.gmra.mxu0 %v5352
    %v5519 = vpop.f32.mrf.mxu0
    %v5520 = vadd.f32 %v5340, %v5519
    %v5521 = vpop.f32.mrf.mxu0
    %5522 = vmatprep.mubr.f32.mxu0 0.0
    %5523 = vmatmul.mubr.f32.gmra.mxu0 %v5355
    %v5524 = vpop.f32.mrf.mxu0
    %v5525 = vadd.f32 %v5340, %v5524
    %v5526 = vpop.f32.mrf.mxu0
    %5527 = vmatprep.mubr.f32.mxu0 0.0
    %5528 = vmatmul.mubr.f32.gmra.mxu0 %v5358
    %v5529 = vpop.f32.mrf.mxu0
    %v5530 = vadd.f32 %v5340, %v5529
    %v5531 = vpop.f32.mrf.mxu0
    %5532 = vmatprep.mubr.f32.mxu0 0.0
    %5533 = vmatmul.mubr.f32.gmra.mxu0 %v5361
    %v5534 = vpop.f32.mrf.mxu0
    %v5535 = vadd.f32 %v5340, %v5534
    %v5536 = vpop.f32.mrf.mxu0
    %5537 = vmatprep.mubr.f32.mxu0 0.0
    %5538 = vmatmul.mubr.f32.gmra.mxu0 %v5364
    %v5539 = vpop.f32.mrf.mxu0
    %v5540 = vadd.f32 %v5340, %v5539
    %v5541 = vpop.f32.mrf.mxu0
    %5542 = vmatprep.mubr.f32.mxu0 0.0
    %5543 = vmatmul.mubr.f32.gmra.mxu0 %v5367
    %v5544 = vpop.f32.mrf.mxu0
    %v5545 = vadd.f32 %v5340, %v5544
    %v5546 = vpop.f32.mrf.mxu0
    %5547 = vmatprep.mubr.f32.mxu0 0.0
    %5548 = vmatmul.mubr.f32.gmra.mxu0 %v5370
    %v5549 = vpop.f32.mrf.mxu0
    %v5550 = vadd.f32 %v5340, %v5549
    %v5551 = vpop.f32.mrf.mxu0
    %5552 = vmatprep.mubr.f32.mxu0 0.0
    %5553 = vmatmul.mubr.f32.gmra.mxu0 %v5373
    %v5554 = vpop.f32.mrf.mxu0
    %v5555 = vadd.f32 %v5340, %v5554
    %v5556 = vpop.f32.mrf.mxu0
    %5557 = vmatprep.mubr.f32.mxu0 0.0
    %5558 = vmatmul.mubr.f32.gmra.mxu0 %v5376
    %v5559 = vpop.f32.mrf.mxu0
    %v5560 = vadd.f32 %v5340, %v5559
    %v5561 = vpop.f32.mrf.mxu0
    %5562 = vmatprep.mubr.f32.mxu0 0.0
    %5563 = vmatmul.mubr.f32.gmra.mxu0 %v5379
    %v5564 = vpop.f32.mrf.mxu0
    %v5565 = vadd.f32 %v5340, %v5564
    %v5566 = vpop.f32.mrf.mxu0
    %5567 = vmatprep.mubr.f32.mxu0 0.0
    %5568 = vmatmul.mubr.f32.gmra.mxu0 %v5382
    %v5569 = vpop.f32.mrf.mxu0
    %v5570 = vadd.f32 %v5340, %v5569
    %v5571 = vpop.f32.mrf.mxu0
    %5572 = vmatprep.mubr.f32.mxu0 0.0
    %5573 = vmatmul.mubr.f32.gmra.mxu0 %v5385
    %v5574 = vpop.f32.mrf.mxu0
    %v5575 = vadd.f32 %v5340, %v5574
    %v5576 = vpop.f32.mrf.mxu0
    %5577 = vmatprep.mubr.f32.mxu0 0.0
    %5578 = vmatmul.mubr.f32.gmra.mxu0 %v5388
    %v5579 = vpop.f32.mrf.mxu0
    %v5580 = vadd.f32 %v5340, %v5579
    %v5581 = vpop.f32.mrf.mxu0
    %5582 = vmatprep.mubr.f32.mxu0 0.0
    %5583 = vmatmul.mubr.f32.gmra.mxu0 %v5391
    %v5584 = vpop.f32.mrf.mxu0
    %v5585 = vadd.f32 %v5340, %v5584
    %v5586 = vpop.f32.mrf.mxu0
    %5587 = vmatprep.mubr.f32.mxu0 0.0
    %5588 = vmatmul.mubr.f32.gmra.mxu0 %v5394
    %v5589 = vpop.f32.mrf.mxu0
    %v5590 = vadd.f32 %v5340, %v5589
    %v5591 = vpop.f32.mrf.mxu0
    %5592 = vmatprep.mubr.f32.mxu0 0.0
    %5593 = vmatmul.mubr.f32.gmra.mxu0 %v5397
    %v5594 = vpop.f32.mrf.mxu0
    %v5595 = vadd.f32 %v5340, %v5594
    %v5596 = vpop.f32.mrf.mxu0
    %5597 = vmatprep.mubr.f32.mxu0 0.0
    %5598 = vmatmul.mubr.f32.gmra.mxu0 %v5400
    %v5599 = vpop.f32.mrf.mxu0
    %v5600 = vadd.f32 %v5340, %v5599
    %v5601 = vpop.f32.mrf.mxu0
    %5602 = vmatprep.mubr.f32.mxu0 0.0
    %5603 = vmatmul.mubr.f32.gmra.mxu0 %v5403
    %v5604 = vpop.f32.mrf.mxu0
    %v5605 = vadd.f32 %v5340, %v5604
    %v5606 = vpop.f32.mrf.mxu0
    %5607 = vmatprep.mubr.f32.mxu0 0.0
    %5608 = vmatmul.mubr.f32.gmra.mxu0 %v5406
    %v5609 = vpop.f32.mrf.mxu0
    %v5610 = vadd.f32 %v5340, %v5609
    %v5611 = vpop.f32.mrf.mxu0
    %5612 = vmatprep.mubr.f32.mxu0 0.0
    %5613 = vmatmul.mubr.f32.gmra.mxu0 %v5409
    %v5614 = vpop.f32.mrf.mxu0
    %v5615 = vadd.f32 %v5340, %v5614
    %v5616 = vpop.f32.mrf.mxu0
    %5617 = vmatprep.mubr.f32.mxu0 0.0
    %5618 = vmatmul.mubr.f32.gmra.mxu0 %v5412
    %v5619 = vpop.f32.mrf.mxu0
    %v5620 = vadd.f32 %v5340, %v5619
    %v5621 = vpop.f32.mrf.mxu0
    %5622 = vmatprep.mubr.f32.mxu0 0.0
    %5623 = vmatmul.mubr.f32.gmra.mxu0 %v5415
    %v5624 = vpop.f32.mrf.mxu0
    %v5625 = vadd.f32 %v5340, %v5624
    %v5626 = vpop.f32.mrf.mxu0
    %5627 = vmatprep.mubr.f32.mxu0 0.0
    %5628 = vmatmul.mubr.f32.gmra.mxu0 %v5418
    %v5629 = vpop.f32.mrf.mxu0
    %v5630 = vadd.f32 %v5340, %v5629
    %v5631 = vpop.f32.mrf.mxu0
    %5632 = vmatprep.mubr.f32.mxu0 0.0
    %5633 = vmatmul.mubr.f32.gmra.mxu0 %v5421
    %v5634 = vpop.f32.mrf.mxu0
    %v5635 = vadd.f32 %v5340, %v5634
    %v5636 = vpop.f32.mrf.mxu0
    %5637 = vmatprep.mubr.f32.mxu0 0.0
    %5638 = vmatmul.mubr.f32.gmra.mxu0 %v5424
    %v5639 = vpop.f32.mrf.mxu0
    %v5640 = vadd.f32 %v5340, %v5639
    %v5641 = vpop.f32.mrf.mxu0
    %5642 = vmatprep.mubr.f32.mxu0 0.0
    %5643 = vmatmul.mubr.f32.gmra.mxu0 %v5427
    %v5644 = vpop.f32.mrf.mxu0
    %v5645 = vadd.f32 %v5340, %v5644
    %v5646 = vpop.f32.mrf.mxu0
    %5647 = vmatprep.mubr.f32.mxu0 0.0
    %5648 = vmatmul.mubr.f32.gmra.mxu0 %v5430
    %v5649 = vpop.f32.mrf.mxu0
    %v5650 = vadd.f32 %v5340, %v5649
    %v5651 = vpop.f32.mrf.mxu0
    %5652 = vmatprep.mubr.f32.mxu0 0.0
    %5653 = vmatmul.mubr.f32.gmra.mxu0 %v5433
    %v5654 = vpop.f32.mrf.mxu0
    %v5655 = vadd.f32 %v5340, %v5654
    %v5656 = vpop.f32.mrf.mxu0
    %5657 = vmatprep.mubr.f32.mxu0 0.0
    %5658 = vmatmul.mubr.f32.gmra.mxu0 %v5436
    %v5659 = vpop.f32.mrf.mxu0
    %v5660 = vadd.f32 %v5340, %v5659
    %v5661 = vpop.f32.mrf.mxu0
    %5662 = vdwg.mxu0
    %vm5663 = vcmp.gt.f32.partialorder %v5505, 0.0
    %vm5664 = vcmp.gt.f32.partialorder %v5510, 0.0
    %vm5665 = vcmp.gt.f32.partialorder %v5515, 0.0
    %vm5666 = vcmp.gt.f32.partialorder %v5520, 0.0
    %vm5667 = vcmp.gt.f32.partialorder %v5525, 0.0
    %vm5668 = vcmp.gt.f32.partialorder %v5530, 0.0
    %vm5669 = vcmp.gt.f32.partialorder %v5535, 0.0
    %vm5670 = vcmp.gt.f32.partialorder %v5540, 0.0
    %vm5671 = vcmp.gt.f32.partialorder %v5545, 0.0
    %vm5672 = vcmp.gt.f32.partialorder %v5550, 0.0
    %vm5673 = vcmp.gt.f32.partialorder %v5555, 0.0
    %vm5674 = vcmp.gt.f32.partialorder %v5560, 0.0
    %vm5675 = vcmp.gt.f32.partialorder %v5565, 0.0
    %vm5676 = vcmp.gt.f32.partialorder %v5570, 0.0
    %vm5677 = vcmp.gt.f32.partialorder %v5575, 0.0
    %vm5678 = vcmp.gt.f32.partialorder %v5580, 0.0
    %vm5679 = vcmp.gt.f32.partialorder %v5585, 0.0
    %vm5680 = vcmp.gt.f32.partialorder %v5590, 0.0
    %vm5681 = vcmp.gt.f32.partialorder %v5595, 0.0
    %vm5682 = vcmp.gt.f32.partialorder %v5600, 0.0
    %vm5683 = vcmp.gt.f32.partialorder %v5605, 0.0
    %vm5684 = vcmp.gt.f32.partialorder %v5610, 0.0
    %vm5685 = vcmp.gt.f32.partialorder %v5615, 0.0
    %vm5686 = vcmp.gt.f32.partialorder %v5620, 0.0
    %vm5687 = vcmp.gt.f32.partialorder %v5625, 0.0
    %vm5688 = vcmp.gt.f32.partialorder %v5630, 0.0
    %vm5689 = vcmp.gt.f32.partialorder %v5635, 0.0
    %vm5690 = vcmp.gt.f32.partialorder %v5640, 0.0
    %vm5691 = vcmp.gt.f32.partialorder %v5645, 0.0
    %vm5692 = vcmp.gt.f32.partialorder %v5650, 0.0
    %vm5693 = vcmp.gt.f32.partialorder %v5655, 0.0
    %vm5694 = vcmp.gt.f32.partialorder %v5660, 0.0
    %v5695 = vmul.f32 %v5505, 0.01
    %v5696 = vmul.f32 %v5510, 0.01
    %v5697 = vmul.f32 %v5515, 0.01
    %v5698 = vmul.f32 %v5520, 0.01
    %v5699 = vmul.f32 %v5525, 0.01
    %v5700 = vmul.f32 %v5530, 0.01
    %v5701 = vmul.f32 %v5535, 0.01
    %v5702 = vmul.f32 %v5540, 0.01
    %v5703 = vmul.f32 %v5545, 0.01
    %v5704 = vmul.f32 %v5550, 0.01
    %v5705 = vmul.f32 %v5555, 0.01
    %v5706 = vmul.f32 %v5560, 0.01
    %v5707 = vmul.f32 %v5565, 0.01
    %v5708 = vmul.f32 %v5570, 0.01
    %v5709 = vmul.f32 %v5575, 0.01
    %v5710 = vmul.f32 %v5580, 0.01
    %v5711 = vmul.f32 %v5585, 0.01
    %v5712 = vmul.f32 %v5590, 0.01
    %v5713 = vmul.f32 %v5595, 0.01
    %v5714 = vmul.f32 %v5600, 0.01
    %v5715 = vmul.f32 %v5605, 0.01
    %v5716 = vmul.f32 %v5610, 0.01
    %v5717 = vmul.f32 %v5615, 0.01
    %v5718 = vmul.f32 %v5620, 0.01
    %v5719 = vmul.f32 %v5625, 0.01
    %v5720 = vmul.f32 %v5630, 0.01
    %v5721 = vmul.f32 %v5635, 0.01
    %v5722 = vmul.f32 %v5640, 0.01
    %v5723 = vmul.f32 %v5645, 0.01
    %v5724 = vmul.f32 %v5650, 0.01
    %v5725 = vmul.f32 %v5655, 0.01
    %v5726 = vmul.f32 %v5660, 0.01
    %v5727 = vsel %vm5663, %v5505, %v5695
    %v5728 = vsel %vm5664, %v5510, %v5696
    %v5729 = vsel %vm5665, %v5515, %v5697
    %v5730 = vsel %vm5666, %v5520, %v5698
    %v5731 = vsel %vm5667, %v5525, %v5699
    %v5732 = vsel %vm5668, %v5530, %v5700
    %v5733 = vsel %vm5669, %v5535, %v5701
    %v5734 = vsel %vm5670, %v5540, %v5702
    %v5735 = vsel %vm5671, %v5545, %v5703
    %v5736 = vsel %vm5672, %v5550, %v5704
    %v5737 = vsel %vm5673, %v5555, %v5705
    %v5738 = vsel %vm5674, %v5560, %v5706
    %v5739 = vsel %vm5675, %v5565, %v5707
    %v5740 = vsel %vm5676, %v5570, %v5708
    %v5741 = vsel %vm5677, %v5575, %v5709
    %v5742 = vsel %vm5678, %v5580, %v5710
    %v5743 = vsel %vm5679, %v5585, %v5711
    %v5744 = vsel %vm5680, %v5590, %v5712
    %v5745 = vsel %vm5681, %v5595, %v5713
    %v5746 = vsel %vm5682, %v5600, %v5714
    %v5747 = vsel %vm5683, %v5605, %v5715
    %v5748 = vsel %vm5684, %v5610, %v5716
    %v5749 = vsel %vm5685, %v5615, %v5717
    %v5750 = vsel %vm5686, %v5620, %v5718
    %v5751 = vsel %vm5687, %v5625, %v5719
    %v5752 = vsel %vm5688, %v5630, %v5720
    %v5753 = vsel %vm5689, %v5635, %v5721
    %v5754 = vsel %vm5690, %v5640, %v5722
    %v5755 = vsel %vm5691, %v5645, %v5723
    %v5756 = vsel %vm5692, %v5650, %v5724
    %v5757 = vsel %vm5693, %v5655, %v5725
    %v5758 = vsel %vm5694, %v5660, %v5726
    %s5759 = scalar_lea.vmem %s6, 32
    %v5760 = vld [vmem:[%s5759] sm:$0xff]
    %v5761 = vld [vmem:[%s5759 + $0x8] sm:$0xff]
    %v5762 = vld [vmem:[%s5759 + $0x10] sm:$0xff]
    %v5763 = vld [vmem:[%s5759 + $0x18] sm:$0xff]
    %s5764 = scalar_lea.vmem %s7, 1
    %v5765 = vld [vmem:[%s5764] sm:$0x1]
    %v5767 = vlaneseq
    %v5768 = vshrl.u32 %v5767, 7
    %v5769 = vsub.s32 0, %v5768
    %v5770 = vrot.slane %v5765, %v5769
    %v5773 = vsel %vm551, %v5727, 0
    %v5776 = vsel %vm551, %v5728, 0
    %v5779 = vsel %vm551, %v5729, 0
    %v5782 = vsel %vm551, %v5730, 0
    %v5785 = vsel %vm551, %v5731, 0
    %v5788 = vsel %vm551, %v5732, 0
    %v5791 = vsel %vm551, %v5733, 0
    %v5794 = vsel %vm551, %v5734, 0
    %v5797 = vsel %vm551, %v5735, 0
    %v5800 = vsel %vm551, %v5736, 0
    %v5803 = vsel %vm551, %v5737, 0
    %v5806 = vsel %vm551, %v5738, 0
    %v5809 = vsel %vm551, %v5739, 0
    %v5812 = vsel %vm551, %v5740, 0
    %v5815 = vsel %vm551, %v5741, 0
    %v5818 = vsel %vm551, %v5742, 0
    %v5821 = vsel %vm551, %v5743, 0
    %v5824 = vsel %vm551, %v5744, 0
    %v5827 = vsel %vm551, %v5745, 0
    %v5830 = vsel %vm551, %v5746, 0
    %v5833 = vsel %vm551, %v5747, 0
    %v5836 = vsel %vm551, %v5748, 0
    %v5839 = vsel %vm551, %v5749, 0
    %v5842 = vsel %vm551, %v5750, 0
    %v5845 = vsel %vm551, %v5751, 0
    %v5848 = vsel %vm551, %v5752, 0
    %v5851 = vsel %vm551, %v5753, 0
    %v5854 = vsel %vm551, %v5754, 0
    %v5857 = vsel %vm551, %v5755, 0
    %v5860 = vsel %vm551, %v5756, 0
    %v5863 = vsel %vm551, %v5757, 0
    %v5866 = vsel %vm551, %v5758, 0
    %5868 = vmatprep.subr.mxu0 0.0
    %5869 = vmatpush1.msra.mxu0 0.0
    %5870 = vmatprep.subr.mxu0 0.0
    %5871 = vmatpush1.msra.mxu0 0.0
    %5872 = vmatprep.subr.mxu0 0.0
    %5873 = vmatpush1.msra.mxu0 0.0
    %5874 = vmatprep.subr.mxu0 0.0
    %5875 = vmatpush1.msra.mxu0 0.0
    %5876 = vmatprep.subr.mxu0 0.0
    %5877 = vmatpush1.msra.mxu0 0.0
    %5878 = vmatprep.subr.mxu0 0.0
    %5879 = vmatpush1.msra.mxu0 0.0
    %5880 = vmatprep.subr.mxu0 0.0
    %5881 = vmatpush1.msra.mxu0 0.0
    %5882 = vmatprep.subr.mxu0 0.0
    %5883 = vmatpush1.msra.mxu0 0.0
    %5884 = vmatprep.subr.mxu0 0.0
    %5885 = vmatpush1.msra.mxu0 0.0
    %5886 = vmatprep.subr.mxu0 0.0
    %5887 = vmatpush1.msra.mxu0 0.0
    %5888 = vmatprep.subr.mxu0 0.0
    %5889 = vmatpush1.msra.mxu0 0.0
    %5890 = vmatprep.subr.mxu0 0.0
    %5891 = vmatpush1.msra.mxu0 0.0
    %5892 = vmatprep.subr.mxu0 0.0
    %5893 = vmatpush1.msra.mxu0 %v5763
    %5894 = vmatprep.subr.mxu0 0.0
    %5895 = vmatpush1.msra.mxu0 %v5762
    %5896 = vmatprep.subr.mxu0 0.0
    %5897 = vmatpush1.msra.mxu0 %v5761
    %5898 = vmatprep.subr.mxu0 0.0
    %5899 = vmatpush1.msra.mxu0 %v5760
    %5900 = vmatprep.subr.mxu0 0.0
    %5901 = vmatpush2.msra.mxu0 0.0
    %5902 = vmatprep.subr.mxu0 0.0
    %5903 = vmatpush2.msra.mxu0 0.0
    %5904 = vmatprep.subr.mxu0 0.0
    %5905 = vmatpush2.msra.mxu0 0.0
    %5906 = vmatprep.subr.mxu0 0.0
    %5907 = vmatpush2.msra.mxu0 0.0
    %5908 = vmatprep.subr.mxu0 0.0
    %5909 = vmatpush2.msra.mxu0 0.0
    %5910 = vmatprep.subr.mxu0 0.0
    %5911 = vmatpush2.msra.mxu0 0.0
    %5912 = vmatprep.subr.mxu0 0.0
    %5913 = vmatpush2.msra.mxu0 0.0
    %5914 = vmatprep.subr.mxu0 0.0
    %5915 = vmatpush2.msra.mxu0 0.0
    %5916 = vmatprep.subr.mxu0 0.0
    %5917 = vmatpush2.msra.mxu0 0.0
    %5918 = vmatprep.subr.mxu0 0.0
    %5919 = vmatpush2.msra.mxu0 0.0
    %5920 = vmatprep.subr.mxu0 0.0
    %5921 = vmatpush2.msra.mxu0 0.0
    %5922 = vmatprep.subr.mxu0 0.0
    %5923 = vmatpush2.msra.mxu0 0.0
    %5924 = vmatprep.subr.mxu0 0.0
    %5925 = vmatpush2.msra.mxu0 0.0
    %5926 = vmatprep.subr.mxu0 0.0
    %5927 = vmatpush2.msra.mxu0 0.0
    %5928 = vmatprep.subr.mxu0 0.0
    %5929 = vmatpush2.msra.mxu0 0.0
    %5930 = vmatprep.subr.mxu0 0.0
    %5931 = vmatpush2.msra.mxu0 0.0
    %5932 = vmatprep.mubr.f32.mxu0 0.0
    %5933 = vmatmul.mubr.f32.gmra.mxu0 %v5773
    %v5934 = vpop.f32.mrf.mxu0
    %v5935 = vadd.f32 %v5770, %v5934
    %v5936 = vpop.f32.mrf.mxu0
    %5937 = vmatprep.mubr.f32.mxu0 0.0
    %5938 = vmatmul.mubr.f32.gmra.mxu0 %v5776
    %v5939 = vpop.f32.mrf.mxu0
    %v5940 = vadd.f32 %v5770, %v5939
    %v5941 = vpop.f32.mrf.mxu0
    %5942 = vmatprep.mubr.f32.mxu0 0.0
    %5943 = vmatmul.mubr.f32.gmra.mxu0 %v5779
    %v5944 = vpop.f32.mrf.mxu0
    %v5945 = vadd.f32 %v5770, %v5944
    %v5946 = vpop.f32.mrf.mxu0
    %5947 = vmatprep.mubr.f32.mxu0 0.0
    %5948 = vmatmul.mubr.f32.gmra.mxu0 %v5782
    %v5949 = vpop.f32.mrf.mxu0
    %v5950 = vadd.f32 %v5770, %v5949
    %v5951 = vpop.f32.mrf.mxu0
    %5952 = vmatprep.mubr.f32.mxu0 0.0
    %5953 = vmatmul.mubr.f32.gmra.mxu0 %v5785
    %v5954 = vpop.f32.mrf.mxu0
    %v5955 = vadd.f32 %v5770, %v5954
    %v5956 = vpop.f32.mrf.mxu0
    %5957 = vmatprep.mubr.f32.mxu0 0.0
    %5958 = vmatmul.mubr.f32.gmra.mxu0 %v5788
    %v5959 = vpop.f32.mrf.mxu0
    %v5960 = vadd.f32 %v5770, %v5959
    %v5961 = vpop.f32.mrf.mxu0
    %5962 = vmatprep.mubr.f32.mxu0 0.0
    %5963 = vmatmul.mubr.f32.gmra.mxu0 %v5791
    %v5964 = vpop.f32.mrf.mxu0
    %v5965 = vadd.f32 %v5770, %v5964
    %v5966 = vpop.f32.mrf.mxu0
    %5967 = vmatprep.mubr.f32.mxu0 0.0
    %5968 = vmatmul.mubr.f32.gmra.mxu0 %v5794
    %v5969 = vpop.f32.mrf.mxu0
    %v5970 = vadd.f32 %v5770, %v5969
    %v5971 = vpop.f32.mrf.mxu0
    %5972 = vmatprep.mubr.f32.mxu0 0.0
    %5973 = vmatmul.mubr.f32.gmra.mxu0 %v5797
    %v5974 = vpop.f32.mrf.mxu0
    %v5975 = vadd.f32 %v5770, %v5974
    %v5976 = vpop.f32.mrf.mxu0
    %5977 = vmatprep.mubr.f32.mxu0 0.0
    %5978 = vmatmul.mubr.f32.gmra.mxu0 %v5800
    %v5979 = vpop.f32.mrf.mxu0
    %v5980 = vadd.f32 %v5770, %v5979
    %v5981 = vpop.f32.mrf.mxu0
    %5982 = vmatprep.mubr.f32.mxu0 0.0
    %5983 = vmatmul.mubr.f32.gmra.mxu0 %v5803
    %v5984 = vpop.f32.mrf.mxu0
    %v5985 = vadd.f32 %v5770, %v5984
    %v5986 = vpop.f32.mrf.mxu0
    %5987 = vmatprep.mubr.f32.mxu0 0.0
    %5988 = vmatmul.mubr.f32.gmra.mxu0 %v5806
    %v5989 = vpop.f32.mrf.mxu0
    %v5990 = vadd.f32 %v5770, %v5989
    %v5991 = vpop.f32.mrf.mxu0
    %5992 = vmatprep.mubr.f32.mxu0 0.0
    %5993 = vmatmul.mubr.f32.gmra.mxu0 %v5809
    %v5994 = vpop.f32.mrf.mxu0
    %v5995 = vadd.f32 %v5770, %v5994
    %v5996 = vpop.f32.mrf.mxu0
    %5997 = vmatprep.mubr.f32.mxu0 0.0
    %5998 = vmatmul.mubr.f32.gmra.mxu0 %v5812
    %v5999 = vpop.f32.mrf.mxu0
    %v6000 = vadd.f32 %v5770, %v5999
    %v6001 = vpop.f32.mrf.mxu0
    %6002 = vmatprep.mubr.f32.mxu0 0.0
    %6003 = vmatmul.mubr.f32.gmra.mxu0 %v5815
    %v6004 = vpop.f32.mrf.mxu0
    %v6005 = vadd.f32 %v5770, %v6004
    %v6006 = vpop.f32.mrf.mxu0
    %6007 = vmatprep.mubr.f32.mxu0 0.0
    %6008 = vmatmul.mubr.f32.gmra.mxu0 %v5818
    %v6009 = vpop.f32.mrf.mxu0
    %v6010 = vadd.f32 %v5770, %v6009
    %v6011 = vpop.f32.mrf.mxu0
    %6012 = vmatprep.mubr.f32.mxu0 0.0
    %6013 = vmatmul.mubr.f32.gmra.mxu0 %v5821
    %v6014 = vpop.f32.mrf.mxu0
    %v6015 = vadd.f32 %v5770, %v6014
    %v6016 = vpop.f32.mrf.mxu0
    %6017 = vmatprep.mubr.f32.mxu0 0.0
    %6018 = vmatmul.mubr.f32.gmra.mxu0 %v5824
    %v6019 = vpop.f32.mrf.mxu0
    %v6020 = vadd.f32 %v5770, %v6019
    %v6021 = vpop.f32.mrf.mxu0
    %6022 = vmatprep.mubr.f32.mxu0 0.0
    %6023 = vmatmul.mubr.f32.gmra.mxu0 %v5827
    %v6024 = vpop.f32.mrf.mxu0
    %v6025 = vadd.f32 %v5770, %v6024
    %v6026 = vpop.f32.mrf.mxu0
    %6027 = vmatprep.mubr.f32.mxu0 0.0
    %6028 = vmatmul.mubr.f32.gmra.mxu0 %v5830
    %v6029 = vpop.f32.mrf.mxu0
    %v6030 = vadd.f32 %v5770, %v6029
    %v6031 = vpop.f32.mrf.mxu0
    %6032 = vmatprep.mubr.f32.mxu0 0.0
    %6033 = vmatmul.mubr.f32.gmra.mxu0 %v5833
    %v6034 = vpop.f32.mrf.mxu0
    %v6035 = vadd.f32 %v5770, %v6034
    %v6036 = vpop.f32.mrf.mxu0
    %6037 = vmatprep.mubr.f32.mxu0 0.0
    %6038 = vmatmul.mubr.f32.gmra.mxu0 %v5836
    %v6039 = vpop.f32.mrf.mxu0
    %v6040 = vadd.f32 %v5770, %v6039
    %v6041 = vpop.f32.mrf.mxu0
    %6042 = vmatprep.mubr.f32.mxu0 0.0
    %6043 = vmatmul.mubr.f32.gmra.mxu0 %v5839
    %v6044 = vpop.f32.mrf.mxu0
    %v6045 = vadd.f32 %v5770, %v6044
    %v6046 = vpop.f32.mrf.mxu0
    %6047 = vmatprep.mubr.f32.mxu0 0.0
    %6048 = vmatmul.mubr.f32.gmra.mxu0 %v5842
    %v6049 = vpop.f32.mrf.mxu0
    %v6050 = vadd.f32 %v5770, %v6049
    %v6051 = vpop.f32.mrf.mxu0
    %6052 = vmatprep.mubr.f32.mxu0 0.0
    %6053 = vmatmul.mubr.f32.gmra.mxu0 %v5845
    %v6054 = vpop.f32.mrf.mxu0
    %v6055 = vadd.f32 %v5770, %v6054
    %v6056 = vpop.f32.mrf.mxu0
    %6057 = vmatprep.mubr.f32.mxu0 0.0
    %6058 = vmatmul.mubr.f32.gmra.mxu0 %v5848
    %v6059 = vpop.f32.mrf.mxu0
    %v6060 = vadd.f32 %v5770, %v6059
    %v6061 = vpop.f32.mrf.mxu0
    %6062 = vmatprep.mubr.f32.mxu0 0.0
    %6063 = vmatmul.mubr.f32.gmra.mxu0 %v5851
    %v6064 = vpop.f32.mrf.mxu0
    %v6065 = vadd.f32 %v5770, %v6064
    %v6066 = vpop.f32.mrf.mxu0
    %6067 = vmatprep.mubr.f32.mxu0 0.0
    %6068 = vmatmul.mubr.f32.gmra.mxu0 %v5854
    %v6069 = vpop.f32.mrf.mxu0
    %v6070 = vadd.f32 %v5770, %v6069
    %v6071 = vpop.f32.mrf.mxu0
    %6072 = vmatprep.mubr.f32.mxu0 0.0
    %6073 = vmatmul.mubr.f32.gmra.mxu0 %v5857
    %v6074 = vpop.f32.mrf.mxu0
    %v6075 = vadd.f32 %v5770, %v6074
    %v6076 = vpop.f32.mrf.mxu0
    %6077 = vmatprep.mubr.f32.mxu0 0.0
    %6078 = vmatmul.mubr.f32.gmra.mxu0 %v5860
    %v6079 = vpop.f32.mrf.mxu0
    %v6080 = vadd.f32 %v5770, %v6079
    %v6081 = vpop.f32.mrf.mxu0
    %6082 = vmatprep.mubr.f32.mxu0 0.0
    %6083 = vmatmul.mubr.f32.gmra.mxu0 %v5863
    %v6084 = vpop.f32.mrf.mxu0
    %v6085 = vadd.f32 %v5770, %v6084
    %v6086 = vpop.f32.mrf.mxu0
    %6087 = vmatprep.mubr.f32.mxu0 0.0
    %6088 = vmatmul.mubr.f32.gmra.mxu0 %v5866
    %v6089 = vpop.f32.mrf.mxu0
    %v6090 = vadd.f32 %v5770, %v6089
    %v6091 = vpop.f32.mrf.mxu0
    %6092 = vdwg.mxu0
    %s6093 = scalar_lea.vmem %s8, 32
    %v6094 = vld [vmem:[%s6093] sm:$0xff]
    %v6095 = vld [vmem:[%s6093 + $0x8] sm:$0xff]
    %v6096 = vld [vmem:[%s6093 + $0x10] sm:$0xff]
    %v6097 = vld [vmem:[%s6093 + $0x18] sm:$0xff]
    %s6098 = scalar_lea.vmem %s9, 1
    %v6099 = vld [vmem:[%s6098] sm:$0x1]
    %v6101 = vlaneseq
    %v6102 = vshrl.u32 %v6101, 7
    %v6103 = vsub.s32 0, %v6102
    %v6104 = vrot.slane %v6099, %v6103
    %6106 = vmatprep.subr.mxu0 0.0
    %6107 = vmatpush1.msra.mxu0 0.0
    %6108 = vmatprep.subr.mxu0 0.0
    %6109 = vmatpush1.msra.mxu0 0.0
    %6110 = vmatprep.subr.mxu0 0.0
    %6111 = vmatpush1.msra.mxu0 0.0
    %6112 = vmatprep.subr.mxu0 0.0
    %6113 = vmatpush1.msra.mxu0 0.0
    %6114 = vmatprep.subr.mxu0 0.0
    %6115 = vmatpush1.msra.mxu0 0.0
    %6116 = vmatprep.subr.mxu0 0.0
    %6117 = vmatpush1.msra.mxu0 0.0
    %6118 = vmatprep.subr.mxu0 0.0
    %6119 = vmatpush1.msra.mxu0 0.0
    %6120 = vmatprep.subr.mxu0 0.0
    %6121 = vmatpush1.msra.mxu0 0.0
    %6122 = vmatprep.subr.mxu0 0.0
    %6123 = vmatpush1.msra.mxu0 0.0
    %6124 = vmatprep.subr.mxu0 0.0
    %6125 = vmatpush1.msra.mxu0 0.0
    %6126 = vmatprep.subr.mxu0 0.0
    %6127 = vmatpush1.msra.mxu0 0.0
    %6128 = vmatprep.subr.mxu0 0.0
    %6129 = vmatpush1.msra.mxu0 0.0
    %6130 = vmatprep.subr.mxu0 0.0
    %6131 = vmatpush1.msra.mxu0 %v6097
    %6132 = vmatprep.subr.mxu0 0.0
    %6133 = vmatpush1.msra.mxu0 %v6096
    %6134 = vmatprep.subr.mxu0 0.0
    %6135 = vmatpush1.msra.mxu0 %v6095
    %6136 = vmatprep.subr.mxu0 0.0
    %6137 = vmatpush1.msra.mxu0 %v6094
    %6138 = vmatprep.subr.mxu0 0.0
    %6139 = vmatpush2.msra.mxu0 0.0
    %6140 = vmatprep.subr.mxu0 0.0
    %6141 = vmatpush2.msra.mxu0 0.0
    %6142 = vmatprep.subr.mxu0 0.0
    %6143 = vmatpush2.msra.mxu0 0.0
    %6144 = vmatprep.subr.mxu0 0.0
    %6145 = vmatpush2.msra.mxu0 0.0
    %6146 = vmatprep.subr.mxu0 0.0
    %6147 = vmatpush2.msra.mxu0 0.0
    %6148 = vmatprep.subr.mxu0 0.0
    %6149 = vmatpush2.msra.mxu0 0.0
    %6150 = vmatprep.subr.mxu0 0.0
    %6151 = vmatpush2.msra.mxu0 0.0
    %6152 = vmatprep.subr.mxu0 0.0
    %6153 = vmatpush2.msra.mxu0 0.0
    %6154 = vmatprep.subr.mxu0 0.0
    %6155 = vmatpush2.msra.mxu0 0.0
    %6156 = vmatprep.subr.mxu0 0.0
    %6157 = vmatpush2.msra.mxu0 0.0
    %6158 = vmatprep.subr.mxu0 0.0
    %6159 = vmatpush2.msra.mxu0 0.0
    %6160 = vmatprep.subr.mxu0 0.0
    %6161 = vmatpush2.msra.mxu0 0.0
    %6162 = vmatprep.subr.mxu0 0.0
    %6163 = vmatpush2.msra.mxu0 0.0
    %6164 = vmatprep.subr.mxu0 0.0
    %6165 = vmatpush2.msra.mxu0 0.0
    %6166 = vmatprep.subr.mxu0 0.0
    %6167 = vmatpush2.msra.mxu0 0.0
    %6168 = vmatprep.subr.mxu0 0.0
    %6169 = vmatpush2.msra.mxu0 0.0
    %6170 = vmatprep.mubr.f32.mxu0 0.0
    %6171 = vmatmul.mubr.f32.gmra.mxu0 %v5773
    %v6172 = vpop.f32.mrf.mxu0
    %v6173 = vadd.f32 %v6104, %v6172
    %v6174 = vpop.f32.mrf.mxu0
    %6175 = vmatprep.mubr.f32.mxu0 0.0
    %6176 = vmatmul.mubr.f32.gmra.mxu0 %v5776
    %v6177 = vpop.f32.mrf.mxu0
    %v6178 = vadd.f32 %v6104, %v6177
    %v6179 = vpop.f32.mrf.mxu0
    %6180 = vmatprep.mubr.f32.mxu0 0.0
    %6181 = vmatmul.mubr.f32.gmra.mxu0 %v5779
    %v6182 = vpop.f32.mrf.mxu0
    %v6183 = vadd.f32 %v6104, %v6182
    %v6184 = vpop.f32.mrf.mxu0
    %6185 = vmatprep.mubr.f32.mxu0 0.0
    %6186 = vmatmul.mubr.f32.gmra.mxu0 %v5782
    %v6187 = vpop.f32.mrf.mxu0
    %v6188 = vadd.f32 %v6104, %v6187
    %v6189 = vpop.f32.mrf.mxu0
    %6190 = vmatprep.mubr.f32.mxu0 0.0
    %6191 = vmatmul.mubr.f32.gmra.mxu0 %v5785
    %v6192 = vpop.f32.mrf.mxu0
    %v6193 = vadd.f32 %v6104, %v6192
    %v6194 = vpop.f32.mrf.mxu0
    %6195 = vmatprep.mubr.f32.mxu0 0.0
    %6196 = vmatmul.mubr.f32.gmra.mxu0 %v5788
    %v6197 = vpop.f32.mrf.mxu0
    %v6198 = vadd.f32 %v6104, %v6197
    %v6199 = vpop.f32.mrf.mxu0
    %6200 = vmatprep.mubr.f32.mxu0 0.0
    %6201 = vmatmul.mubr.f32.gmra.mxu0 %v5791
    %v6202 = vpop.f32.mrf.mxu0
    %v6203 = vadd.f32 %v6104, %v6202
    %v6204 = vpop.f32.mrf.mxu0
    %6205 = vmatprep.mubr.f32.mxu0 0.0
    %6206 = vmatmul.mubr.f32.gmra.mxu0 %v5794
    %v6207 = vpop.f32.mrf.mxu0
    %v6208 = vadd.f32 %v6104, %v6207
    %v6209 = vpop.f32.mrf.mxu0
    %6210 = vmatprep.mubr.f32.mxu0 0.0
    %6211 = vmatmul.mubr.f32.gmra.mxu0 %v5797
    %v6212 = vpop.f32.mrf.mxu0
    %v6213 = vadd.f32 %v6104, %v6212
    %v6214 = vpop.f32.mrf.mxu0
    %6215 = vmatprep.mubr.f32.mxu0 0.0
    %6216 = vmatmul.mubr.f32.gmra.mxu0 %v5800
    %v6217 = vpop.f32.mrf.mxu0
    %v6218 = vadd.f32 %v6104, %v6217
    %v6219 = vpop.f32.mrf.mxu0
    %6220 = vmatprep.mubr.f32.mxu0 0.0
    %6221 = vmatmul.mubr.f32.gmra.mxu0 %v5803
    %v6222 = vpop.f32.mrf.mxu0
    %v6223 = vadd.f32 %v6104, %v6222
    %v6224 = vpop.f32.mrf.mxu0
    %6225 = vmatprep.mubr.f32.mxu0 0.0
    %6226 = vmatmul.mubr.f32.gmra.mxu0 %v5806
    %v6227 = vpop.f32.mrf.mxu0
    %v6228 = vadd.f32 %v6104, %v6227
    %v6229 = vpop.f32.mrf.mxu0
    %6230 = vmatprep.mubr.f32.mxu0 0.0
    %6231 = vmatmul.mubr.f32.gmra.mxu0 %v5809
    %v6232 = vpop.f32.mrf.mxu0
    %v6233 = vadd.f32 %v6104, %v6232
    %v6234 = vpop.f32.mrf.mxu0
    %6235 = vmatprep.mubr.f32.mxu0 0.0
    %6236 = vmatmul.mubr.f32.gmra.mxu0 %v5812
    %v6237 = vpop.f32.mrf.mxu0
    %v6238 = vadd.f32 %v6104, %v6237
    %v6239 = vpop.f32.mrf.mxu0
    %6240 = vmatprep.mubr.f32.mxu0 0.0
    %6241 = vmatmul.mubr.f32.gmra.mxu0 %v5815
    %v6242 = vpop.f32.mrf.mxu0
    %v6243 = vadd.f32 %v6104, %v6242
    %v6244 = vpop.f32.mrf.mxu0
    %6245 = vmatprep.mubr.f32.mxu0 0.0
    %6246 = vmatmul.mubr.f32.gmra.mxu0 %v5818
    %v6247 = vpop.f32.mrf.mxu0
    %v6248 = vadd.f32 %v6104, %v6247
    %v6249 = vpop.f32.mrf.mxu0
    %6250 = vmatprep.mubr.f32.mxu0 0.0
    %6251 = vmatmul.mubr.f32.gmra.mxu0 %v5821
    %v6252 = vpop.f32.mrf.mxu0
    %v6253 = vadd.f32 %v6104, %v6252
    %v6254 = vpop.f32.mrf.mxu0
    %6255 = vmatprep.mubr.f32.mxu0 0.0
    %6256 = vmatmul.mubr.f32.gmra.mxu0 %v5824
    %v6257 = vpop.f32.mrf.mxu0
    %v6258 = vadd.f32 %v6104, %v6257
    %v6259 = vpop.f32.mrf.mxu0
    %6260 = vmatprep.mubr.f32.mxu0 0.0
    %6261 = vmatmul.mubr.f32.gmra.mxu0 %v5827
    %v6262 = vpop.f32.mrf.mxu0
    %v6263 = vadd.f32 %v6104, %v6262
    %v6264 = vpop.f32.mrf.mxu0
    %6265 = vmatprep.mubr.f32.mxu0 0.0
    %6266 = vmatmul.mubr.f32.gmra.mxu0 %v5830
    %v6267 = vpop.f32.mrf.mxu0
    %v6268 = vadd.f32 %v6104, %v6267
    %v6269 = vpop.f32.mrf.mxu0
    %6270 = vmatprep.mubr.f32.mxu0 0.0
    %6271 = vmatmul.mubr.f32.gmra.mxu0 %v5833
    %v6272 = vpop.f32.mrf.mxu0
    %v6273 = vadd.f32 %v6104, %v6272
    %v6274 = vpop.f32.mrf.mxu0
    %6275 = vmatprep.mubr.f32.mxu0 0.0
    %6276 = vmatmul.mubr.f32.gmra.mxu0 %v5836
    %v6277 = vpop.f32.mrf.mxu0
    %v6278 = vadd.f32 %v6104, %v6277
    %v6279 = vpop.f32.mrf.mxu0
    %6280 = vmatprep.mubr.f32.mxu0 0.0
    %6281 = vmatmul.mubr.f32.gmra.mxu0 %v5839
    %v6282 = vpop.f32.mrf.mxu0
    %v6283 = vadd.f32 %v6104, %v6282
    %v6284 = vpop.f32.mrf.mxu0
    %6285 = vmatprep.mubr.f32.mxu0 0.0
    %6286 = vmatmul.mubr.f32.gmra.mxu0 %v5842
    %v6287 = vpop.f32.mrf.mxu0
    %v6288 = vadd.f32 %v6104, %v6287
    %v6289 = vpop.f32.mrf.mxu0
    %6290 = vmatprep.mubr.f32.mxu0 0.0
    %6291 = vmatmul.mubr.f32.gmra.mxu0 %v5845
    %v6292 = vpop.f32.mrf.mxu0
    %v6293 = vadd.f32 %v6104, %v6292
    %v6294 = vpop.f32.mrf.mxu0
    %6295 = vmatprep.mubr.f32.mxu0 0.0
    %6296 = vmatmul.mubr.f32.gmra.mxu0 %v5848
    %v6297 = vpop.f32.mrf.mxu0
    %v6298 = vadd.f32 %v6104, %v6297
    %v6299 = vpop.f32.mrf.mxu0
    %6300 = vmatprep.mubr.f32.mxu0 0.0
    %6301 = vmatmul.mubr.f32.gmra.mxu0 %v5851
    %v6302 = vpop.f32.mrf.mxu0
    %v6303 = vadd.f32 %v6104, %v6302
    %v6304 = vpop.f32.mrf.mxu0
    %6305 = vmatprep.mubr.f32.mxu0 0.0
    %6306 = vmatmul.mubr.f32.gmra.mxu0 %v5854
    %v6307 = vpop.f32.mrf.mxu0
    %v6308 = vadd.f32 %v6104, %v6307
    %v6309 = vpop.f32.mrf.mxu0
    %6310 = vmatprep.mubr.f32.mxu0 0.0
    %6311 = vmatmul.mubr.f32.gmra.mxu0 %v5857
    %v6312 = vpop.f32.mrf.mxu0
    %v6313 = vadd.f32 %v6104, %v6312
    %v6314 = vpop.f32.mrf.mxu0
    %6315 = vmatprep.mubr.f32.mxu0 0.0
    %6316 = vmatmul.mubr.f32.gmra.mxu0 %v5860
    %v6317 = vpop.f32.mrf.mxu0
    %v6318 = vadd.f32 %v6104, %v6317
    %v6319 = vpop.f32.mrf.mxu0
    %6320 = vmatprep.mubr.f32.mxu0 0.0
    %6321 = vmatmul.mubr.f32.gmra.mxu0 %v5863
    %v6322 = vpop.f32.mrf.mxu0
    %v6323 = vadd.f32 %v6104, %v6322
    %v6324 = vpop.f32.mrf.mxu0
    %6325 = vmatprep.mubr.f32.mxu0 0.0
    %6326 = vmatmul.mubr.f32.gmra.mxu0 %v5866
    %v6327 = vpop.f32.mrf.mxu0
    %v6328 = vadd.f32 %v6104, %v6327
    %v6329 = vpop.f32.mrf.mxu0
    %6330 = vdwg.mxu0
    %v6331 = vadd.f32 %v5935, 2.0
    %v6332 = vadd.f32 %v5940, 2.0
    %v6333 = vadd.f32 %v5945, 2.0
    %v6334 = vadd.f32 %v5950, 2.0
    %v6335 = vadd.f32 %v5955, 2.0
    %v6336 = vadd.f32 %v5960, 2.0
    %v6337 = vadd.f32 %v5965, 2.0
    %v6338 = vadd.f32 %v5970, 2.0
    %v6339 = vadd.f32 %v5975, 2.0
    %v6340 = vadd.f32 %v5980, 2.0
    %v6341 = vadd.f32 %v5985, 2.0
    %v6342 = vadd.f32 %v5990, 2.0
    %v6343 = vadd.f32 %v5995, 2.0
    %v6344 = vadd.f32 %v6000, 2.0
    %v6345 = vadd.f32 %v6005, 2.0
    %v6346 = vadd.f32 %v6010, 2.0
    %v6347 = vadd.f32 %v6015, 2.0
    %v6348 = vadd.f32 %v6020, 2.0
    %v6349 = vadd.f32 %v6025, 2.0
    %v6350 = vadd.f32 %v6030, 2.0
    %v6351 = vadd.f32 %v6035, 2.0
    %v6352 = vadd.f32 %v6040, 2.0
    %v6353 = vadd.f32 %v6045, 2.0
    %v6354 = vadd.f32 %v6050, 2.0
    %v6355 = vadd.f32 %v6055, 2.0
    %v6356 = vadd.f32 %v6060, 2.0
    %v6357 = vadd.f32 %v6065, 2.0
    %v6358 = vadd.f32 %v6070, 2.0
    %v6359 = vadd.f32 %v6075, 2.0
    %v6360 = vadd.f32 %v6080, 2.0
    %v6361 = vadd.f32 %v6085, 2.0
    %v6362 = vadd.f32 %v6090, 2.0
    %v6363 = vsub.f32 0.0, %v6331
    %v6364 = vsub.f32 0.0, %v6332
    %v6365 = vsub.f32 0.0, %v6333
    %v6366 = vsub.f32 0.0, %v6334
    %v6367 = vsub.f32 0.0, %v6335
    %v6368 = vsub.f32 0.0, %v6336
    %v6369 = vsub.f32 0.0, %v6337
    %v6370 = vsub.f32 0.0, %v6338
    %v6371 = vsub.f32 0.0, %v6339
    %v6372 = vsub.f32 0.0, %v6340
    %v6373 = vsub.f32 0.0, %v6341
    %v6374 = vsub.f32 0.0, %v6342
    %v6375 = vsub.f32 0.0, %v6343
    %v6376 = vsub.f32 0.0, %v6344
    %v6377 = vsub.f32 0.0, %v6345
    %v6378 = vsub.f32 0.0, %v6346
    %v6379 = vsub.f32 0.0, %v6347
    %v6380 = vsub.f32 0.0, %v6348
    %v6381 = vsub.f32 0.0, %v6349
    %v6382 = vsub.f32 0.0, %v6350
    %v6383 = vsub.f32 0.0, %v6351
    %v6384 = vsub.f32 0.0, %v6352
    %v6385 = vsub.f32 0.0, %v6353
    %v6386 = vsub.f32 0.0, %v6354
    %v6387 = vsub.f32 0.0, %v6355
    %v6388 = vsub.f32 0.0, %v6356
    %v6389 = vsub.f32 0.0, %v6357
    %v6390 = vsub.f32 0.0, %v6358
    %v6391 = vsub.f32 0.0, %v6359
    %v6392 = vsub.f32 0.0, %v6360
    %v6393 = vsub.f32 0.0, %v6361
    %v6394 = vsub.f32 0.0, %v6362
    %v6395 = vmul.f32 %v6363, 1.442695
    %v6396 = vpow.pop %v6395
    %v6397 = vmul.f32 %v6364, 1.442695
    %v6398 = vpow.pop %v6397
    %v6399 = vmul.f32 %v6365, 1.442695
    %v6400 = vpow.pop %v6399
    %v6401 = vmul.f32 %v6366, 1.442695
    %v6402 = vpow.pop %v6401
    %v6403 = vmul.f32 %v6367, 1.442695
    %v6404 = vpow.pop %v6403
    %v6405 = vmul.f32 %v6368, 1.442695
    %v6406 = vpow.pop %v6405
    %v6407 = vmul.f32 %v6369, 1.442695
    %v6408 = vpow.pop %v6407
    %v6409 = vmul.f32 %v6370, 1.442695
    %v6410 = vpow.pop %v6409
    %v6411 = vmul.f32 %v6371, 1.442695
    %v6412 = vpow.pop %v6411
    %v6413 = vmul.f32 %v6372, 1.442695
    %v6414 = vpow.pop %v6413
    %v6415 = vmul.f32 %v6373, 1.442695
    %v6416 = vpow.pop %v6415
    %v6417 = vmul.f32 %v6374, 1.442695
    %v6418 = vpow.pop %v6417
    %v6419 = vmul.f32 %v6375, 1.442695
    %v6420 = vpow.pop %v6419
    %v6421 = vmul.f32 %v6376, 1.442695
    %v6422 = vpow.pop %v6421
    %v6423 = vmul.f32 %v6377, 1.442695
    %v6424 = vpow.pop %v6423
    %v6425 = vmul.f32 %v6378, 1.442695
    %v6426 = vpow.pop %v6425
    %v6427 = vmul.f32 %v6379, 1.442695
    %v6428 = vpow.pop %v6427
    %v6429 = vmul.f32 %v6380, 1.442695
    %v6430 = vpow.pop %v6429
    %v6431 = vmul.f32 %v6381, 1.442695
    %v6432 = vpow.pop %v6431
    %v6433 = vmul.f32 %v6382, 1.442695
    %v6434 = vpow.pop %v6433
    %v6435 = vmul.f32 %v6383, 1.442695
    %v6436 = vpow.pop %v6435
    %v6437 = vmul.f32 %v6384, 1.442695
    %v6438 = vpow.pop %v6437
    %v6439 = vmul.f32 %v6385, 1.442695
    %v6440 = vpow.pop %v6439
    %v6441 = vmul.f32 %v6386, 1.442695
    %v6442 = vpow.pop %v6441
    %v6443 = vmul.f32 %v6387, 1.442695
    %v6444 = vpow.pop %v6443
    %v6445 = vmul.f32 %v6388, 1.442695
    %v6446 = vpow.pop %v6445
    %v6447 = vmul.f32 %v6389, 1.442695
    %v6448 = vpow.pop %v6447
    %v6449 = vmul.f32 %v6390, 1.442695
    %v6450 = vpow.pop %v6449
    %v6451 = vmul.f32 %v6391, 1.442695
    %v6452 = vpow.pop %v6451
    %v6453 = vmul.f32 %v6392, 1.442695
    %v6454 = vpow.pop %v6453
    %v6455 = vmul.f32 %v6393, 1.442695
    %v6456 = vpow.pop %v6455
    %v6457 = vmul.f32 %v6394, 1.442695
    %v6458 = vpow.pop %v6457
    %v6459 = vadd.f32 %v6396, 1.0
    %v6460 = vadd.f32 %v6398, 1.0
    %v6461 = vadd.f32 %v6400, 1.0
    %v6462 = vadd.f32 %v6402, 1.0
    %v6463 = vadd.f32 %v6404, 1.0
    %v6464 = vadd.f32 %v6406, 1.0
    %v6465 = vadd.f32 %v6408, 1.0
    %v6466 = vadd.f32 %v6410, 1.0
    %v6467 = vadd.f32 %v6412, 1.0
    %v6468 = vadd.f32 %v6414, 1.0
    %v6469 = vadd.f32 %v6416, 1.0
    %v6470 = vadd.f32 %v6418, 1.0
    %v6471 = vadd.f32 %v6420, 1.0
    %v6472 = vadd.f32 %v6422, 1.0
    %v6473 = vadd.f32 %v6424, 1.0
    %v6474 = vadd.f32 %v6426, 1.0
    %v6475 = vadd.f32 %v6428, 1.0
    %v6476 = vadd.f32 %v6430, 1.0
    %v6477 = vadd.f32 %v6432, 1.0
    %v6478 = vadd.f32 %v6434, 1.0
    %v6479 = vadd.f32 %v6436, 1.0
    %v6480 = vadd.f32 %v6438, 1.0
    %v6481 = vadd.f32 %v6440, 1.0
    %v6482 = vadd.f32 %v6442, 1.0
    %v6483 = vadd.f32 %v6444, 1.0
    %v6484 = vadd.f32 %v6446, 1.0
    %v6485 = vadd.f32 %v6448, 1.0
    %v6486 = vadd.f32 %v6450, 1.0
    %v6487 = vadd.f32 %v6452, 1.0
    %v6488 = vadd.f32 %v6454, 1.0
    %v6489 = vadd.f32 %v6456, 1.0
    %v6490 = vadd.f32 %v6458, 1.0
    %v6491 = vlog2.pop %v6459
    %v6492 = vmul.f32 %v6491, 0.6931472
    %v6493 = vlog2.pop %v6460
    %v6494 = vmul.f32 %v6493, 0.6931472
    %v6495 = vlog2.pop %v6461
    %v6496 = vmul.f32 %v6495, 0.6931472
    %v6497 = vlog2.pop %v6462
    %v6498 = vmul.f32 %v6497, 0.6931472
    %v6499 = vlog2.pop %v6463
    %v6500 = vmul.f32 %v6499, 0.6931472
    %v6501 = vlog2.pop %v6464
    %v6502 = vmul.f32 %v6501, 0.6931472
    %v6503 = vlog2.pop %v6465
    %v6504 = vmul.f32 %v6503, 0.6931472
    %v6505 = vlog2.pop %v6466
    %v6506 = vmul.f32 %v6505, 0.6931472
    %v6507 = vlog2.pop %v6467
    %v6508 = vmul.f32 %v6507, 0.6931472
    %v6509 = vlog2.pop %v6468
    %v6510 = vmul.f32 %v6509, 0.6931472
    %v6511 = vlog2.pop %v6469
    %v6512 = vmul.f32 %v6511, 0.6931472
    %v6513 = vlog2.pop %v6470
    %v6514 = vmul.f32 %v6513, 0.6931472
    %v6515 = vlog2.pop %v6471
    %v6516 = vmul.f32 %v6515, 0.6931472
    %v6517 = vlog2.pop %v6472
    %v6518 = vmul.f32 %v6517, 0.6931472
    %v6519 = vlog2.pop %v6473
    %v6520 = vmul.f32 %v6519, 0.6931472
    %v6521 = vlog2.pop %v6474
    %v6522 = vmul.f32 %v6521, 0.6931472
    %v6523 = vlog2.pop %v6475
    %v6524 = vmul.f32 %v6523, 0.6931472
    %v6525 = vlog2.pop %v6476
    %v6526 = vmul.f32 %v6525, 0.6931472
    %v6527 = vlog2.pop %v6477
    %v6528 = vmul.f32 %v6527, 0.6931472
    %v6529 = vlog2.pop %v6478
    %v6530 = vmul.f32 %v6529, 0.6931472
    %v6531 = vlog2.pop %v6479
    %v6532 = vmul.f32 %v6531, 0.6931472
    %v6533 = vlog2.pop %v6480
    %v6534 = vmul.f32 %v6533, 0.6931472
    %v6535 = vlog2.pop %v6481
    %v6536 = vmul.f32 %v6535, 0.6931472
    %v6537 = vlog2.pop %v6482
    %v6538 = vmul.f32 %v6537, 0.6931472
    %v6539 = vlog2.pop %v6483
    %v6540 = vmul.f32 %v6539, 0.6931472
    %v6541 = vlog2.pop %v6484
    %v6542 = vmul.f32 %v6541, 0.6931472
    %v6543 = vlog2.pop %v6485
    %v6544 = vmul.f32 %v6543, 0.6931472
    %v6545 = vlog2.pop %v6486
    %v6546 = vmul.f32 %v6545, 0.6931472
    %v6547 = vlog2.pop %v6487
    %v6548 = vmul.f32 %v6547, 0.6931472
    %v6549 = vlog2.pop %v6488
    %v6550 = vmul.f32 %v6549, 0.6931472
    %v6551 = vlog2.pop %v6489
    %v6552 = vmul.f32 %v6551, 0.6931472
    %v6553 = vlog2.pop %v6490
    %v6554 = vmul.f32 %v6553, 0.6931472
    %v6555 = vsub.f32 %v4375, %v6492
    %v6556 = vsub.f32 %v4376, %v6494
    %v6557 = vsub.f32 %v4377, %v6496
    %v6558 = vsub.f32 %v4378, %v6498
    %v6559 = vsub.f32 %v4379, %v6500
    %v6560 = vsub.f32 %v4380, %v6502
    %v6561 = vsub.f32 %v4381, %v6504
    %v6562 = vsub.f32 %v4382, %v6506
    %v6563 = vsub.f32 %v4383, %v6508
    %v6564 = vsub.f32 %v4384, %v6510
    %v6565 = vsub.f32 %v4385, %v6512
    %v6566 = vsub.f32 %v4386, %v6514
    %v6567 = vsub.f32 %v4387, %v6516
    %v6568 = vsub.f32 %v4388, %v6518
    %v6569 = vsub.f32 %v4389, %v6520
    %v6570 = vsub.f32 %v4390, %v6522
    %v6571 = vsub.f32 %v4391, %v6524
    %v6572 = vsub.f32 %v4392, %v6526
    %v6573 = vsub.f32 %v4393, %v6528
    %v6574 = vsub.f32 %v4394, %v6530
    %v6575 = vsub.f32 %v4395, %v6532
    %v6576 = vsub.f32 %v4396, %v6534
    %v6577 = vsub.f32 %v4397, %v6536
    %v6578 = vsub.f32 %v4398, %v6538
    %v6579 = vsub.f32 %v4399, %v6540
    %v6580 = vsub.f32 %v4400, %v6542
    %v6581 = vsub.f32 %v4401, %v6544
    %v6582 = vsub.f32 %v4402, %v6546
    %v6583 = vsub.f32 %v4403, %v6548
    %v6584 = vsub.f32 %v4404, %v6550
    %v6585 = vsub.f32 %v4405, %v6552
    %v6586 = vsub.f32 %v4406, %v6554
    %v6587 = vsub.f32 %v4439, %v6173
    %v6588 = vsub.f32 %v4440, %v6178
    %v6589 = vsub.f32 %v4441, %v6183
    %v6590 = vsub.f32 %v4442, %v6188
    %v6591 = vsub.f32 %v4443, %v6193
    %v6592 = vsub.f32 %v4444, %v6198
    %v6593 = vsub.f32 %v4445, %v6203
    %v6594 = vsub.f32 %v4446, %v6208
    %v6595 = vsub.f32 %v4447, %v6213
    %v6596 = vsub.f32 %v4448, %v6218
    %v6597 = vsub.f32 %v4449, %v6223
    %v6598 = vsub.f32 %v4450, %v6228
    %v6599 = vsub.f32 %v4451, %v6233
    %v6600 = vsub.f32 %v4452, %v6238
    %v6601 = vsub.f32 %v4453, %v6243
    %v6602 = vsub.f32 %v4454, %v6248
    %v6603 = vsub.f32 %v4455, %v6253
    %v6604 = vsub.f32 %v4456, %v6258
    %v6605 = vsub.f32 %v4457, %v6263
    %v6606 = vsub.f32 %v4458, %v6268
    %v6607 = vsub.f32 %v4459, %v6273
    %v6608 = vsub.f32 %v4460, %v6278
    %v6609 = vsub.f32 %v4461, %v6283
    %v6610 = vsub.f32 %v4462, %v6288
    %v6611 = vsub.f32 %v4463, %v6293
    %v6612 = vsub.f32 %v4464, %v6298
    %v6613 = vsub.f32 %v4465, %v6303
    %v6614 = vsub.f32 %v4466, %v6308
    %v6615 = vsub.f32 %v4467, %v6313
    %v6616 = vsub.f32 %v4468, %v6318
    %v6617 = vsub.f32 %v4469, %v6323
    %v6618 = vsub.f32 %v4470, %v6328
    %v6619 = vmul.f32 %v6587, %v6459
    %v6620 = vmul.f32 %v6588, %v6460
    %v6621 = vmul.f32 %v6589, %v6461
    %v6622 = vmul.f32 %v6590, %v6462
    %v6623 = vmul.f32 %v6591, %v6463
    %v6624 = vmul.f32 %v6592, %v6464
    %v6625 = vmul.f32 %v6593, %v6465
    %v6626 = vmul.f32 %v6594, %v6466
    %v6627 = vmul.f32 %v6595, %v6467
    %v6628 = vmul.f32 %v6596, %v6468
    %v6629 = vmul.f32 %v6597, %v6469
    %v6630 = vmul.f32 %v6598, %v6470
    %v6631 = vmul.f32 %v6599, %v6471
    %v6632 = vmul.f32 %v6600, %v6472
    %v6633 = vmul.f32 %v6601, %v6473
    %v6634 = vmul.f32 %v6602, %v6474
    %v6635 = vmul.f32 %v6603, %v6475
    %v6636 = vmul.f32 %v6604, %v6476
    %v6637 = vmul.f32 %v6605, %v6477
    %v6638 = vmul.f32 %v6606, %v6478
    %v6639 = vmul.f32 %v6607, %v6479
    %v6640 = vmul.f32 %v6608, %v6480
    %v6641 = vmul.f32 %v6609, %v6481
    %v6642 = vmul.f32 %v6610, %v6482
    %v6643 = vmul.f32 %v6611, %v6483
    %v6644 = vmul.f32 %v6612, %v6484
    %v6645 = vmul.f32 %v6613, %v6485
    %v6646 = vmul.f32 %v6614, %v6486
    %v6647 = vmul.f32 %v6615, %v6487
    %v6648 = vmul.f32 %v6616, %v6488
    %v6649 = vmul.f32 %v6617, %v6489
    %v6650 = vmul.f32 %v6618, %v6490
    %v6651 = vld [vmem:[%s2] sm:$0xff]
    %v6652 = vld [vmem:[%s2 + $0x8] sm:$0xff]
    %v6653 = vld [vmem:[%s3] sm:$0x1]
    %v6655 = vlaneseq
    %v6656 = vshrl.u32 %v6655, 7
    %v6657 = vsub.s32 0, %v6656
    %v6658 = vrot.slane %v6653, %v6657
    %v6661 = vsel %vm120, %v6619, 0
    %v6664 = vsel %vm120, %v6620, 0
    %v6667 = vsel %vm120, %v6621, 0
    %v6670 = vsel %vm120, %v6622, 0
    %v6673 = vsel %vm120, %v6623, 0
    %v6676 = vsel %vm120, %v6624, 0
    %v6679 = vsel %vm120, %v6625, 0
    %v6682 = vsel %vm120, %v6626, 0
    %v6685 = vsel %vm120, %v6627, 0
    %v6688 = vsel %vm120, %v6628, 0
    %v6691 = vsel %vm120, %v6629, 0
    %v6694 = vsel %vm120, %v6630, 0
    %v6697 = vsel %vm120, %v6631, 0
    %v6700 = vsel %vm120, %v6632, 0
    %v6703 = vsel %vm120, %v6633, 0
    %v6706 = vsel %vm120, %v6634, 0
    %v6709 = vsel %vm120, %v6635, 0
    %v6712 = vsel %vm120, %v6636, 0
    %v6715 = vsel %vm120, %v6637, 0
    %v6718 = vsel %vm120, %v6638, 0
    %v6721 = vsel %vm120, %v6639, 0
    %v6724 = vsel %vm120, %v6640, 0
    %v6727 = vsel %vm120, %v6641, 0
    %v6730 = vsel %vm120, %v6642, 0
    %v6733 = vsel %vm120, %v6643, 0
    %v6736 = vsel %vm120, %v6644, 0
    %v6739 = vsel %vm120, %v6645, 0
    %v6742 = vsel %vm120, %v6646, 0
    %v6745 = vsel %vm120, %v6647, 0
    %v6748 = vsel %vm120, %v6648, 0
    %v6751 = vsel %vm120, %v6649, 0
    %v6754 = vsel %vm120, %v6650, 0
    %6756 = vmatprep.subr.mxu0 0.0
    %6757 = vmatpush1.msra.mxu0 0.0
    %6758 = vmatprep.subr.mxu0 0.0
    %6759 = vmatpush1.msra.mxu0 0.0
    %6760 = vmatprep.subr.mxu0 0.0
    %6761 = vmatpush1.msra.mxu0 0.0
    %6762 = vmatprep.subr.mxu0 0.0
    %6763 = vmatpush1.msra.mxu0 0.0
    %6764 = vmatprep.subr.mxu0 0.0
    %6765 = vmatpush1.msra.mxu0 0.0
    %6766 = vmatprep.subr.mxu0 0.0
    %6767 = vmatpush1.msra.mxu0 0.0
    %6768 = vmatprep.subr.mxu0 0.0
    %6769 = vmatpush1.msra.mxu0 0.0
    %6770 = vmatprep.subr.mxu0 0.0
    %6771 = vmatpush1.msra.mxu0 0.0
    %6772 = vmatprep.subr.mxu0 0.0
    %6773 = vmatpush1.msra.mxu0 0.0
    %6774 = vmatprep.subr.mxu0 0.0
    %6775 = vmatpush1.msra.mxu0 0.0
    %6776 = vmatprep.subr.mxu0 0.0
    %6777 = vmatpush1.msra.mxu0 0.0
    %6778 = vmatprep.subr.mxu0 0.0
    %6779 = vmatpush1.msra.mxu0 0.0
    %6780 = vmatprep.subr.mxu0 0.0
    %6781 = vmatpush1.msra.mxu0 0.0
    %6782 = vmatprep.subr.mxu0 0.0
    %6783 = vmatpush1.msra.mxu0 0.0
    %6784 = vmatprep.subr.mxu0 0.0
    %6785 = vmatpush1.msra.mxu0 %v6652
    %6786 = vmatprep.subr.mxu0 0.0
    %6787 = vmatpush1.msra.mxu0 %v6651
    %6788 = vmatprep.subr.mxu0 0.0
    %6789 = vmatpush2.msra.mxu0 0.0
    %6790 = vmatprep.subr.mxu0 0.0
    %6791 = vmatpush2.msra.mxu0 0.0
    %6792 = vmatprep.subr.mxu0 0.0
    %6793 = vmatpush2.msra.mxu0 0.0
    %6794 = vmatprep.subr.mxu0 0.0
    %6795 = vmatpush2.msra.mxu0 0.0
    %6796 = vmatprep.subr.mxu0 0.0
    %6797 = vmatpush2.msra.mxu0 0.0
    %6798 = vmatprep.subr.mxu0 0.0
    %6799 = vmatpush2.msra.mxu0 0.0
    %6800 = vmatprep.subr.mxu0 0.0
    %6801 = vmatpush2.msra.mxu0 0.0
    %6802 = vmatprep.subr.mxu0 0.0
    %6803 = vmatpush2.msra.mxu0 0.0
    %6804 = vmatprep.subr.mxu0 0.0
    %6805 = vmatpush2.msra.mxu0 0.0
    %6806 = vmatprep.subr.mxu0 0.0
    %6807 = vmatpush2.msra.mxu0 0.0
    %6808 = vmatprep.subr.mxu0 0.0
    %6809 = vmatpush2.msra.mxu0 0.0
    %6810 = vmatprep.subr.mxu0 0.0
    %6811 = vmatpush2.msra.mxu0 0.0
    %6812 = vmatprep.subr.mxu0 0.0
    %6813 = vmatpush2.msra.mxu0 0.0
    %6814 = vmatprep.subr.mxu0 0.0
    %6815 = vmatpush2.msra.mxu0 0.0
    %6816 = vmatprep.subr.mxu0 0.0
    %6817 = vmatpush2.msra.mxu0 0.0
    %6818 = vmatprep.subr.mxu0 0.0
    %6819 = vmatpush2.msra.mxu0 0.0
    %6820 = vmatprep.mubr.f32.mxu0 0.0
    %6821 = vmatmul.mubr.f32.gmra.mxu0 %v6661
    %v6822 = vpop.f32.mrf.mxu0
    %v6823 = vadd.f32 %v6658, %v6822
    %v6824 = vpop.f32.mrf.mxu0
    %6825 = vmatprep.mubr.f32.mxu0 0.0
    %6826 = vmatmul.mubr.f32.gmra.mxu0 %v6664
    %v6827 = vpop.f32.mrf.mxu0
    %v6828 = vadd.f32 %v6658, %v6827
    %v6829 = vpop.f32.mrf.mxu0
    %6830 = vmatprep.mubr.f32.mxu0 0.0
    %6831 = vmatmul.mubr.f32.gmra.mxu0 %v6667
    %v6832 = vpop.f32.mrf.mxu0
    %v6833 = vadd.f32 %v6658, %v6832
    %v6834 = vpop.f32.mrf.mxu0
    %6835 = vmatprep.mubr.f32.mxu0 0.0
    %6836 = vmatmul.mubr.f32.gmra.mxu0 %v6670
    %v6837 = vpop.f32.mrf.mxu0
    %v6838 = vadd.f32 %v6658, %v6837
    %v6839 = vpop.f32.mrf.mxu0
    %6840 = vmatprep.mubr.f32.mxu0 0.0
    %6841 = vmatmul.mubr.f32.gmra.mxu0 %v6673
    %v6842 = vpop.f32.mrf.mxu0
    %v6843 = vadd.f32 %v6658, %v6842
    %v6844 = vpop.f32.mrf.mxu0
    %6845 = vmatprep.mubr.f32.mxu0 0.0
    %6846 = vmatmul.mubr.f32.gmra.mxu0 %v6676
    %v6847 = vpop.f32.mrf.mxu0
    %v6848 = vadd.f32 %v6658, %v6847
    %v6849 = vpop.f32.mrf.mxu0
    %6850 = vmatprep.mubr.f32.mxu0 0.0
    %6851 = vmatmul.mubr.f32.gmra.mxu0 %v6679
    %v6852 = vpop.f32.mrf.mxu0
    %v6853 = vadd.f32 %v6658, %v6852
    %v6854 = vpop.f32.mrf.mxu0
    %6855 = vmatprep.mubr.f32.mxu0 0.0
    %6856 = vmatmul.mubr.f32.gmra.mxu0 %v6682
    %v6857 = vpop.f32.mrf.mxu0
    %v6858 = vadd.f32 %v6658, %v6857
    %v6859 = vpop.f32.mrf.mxu0
    %6860 = vmatprep.mubr.f32.mxu0 0.0
    %6861 = vmatmul.mubr.f32.gmra.mxu0 %v6685
    %v6862 = vpop.f32.mrf.mxu0
    %v6863 = vadd.f32 %v6658, %v6862
    %v6864 = vpop.f32.mrf.mxu0
    %6865 = vmatprep.mubr.f32.mxu0 0.0
    %6866 = vmatmul.mubr.f32.gmra.mxu0 %v6688
    %v6867 = vpop.f32.mrf.mxu0
    %v6868 = vadd.f32 %v6658, %v6867
    %v6869 = vpop.f32.mrf.mxu0
    %6870 = vmatprep.mubr.f32.mxu0 0.0
    %6871 = vmatmul.mubr.f32.gmra.mxu0 %v6691
    %v6872 = vpop.f32.mrf.mxu0
    %v6873 = vadd.f32 %v6658, %v6872
    %v6874 = vpop.f32.mrf.mxu0
    %6875 = vmatprep.mubr.f32.mxu0 0.0
    %6876 = vmatmul.mubr.f32.gmra.mxu0 %v6694
    %v6877 = vpop.f32.mrf.mxu0
    %v6878 = vadd.f32 %v6658, %v6877
    %v6879 = vpop.f32.mrf.mxu0
    %6880 = vmatprep.mubr.f32.mxu0 0.0
    %6881 = vmatmul.mubr.f32.gmra.mxu0 %v6697
    %v6882 = vpop.f32.mrf.mxu0
    %v6883 = vadd.f32 %v6658, %v6882
    %v6884 = vpop.f32.mrf.mxu0
    %6885 = vmatprep.mubr.f32.mxu0 0.0
    %6886 = vmatmul.mubr.f32.gmra.mxu0 %v6700
    %v6887 = vpop.f32.mrf.mxu0
    %v6888 = vadd.f32 %v6658, %v6887
    %v6889 = vpop.f32.mrf.mxu0
    %6890 = vmatprep.mubr.f32.mxu0 0.0
    %6891 = vmatmul.mubr.f32.gmra.mxu0 %v6703
    %v6892 = vpop.f32.mrf.mxu0
    %v6893 = vadd.f32 %v6658, %v6892
    %v6894 = vpop.f32.mrf.mxu0
    %6895 = vmatprep.mubr.f32.mxu0 0.0
    %6896 = vmatmul.mubr.f32.gmra.mxu0 %v6706
    %v6897 = vpop.f32.mrf.mxu0
    %v6898 = vadd.f32 %v6658, %v6897
    %v6899 = vpop.f32.mrf.mxu0
    %6900 = vmatprep.mubr.f32.mxu0 0.0
    %6901 = vmatmul.mubr.f32.gmra.mxu0 %v6709
    %v6902 = vpop.f32.mrf.mxu0
    %v6903 = vadd.f32 %v6658, %v6902
    %v6904 = vpop.f32.mrf.mxu0
    %6905 = vmatprep.mubr.f32.mxu0 0.0
    %6906 = vmatmul.mubr.f32.gmra.mxu0 %v6712
    %v6907 = vpop.f32.mrf.mxu0
    %v6908 = vadd.f32 %v6658, %v6907
    %v6909 = vpop.f32.mrf.mxu0
    %6910 = vmatprep.mubr.f32.mxu0 0.0
    %6911 = vmatmul.mubr.f32.gmra.mxu0 %v6715
    %v6912 = vpop.f32.mrf.mxu0
    %v6913 = vadd.f32 %v6658, %v6912
    %v6914 = vpop.f32.mrf.mxu0
    %6915 = vmatprep.mubr.f32.mxu0 0.0
    %6916 = vmatmul.mubr.f32.gmra.mxu0 %v6718
    %v6917 = vpop.f32.mrf.mxu0
    %v6918 = vadd.f32 %v6658, %v6917
    %v6919 = vpop.f32.mrf.mxu0
    %6920 = vmatprep.mubr.f32.mxu0 0.0
    %6921 = vmatmul.mubr.f32.gmra.mxu0 %v6721
    %v6922 = vpop.f32.mrf.mxu0
    %v6923 = vadd.f32 %v6658, %v6922
    %v6924 = vpop.f32.mrf.mxu0
    %6925 = vmatprep.mubr.f32.mxu0 0.0
    %6926 = vmatmul.mubr.f32.gmra.mxu0 %v6724
    %v6927 = vpop.f32.mrf.mxu0
    %v6928 = vadd.f32 %v6658, %v6927
    %v6929 = vpop.f32.mrf.mxu0
    %6930 = vmatprep.mubr.f32.mxu0 0.0
    %6931 = vmatmul.mubr.f32.gmra.mxu0 %v6727
    %v6932 = vpop.f32.mrf.mxu0
    %v6933 = vadd.f32 %v6658, %v6932
    %v6934 = vpop.f32.mrf.mxu0
    %6935 = vmatprep.mubr.f32.mxu0 0.0
    %6936 = vmatmul.mubr.f32.gmra.mxu0 %v6730
    %v6937 = vpop.f32.mrf.mxu0
    %v6938 = vadd.f32 %v6658, %v6937
    %v6939 = vpop.f32.mrf.mxu0
    %6940 = vmatprep.mubr.f32.mxu0 0.0
    %6941 = vmatmul.mubr.f32.gmra.mxu0 %v6733
    %v6942 = vpop.f32.mrf.mxu0
    %v6943 = vadd.f32 %v6658, %v6942
    %v6944 = vpop.f32.mrf.mxu0
    %6945 = vmatprep.mubr.f32.mxu0 0.0
    %6946 = vmatmul.mubr.f32.gmra.mxu0 %v6736
    %v6947 = vpop.f32.mrf.mxu0
    %v6948 = vadd.f32 %v6658, %v6947
    %v6949 = vpop.f32.mrf.mxu0
    %6950 = vmatprep.mubr.f32.mxu0 0.0
    %6951 = vmatmul.mubr.f32.gmra.mxu0 %v6739
    %v6952 = vpop.f32.mrf.mxu0
    %v6953 = vadd.f32 %v6658, %v6952
    %v6954 = vpop.f32.mrf.mxu0
    %6955 = vmatprep.mubr.f32.mxu0 0.0
    %6956 = vmatmul.mubr.f32.gmra.mxu0 %v6742
    %v6957 = vpop.f32.mrf.mxu0
    %v6958 = vadd.f32 %v6658, %v6957
    %v6959 = vpop.f32.mrf.mxu0
    %6960 = vmatprep.mubr.f32.mxu0 0.0
    %6961 = vmatmul.mubr.f32.gmra.mxu0 %v6745
    %v6962 = vpop.f32.mrf.mxu0
    %v6963 = vadd.f32 %v6658, %v6962
    %v6964 = vpop.f32.mrf.mxu0
    %6965 = vmatprep.mubr.f32.mxu0 0.0
    %6966 = vmatmul.mubr.f32.gmra.mxu0 %v6748
    %v6967 = vpop.f32.mrf.mxu0
    %v6968 = vadd.f32 %v6658, %v6967
    %v6969 = vpop.f32.mrf.mxu0
    %6970 = vmatprep.mubr.f32.mxu0 0.0
    %6971 = vmatmul.mubr.f32.gmra.mxu0 %v6751
    %v6972 = vpop.f32.mrf.mxu0
    %v6973 = vadd.f32 %v6658, %v6972
    %v6974 = vpop.f32.mrf.mxu0
    %6975 = vmatprep.mubr.f32.mxu0 0.0
    %6976 = vmatmul.mubr.f32.gmra.mxu0 %v6754
    %v6977 = vpop.f32.mrf.mxu0
    %v6978 = vadd.f32 %v6658, %v6977
    %v6979 = vpop.f32.mrf.mxu0
    %6980 = vdwg.mxu0
    %vm6981 = vcmp.gt.f32.partialorder %v6823, 0.0
    %vm6982 = vcmp.gt.f32.partialorder %v6828, 0.0
    %vm6983 = vcmp.gt.f32.partialorder %v6833, 0.0
    %vm6984 = vcmp.gt.f32.partialorder %v6838, 0.0
    %vm6985 = vcmp.gt.f32.partialorder %v6843, 0.0
    %vm6986 = vcmp.gt.f32.partialorder %v6848, 0.0
    %vm6987 = vcmp.gt.f32.partialorder %v6853, 0.0
    %vm6988 = vcmp.gt.f32.partialorder %v6858, 0.0
    %vm6989 = vcmp.gt.f32.partialorder %v6863, 0.0
    %vm6990 = vcmp.gt.f32.partialorder %v6868, 0.0
    %vm6991 = vcmp.gt.f32.partialorder %v6873, 0.0
    %vm6992 = vcmp.gt.f32.partialorder %v6878, 0.0
    %vm6993 = vcmp.gt.f32.partialorder %v6883, 0.0
    %vm6994 = vcmp.gt.f32.partialorder %v6888, 0.0
    %vm6995 = vcmp.gt.f32.partialorder %v6893, 0.0
    %vm6996 = vcmp.gt.f32.partialorder %v6898, 0.0
    %vm6997 = vcmp.gt.f32.partialorder %v6903, 0.0
    %vm6998 = vcmp.gt.f32.partialorder %v6908, 0.0
    %vm6999 = vcmp.gt.f32.partialorder %v6913, 0.0
    %vm7000 = vcmp.gt.f32.partialorder %v6918, 0.0
    %vm7001 = vcmp.gt.f32.partialorder %v6923, 0.0
    %vm7002 = vcmp.gt.f32.partialorder %v6928, 0.0
    %vm7003 = vcmp.gt.f32.partialorder %v6933, 0.0
    %vm7004 = vcmp.gt.f32.partialorder %v6938, 0.0
    %vm7005 = vcmp.gt.f32.partialorder %v6943, 0.0
    %vm7006 = vcmp.gt.f32.partialorder %v6948, 0.0
    %vm7007 = vcmp.gt.f32.partialorder %v6953, 0.0
    %vm7008 = vcmp.gt.f32.partialorder %v6958, 0.0
    %vm7009 = vcmp.gt.f32.partialorder %v6963, 0.0
    %vm7010 = vcmp.gt.f32.partialorder %v6968, 0.0
    %vm7011 = vcmp.gt.f32.partialorder %v6973, 0.0
    %vm7012 = vcmp.gt.f32.partialorder %v6978, 0.0
    %v7013 = vmul.f32 %v6823, 0.01
    %v7014 = vmul.f32 %v6828, 0.01
    %v7015 = vmul.f32 %v6833, 0.01
    %v7016 = vmul.f32 %v6838, 0.01
    %v7017 = vmul.f32 %v6843, 0.01
    %v7018 = vmul.f32 %v6848, 0.01
    %v7019 = vmul.f32 %v6853, 0.01
    %v7020 = vmul.f32 %v6858, 0.01
    %v7021 = vmul.f32 %v6863, 0.01
    %v7022 = vmul.f32 %v6868, 0.01
    %v7023 = vmul.f32 %v6873, 0.01
    %v7024 = vmul.f32 %v6878, 0.01
    %v7025 = vmul.f32 %v6883, 0.01
    %v7026 = vmul.f32 %v6888, 0.01
    %v7027 = vmul.f32 %v6893, 0.01
    %v7028 = vmul.f32 %v6898, 0.01
    %v7029 = vmul.f32 %v6903, 0.01
    %v7030 = vmul.f32 %v6908, 0.01
    %v7031 = vmul.f32 %v6913, 0.01
    %v7032 = vmul.f32 %v6918, 0.01
    %v7033 = vmul.f32 %v6923, 0.01
    %v7034 = vmul.f32 %v6928, 0.01
    %v7035 = vmul.f32 %v6933, 0.01
    %v7036 = vmul.f32 %v6938, 0.01
    %v7037 = vmul.f32 %v6943, 0.01
    %v7038 = vmul.f32 %v6948, 0.01
    %v7039 = vmul.f32 %v6953, 0.01
    %v7040 = vmul.f32 %v6958, 0.01
    %v7041 = vmul.f32 %v6963, 0.01
    %v7042 = vmul.f32 %v6968, 0.01
    %v7043 = vmul.f32 %v6973, 0.01
    %v7044 = vmul.f32 %v6978, 0.01
    %v7045 = vsel %vm6981, %v6823, %v7013
    %v7046 = vsel %vm6982, %v6828, %v7014
    %v7047 = vsel %vm6983, %v6833, %v7015
    %v7048 = vsel %vm6984, %v6838, %v7016
    %v7049 = vsel %vm6985, %v6843, %v7017
    %v7050 = vsel %vm6986, %v6848, %v7018
    %v7051 = vsel %vm6987, %v6853, %v7019
    %v7052 = vsel %vm6988, %v6858, %v7020
    %v7053 = vsel %vm6989, %v6863, %v7021
    %v7054 = vsel %vm6990, %v6868, %v7022
    %v7055 = vsel %vm6991, %v6873, %v7023
    %v7056 = vsel %vm6992, %v6878, %v7024
    %v7057 = vsel %vm6993, %v6883, %v7025
    %v7058 = vsel %vm6994, %v6888, %v7026
    %v7059 = vsel %vm6995, %v6893, %v7027
    %v7060 = vsel %vm6996, %v6898, %v7028
    %v7061 = vsel %vm6997, %v6903, %v7029
    %v7062 = vsel %vm6998, %v6908, %v7030
    %v7063 = vsel %vm6999, %v6913, %v7031
    %v7064 = vsel %vm7000, %v6918, %v7032
    %v7065 = vsel %vm7001, %v6923, %v7033
    %v7066 = vsel %vm7002, %v6928, %v7034
    %v7067 = vsel %vm7003, %v6933, %v7035
    %v7068 = vsel %vm7004, %v6938, %v7036
    %v7069 = vsel %vm7005, %v6943, %v7037
    %v7070 = vsel %vm7006, %v6948, %v7038
    %v7071 = vsel %vm7007, %v6953, %v7039
    %v7072 = vsel %vm7008, %v6958, %v7040
    %v7073 = vsel %vm7009, %v6963, %v7041
    %v7074 = vsel %vm7010, %v6968, %v7042
    %v7075 = vsel %vm7011, %v6973, %v7043
    %v7076 = vsel %vm7012, %v6978, %v7044
    %v7077 = vld [vmem:[%s4] sm:$0xff]
    %v7078 = vld [vmem:[%s4 + $0x8] sm:$0xff]
    %v7079 = vld [vmem:[%s4 + $0x10] sm:$0xff]
    %v7080 = vld [vmem:[%s4 + $0x18] sm:$0xff]
    %v7081 = vld [vmem:[%s5] sm:$0x1]
    %v7083 = vlaneseq
    %v7084 = vshrl.u32 %v7083, 7
    %v7085 = vsub.s32 0, %v7084
    %v7086 = vrot.slane %v7081, %v7085
    %v7089 = vsel %vm551, %v7045, 0
    %v7092 = vsel %vm551, %v7046, 0
    %v7095 = vsel %vm551, %v7047, 0
    %v7098 = vsel %vm551, %v7048, 0
    %v7101 = vsel %vm551, %v7049, 0
    %v7104 = vsel %vm551, %v7050, 0
    %v7107 = vsel %vm551, %v7051, 0
    %v7110 = vsel %vm551, %v7052, 0
    %v7113 = vsel %vm551, %v7053, 0
    %v7116 = vsel %vm551, %v7054, 0
    %v7119 = vsel %vm551, %v7055, 0
    %v7122 = vsel %vm551, %v7056, 0
    %v7125 = vsel %vm551, %v7057, 0
    %v7128 = vsel %vm551, %v7058, 0
    %v7131 = vsel %vm551, %v7059, 0
    %v7134 = vsel %vm551, %v7060, 0
    %v7137 = vsel %vm551, %v7061, 0
    %v7140 = vsel %vm551, %v7062, 0
    %v7143 = vsel %vm551, %v7063, 0
    %v7146 = vsel %vm551, %v7064, 0
    %v7149 = vsel %vm551, %v7065, 0
    %v7152 = vsel %vm551, %v7066, 0
    %v7155 = vsel %vm551, %v7067, 0
    %v7158 = vsel %vm551, %v7068, 0
    %v7161 = vsel %vm551, %v7069, 0
    %v7164 = vsel %vm551, %v7070, 0
    %v7167 = vsel %vm551, %v7071, 0
    %v7170 = vsel %vm551, %v7072, 0
    %v7173 = vsel %vm551, %v7073, 0
    %v7176 = vsel %vm551, %v7074, 0
    %v7179 = vsel %vm551, %v7075, 0
    %v7182 = vsel %vm551, %v7076, 0
    %7184 = vmatprep.subr.mxu0 0.0
    %7185 = vmatpush1.msra.mxu0 0.0
    %7186 = vmatprep.subr.mxu0 0.0
    %7187 = vmatpush1.msra.mxu0 0.0
    %7188 = vmatprep.subr.mxu0 0.0
    %7189 = vmatpush1.msra.mxu0 0.0
    %7190 = vmatprep.subr.mxu0 0.0
    %7191 = vmatpush1.msra.mxu0 0.0
    %7192 = vmatprep.subr.mxu0 0.0
    %7193 = vmatpush1.msra.mxu0 0.0
    %7194 = vmatprep.subr.mxu0 0.0
    %7195 = vmatpush1.msra.mxu0 0.0
    %7196 = vmatprep.subr.mxu0 0.0
    %7197 = vmatpush1.msra.mxu0 0.0
    %7198 = vmatprep.subr.mxu0 0.0
    %7199 = vmatpush1.msra.mxu0 0.0
    %7200 = vmatprep.subr.mxu0 0.0
    %7201 = vmatpush1.msra.mxu0 0.0
    %7202 = vmatprep.subr.mxu0 0.0
    %7203 = vmatpush1.msra.mxu0 0.0
    %7204 = vmatprep.subr.mxu0 0.0
    %7205 = vmatpush1.msra.mxu0 0.0
    %7206 = vmatprep.subr.mxu0 0.0
    %7207 = vmatpush1.msra.mxu0 0.0
    %7208 = vmatprep.subr.mxu0 0.0
    %7209 = vmatpush1.msra.mxu0 %v7080
    %7210 = vmatprep.subr.mxu0 0.0
    %7211 = vmatpush1.msra.mxu0 %v7079
    %7212 = vmatprep.subr.mxu0 0.0
    %7213 = vmatpush1.msra.mxu0 %v7078
    %7214 = vmatprep.subr.mxu0 0.0
    %7215 = vmatpush1.msra.mxu0 %v7077
    %7216 = vmatprep.subr.mxu0 0.0
    %7217 = vmatpush2.msra.mxu0 0.0
    %7218 = vmatprep.subr.mxu0 0.0
    %7219 = vmatpush2.msra.mxu0 0.0
    %7220 = vmatprep.subr.mxu0 0.0
    %7221 = vmatpush2.msra.mxu0 0.0
    %7222 = vmatprep.subr.mxu0 0.0
    %7223 = vmatpush2.msra.mxu0 0.0
    %7224 = vmatprep.subr.mxu0 0.0
    %7225 = vmatpush2.msra.mxu0 0.0
    %7226 = vmatprep.subr.mxu0 0.0
    %7227 = vmatpush2.msra.mxu0 0.0
    %7228 = vmatprep.subr.mxu0 0.0
    %7229 = vmatpush2.msra.mxu0 0.0
    %7230 = vmatprep.subr.mxu0 0.0
    %7231 = vmatpush2.msra.mxu0 0.0
    %7232 = vmatprep.subr.mxu0 0.0
    %7233 = vmatpush2.msra.mxu0 0.0
    %7234 = vmatprep.subr.mxu0 0.0
    %7235 = vmatpush2.msra.mxu0 0.0
    %7236 = vmatprep.subr.mxu0 0.0
    %7237 = vmatpush2.msra.mxu0 0.0
    %7238 = vmatprep.subr.mxu0 0.0
    %7239 = vmatpush2.msra.mxu0 0.0
    %7240 = vmatprep.subr.mxu0 0.0
    %7241 = vmatpush2.msra.mxu0 0.0
    %7242 = vmatprep.subr.mxu0 0.0
    %7243 = vmatpush2.msra.mxu0 0.0
    %7244 = vmatprep.subr.mxu0 0.0
    %7245 = vmatpush2.msra.mxu0 0.0
    %7246 = vmatprep.subr.mxu0 0.0
    %7247 = vmatpush2.msra.mxu0 0.0
    %7248 = vmatprep.mubr.f32.mxu0 0.0
    %7249 = vmatmul.mubr.f32.gmra.mxu0 %v7089
    %v7250 = vpop.f32.mrf.mxu0
    %v7251 = vadd.f32 %v7086, %v7250
    %v7252 = vpop.f32.mrf.mxu0
    %7253 = vmatprep.mubr.f32.mxu0 0.0
    %7254 = vmatmul.mubr.f32.gmra.mxu0 %v7092
    %v7255 = vpop.f32.mrf.mxu0
    %v7256 = vadd.f32 %v7086, %v7255
    %v7257 = vpop.f32.mrf.mxu0
    %7258 = vmatprep.mubr.f32.mxu0 0.0
    %7259 = vmatmul.mubr.f32.gmra.mxu0 %v7095
    %v7260 = vpop.f32.mrf.mxu0
    %v7261 = vadd.f32 %v7086, %v7260
    %v7262 = vpop.f32.mrf.mxu0
    %7263 = vmatprep.mubr.f32.mxu0 0.0
    %7264 = vmatmul.mubr.f32.gmra.mxu0 %v7098
    %v7265 = vpop.f32.mrf.mxu0
    %v7266 = vadd.f32 %v7086, %v7265
    %v7267 = vpop.f32.mrf.mxu0
    %7268 = vmatprep.mubr.f32.mxu0 0.0
    %7269 = vmatmul.mubr.f32.gmra.mxu0 %v7101
    %v7270 = vpop.f32.mrf.mxu0
    %v7271 = vadd.f32 %v7086, %v7270
    %v7272 = vpop.f32.mrf.mxu0
    %7273 = vmatprep.mubr.f32.mxu0 0.0
    %7274 = vmatmul.mubr.f32.gmra.mxu0 %v7104
    %v7275 = vpop.f32.mrf.mxu0
    %v7276 = vadd.f32 %v7086, %v7275
    %v7277 = vpop.f32.mrf.mxu0
    %7278 = vmatprep.mubr.f32.mxu0 0.0
    %7279 = vmatmul.mubr.f32.gmra.mxu0 %v7107
    %v7280 = vpop.f32.mrf.mxu0
    %v7281 = vadd.f32 %v7086, %v7280
    %v7282 = vpop.f32.mrf.mxu0
    %7283 = vmatprep.mubr.f32.mxu0 0.0
    %7284 = vmatmul.mubr.f32.gmra.mxu0 %v7110
    %v7285 = vpop.f32.mrf.mxu0
    %v7286 = vadd.f32 %v7086, %v7285
    %v7287 = vpop.f32.mrf.mxu0
    %7288 = vmatprep.mubr.f32.mxu0 0.0
    %7289 = vmatmul.mubr.f32.gmra.mxu0 %v7113
    %v7290 = vpop.f32.mrf.mxu0
    %v7291 = vadd.f32 %v7086, %v7290
    %v7292 = vpop.f32.mrf.mxu0
    %7293 = vmatprep.mubr.f32.mxu0 0.0
    %7294 = vmatmul.mubr.f32.gmra.mxu0 %v7116
    %v7295 = vpop.f32.mrf.mxu0
    %v7296 = vadd.f32 %v7086, %v7295
    %v7297 = vpop.f32.mrf.mxu0
    %7298 = vmatprep.mubr.f32.mxu0 0.0
    %7299 = vmatmul.mubr.f32.gmra.mxu0 %v7119
    %v7300 = vpop.f32.mrf.mxu0
    %v7301 = vadd.f32 %v7086, %v7300
    %v7302 = vpop.f32.mrf.mxu0
    %7303 = vmatprep.mubr.f32.mxu0 0.0
    %7304 = vmatmul.mubr.f32.gmra.mxu0 %v7122
    %v7305 = vpop.f32.mrf.mxu0
    %v7306 = vadd.f32 %v7086, %v7305
    %v7307 = vpop.f32.mrf.mxu0
    %7308 = vmatprep.mubr.f32.mxu0 0.0
    %7309 = vmatmul.mubr.f32.gmra.mxu0 %v7125
    %v7310 = vpop.f32.mrf.mxu0
    %v7311 = vadd.f32 %v7086, %v7310
    %v7312 = vpop.f32.mrf.mxu0
    %7313 = vmatprep.mubr.f32.mxu0 0.0
    %7314 = vmatmul.mubr.f32.gmra.mxu0 %v7128
    %v7315 = vpop.f32.mrf.mxu0
    %v7316 = vadd.f32 %v7086, %v7315
    %v7317 = vpop.f32.mrf.mxu0
    %7318 = vmatprep.mubr.f32.mxu0 0.0
    %7319 = vmatmul.mubr.f32.gmra.mxu0 %v7131
    %v7320 = vpop.f32.mrf.mxu0
    %v7321 = vadd.f32 %v7086, %v7320
    %v7322 = vpop.f32.mrf.mxu0
    %7323 = vmatprep.mubr.f32.mxu0 0.0
    %7324 = vmatmul.mubr.f32.gmra.mxu0 %v7134
    %v7325 = vpop.f32.mrf.mxu0
    %v7326 = vadd.f32 %v7086, %v7325
    %v7327 = vpop.f32.mrf.mxu0
    %7328 = vmatprep.mubr.f32.mxu0 0.0
    %7329 = vmatmul.mubr.f32.gmra.mxu0 %v7137
    %v7330 = vpop.f32.mrf.mxu0
    %v7331 = vadd.f32 %v7086, %v7330
    %v7332 = vpop.f32.mrf.mxu0
    %7333 = vmatprep.mubr.f32.mxu0 0.0
    %7334 = vmatmul.mubr.f32.gmra.mxu0 %v7140
    %v7335 = vpop.f32.mrf.mxu0
    %v7336 = vadd.f32 %v7086, %v7335
    %v7337 = vpop.f32.mrf.mxu0
    %7338 = vmatprep.mubr.f32.mxu0 0.0
    %7339 = vmatmul.mubr.f32.gmra.mxu0 %v7143
    %v7340 = vpop.f32.mrf.mxu0
    %v7341 = vadd.f32 %v7086, %v7340
    %v7342 = vpop.f32.mrf.mxu0
    %7343 = vmatprep.mubr.f32.mxu0 0.0
    %7344 = vmatmul.mubr.f32.gmra.mxu0 %v7146
    %v7345 = vpop.f32.mrf.mxu0
    %v7346 = vadd.f32 %v7086, %v7345
    %v7347 = vpop.f32.mrf.mxu0
    %7348 = vmatprep.mubr.f32.mxu0 0.0
    %7349 = vmatmul.mubr.f32.gmra.mxu0 %v7149
    %v7350 = vpop.f32.mrf.mxu0
    %v7351 = vadd.f32 %v7086, %v7350
    %v7352 = vpop.f32.mrf.mxu0
    %7353 = vmatprep.mubr.f32.mxu0 0.0
    %7354 = vmatmul.mubr.f32.gmra.mxu0 %v7152
    %v7355 = vpop.f32.mrf.mxu0
    %v7356 = vadd.f32 %v7086, %v7355
    %v7357 = vpop.f32.mrf.mxu0
    %7358 = vmatprep.mubr.f32.mxu0 0.0
    %7359 = vmatmul.mubr.f32.gmra.mxu0 %v7155
    %v7360 = vpop.f32.mrf.mxu0
    %v7361 = vadd.f32 %v7086, %v7360
    %v7362 = vpop.f32.mrf.mxu0
    %7363 = vmatprep.mubr.f32.mxu0 0.0
    %7364 = vmatmul.mubr.f32.gmra.mxu0 %v7158
    %v7365 = vpop.f32.mrf.mxu0
    %v7366 = vadd.f32 %v7086, %v7365
    %v7367 = vpop.f32.mrf.mxu0
    %7368 = vmatprep.mubr.f32.mxu0 0.0
    %7369 = vmatmul.mubr.f32.gmra.mxu0 %v7161
    %v7370 = vpop.f32.mrf.mxu0
    %v7371 = vadd.f32 %v7086, %v7370
    %v7372 = vpop.f32.mrf.mxu0
    %7373 = vmatprep.mubr.f32.mxu0 0.0
    %7374 = vmatmul.mubr.f32.gmra.mxu0 %v7164
    %v7375 = vpop.f32.mrf.mxu0
    %v7376 = vadd.f32 %v7086, %v7375
    %v7377 = vpop.f32.mrf.mxu0
    %7378 = vmatprep.mubr.f32.mxu0 0.0
    %7379 = vmatmul.mubr.f32.gmra.mxu0 %v7167
    %v7380 = vpop.f32.mrf.mxu0
    %v7381 = vadd.f32 %v7086, %v7380
    %v7382 = vpop.f32.mrf.mxu0
    %7383 = vmatprep.mubr.f32.mxu0 0.0
    %7384 = vmatmul.mubr.f32.gmra.mxu0 %v7170
    %v7385 = vpop.f32.mrf.mxu0
    %v7386 = vadd.f32 %v7086, %v7385
    %v7387 = vpop.f32.mrf.mxu0
    %7388 = vmatprep.mubr.f32.mxu0 0.0
    %7389 = vmatmul.mubr.f32.gmra.mxu0 %v7173
    %v7390 = vpop.f32.mrf.mxu0
    %v7391 = vadd.f32 %v7086, %v7390
    %v7392 = vpop.f32.mrf.mxu0
    %7393 = vmatprep.mubr.f32.mxu0 0.0
    %7394 = vmatmul.mubr.f32.gmra.mxu0 %v7176
    %v7395 = vpop.f32.mrf.mxu0
    %v7396 = vadd.f32 %v7086, %v7395
    %v7397 = vpop.f32.mrf.mxu0
    %7398 = vmatprep.mubr.f32.mxu0 0.0
    %7399 = vmatmul.mubr.f32.gmra.mxu0 %v7179
    %v7400 = vpop.f32.mrf.mxu0
    %v7401 = vadd.f32 %v7086, %v7400
    %v7402 = vpop.f32.mrf.mxu0
    %7403 = vmatprep.mubr.f32.mxu0 0.0
    %7404 = vmatmul.mubr.f32.gmra.mxu0 %v7182
    %v7405 = vpop.f32.mrf.mxu0
    %v7406 = vadd.f32 %v7086, %v7405
    %v7407 = vpop.f32.mrf.mxu0
    %7408 = vdwg.mxu0
    %vm7409 = vcmp.gt.f32.partialorder %v7251, 0.0
    %vm7410 = vcmp.gt.f32.partialorder %v7256, 0.0
    %vm7411 = vcmp.gt.f32.partialorder %v7261, 0.0
    %vm7412 = vcmp.gt.f32.partialorder %v7266, 0.0
    %vm7413 = vcmp.gt.f32.partialorder %v7271, 0.0
    %vm7414 = vcmp.gt.f32.partialorder %v7276, 0.0
    %vm7415 = vcmp.gt.f32.partialorder %v7281, 0.0
    %vm7416 = vcmp.gt.f32.partialorder %v7286, 0.0
    %vm7417 = vcmp.gt.f32.partialorder %v7291, 0.0
    %vm7418 = vcmp.gt.f32.partialorder %v7296, 0.0
    %vm7419 = vcmp.gt.f32.partialorder %v7301, 0.0
    %vm7420 = vcmp.gt.f32.partialorder %v7306, 0.0
    %vm7421 = vcmp.gt.f32.partialorder %v7311, 0.0
    %vm7422 = vcmp.gt.f32.partialorder %v7316, 0.0
    %vm7423 = vcmp.gt.f32.partialorder %v7321, 0.0
    %vm7424 = vcmp.gt.f32.partialorder %v7326, 0.0
    %vm7425 = vcmp.gt.f32.partialorder %v7331, 0.0
    %vm7426 = vcmp.gt.f32.partialorder %v7336, 0.0
    %vm7427 = vcmp.gt.f32.partialorder %v7341, 0.0
    %vm7428 = vcmp.gt.f32.partialorder %v7346, 0.0
    %vm7429 = vcmp.gt.f32.partialorder %v7351, 0.0
    %vm7430 = vcmp.gt.f32.partialorder %v7356, 0.0
    %vm7431 = vcmp.gt.f32.partialorder %v7361, 0.0
    %vm7432 = vcmp.gt.f32.partialorder %v7366, 0.0
    %vm7433 = vcmp.gt.f32.partialorder %v7371, 0.0
    %vm7434 = vcmp.gt.f32.partialorder %v7376, 0.0
    %vm7435 = vcmp.gt.f32.partialorder %v7381, 0.0
    %vm7436 = vcmp.gt.f32.partialorder %v7386, 0.0
    %vm7437 = vcmp.gt.f32.partialorder %v7391, 0.0
    %vm7438 = vcmp.gt.f32.partialorder %v7396, 0.0
    %vm7439 = vcmp.gt.f32.partialorder %v7401, 0.0
    %vm7440 = vcmp.gt.f32.partialorder %v7406, 0.0
    %v7441 = vmul.f32 %v7251, 0.01
    %v7442 = vmul.f32 %v7256, 0.01
    %v7443 = vmul.f32 %v7261, 0.01
    %v7444 = vmul.f32 %v7266, 0.01
    %v7445 = vmul.f32 %v7271, 0.01
    %v7446 = vmul.f32 %v7276, 0.01
    %v7447 = vmul.f32 %v7281, 0.01
    %v7448 = vmul.f32 %v7286, 0.01
    %v7449 = vmul.f32 %v7291, 0.01
    %v7450 = vmul.f32 %v7296, 0.01
    %v7451 = vmul.f32 %v7301, 0.01
    %v7452 = vmul.f32 %v7306, 0.01
    %v7453 = vmul.f32 %v7311, 0.01
    %v7454 = vmul.f32 %v7316, 0.01
    %v7455 = vmul.f32 %v7321, 0.01
    %v7456 = vmul.f32 %v7326, 0.01
    %v7457 = vmul.f32 %v7331, 0.01
    %v7458 = vmul.f32 %v7336, 0.01
    %v7459 = vmul.f32 %v7341, 0.01
    %v7460 = vmul.f32 %v7346, 0.01
    %v7461 = vmul.f32 %v7351, 0.01
    %v7462 = vmul.f32 %v7356, 0.01
    %v7463 = vmul.f32 %v7361, 0.01
    %v7464 = vmul.f32 %v7366, 0.01
    %v7465 = vmul.f32 %v7371, 0.01
    %v7466 = vmul.f32 %v7376, 0.01
    %v7467 = vmul.f32 %v7381, 0.01
    %v7468 = vmul.f32 %v7386, 0.01
    %v7469 = vmul.f32 %v7391, 0.01
    %v7470 = vmul.f32 %v7396, 0.01
    %v7471 = vmul.f32 %v7401, 0.01
    %v7472 = vmul.f32 %v7406, 0.01
    %v7473 = vsel %vm7409, %v7251, %v7441
    %v7474 = vsel %vm7410, %v7256, %v7442
    %v7475 = vsel %vm7411, %v7261, %v7443
    %v7476 = vsel %vm7412, %v7266, %v7444
    %v7477 = vsel %vm7413, %v7271, %v7445
    %v7478 = vsel %vm7414, %v7276, %v7446
    %v7479 = vsel %vm7415, %v7281, %v7447
    %v7480 = vsel %vm7416, %v7286, %v7448
    %v7481 = vsel %vm7417, %v7291, %v7449
    %v7482 = vsel %vm7418, %v7296, %v7450
    %v7483 = vsel %vm7419, %v7301, %v7451
    %v7484 = vsel %vm7420, %v7306, %v7452
    %v7485 = vsel %vm7421, %v7311, %v7453
    %v7486 = vsel %vm7422, %v7316, %v7454
    %v7487 = vsel %vm7423, %v7321, %v7455
    %v7488 = vsel %vm7424, %v7326, %v7456
    %v7489 = vsel %vm7425, %v7331, %v7457
    %v7490 = vsel %vm7426, %v7336, %v7458
    %v7491 = vsel %vm7427, %v7341, %v7459
    %v7492 = vsel %vm7428, %v7346, %v7460
    %v7493 = vsel %vm7429, %v7351, %v7461
    %v7494 = vsel %vm7430, %v7356, %v7462
    %v7495 = vsel %vm7431, %v7361, %v7463
    %v7496 = vsel %vm7432, %v7366, %v7464
    %v7497 = vsel %vm7433, %v7371, %v7465
    %v7498 = vsel %vm7434, %v7376, %v7466
    %v7499 = vsel %vm7435, %v7381, %v7467
    %v7500 = vsel %vm7436, %v7386, %v7468
    %v7501 = vsel %vm7437, %v7391, %v7469
    %v7502 = vsel %vm7438, %v7396, %v7470
    %v7503 = vsel %vm7439, %v7401, %v7471
    %v7504 = vsel %vm7440, %v7406, %v7472
    %s7505 = scalar_lea.vmem %s4, 32
    %v7506 = vld [vmem:[%s7505] sm:$0xff]
    %v7507 = vld [vmem:[%s7505 + $0x8] sm:$0xff]
    %v7508 = vld [vmem:[%s7505 + $0x10] sm:$0xff]
    %v7509 = vld [vmem:[%s7505 + $0x18] sm:$0xff]
    %s7510 = scalar_lea.vmem %s5, 1
    %v7511 = vld [vmem:[%s7510] sm:$0x1]
    %v7513 = vlaneseq
    %v7514 = vshrl.u32 %v7513, 7
    %v7515 = vsub.s32 0, %v7514
    %v7516 = vrot.slane %v7511, %v7515
    %v7519 = vsel %vm551, %v7473, 0
    %v7522 = vsel %vm551, %v7474, 0
    %v7525 = vsel %vm551, %v7475, 0
    %v7528 = vsel %vm551, %v7476, 0
    %v7531 = vsel %vm551, %v7477, 0
    %v7534 = vsel %vm551, %v7478, 0
    %v7537 = vsel %vm551, %v7479, 0
    %v7540 = vsel %vm551, %v7480, 0
    %v7543 = vsel %vm551, %v7481, 0
    %v7546 = vsel %vm551, %v7482, 0
    %v7549 = vsel %vm551, %v7483, 0
    %v7552 = vsel %vm551, %v7484, 0
    %v7555 = vsel %vm551, %v7485, 0
    %v7558 = vsel %vm551, %v7486, 0
    %v7561 = vsel %vm551, %v7487, 0
    %v7564 = vsel %vm551, %v7488, 0
    %v7567 = vsel %vm551, %v7489, 0
    %v7570 = vsel %vm551, %v7490, 0
    %v7573 = vsel %vm551, %v7491, 0
    %v7576 = vsel %vm551, %v7492, 0
    %v7579 = vsel %vm551, %v7493, 0
    %v7582 = vsel %vm551, %v7494, 0
    %v7585 = vsel %vm551, %v7495, 0
    %v7588 = vsel %vm551, %v7496, 0
    %v7591 = vsel %vm551, %v7497, 0
    %v7594 = vsel %vm551, %v7498, 0
    %v7597 = vsel %vm551, %v7499, 0
    %v7600 = vsel %vm551, %v7500, 0
    %v7603 = vsel %vm551, %v7501, 0
    %v7606 = vsel %vm551, %v7502, 0
    %v7609 = vsel %vm551, %v7503, 0
    %v7612 = vsel %vm551, %v7504, 0
    %7614 = vmatprep.subr.mxu0 0.0
    %7615 = vmatpush1.msra.mxu0 0.0
    %7616 = vmatprep.subr.mxu0 0.0
    %7617 = vmatpush1.msra.mxu0 0.0
    %7618 = vmatprep.subr.mxu0 0.0
    %7619 = vmatpush1.msra.mxu0 0.0
    %7620 = vmatprep.subr.mxu0 0.0
    %7621 = vmatpush1.msra.mxu0 0.0
    %7622 = vmatprep.subr.mxu0 0.0
    %7623 = vmatpush1.msra.mxu0 0.0
    %7624 = vmatprep.subr.mxu0 0.0
    %7625 = vmatpush1.msra.mxu0 0.0
    %7626 = vmatprep.subr.mxu0 0.0
    %7627 = vmatpush1.msra.mxu0 0.0
    %7628 = vmatprep.subr.mxu0 0.0
    %7629 = vmatpush1.msra.mxu0 0.0
    %7630 = vmatprep.subr.mxu0 0.0
    %7631 = vmatpush1.msra.mxu0 0.0
    %7632 = vmatprep.subr.mxu0 0.0
    %7633 = vmatpush1.msra.mxu0 0.0
    %7634 = vmatprep.subr.mxu0 0.0
    %7635 = vmatpush1.msra.mxu0 0.0
    %7636 = vmatprep.subr.mxu0 0.0
    %7637 = vmatpush1.msra.mxu0 0.0
    %7638 = vmatprep.subr.mxu0 0.0
    %7639 = vmatpush1.msra.mxu0 %v7509
    %7640 = vmatprep.subr.mxu0 0.0
    %7641 = vmatpush1.msra.mxu0 %v7508
    %7642 = vmatprep.subr.mxu0 0.0
    %7643 = vmatpush1.msra.mxu0 %v7507
    %7644 = vmatprep.subr.mxu0 0.0
    %7645 = vmatpush1.msra.mxu0 %v7506
    %7646 = vmatprep.subr.mxu0 0.0
    %7647 = vmatpush2.msra.mxu0 0.0
    %7648 = vmatprep.subr.mxu0 0.0
    %7649 = vmatpush2.msra.mxu0 0.0
    %7650 = vmatprep.subr.mxu0 0.0
    %7651 = vmatpush2.msra.mxu0 0.0
    %7652 = vmatprep.subr.mxu0 0.0
    %7653 = vmatpush2.msra.mxu0 0.0
    %7654 = vmatprep.subr.mxu0 0.0
    %7655 = vmatpush2.msra.mxu0 0.0
    %7656 = vmatprep.subr.mxu0 0.0
    %7657 = vmatpush2.msra.mxu0 0.0
    %7658 = vmatprep.subr.mxu0 0.0
    %7659 = vmatpush2.msra.mxu0 0.0
    %7660 = vmatprep.subr.mxu0 0.0
    %7661 = vmatpush2.msra.mxu0 0.0
    %7662 = vmatprep.subr.mxu0 0.0
    %7663 = vmatpush2.msra.mxu0 0.0
    %7664 = vmatprep.subr.mxu0 0.0
    %7665 = vmatpush2.msra.mxu0 0.0
    %7666 = vmatprep.subr.mxu0 0.0
    %7667 = vmatpush2.msra.mxu0 0.0
    %7668 = vmatprep.subr.mxu0 0.0
    %7669 = vmatpush2.msra.mxu0 0.0
    %7670 = vmatprep.subr.mxu0 0.0
    %7671 = vmatpush2.msra.mxu0 0.0
    %7672 = vmatprep.subr.mxu0 0.0
    %7673 = vmatpush2.msra.mxu0 0.0
    %7674 = vmatprep.subr.mxu0 0.0
    %7675 = vmatpush2.msra.mxu0 0.0
    %7676 = vmatprep.subr.mxu0 0.0
    %7677 = vmatpush2.msra.mxu0 0.0
    %7678 = vmatprep.mubr.f32.mxu0 0.0
    %7679 = vmatmul.mubr.f32.gmra.mxu0 %v7519
    %v7680 = vpop.f32.mrf.mxu0
    %v7681 = vadd.f32 %v7516, %v7680
    %v7682 = vpop.f32.mrf.mxu0
    %7683 = vmatprep.mubr.f32.mxu0 0.0
    %7684 = vmatmul.mubr.f32.gmra.mxu0 %v7522
    %v7685 = vpop.f32.mrf.mxu0
    %v7686 = vadd.f32 %v7516, %v7685
    %v7687 = vpop.f32.mrf.mxu0
    %7688 = vmatprep.mubr.f32.mxu0 0.0
    %7689 = vmatmul.mubr.f32.gmra.mxu0 %v7525
    %v7690 = vpop.f32.mrf.mxu0
    %v7691 = vadd.f32 %v7516, %v7690
    %v7692 = vpop.f32.mrf.mxu0
    %7693 = vmatprep.mubr.f32.mxu0 0.0
    %7694 = vmatmul.mubr.f32.gmra.mxu0 %v7528
    %v7695 = vpop.f32.mrf.mxu0
    %v7696 = vadd.f32 %v7516, %v7695
    %v7697 = vpop.f32.mrf.mxu0
    %7698 = vmatprep.mubr.f32.mxu0 0.0
    %7699 = vmatmul.mubr.f32.gmra.mxu0 %v7531
    %v7700 = vpop.f32.mrf.mxu0
    %v7701 = vadd.f32 %v7516, %v7700
    %v7702 = vpop.f32.mrf.mxu0
    %7703 = vmatprep.mubr.f32.mxu0 0.0
    %7704 = vmatmul.mubr.f32.gmra.mxu0 %v7534
    %v7705 = vpop.f32.mrf.mxu0
    %v7706 = vadd.f32 %v7516, %v7705
    %v7707 = vpop.f32.mrf.mxu0
    %7708 = vmatprep.mubr.f32.mxu0 0.0
    %7709 = vmatmul.mubr.f32.gmra.mxu0 %v7537
    %v7710 = vpop.f32.mrf.mxu0
    %v7711 = vadd.f32 %v7516, %v7710
    %v7712 = vpop.f32.mrf.mxu0
    %7713 = vmatprep.mubr.f32.mxu0 0.0
    %7714 = vmatmul.mubr.f32.gmra.mxu0 %v7540
    %v7715 = vpop.f32.mrf.mxu0
    %v7716 = vadd.f32 %v7516, %v7715
    %v7717 = vpop.f32.mrf.mxu0
    %7718 = vmatprep.mubr.f32.mxu0 0.0
    %7719 = vmatmul.mubr.f32.gmra.mxu0 %v7543
    %v7720 = vpop.f32.mrf.mxu0
    %v7721 = vadd.f32 %v7516, %v7720
    %v7722 = vpop.f32.mrf.mxu0
    %7723 = vmatprep.mubr.f32.mxu0 0.0
    %7724 = vmatmul.mubr.f32.gmra.mxu0 %v7546
    %v7725 = vpop.f32.mrf.mxu0
    %v7726 = vadd.f32 %v7516, %v7725
    %v7727 = vpop.f32.mrf.mxu0
    %7728 = vmatprep.mubr.f32.mxu0 0.0
    %7729 = vmatmul.mubr.f32.gmra.mxu0 %v7549
    %v7730 = vpop.f32.mrf.mxu0
    %v7731 = vadd.f32 %v7516, %v7730
    %v7732 = vpop.f32.mrf.mxu0
    %7733 = vmatprep.mubr.f32.mxu0 0.0
    %7734 = vmatmul.mubr.f32.gmra.mxu0 %v7552
    %v7735 = vpop.f32.mrf.mxu0
    %v7736 = vadd.f32 %v7516, %v7735
    %v7737 = vpop.f32.mrf.mxu0
    %7738 = vmatprep.mubr.f32.mxu0 0.0
    %7739 = vmatmul.mubr.f32.gmra.mxu0 %v7555
    %v7740 = vpop.f32.mrf.mxu0
    %v7741 = vadd.f32 %v7516, %v7740
    %v7742 = vpop.f32.mrf.mxu0
    %7743 = vmatprep.mubr.f32.mxu0 0.0
    %7744 = vmatmul.mubr.f32.gmra.mxu0 %v7558
    %v7745 = vpop.f32.mrf.mxu0
    %v7746 = vadd.f32 %v7516, %v7745
    %v7747 = vpop.f32.mrf.mxu0
    %7748 = vmatprep.mubr.f32.mxu0 0.0
    %7749 = vmatmul.mubr.f32.gmra.mxu0 %v7561
    %v7750 = vpop.f32.mrf.mxu0
    %v7751 = vadd.f32 %v7516, %v7750
    %v7752 = vpop.f32.mrf.mxu0
    %7753 = vmatprep.mubr.f32.mxu0 0.0
    %7754 = vmatmul.mubr.f32.gmra.mxu0 %v7564
    %v7755 = vpop.f32.mrf.mxu0
    %v7756 = vadd.f32 %v7516, %v7755
    %v7757 = vpop.f32.mrf.mxu0
    %7758 = vmatprep.mubr.f32.mxu0 0.0
    %7759 = vmatmul.mubr.f32.gmra.mxu0 %v7567
    %v7760 = vpop.f32.mrf.mxu0
    %v7761 = vadd.f32 %v7516, %v7760
    %v7762 = vpop.f32.mrf.mxu0
    %7763 = vmatprep.mubr.f32.mxu0 0.0
    %7764 = vmatmul.mubr.f32.gmra.mxu0 %v7570
    %v7765 = vpop.f32.mrf.mxu0
    %v7766 = vadd.f32 %v7516, %v7765
    %v7767 = vpop.f32.mrf.mxu0
    %7768 = vmatprep.mubr.f32.mxu0 0.0
    %7769 = vmatmul.mubr.f32.gmra.mxu0 %v7573
    %v7770 = vpop.f32.mrf.mxu0
    %v7771 = vadd.f32 %v7516, %v7770
    %v7772 = vpop.f32.mrf.mxu0
    %7773 = vmatprep.mubr.f32.mxu0 0.0
    %7774 = vmatmul.mubr.f32.gmra.mxu0 %v7576
    %v7775 = vpop.f32.mrf.mxu0
    %v7776 = vadd.f32 %v7516, %v7775
    %v7777 = vpop.f32.mrf.mxu0
    %7778 = vmatprep.mubr.f32.mxu0 0.0
    %7779 = vmatmul.mubr.f32.gmra.mxu0 %v7579
    %v7780 = vpop.f32.mrf.mxu0
    %v7781 = vadd.f32 %v7516, %v7780
    %v7782 = vpop.f32.mrf.mxu0
    %7783 = vmatprep.mubr.f32.mxu0 0.0
    %7784 = vmatmul.mubr.f32.gmra.mxu0 %v7582
    %v7785 = vpop.f32.mrf.mxu0
    %v7786 = vadd.f32 %v7516, %v7785
    %v7787 = vpop.f32.mrf.mxu0
    %7788 = vmatprep.mubr.f32.mxu0 0.0
    %7789 = vmatmul.mubr.f32.gmra.mxu0 %v7585
    %v7790 = vpop.f32.mrf.mxu0
    %v7791 = vadd.f32 %v7516, %v7790
    %v7792 = vpop.f32.mrf.mxu0
    %7793 = vmatprep.mubr.f32.mxu0 0.0
    %7794 = vmatmul.mubr.f32.gmra.mxu0 %v7588
    %v7795 = vpop.f32.mrf.mxu0
    %v7796 = vadd.f32 %v7516, %v7795
    %v7797 = vpop.f32.mrf.mxu0
    %7798 = vmatprep.mubr.f32.mxu0 0.0
    %7799 = vmatmul.mubr.f32.gmra.mxu0 %v7591
    %v7800 = vpop.f32.mrf.mxu0
    %v7801 = vadd.f32 %v7516, %v7800
    %v7802 = vpop.f32.mrf.mxu0
    %7803 = vmatprep.mubr.f32.mxu0 0.0
    %7804 = vmatmul.mubr.f32.gmra.mxu0 %v7594
    %v7805 = vpop.f32.mrf.mxu0
    %v7806 = vadd.f32 %v7516, %v7805
    %v7807 = vpop.f32.mrf.mxu0
    %7808 = vmatprep.mubr.f32.mxu0 0.0
    %7809 = vmatmul.mubr.f32.gmra.mxu0 %v7597
    %v7810 = vpop.f32.mrf.mxu0
    %v7811 = vadd.f32 %v7516, %v7810
    %v7812 = vpop.f32.mrf.mxu0
    %7813 = vmatprep.mubr.f32.mxu0 0.0
    %7814 = vmatmul.mubr.f32.gmra.mxu0 %v7600
    %v7815 = vpop.f32.mrf.mxu0
    %v7816 = vadd.f32 %v7516, %v7815
    %v7817 = vpop.f32.mrf.mxu0
    %7818 = vmatprep.mubr.f32.mxu0 0.0
    %7819 = vmatmul.mubr.f32.gmra.mxu0 %v7603
    %v7820 = vpop.f32.mrf.mxu0
    %v7821 = vadd.f32 %v7516, %v7820
    %v7822 = vpop.f32.mrf.mxu0
    %7823 = vmatprep.mubr.f32.mxu0 0.0
    %7824 = vmatmul.mubr.f32.gmra.mxu0 %v7606
    %v7825 = vpop.f32.mrf.mxu0
    %v7826 = vadd.f32 %v7516, %v7825
    %v7827 = vpop.f32.mrf.mxu0
    %7828 = vmatprep.mubr.f32.mxu0 0.0
    %7829 = vmatmul.mubr.f32.gmra.mxu0 %v7609
    %v7830 = vpop.f32.mrf.mxu0
    %v7831 = vadd.f32 %v7516, %v7830
    %v7832 = vpop.f32.mrf.mxu0
    %7833 = vmatprep.mubr.f32.mxu0 0.0
    %7834 = vmatmul.mubr.f32.gmra.mxu0 %v7612
    %v7835 = vpop.f32.mrf.mxu0
    %v7836 = vadd.f32 %v7516, %v7835
    %v7837 = vpop.f32.mrf.mxu0
    %7838 = vdwg.mxu0
    %vm7839 = vcmp.gt.f32.partialorder %v7681, 0.0
    %vm7840 = vcmp.gt.f32.partialorder %v7686, 0.0
    %vm7841 = vcmp.gt.f32.partialorder %v7691, 0.0
    %vm7842 = vcmp.gt.f32.partialorder %v7696, 0.0
    %vm7843 = vcmp.gt.f32.partialorder %v7701, 0.0
    %vm7844 = vcmp.gt.f32.partialorder %v7706, 0.0
    %vm7845 = vcmp.gt.f32.partialorder %v7711, 0.0
    %vm7846 = vcmp.gt.f32.partialorder %v7716, 0.0
    %vm7847 = vcmp.gt.f32.partialorder %v7721, 0.0
    %vm7848 = vcmp.gt.f32.partialorder %v7726, 0.0
    %vm7849 = vcmp.gt.f32.partialorder %v7731, 0.0
    %vm7850 = vcmp.gt.f32.partialorder %v7736, 0.0
    %vm7851 = vcmp.gt.f32.partialorder %v7741, 0.0
    %vm7852 = vcmp.gt.f32.partialorder %v7746, 0.0
    %vm7853 = vcmp.gt.f32.partialorder %v7751, 0.0
    %vm7854 = vcmp.gt.f32.partialorder %v7756, 0.0
    %vm7855 = vcmp.gt.f32.partialorder %v7761, 0.0
    %vm7856 = vcmp.gt.f32.partialorder %v7766, 0.0
    %vm7857 = vcmp.gt.f32.partialorder %v7771, 0.0
    %vm7858 = vcmp.gt.f32.partialorder %v7776, 0.0
    %vm7859 = vcmp.gt.f32.partialorder %v7781, 0.0
    %vm7860 = vcmp.gt.f32.partialorder %v7786, 0.0
    %vm7861 = vcmp.gt.f32.partialorder %v7791, 0.0
    %vm7862 = vcmp.gt.f32.partialorder %v7796, 0.0
    %vm7863 = vcmp.gt.f32.partialorder %v7801, 0.0
    %vm7864 = vcmp.gt.f32.partialorder %v7806, 0.0
    %vm7865 = vcmp.gt.f32.partialorder %v7811, 0.0
    %vm7866 = vcmp.gt.f32.partialorder %v7816, 0.0
    %vm7867 = vcmp.gt.f32.partialorder %v7821, 0.0
    %vm7868 = vcmp.gt.f32.partialorder %v7826, 0.0
    %vm7869 = vcmp.gt.f32.partialorder %v7831, 0.0
    %vm7870 = vcmp.gt.f32.partialorder %v7836, 0.0
    %v7871 = vmul.f32 %v7681, 0.01
    %v7872 = vmul.f32 %v7686, 0.01
    %v7873 = vmul.f32 %v7691, 0.01
    %v7874 = vmul.f32 %v7696, 0.01
    %v7875 = vmul.f32 %v7701, 0.01
    %v7876 = vmul.f32 %v7706, 0.01
    %v7877 = vmul.f32 %v7711, 0.01
    %v7878 = vmul.f32 %v7716, 0.01
    %v7879 = vmul.f32 %v7721, 0.01
    %v7880 = vmul.f32 %v7726, 0.01
    %v7881 = vmul.f32 %v7731, 0.01
    %v7882 = vmul.f32 %v7736, 0.01
    %v7883 = vmul.f32 %v7741, 0.01
    %v7884 = vmul.f32 %v7746, 0.01
    %v7885 = vmul.f32 %v7751, 0.01
    %v7886 = vmul.f32 %v7756, 0.01
    %v7887 = vmul.f32 %v7761, 0.01
    %v7888 = vmul.f32 %v7766, 0.01
    %v7889 = vmul.f32 %v7771, 0.01
    %v7890 = vmul.f32 %v7776, 0.01
    %v7891 = vmul.f32 %v7781, 0.01
    %v7892 = vmul.f32 %v7786, 0.01
    %v7893 = vmul.f32 %v7791, 0.01
    %v7894 = vmul.f32 %v7796, 0.01
    %v7895 = vmul.f32 %v7801, 0.01
    %v7896 = vmul.f32 %v7806, 0.01
    %v7897 = vmul.f32 %v7811, 0.01
    %v7898 = vmul.f32 %v7816, 0.01
    %v7899 = vmul.f32 %v7821, 0.01
    %v7900 = vmul.f32 %v7826, 0.01
    %v7901 = vmul.f32 %v7831, 0.01
    %v7902 = vmul.f32 %v7836, 0.01
    %v7903 = vsel %vm7839, %v7681, %v7871
    %v7904 = vsel %vm7840, %v7686, %v7872
    %v7905 = vsel %vm7841, %v7691, %v7873
    %v7906 = vsel %vm7842, %v7696, %v7874
    %v7907 = vsel %vm7843, %v7701, %v7875
    %v7908 = vsel %vm7844, %v7706, %v7876
    %v7909 = vsel %vm7845, %v7711, %v7877
    %v7910 = vsel %vm7846, %v7716, %v7878
    %v7911 = vsel %vm7847, %v7721, %v7879
    %v7912 = vsel %vm7848, %v7726, %v7880
    %v7913 = vsel %vm7849, %v7731, %v7881
    %v7914 = vsel %vm7850, %v7736, %v7882
    %v7915 = vsel %vm7851, %v7741, %v7883
    %v7916 = vsel %vm7852, %v7746, %v7884
    %v7917 = vsel %vm7853, %v7751, %v7885
    %v7918 = vsel %vm7854, %v7756, %v7886
    %v7919 = vsel %vm7855, %v7761, %v7887
    %v7920 = vsel %vm7856, %v7766, %v7888
    %v7921 = vsel %vm7857, %v7771, %v7889
    %v7922 = vsel %vm7858, %v7776, %v7890
    %v7923 = vsel %vm7859, %v7781, %v7891
    %v7924 = vsel %vm7860, %v7786, %v7892
    %v7925 = vsel %vm7861, %v7791, %v7893
    %v7926 = vsel %vm7862, %v7796, %v7894
    %v7927 = vsel %vm7863, %v7801, %v7895
    %v7928 = vsel %vm7864, %v7806, %v7896
    %v7929 = vsel %vm7865, %v7811, %v7897
    %v7930 = vsel %vm7866, %v7816, %v7898
    %v7931 = vsel %vm7867, %v7821, %v7899
    %v7932 = vsel %vm7868, %v7826, %v7900
    %v7933 = vsel %vm7869, %v7831, %v7901
    %v7934 = vsel %vm7870, %v7836, %v7902
    %v7935 = vld [vmem:[%s6] sm:$0xff]
    %v7936 = vld [vmem:[%s6 + $0x8] sm:$0xff]
    %v7937 = vld [vmem:[%s6 + $0x10] sm:$0xff]
    %v7938 = vld [vmem:[%s6 + $0x18] sm:$0xff]
    %v7939 = vld [vmem:[%s7] sm:$0x1]
    %v7941 = vlaneseq
    %v7942 = vshrl.u32 %v7941, 7
    %v7943 = vsub.s32 0, %v7942
    %v7944 = vrot.slane %v7939, %v7943
    %v7947 = vsel %vm551, %v7903, 0
    %v7950 = vsel %vm551, %v7904, 0
    %v7953 = vsel %vm551, %v7905, 0
    %v7956 = vsel %vm551, %v7906, 0
    %v7959 = vsel %vm551, %v7907, 0
    %v7962 = vsel %vm551, %v7908, 0
    %v7965 = vsel %vm551, %v7909, 0
    %v7968 = vsel %vm551, %v7910, 0
    %v7971 = vsel %vm551, %v7911, 0
    %v7974 = vsel %vm551, %v7912, 0
    %v7977 = vsel %vm551, %v7913, 0
    %v7980 = vsel %vm551, %v7914, 0
    %v7983 = vsel %vm551, %v7915, 0
    %v7986 = vsel %vm551, %v7916, 0
    %v7989 = vsel %vm551, %v7917, 0
    %v7992 = vsel %vm551, %v7918, 0
    %v7995 = vsel %vm551, %v7919, 0
    %v7998 = vsel %vm551, %v7920, 0
    %v8001 = vsel %vm551, %v7921, 0
    %v8004 = vsel %vm551, %v7922, 0
    %v8007 = vsel %vm551, %v7923, 0
    %v8010 = vsel %vm551, %v7924, 0
    %v8013 = vsel %vm551, %v7925, 0
    %v8016 = vsel %vm551, %v7926, 0
    %v8019 = vsel %vm551, %v7927, 0
    %v8022 = vsel %vm551, %v7928, 0
    %v8025 = vsel %vm551, %v7929, 0
    %v8028 = vsel %vm551, %v7930, 0
    %v8031 = vsel %vm551, %v7931, 0
    %v8034 = vsel %vm551, %v7932, 0
    %v8037 = vsel %vm551, %v7933, 0
    %v8040 = vsel %vm551, %v7934, 0
    %8042 = vmatprep.subr.mxu0 0.0
    %8043 = vmatpush1.msra.mxu0 0.0
    %8044 = vmatprep.subr.mxu0 0.0
    %8045 = vmatpush1.msra.mxu0 0.0
    %8046 = vmatprep.subr.mxu0 0.0
    %8047 = vmatpush1.msra.mxu0 0.0
    %8048 = vmatprep.subr.mxu0 0.0
    %8049 = vmatpush1.msra.mxu0 0.0
    %8050 = vmatprep.subr.mxu0 0.0
    %8051 = vmatpush1.msra.mxu0 0.0
    %8052 = vmatprep.subr.mxu0 0.0
    %8053 = vmatpush1.msra.mxu0 0.0
    %8054 = vmatprep.subr.mxu0 0.0
    %8055 = vmatpush1.msra.mxu0 0.0
    %8056 = vmatprep.subr.mxu0 0.0
    %8057 = vmatpush1.msra.mxu0 0.0
    %8058 = vmatprep.subr.mxu0 0.0
    %8059 = vmatpush1.msra.mxu0 0.0
    %8060 = vmatprep.subr.mxu0 0.0
    %8061 = vmatpush1.msra.mxu0 0.0
    %8062 = vmatprep.subr.mxu0 0.0
    %8063 = vmatpush1.msra.mxu0 0.0
    %8064 = vmatprep.subr.mxu0 0.0
    %8065 = vmatpush1.msra.mxu0 0.0
    %8066 = vmatprep.subr.mxu0 0.0
    %8067 = vmatpush1.msra.mxu0 %v7938
    %8068 = vmatprep.subr.mxu0 0.0
    %8069 = vmatpush1.msra.mxu0 %v7937
    %8070 = vmatprep.subr.mxu0 0.0
    %8071 = vmatpush1.msra.mxu0 %v7936
    %8072 = vmatprep.subr.mxu0 0.0
    %8073 = vmatpush1.msra.mxu0 %v7935
    %8074 = vmatprep.subr.mxu0 0.0
    %8075 = vmatpush2.msra.mxu0 0.0
    %8076 = vmatprep.subr.mxu0 0.0
    %8077 = vmatpush2.msra.mxu0 0.0
    %8078 = vmatprep.subr.mxu0 0.0
    %8079 = vmatpush2.msra.mxu0 0.0
    %8080 = vmatprep.subr.mxu0 0.0
    %8081 = vmatpush2.msra.mxu0 0.0
    %8082 = vmatprep.subr.mxu0 0.0
    %8083 = vmatpush2.msra.mxu0 0.0
    %8084 = vmatprep.subr.mxu0 0.0
    %8085 = vmatpush2.msra.mxu0 0.0
    %8086 = vmatprep.subr.mxu0 0.0
    %8087 = vmatpush2.msra.mxu0 0.0
    %8088 = vmatprep.subr.mxu0 0.0
    %8089 = vmatpush2.msra.mxu0 0.0
    %8090 = vmatprep.subr.mxu0 0.0
    %8091 = vmatpush2.msra.mxu0 0.0
    %8092 = vmatprep.subr.mxu0 0.0
    %8093 = vmatpush2.msra.mxu0 0.0
    %8094 = vmatprep.subr.mxu0 0.0
    %8095 = vmatpush2.msra.mxu0 0.0
    %8096 = vmatprep.subr.mxu0 0.0
    %8097 = vmatpush2.msra.mxu0 0.0
    %8098 = vmatprep.subr.mxu0 0.0
    %8099 = vmatpush2.msra.mxu0 0.0
    %8100 = vmatprep.subr.mxu0 0.0
    %8101 = vmatpush2.msra.mxu0 0.0
    %8102 = vmatprep.subr.mxu0 0.0
    %8103 = vmatpush2.msra.mxu0 0.0
    %8104 = vmatprep.subr.mxu0 0.0
    %8105 = vmatpush2.msra.mxu0 0.0
    %8106 = vmatprep.mubr.f32.mxu0 0.0
    %8107 = vmatmul.mubr.f32.gmra.mxu0 %v7947
    %v8108 = vpop.f32.mrf.mxu0
    %v8109 = vadd.f32 %v7944, %v8108
    %v8110 = vpop.f32.mrf.mxu0
    %8111 = vmatprep.mubr.f32.mxu0 0.0
    %8112 = vmatmul.mubr.f32.gmra.mxu0 %v7950
    %v8113 = vpop.f32.mrf.mxu0
    %v8114 = vadd.f32 %v7944, %v8113
    %v8115 = vpop.f32.mrf.mxu0
    %8116 = vmatprep.mubr.f32.mxu0 0.0
    %8117 = vmatmul.mubr.f32.gmra.mxu0 %v7953
    %v8118 = vpop.f32.mrf.mxu0
    %v8119 = vadd.f32 %v7944, %v8118
    %v8120 = vpop.f32.mrf.mxu0
    %8121 = vmatprep.mubr.f32.mxu0 0.0
    %8122 = vmatmul.mubr.f32.gmra.mxu0 %v7956
    %v8123 = vpop.f32.mrf.mxu0
    %v8124 = vadd.f32 %v7944, %v8123
    %v8125 = vpop.f32.mrf.mxu0
    %8126 = vmatprep.mubr.f32.mxu0 0.0
    %8127 = vmatmul.mubr.f32.gmra.mxu0 %v7959
    %v8128 = vpop.f32.mrf.mxu0
    %v8129 = vadd.f32 %v7944, %v8128
    %v8130 = vpop.f32.mrf.mxu0
    %8131 = vmatprep.mubr.f32.mxu0 0.0
    %8132 = vmatmul.mubr.f32.gmra.mxu0 %v7962
    %v8133 = vpop.f32.mrf.mxu0
    %v8134 = vadd.f32 %v7944, %v8133
    %v8135 = vpop.f32.mrf.mxu0
    %8136 = vmatprep.mubr.f32.mxu0 0.0
    %8137 = vmatmul.mubr.f32.gmra.mxu0 %v7965
    %v8138 = vpop.f32.mrf.mxu0
    %v8139 = vadd.f32 %v7944, %v8138
    %v8140 = vpop.f32.mrf.mxu0
    %8141 = vmatprep.mubr.f32.mxu0 0.0
    %8142 = vmatmul.mubr.f32.gmra.mxu0 %v7968
    %v8143 = vpop.f32.mrf.mxu0
    %v8144 = vadd.f32 %v7944, %v8143
    %v8145 = vpop.f32.mrf.mxu0
    %8146 = vmatprep.mubr.f32.mxu0 0.0
    %8147 = vmatmul.mubr.f32.gmra.mxu0 %v7971
    %v8148 = vpop.f32.mrf.mxu0
    %v8149 = vadd.f32 %v7944, %v8148
    %v8150 = vpop.f32.mrf.mxu0
    %8151 = vmatprep.mubr.f32.mxu0 0.0
    %8152 = vmatmul.mubr.f32.gmra.mxu0 %v7974
    %v8153 = vpop.f32.mrf.mxu0
    %v8154 = vadd.f32 %v7944, %v8153
    %v8155 = vpop.f32.mrf.mxu0
    %8156 = vmatprep.mubr.f32.mxu0 0.0
    %8157 = vmatmul.mubr.f32.gmra.mxu0 %v7977
    %v8158 = vpop.f32.mrf.mxu0
    %v8159 = vadd.f32 %v7944, %v8158
    %v8160 = vpop.f32.mrf.mxu0
    %8161 = vmatprep.mubr.f32.mxu0 0.0
    %8162 = vmatmul.mubr.f32.gmra.mxu0 %v7980
    %v8163 = vpop.f32.mrf.mxu0
    %v8164 = vadd.f32 %v7944, %v8163
    %v8165 = vpop.f32.mrf.mxu0
    %8166 = vmatprep.mubr.f32.mxu0 0.0
    %8167 = vmatmul.mubr.f32.gmra.mxu0 %v7983
    %v8168 = vpop.f32.mrf.mxu0
    %v8169 = vadd.f32 %v7944, %v8168
    %v8170 = vpop.f32.mrf.mxu0
    %8171 = vmatprep.mubr.f32.mxu0 0.0
    %8172 = vmatmul.mubr.f32.gmra.mxu0 %v7986
    %v8173 = vpop.f32.mrf.mxu0
    %v8174 = vadd.f32 %v7944, %v8173
    %v8175 = vpop.f32.mrf.mxu0
    %8176 = vmatprep.mubr.f32.mxu0 0.0
    %8177 = vmatmul.mubr.f32.gmra.mxu0 %v7989
    %v8178 = vpop.f32.mrf.mxu0
    %v8179 = vadd.f32 %v7944, %v8178
    %v8180 = vpop.f32.mrf.mxu0
    %8181 = vmatprep.mubr.f32.mxu0 0.0
    %8182 = vmatmul.mubr.f32.gmra.mxu0 %v7992
    %v8183 = vpop.f32.mrf.mxu0
    %v8184 = vadd.f32 %v7944, %v8183
    %v8185 = vpop.f32.mrf.mxu0
    %8186 = vmatprep.mubr.f32.mxu0 0.0
    %8187 = vmatmul.mubr.f32.gmra.mxu0 %v7995
    %v8188 = vpop.f32.mrf.mxu0
    %v8189 = vadd.f32 %v7944, %v8188
    %v8190 = vpop.f32.mrf.mxu0
    %8191 = vmatprep.mubr.f32.mxu0 0.0
    %8192 = vmatmul.mubr.f32.gmra.mxu0 %v7998
    %v8193 = vpop.f32.mrf.mxu0
    %v8194 = vadd.f32 %v7944, %v8193
    %v8195 = vpop.f32.mrf.mxu0
    %8196 = vmatprep.mubr.f32.mxu0 0.0
    %8197 = vmatmul.mubr.f32.gmra.mxu0 %v8001
    %v8198 = vpop.f32.mrf.mxu0
    %v8199 = vadd.f32 %v7944, %v8198
    %v8200 = vpop.f32.mrf.mxu0
    %8201 = vmatprep.mubr.f32.mxu0 0.0
    %8202 = vmatmul.mubr.f32.gmra.mxu0 %v8004
    %v8203 = vpop.f32.mrf.mxu0
    %v8204 = vadd.f32 %v7944, %v8203
    %v8205 = vpop.f32.mrf.mxu0
    %8206 = vmatprep.mubr.f32.mxu0 0.0
    %8207 = vmatmul.mubr.f32.gmra.mxu0 %v8007
    %v8208 = vpop.f32.mrf.mxu0
    %v8209 = vadd.f32 %v7944, %v8208
    %v8210 = vpop.f32.mrf.mxu0
    %8211 = vmatprep.mubr.f32.mxu0 0.0
    %8212 = vmatmul.mubr.f32.gmra.mxu0 %v8010
    %v8213 = vpop.f32.mrf.mxu0
    %v8214 = vadd.f32 %v7944, %v8213
    %v8215 = vpop.f32.mrf.mxu0
    %8216 = vmatprep.mubr.f32.mxu0 0.0
    %8217 = vmatmul.mubr.f32.gmra.mxu0 %v8013
    %v8218 = vpop.f32.mrf.mxu0
    %v8219 = vadd.f32 %v7944, %v8218
    %v8220 = vpop.f32.mrf.mxu0
    %8221 = vmatprep.mubr.f32.mxu0 0.0
    %8222 = vmatmul.mubr.f32.gmra.mxu0 %v8016
    %v8223 = vpop.f32.mrf.mxu0
    %v8224 = vadd.f32 %v7944, %v8223
    %v8225 = vpop.f32.mrf.mxu0
    %8226 = vmatprep.mubr.f32.mxu0 0.0
    %8227 = vmatmul.mubr.f32.gmra.mxu0 %v8019
    %v8228 = vpop.f32.mrf.mxu0
    %v8229 = vadd.f32 %v7944, %v8228
    %v8230 = vpop.f32.mrf.mxu0
    %8231 = vmatprep.mubr.f32.mxu0 0.0
    %8232 = vmatmul.mubr.f32.gmra.mxu0 %v8022
    %v8233 = vpop.f32.mrf.mxu0
    %v8234 = vadd.f32 %v7944, %v8233
    %v8235 = vpop.f32.mrf.mxu0
    %8236 = vmatprep.mubr.f32.mxu0 0.0
    %8237 = vmatmul.mubr.f32.gmra.mxu0 %v8025
    %v8238 = vpop.f32.mrf.mxu0
    %v8239 = vadd.f32 %v7944, %v8238
    %v8240 = vpop.f32.mrf.mxu0
    %8241 = vmatprep.mubr.f32.mxu0 0.0
    %8242 = vmatmul.mubr.f32.gmra.mxu0 %v8028
    %v8243 = vpop.f32.mrf.mxu0
    %v8244 = vadd.f32 %v7944, %v8243
    %v8245 = vpop.f32.mrf.mxu0
    %8246 = vmatprep.mubr.f32.mxu0 0.0
    %8247 = vmatmul.mubr.f32.gmra.mxu0 %v8031
    %v8248 = vpop.f32.mrf.mxu0
    %v8249 = vadd.f32 %v7944, %v8248
    %v8250 = vpop.f32.mrf.mxu0
    %8251 = vmatprep.mubr.f32.mxu0 0.0
    %8252 = vmatmul.mubr.f32.gmra.mxu0 %v8034
    %v8253 = vpop.f32.mrf.mxu0
    %v8254 = vadd.f32 %v7944, %v8253
    %v8255 = vpop.f32.mrf.mxu0
    %8256 = vmatprep.mubr.f32.mxu0 0.0
    %8257 = vmatmul.mubr.f32.gmra.mxu0 %v8037
    %v8258 = vpop.f32.mrf.mxu0
    %v8259 = vadd.f32 %v7944, %v8258
    %v8260 = vpop.f32.mrf.mxu0
    %8261 = vmatprep.mubr.f32.mxu0 0.0
    %8262 = vmatmul.mubr.f32.gmra.mxu0 %v8040
    %v8263 = vpop.f32.mrf.mxu0
    %v8264 = vadd.f32 %v7944, %v8263
    %v8265 = vpop.f32.mrf.mxu0
    %8266 = vdwg.mxu0
    %v8267 = vld [vmem:[%s8] sm:$0xff]
    %v8268 = vld [vmem:[%s8 + $0x8] sm:$0xff]
    %v8269 = vld [vmem:[%s8 + $0x10] sm:$0xff]
    %v8270 = vld [vmem:[%s8 + $0x18] sm:$0xff]
    %v8271 = vld [vmem:[%s9] sm:$0x1]
    %v8273 = vlaneseq
    %v8274 = vshrl.u32 %v8273, 7
    %v8275 = vsub.s32 0, %v8274
    %v8276 = vrot.slane %v8271, %v8275
    %8278 = vmatprep.subr.mxu0 0.0
    %8279 = vmatpush1.msra.mxu0 0.0
    %8280 = vmatprep.subr.mxu0 0.0
    %8281 = vmatpush1.msra.mxu0 0.0
    %8282 = vmatprep.subr.mxu0 0.0
    %8283 = vmatpush1.msra.mxu0 0.0
    %8284 = vmatprep.subr.mxu0 0.0
    %8285 = vmatpush1.msra.mxu0 0.0
    %8286 = vmatprep.subr.mxu0 0.0
    %8287 = vmatpush1.msra.mxu0 0.0
    %8288 = vmatprep.subr.mxu0 0.0
    %8289 = vmatpush1.msra.mxu0 0.0
    %8290 = vmatprep.subr.mxu0 0.0
    %8291 = vmatpush1.msra.mxu0 0.0
    %8292 = vmatprep.subr.mxu0 0.0
    %8293 = vmatpush1.msra.mxu0 0.0
    %8294 = vmatprep.subr.mxu0 0.0
    %8295 = vmatpush1.msra.mxu0 0.0
    %8296 = vmatprep.subr.mxu0 0.0
    %8297 = vmatpush1.msra.mxu0 0.0
    %8298 = vmatprep.subr.mxu0 0.0
    %8299 = vmatpush1.msra.mxu0 0.0
    %8300 = vmatprep.subr.mxu0 0.0
    %8301 = vmatpush1.msra.mxu0 0.0
    %8302 = vmatprep.subr.mxu0 0.0
    %8303 = vmatpush1.msra.mxu0 %v8270
    %8304 = vmatprep.subr.mxu0 0.0
    %8305 = vmatpush1.msra.mxu0 %v8269
    %8306 = vmatprep.subr.mxu0 0.0
    %8307 = vmatpush1.msra.mxu0 %v8268
    %8308 = vmatprep.subr.mxu0 0.0
    %8309 = vmatpush1.msra.mxu0 %v8267
    %8310 = vmatprep.subr.mxu0 0.0
    %8311 = vmatpush2.msra.mxu0 0.0
    %8312 = vmatprep.subr.mxu0 0.0
    %8313 = vmatpush2.msra.mxu0 0.0
    %8314 = vmatprep.subr.mxu0 0.0
    %8315 = vmatpush2.msra.mxu0 0.0
    %8316 = vmatprep.subr.mxu0 0.0
    %8317 = vmatpush2.msra.mxu0 0.0
    %8318 = vmatprep.subr.mxu0 0.0
    %8319 = vmatpush2.msra.mxu0 0.0
    %8320 = vmatprep.subr.mxu0 0.0
    %8321 = vmatpush2.msra.mxu0 0.0
    %8322 = vmatprep.subr.mxu0 0.0
    %8323 = vmatpush2.msra.mxu0 0.0
    %8324 = vmatprep.subr.mxu0 0.0
    %8325 = vmatpush2.msra.mxu0 0.0
    %8326 = vmatprep.subr.mxu0 0.0
    %8327 = vmatpush2.msra.mxu0 0.0
    %8328 = vmatprep.subr.mxu0 0.0
    %8329 = vmatpush2.msra.mxu0 0.0
    %8330 = vmatprep.subr.mxu0 0.0
    %8331 = vmatpush2.msra.mxu0 0.0
    %8332 = vmatprep.subr.mxu0 0.0
    %8333 = vmatpush2.msra.mxu0 0.0
    %8334 = vmatprep.subr.mxu0 0.0
    %8335 = vmatpush2.msra.mxu0 0.0
    %8336 = vmatprep.subr.mxu0 0.0
    %8337 = vmatpush2.msra.mxu0 0.0
    %8338 = vmatprep.subr.mxu0 0.0
    %8339 = vmatpush2.msra.mxu0 0.0
    %8340 = vmatprep.subr.mxu0 0.0
    %8341 = vmatpush2.msra.mxu0 0.0
    %8342 = vmatprep.mubr.f32.mxu0 0.0
    %8343 = vmatmul.mubr.f32.gmra.mxu0 %v7947
    %v8344 = vpop.f32.mrf.mxu0
    %v8345 = vadd.f32 %v8276, %v8344
    %v8346 = vpop.f32.mrf.mxu0
    %8347 = vmatprep.mubr.f32.mxu0 0.0
    %8348 = vmatmul.mubr.f32.gmra.mxu0 %v7950
    %v8349 = vpop.f32.mrf.mxu0
    %v8350 = vadd.f32 %v8276, %v8349
    %v8351 = vpop.f32.mrf.mxu0
    %8352 = vmatprep.mubr.f32.mxu0 0.0
    %8353 = vmatmul.mubr.f32.gmra.mxu0 %v7953
    %v8354 = vpop.f32.mrf.mxu0
    %v8355 = vadd.f32 %v8276, %v8354
    %v8356 = vpop.f32.mrf.mxu0
    %8357 = vmatprep.mubr.f32.mxu0 0.0
    %8358 = vmatmul.mubr.f32.gmra.mxu0 %v7956
    %v8359 = vpop.f32.mrf.mxu0
    %v8360 = vadd.f32 %v8276, %v8359
    %v8361 = vpop.f32.mrf.mxu0
    %8362 = vmatprep.mubr.f32.mxu0 0.0
    %8363 = vmatmul.mubr.f32.gmra.mxu0 %v7959
    %v8364 = vpop.f32.mrf.mxu0
    %v8365 = vadd.f32 %v8276, %v8364
    %v8366 = vpop.f32.mrf.mxu0
    %8367 = vmatprep.mubr.f32.mxu0 0.0
    %8368 = vmatmul.mubr.f32.gmra.mxu0 %v7962
    %v8369 = vpop.f32.mrf.mxu0
    %v8370 = vadd.f32 %v8276, %v8369
    %v8371 = vpop.f32.mrf.mxu0
    %8372 = vmatprep.mubr.f32.mxu0 0.0
    %8373 = vmatmul.mubr.f32.gmra.mxu0 %v7965
    %v8374 = vpop.f32.mrf.mxu0
    %v8375 = vadd.f32 %v8276, %v8374
    %v8376 = vpop.f32.mrf.mxu0
    %8377 = vmatprep.mubr.f32.mxu0 0.0
    %8378 = vmatmul.mubr.f32.gmra.mxu0 %v7968
    %v8379 = vpop.f32.mrf.mxu0
    %v8380 = vadd.f32 %v8276, %v8379
    %v8381 = vpop.f32.mrf.mxu0
    %8382 = vmatprep.mubr.f32.mxu0 0.0
    %8383 = vmatmul.mubr.f32.gmra.mxu0 %v7971
    %v8384 = vpop.f32.mrf.mxu0
    %v8385 = vadd.f32 %v8276, %v8384
    %v8386 = vpop.f32.mrf.mxu0
    %8387 = vmatprep.mubr.f32.mxu0 0.0
    %8388 = vmatmul.mubr.f32.gmra.mxu0 %v7974
    %v8389 = vpop.f32.mrf.mxu0
    %v8390 = vadd.f32 %v8276, %v8389
    %v8391 = vpop.f32.mrf.mxu0
    %8392 = vmatprep.mubr.f32.mxu0 0.0
    %8393 = vmatmul.mubr.f32.gmra.mxu0 %v7977
    %v8394 = vpop.f32.mrf.mxu0
    %v8395 = vadd.f32 %v8276, %v8394
    %v8396 = vpop.f32.mrf.mxu0
    %8397 = vmatprep.mubr.f32.mxu0 0.0
    %8398 = vmatmul.mubr.f32.gmra.mxu0 %v7980
    %v8399 = vpop.f32.mrf.mxu0
    %v8400 = vadd.f32 %v8276, %v8399
    %v8401 = vpop.f32.mrf.mxu0
    %8402 = vmatprep.mubr.f32.mxu0 0.0
    %8403 = vmatmul.mubr.f32.gmra.mxu0 %v7983
    %v8404 = vpop.f32.mrf.mxu0
    %v8405 = vadd.f32 %v8276, %v8404
    %v8406 = vpop.f32.mrf.mxu0
    %8407 = vmatprep.mubr.f32.mxu0 0.0
    %8408 = vmatmul.mubr.f32.gmra.mxu0 %v7986
    %v8409 = vpop.f32.mrf.mxu0
    %v8410 = vadd.f32 %v8276, %v8409
    %v8411 = vpop.f32.mrf.mxu0
    %8412 = vmatprep.mubr.f32.mxu0 0.0
    %8413 = vmatmul.mubr.f32.gmra.mxu0 %v7989
    %v8414 = vpop.f32.mrf.mxu0
    %v8415 = vadd.f32 %v8276, %v8414
    %v8416 = vpop.f32.mrf.mxu0
    %8417 = vmatprep.mubr.f32.mxu0 0.0
    %8418 = vmatmul.mubr.f32.gmra.mxu0 %v7992
    %v8419 = vpop.f32.mrf.mxu0
    %v8420 = vadd.f32 %v8276, %v8419
    %v8421 = vpop.f32.mrf.mxu0
    %8422 = vmatprep.mubr.f32.mxu0 0.0
    %8423 = vmatmul.mubr.f32.gmra.mxu0 %v7995
    %v8424 = vpop.f32.mrf.mxu0
    %v8425 = vadd.f32 %v8276, %v8424
    %v8426 = vpop.f32.mrf.mxu0
    %8427 = vmatprep.mubr.f32.mxu0 0.0
    %8428 = vmatmul.mubr.f32.gmra.mxu0 %v7998
    %v8429 = vpop.f32.mrf.mxu0
    %v8430 = vadd.f32 %v8276, %v8429
    %v8431 = vpop.f32.mrf.mxu0
    %8432 = vmatprep.mubr.f32.mxu0 0.0
    %8433 = vmatmul.mubr.f32.gmra.mxu0 %v8001
    %v8434 = vpop.f32.mrf.mxu0
    %v8435 = vadd.f32 %v8276, %v8434
    %v8436 = vpop.f32.mrf.mxu0
    %8437 = vmatprep.mubr.f32.mxu0 0.0
    %8438 = vmatmul.mubr.f32.gmra.mxu0 %v8004
    %v8439 = vpop.f32.mrf.mxu0
    %v8440 = vadd.f32 %v8276, %v8439
    %v8441 = vpop.f32.mrf.mxu0
    %8442 = vmatprep.mubr.f32.mxu0 0.0
    %8443 = vmatmul.mubr.f32.gmra.mxu0 %v8007
    %v8444 = vpop.f32.mrf.mxu0
    %v8445 = vadd.f32 %v8276, %v8444
    %v8446 = vpop.f32.mrf.mxu0
    %8447 = vmatprep.mubr.f32.mxu0 0.0
    %8448 = vmatmul.mubr.f32.gmra.mxu0 %v8010
    %v8449 = vpop.f32.mrf.mxu0
    %v8450 = vadd.f32 %v8276, %v8449
    %v8451 = vpop.f32.mrf.mxu0
    %8452 = vmatprep.mubr.f32.mxu0 0.0
    %8453 = vmatmul.mubr.f32.gmra.mxu0 %v8013
    %v8454 = vpop.f32.mrf.mxu0
    %v8455 = vadd.f32 %v8276, %v8454
    %v8456 = vpop.f32.mrf.mxu0
    %8457 = vmatprep.mubr.f32.mxu0 0.0
    %8458 = vmatmul.mubr.f32.gmra.mxu0 %v8016
    %v8459 = vpop.f32.mrf.mxu0
    %v8460 = vadd.f32 %v8276, %v8459
    %v8461 = vpop.f32.mrf.mxu0
    %8462 = vmatprep.mubr.f32.mxu0 0.0
    %8463 = vmatmul.mubr.f32.gmra.mxu0 %v8019
    %v8464 = vpop.f32.mrf.mxu0
    %v8465 = vadd.f32 %v8276, %v8464
    %v8466 = vpop.f32.mrf.mxu0
    %8467 = vmatprep.mubr.f32.mxu0 0.0
    %8468 = vmatmul.mubr.f32.gmra.mxu0 %v8022
    %v8469 = vpop.f32.mrf.mxu0
    %v8470 = vadd.f32 %v8276, %v8469
    %v8471 = vpop.f32.mrf.mxu0
    %8472 = vmatprep.mubr.f32.mxu0 0.0
    %8473 = vmatmul.mubr.f32.gmra.mxu0 %v8025
    %v8474 = vpop.f32.mrf.mxu0
    %v8475 = vadd.f32 %v8276, %v8474
    %v8476 = vpop.f32.mrf.mxu0
    %8477 = vmatprep.mubr.f32.mxu0 0.0
    %8478 = vmatmul.mubr.f32.gmra.mxu0 %v8028
    %v8479 = vpop.f32.mrf.mxu0
    %v8480 = vadd.f32 %v8276, %v8479
    %v8481 = vpop.f32.mrf.mxu0
    %8482 = vmatprep.mubr.f32.mxu0 0.0
    %8483 = vmatmul.mubr.f32.gmra.mxu0 %v8031
    %v8484 = vpop.f32.mrf.mxu0
    %v8485 = vadd.f32 %v8276, %v8484
    %v8486 = vpop.f32.mrf.mxu0
    %8487 = vmatprep.mubr.f32.mxu0 0.0
    %8488 = vmatmul.mubr.f32.gmra.mxu0 %v8034
    %v8489 = vpop.f32.mrf.mxu0
    %v8490 = vadd.f32 %v8276, %v8489
    %v8491 = vpop.f32.mrf.mxu0
    %8492 = vmatprep.mubr.f32.mxu0 0.0
    %8493 = vmatmul.mubr.f32.gmra.mxu0 %v8037
    %v8494 = vpop.f32.mrf.mxu0
    %v8495 = vadd.f32 %v8276, %v8494
    %v8496 = vpop.f32.mrf.mxu0
    %8497 = vmatprep.mubr.f32.mxu0 0.0
    %8498 = vmatmul.mubr.f32.gmra.mxu0 %v8040
    %v8499 = vpop.f32.mrf.mxu0
    %v8500 = vadd.f32 %v8276, %v8499
    %v8501 = vpop.f32.mrf.mxu0
    %8502 = vdwg.mxu0
    %v8503 = vadd.f32 %v8109, 2.0
    %v8504 = vadd.f32 %v8114, 2.0
    %v8505 = vadd.f32 %v8119, 2.0
    %v8506 = vadd.f32 %v8124, 2.0
    %v8507 = vadd.f32 %v8129, 2.0
    %v8508 = vadd.f32 %v8134, 2.0
    %v8509 = vadd.f32 %v8139, 2.0
    %v8510 = vadd.f32 %v8144, 2.0
    %v8511 = vadd.f32 %v8149, 2.0
    %v8512 = vadd.f32 %v8154, 2.0
    %v8513 = vadd.f32 %v8159, 2.0
    %v8514 = vadd.f32 %v8164, 2.0
    %v8515 = vadd.f32 %v8169, 2.0
    %v8516 = vadd.f32 %v8174, 2.0
    %v8517 = vadd.f32 %v8179, 2.0
    %v8518 = vadd.f32 %v8184, 2.0
    %v8519 = vadd.f32 %v8189, 2.0
    %v8520 = vadd.f32 %v8194, 2.0
    %v8521 = vadd.f32 %v8199, 2.0
    %v8522 = vadd.f32 %v8204, 2.0
    %v8523 = vadd.f32 %v8209, 2.0
    %v8524 = vadd.f32 %v8214, 2.0
    %v8525 = vadd.f32 %v8219, 2.0
    %v8526 = vadd.f32 %v8224, 2.0
    %v8527 = vadd.f32 %v8229, 2.0
    %v8528 = vadd.f32 %v8234, 2.0
    %v8529 = vadd.f32 %v8239, 2.0
    %v8530 = vadd.f32 %v8244, 2.0
    %v8531 = vadd.f32 %v8249, 2.0
    %v8532 = vadd.f32 %v8254, 2.0
    %v8533 = vadd.f32 %v8259, 2.0
    %v8534 = vadd.f32 %v8264, 2.0
    %v8535 = vsub.f32 0.0, %v8503
    %v8536 = vsub.f32 0.0, %v8504
    %v8537 = vsub.f32 0.0, %v8505
    %v8538 = vsub.f32 0.0, %v8506
    %v8539 = vsub.f32 0.0, %v8507
    %v8540 = vsub.f32 0.0, %v8508
    %v8541 = vsub.f32 0.0, %v8509
    %v8542 = vsub.f32 0.0, %v8510
    %v8543 = vsub.f32 0.0, %v8511
    %v8544 = vsub.f32 0.0, %v8512
    %v8545 = vsub.f32 0.0, %v8513
    %v8546 = vsub.f32 0.0, %v8514
    %v8547 = vsub.f32 0.0, %v8515
    %v8548 = vsub.f32 0.0, %v8516
    %v8549 = vsub.f32 0.0, %v8517
    %v8550 = vsub.f32 0.0, %v8518
    %v8551 = vsub.f32 0.0, %v8519
    %v8552 = vsub.f32 0.0, %v8520
    %v8553 = vsub.f32 0.0, %v8521
    %v8554 = vsub.f32 0.0, %v8522
    %v8555 = vsub.f32 0.0, %v8523
    %v8556 = vsub.f32 0.0, %v8524
    %v8557 = vsub.f32 0.0, %v8525
    %v8558 = vsub.f32 0.0, %v8526
    %v8559 = vsub.f32 0.0, %v8527
    %v8560 = vsub.f32 0.0, %v8528
    %v8561 = vsub.f32 0.0, %v8529
    %v8562 = vsub.f32 0.0, %v8530
    %v8563 = vsub.f32 0.0, %v8531
    %v8564 = vsub.f32 0.0, %v8532
    %v8565 = vsub.f32 0.0, %v8533
    %v8566 = vsub.f32 0.0, %v8534
    %v8567 = vmul.f32 %v8535, 1.442695
    %v8568 = vpow.pop %v8567
    %v8569 = vmul.f32 %v8536, 1.442695
    %v8570 = vpow.pop %v8569
    %v8571 = vmul.f32 %v8537, 1.442695
    %v8572 = vpow.pop %v8571
    %v8573 = vmul.f32 %v8538, 1.442695
    %v8574 = vpow.pop %v8573
    %v8575 = vmul.f32 %v8539, 1.442695
    %v8576 = vpow.pop %v8575
    %v8577 = vmul.f32 %v8540, 1.442695
    %v8578 = vpow.pop %v8577
    %v8579 = vmul.f32 %v8541, 1.442695
    %v8580 = vpow.pop %v8579
    %v8581 = vmul.f32 %v8542, 1.442695
    %v8582 = vpow.pop %v8581
    %v8583 = vmul.f32 %v8543, 1.442695
    %v8584 = vpow.pop %v8583
    %v8585 = vmul.f32 %v8544, 1.442695
    %v8586 = vpow.pop %v8585
    %v8587 = vmul.f32 %v8545, 1.442695
    %v8588 = vpow.pop %v8587
    %v8589 = vmul.f32 %v8546, 1.442695
    %v8590 = vpow.pop %v8589
    %v8591 = vmul.f32 %v8547, 1.442695
    %v8592 = vpow.pop %v8591
    %v8593 = vmul.f32 %v8548, 1.442695
    %v8594 = vpow.pop %v8593
    %v8595 = vmul.f32 %v8549, 1.442695
    %v8596 = vpow.pop %v8595
    %v8597 = vmul.f32 %v8550, 1.442695
    %v8598 = vpow.pop %v8597
    %v8599 = vmul.f32 %v8551, 1.442695
    %v8600 = vpow.pop %v8599
    %v8601 = vmul.f32 %v8552, 1.442695
    %v8602 = vpow.pop %v8601
    %v8603 = vmul.f32 %v8553, 1.442695
    %v8604 = vpow.pop %v8603
    %v8605 = vmul.f32 %v8554, 1.442695
    %v8606 = vpow.pop %v8605
    %v8607 = vmul.f32 %v8555, 1.442695
    %v8608 = vpow.pop %v8607
    %v8609 = vmul.f32 %v8556, 1.442695
    %v8610 = vpow.pop %v8609
    %v8611 = vmul.f32 %v8557, 1.442695
    %v8612 = vpow.pop %v8611
    %v8613 = vmul.f32 %v8558, 1.442695
    %v8614 = vpow.pop %v8613
    %v8615 = vmul.f32 %v8559, 1.442695
    %v8616 = vpow.pop %v8615
    %v8617 = vmul.f32 %v8560, 1.442695
    %v8618 = vpow.pop %v8617
    %v8619 = vmul.f32 %v8561, 1.442695
    %v8620 = vpow.pop %v8619
    %v8621 = vmul.f32 %v8562, 1.442695
    %v8622 = vpow.pop %v8621
    %v8623 = vmul.f32 %v8563, 1.442695
    %v8624 = vpow.pop %v8623
    %v8625 = vmul.f32 %v8564, 1.442695
    %v8626 = vpow.pop %v8625
    %v8627 = vmul.f32 %v8565, 1.442695
    %v8628 = vpow.pop %v8627
    %v8629 = vmul.f32 %v8566, 1.442695
    %v8630 = vpow.pop %v8629
    %v8631 = vadd.f32 %v8568, 1.0
    %v8632 = vadd.f32 %v8570, 1.0
    %v8633 = vadd.f32 %v8572, 1.0
    %v8634 = vadd.f32 %v8574, 1.0
    %v8635 = vadd.f32 %v8576, 1.0
    %v8636 = vadd.f32 %v8578, 1.0
    %v8637 = vadd.f32 %v8580, 1.0
    %v8638 = vadd.f32 %v8582, 1.0
    %v8639 = vadd.f32 %v8584, 1.0
    %v8640 = vadd.f32 %v8586, 1.0
    %v8641 = vadd.f32 %v8588, 1.0
    %v8642 = vadd.f32 %v8590, 1.0
    %v8643 = vadd.f32 %v8592, 1.0
    %v8644 = vadd.f32 %v8594, 1.0
    %v8645 = vadd.f32 %v8596, 1.0
    %v8646 = vadd.f32 %v8598, 1.0
    %v8647 = vadd.f32 %v8600, 1.0
    %v8648 = vadd.f32 %v8602, 1.0
    %v8649 = vadd.f32 %v8604, 1.0
    %v8650 = vadd.f32 %v8606, 1.0
    %v8651 = vadd.f32 %v8608, 1.0
    %v8652 = vadd.f32 %v8610, 1.0
    %v8653 = vadd.f32 %v8612, 1.0
    %v8654 = vadd.f32 %v8614, 1.0
    %v8655 = vadd.f32 %v8616, 1.0
    %v8656 = vadd.f32 %v8618, 1.0
    %v8657 = vadd.f32 %v8620, 1.0
    %v8658 = vadd.f32 %v8622, 1.0
    %v8659 = vadd.f32 %v8624, 1.0
    %v8660 = vadd.f32 %v8626, 1.0
    %v8661 = vadd.f32 %v8628, 1.0
    %v8662 = vadd.f32 %v8630, 1.0
    %v8663 = vlog2.pop %v8631
    %v8664 = vmul.f32 %v8663, 0.6931472
    %v8665 = vlog2.pop %v8632
    %v8666 = vmul.f32 %v8665, 0.6931472
    %v8667 = vlog2.pop %v8633
    %v8668 = vmul.f32 %v8667, 0.6931472
    %v8669 = vlog2.pop %v8634
    %v8670 = vmul.f32 %v8669, 0.6931472
    %v8671 = vlog2.pop %v8635
    %v8672 = vmul.f32 %v8671, 0.6931472
    %v8673 = vlog2.pop %v8636
    %v8674 = vmul.f32 %v8673, 0.6931472
    %v8675 = vlog2.pop %v8637
    %v8676 = vmul.f32 %v8675, 0.6931472
    %v8677 = vlog2.pop %v8638
    %v8678 = vmul.f32 %v8677, 0.6931472
    %v8679 = vlog2.pop %v8639
    %v8680 = vmul.f32 %v8679, 0.6931472
    %v8681 = vlog2.pop %v8640
    %v8682 = vmul.f32 %v8681, 0.6931472
    %v8683 = vlog2.pop %v8641
    %v8684 = vmul.f32 %v8683, 0.6931472
    %v8685 = vlog2.pop %v8642
    %v8686 = vmul.f32 %v8685, 0.6931472
    %v8687 = vlog2.pop %v8643
    %v8688 = vmul.f32 %v8687, 0.6931472
    %v8689 = vlog2.pop %v8644
    %v8690 = vmul.f32 %v8689, 0.6931472
    %v8691 = vlog2.pop %v8645
    %v8692 = vmul.f32 %v8691, 0.6931472
    %v8693 = vlog2.pop %v8646
    %v8694 = vmul.f32 %v8693, 0.6931472
    %v8695 = vlog2.pop %v8647
    %v8696 = vmul.f32 %v8695, 0.6931472
    %v8697 = vlog2.pop %v8648
    %v8698 = vmul.f32 %v8697, 0.6931472
    %v8699 = vlog2.pop %v8649
    %v8700 = vmul.f32 %v8699, 0.6931472
    %v8701 = vlog2.pop %v8650
    %v8702 = vmul.f32 %v8701, 0.6931472
    %v8703 = vlog2.pop %v8651
    %v8704 = vmul.f32 %v8703, 0.6931472
    %v8705 = vlog2.pop %v8652
    %v8706 = vmul.f32 %v8705, 0.6931472
    %v8707 = vlog2.pop %v8653
    %v8708 = vmul.f32 %v8707, 0.6931472
    %v8709 = vlog2.pop %v8654
    %v8710 = vmul.f32 %v8709, 0.6931472
    %v8711 = vlog2.pop %v8655
    %v8712 = vmul.f32 %v8711, 0.6931472
    %v8713 = vlog2.pop %v8656
    %v8714 = vmul.f32 %v8713, 0.6931472
    %v8715 = vlog2.pop %v8657
    %v8716 = vmul.f32 %v8715, 0.6931472
    %v8717 = vlog2.pop %v8658
    %v8718 = vmul.f32 %v8717, 0.6931472
    %v8719 = vlog2.pop %v8659
    %v8720 = vmul.f32 %v8719, 0.6931472
    %v8721 = vlog2.pop %v8660
    %v8722 = vmul.f32 %v8721, 0.6931472
    %v8723 = vlog2.pop %v8661
    %v8724 = vmul.f32 %v8723, 0.6931472
    %v8725 = vlog2.pop %v8662
    %v8726 = vmul.f32 %v8725, 0.6931472
    %v8727 = vsub.f32 %v6555, %v8664
    %v8728 = vsub.f32 %v6556, %v8666
    %v8729 = vsub.f32 %v6557, %v8668
    %v8730 = vsub.f32 %v6558, %v8670
    %v8731 = vsub.f32 %v6559, %v8672
    %v8732 = vsub.f32 %v6560, %v8674
    %v8733 = vsub.f32 %v6561, %v8676
    %v8734 = vsub.f32 %v6562, %v8678
    %v8735 = vsub.f32 %v6563, %v8680
    %v8736 = vsub.f32 %v6564, %v8682
    %v8737 = vsub.f32 %v6565, %v8684
    %v8738 = vsub.f32 %v6566, %v8686
    %v8739 = vsub.f32 %v6567, %v8688
    %v8740 = vsub.f32 %v6568, %v8690
    %v8741 = vsub.f32 %v6569, %v8692
    %v8742 = vsub.f32 %v6570, %v8694
    %v8743 = vsub.f32 %v6571, %v8696
    %v8744 = vsub.f32 %v6572, %v8698
    %v8745 = vsub.f32 %v6573, %v8700
    %v8746 = vsub.f32 %v6574, %v8702
    %v8747 = vsub.f32 %v6575, %v8704
    %v8748 = vsub.f32 %v6576, %v8706
    %v8749 = vsub.f32 %v6577, %v8708
    %v8750 = vsub.f32 %v6578, %v8710
    %v8751 = vsub.f32 %v6579, %v8712
    %v8752 = vsub.f32 %v6580, %v8714
    %v8753 = vsub.f32 %v6581, %v8716
    %v8754 = vsub.f32 %v6582, %v8718
    %v8755 = vsub.f32 %v6583, %v8720
    %v8756 = vsub.f32 %v6584, %v8722
    %v8757 = vsub.f32 %v6585, %v8724
    %v8758 = vsub.f32 %v6586, %v8726
    %v8759 = vsub.f32 %v6619, %v8345
    %v8760 = vsub.f32 %v6620, %v8350
    %v8761 = vsub.f32 %v6621, %v8355
    %v8762 = vsub.f32 %v6622, %v8360
    %v8763 = vsub.f32 %v6623, %v8365
    %v8764 = vsub.f32 %v6624, %v8370
    %v8765 = vsub.f32 %v6625, %v8375
    %v8766 = vsub.f32 %v6626, %v8380
    %v8767 = vsub.f32 %v6627, %v8385
    %v8768 = vsub.f32 %v6628, %v8390
    %v8769 = vsub.f32 %v6629, %v8395
    %v8770 = vsub.f32 %v6630, %v8400
    %v8771 = vsub.f32 %v6631, %v8405
    %v8772 = vsub.f32 %v6632, %v8410
    %v8773 = vsub.f32 %v6633, %v8415
    %v8774 = vsub.f32 %v6634, %v8420
    %v8775 = vsub.f32 %v6635, %v8425
    %v8776 = vsub.f32 %v6636, %v8430
    %v8777 = vsub.f32 %v6637, %v8435
    %v8778 = vsub.f32 %v6638, %v8440
    %v8779 = vsub.f32 %v6639, %v8445
    %v8780 = vsub.f32 %v6640, %v8450
    %v8781 = vsub.f32 %v6641, %v8455
    %v8782 = vsub.f32 %v6642, %v8460
    %v8783 = vsub.f32 %v6643, %v8465
    %v8784 = vsub.f32 %v6644, %v8470
    %v8785 = vsub.f32 %v6645, %v8475
    %v8786 = vsub.f32 %v6646, %v8480
    %v8787 = vsub.f32 %v6647, %v8485
    %v8788 = vsub.f32 %v6648, %v8490
    %v8789 = vsub.f32 %v6649, %v8495
    %v8790 = vsub.f32 %v6650, %v8500
    %v8791 = vmul.f32 %v8759, %v8631
    %v8792 = vmul.f32 %v8760, %v8632
    %v8793 = vmul.f32 %v8761, %v8633
    %v8794 = vmul.f32 %v8762, %v8634
    %v8795 = vmul.f32 %v8763, %v8635
    %v8796 = vmul.f32 %v8764, %v8636
    %v8797 = vmul.f32 %v8765, %v8637
    %v8798 = vmul.f32 %v8766, %v8638
    %v8799 = vmul.f32 %v8767, %v8639
    %v8800 = vmul.f32 %v8768, %v8640
    %v8801 = vmul.f32 %v8769, %v8641
    %v8802 = vmul.f32 %v8770, %v8642
    %v8803 = vmul.f32 %v8771, %v8643
    %v8804 = vmul.f32 %v8772, %v8644
    %v8805 = vmul.f32 %v8773, %v8645
    %v8806 = vmul.f32 %v8774, %v8646
    %v8807 = vmul.f32 %v8775, %v8647
    %v8808 = vmul.f32 %v8776, %v8648
    %v8809 = vmul.f32 %v8777, %v8649
    %v8810 = vmul.f32 %v8778, %v8650
    %v8811 = vmul.f32 %v8779, %v8651
    %v8812 = vmul.f32 %v8780, %v8652
    %v8813 = vmul.f32 %v8781, %v8653
    %v8814 = vmul.f32 %v8782, %v8654
    %v8815 = vmul.f32 %v8783, %v8655
    %v8816 = vmul.f32 %v8784, %v8656
    %v8817 = vmul.f32 %v8785, %v8657
    %v8818 = vmul.f32 %v8786, %v8658
    %v8819 = vmul.f32 %v8787, %v8659
    %v8820 = vmul.f32 %v8788, %v8660
    %v8821 = vmul.f32 %v8789, %v8661
    %v8822 = vmul.f32 %v8790, %v8662
    %8823 = vst.msk [vmem:[%s10] sm:$0xff] %vm120, %v8791
    %8824 = vst.msk [vmem:[%s10 + $0x8] sm:$0xff] %vm120, %v8792
    %8825 = vst.msk [vmem:[%s10 + $0x10] sm:$0xff] %vm120, %v8793
    %8826 = vst.msk [vmem:[%s10 + $0x18] sm:$0xff] %vm120, %v8794
    %8827 = vst.msk [vmem:[%s10 + $0x20] sm:$0xff] %vm120, %v8795
    %8828 = vst.msk [vmem:[%s10 + $0x28] sm:$0xff] %vm120, %v8796
    %8829 = vst.msk [vmem:[%s10 + $0x30] sm:$0xff] %vm120, %v8797
    %8830 = vst.msk [vmem:[%s10 + $0x38] sm:$0xff] %vm120, %v8798
    %8831 = vst.msk [vmem:[%s10 + $0x40] sm:$0xff] %vm120, %v8799
    %8832 = vst.msk [vmem:[%s10 + $0x48] sm:$0xff] %vm120, %v8800
    %8833 = vst.msk [vmem:[%s10 + $0x50] sm:$0xff] %vm120, %v8801
    %8834 = vst.msk [vmem:[%s10 + $0x58] sm:$0xff] %vm120, %v8802
    %8835 = vst.msk [vmem:[%s10 + $0x60] sm:$0xff] %vm120, %v8803
    %8836 = vst.msk [vmem:[%s10 + $0x68] sm:$0xff] %vm120, %v8804
    %8837 = vst.msk [vmem:[%s10 + $0x70] sm:$0xff] %vm120, %v8805
    %8838 = vst.msk [vmem:[%s10 + $0x78] sm:$0xff] %vm120, %v8806
    %8839 = vst.msk [vmem:[%s10 + $0x80] sm:$0xff] %vm120, %v8807
    %8840 = vst.msk [vmem:[%s10 + $0x88] sm:$0xff] %vm120, %v8808
    %8841 = vst.msk [vmem:[%s10 + $0x90] sm:$0xff] %vm120, %v8809
    %8842 = vst.msk [vmem:[%s10 + $0x98] sm:$0xff] %vm120, %v8810
    %8843 = vst.msk [vmem:[%s10 + $0xa0] sm:$0xff] %vm120, %v8811
    %8844 = vst.msk [vmem:[%s10 + $0xa8] sm:$0xff] %vm120, %v8812
    %8845 = vst.msk [vmem:[%s10 + $0xb0] sm:$0xff] %vm120, %v8813
    %8846 = vst.msk [vmem:[%s10 + $0xb8] sm:$0xff] %vm120, %v8814
    %8847 = vst.msk [vmem:[%s10 + $0xc0] sm:$0xff] %vm120, %v8815
    %8848 = vst.msk [vmem:[%s10 + $0xc8] sm:$0xff] %vm120, %v8816
    %8849 = vst.msk [vmem:[%s10 + $0xd0] sm:$0xff] %vm120, %v8817
    %8850 = vst.msk [vmem:[%s10 + $0xd8] sm:$0xff] %vm120, %v8818
    %8851 = vst.msk [vmem:[%s10 + $0xe0] sm:$0xff] %vm120, %v8819
    %8852 = vst.msk [vmem:[%s10 + $0xe8] sm:$0xff] %vm120, %v8820
    %8853 = vst.msk [vmem:[%s10 + $0xf0] sm:$0xff] %vm120, %v8821
    %8854 = vst.msk [vmem:[%s10 + $0xf8] sm:$0xff] %vm120, %v8822
    %v8855 = vsel %vm120, %v8727, 0.0
    %v8856 = vsel %vm120, %v8728, 0.0
    %v8857 = vadd.f32 %v8855, %v8856
    %v8858 = vsel %vm120, %v8729, 0.0
    %v8859 = vadd.f32 %v8857, %v8858
    %v8860 = vsel %vm120, %v8730, 0.0
    %v8861 = vadd.f32 %v8859, %v8860
    %v8862 = vsel %vm120, %v8731, 0.0
    %v8863 = vadd.f32 %v8861, %v8862
    %v8864 = vsel %vm120, %v8732, 0.0
    %v8865 = vadd.f32 %v8863, %v8864
    %v8866 = vsel %vm120, %v8733, 0.0
    %v8867 = vadd.f32 %v8865, %v8866
    %v8868 = vsel %vm120, %v8734, 0.0
    %v8869 = vadd.f32 %v8867, %v8868
    %v8870 = vsel %vm120, %v8735, 0.0
    %v8871 = vadd.f32 %v8869, %v8870
    %v8872 = vsel %vm120, %v8736, 0.0
    %v8873 = vadd.f32 %v8871, %v8872
    %v8874 = vsel %vm120, %v8737, 0.0
    %v8875 = vadd.f32 %v8873, %v8874
    %v8876 = vsel %vm120, %v8738, 0.0
    %v8877 = vadd.f32 %v8875, %v8876
    %v8878 = vsel %vm120, %v8739, 0.0
    %v8879 = vadd.f32 %v8877, %v8878
    %v8880 = vsel %vm120, %v8740, 0.0
    %v8881 = vadd.f32 %v8879, %v8880
    %v8882 = vsel %vm120, %v8741, 0.0
    %v8883 = vadd.f32 %v8881, %v8882
    %v8884 = vsel %vm120, %v8742, 0.0
    %v8885 = vadd.f32 %v8883, %v8884
    %v8886 = vsel %vm120, %v8743, 0.0
    %v8887 = vadd.f32 %v8885, %v8886
    %v8888 = vsel %vm120, %v8744, 0.0
    %v8889 = vadd.f32 %v8887, %v8888
    %v8890 = vsel %vm120, %v8745, 0.0
    %v8891 = vadd.f32 %v8889, %v8890
    %v8892 = vsel %vm120, %v8746, 0.0
    %v8893 = vadd.f32 %v8891, %v8892
    %v8894 = vsel %vm120, %v8747, 0.0
    %v8895 = vadd.f32 %v8893, %v8894
    %v8896 = vsel %vm120, %v8748, 0.0
    %v8897 = vadd.f32 %v8895, %v8896
    %v8898 = vsel %vm120, %v8749, 0.0
    %v8899 = vadd.f32 %v8897, %v8898
    %v8900 = vsel %vm120, %v8750, 0.0
    %v8901 = vadd.f32 %v8899, %v8900
    %v8902 = vsel %vm120, %v8751, 0.0
    %v8903 = vadd.f32 %v8901, %v8902
    %v8904 = vsel %vm120, %v8752, 0.0
    %v8905 = vadd.f32 %v8903, %v8904
    %v8906 = vsel %vm120, %v8753, 0.0
    %v8907 = vadd.f32 %v8905, %v8906
    %v8908 = vsel %vm120, %v8754, 0.0
    %v8909 = vadd.f32 %v8907, %v8908
    %v8910 = vsel %vm120, %v8755, 0.0
    %v8911 = vadd.f32 %v8909, %v8910
    %v8912 = vsel %vm120, %v8756, 0.0
    %v8913 = vadd.f32 %v8911, %v8912
    %v8914 = vsel %vm120, %v8757, 0.0
    %v8915 = vadd.f32 %v8913, %v8914
    %v8916 = vsel %vm120, %v8758, 0.0
    %v8917 = vadd.f32 %v8915, %v8916
    %8918 = vadd.xlane.f32.xlu0 %v8917
    %v8919 = vpop.xlane.xlu0 %8918
    %v8920 = vrot.slane %v8919, 4
    %v8921 = vadd.f32 %v8919, %v8920
    %v8922 = vrot.slane %v8921, 2
    %v8923 = vadd.f32 %v8921, %v8922
    %v8924 = vrot.slane %v8923, 1
    %v8925 = vadd.f32 %v8923, %v8924
    %s8926 = vtos %v8925
    %s8927 = scalar_lea.smem [#allocation2], 0
    %8928 = sst [smem:[%s8927]] %s8926
    // Predicated region
    $region42: #{_nice_forward.1} parent=1 // pred_check
      _
    $region43: #{_nice_forward.1} parent=1 // pred_check_branch
      %8930 = sbr.rel (0) target = $region45
    $region44: #{_nice_forward.1} parent=1 // pred_region
      _
    $region45: #{_nice_forward.1} parent=1 // pred_fallthru
      _
    // Predicated region
    $region46: #{_nice_forward.1} parent=1 // pred_check
      _
    $region47: #{_nice_forward.1} parent=1 // pred_check_branch
      %8932 = sbr.rel (0) target = $region49
    $region48: #{_nice_forward.1} parent=1 // pred_region
      %s8934 = ssub.s32 16, 16
      %8935 = vsyncadd [#allocation3], %s8934
      %8938 = dma.smem_to_hbm [#allocation2], 16, %s11, [#allocation3]
    $region49: #{_nice_forward.1} parent=1 // pred_fallthru
      _
    // Predicated region
    $region50: #{_nice_forward.1} parent=1 // pred_check
      _
    $region51: #{_nice_forward.1} parent=1 // pred_check_branch
      %8940 = sbr.rel (0) target = $region53
    $region52: #{_nice_forward.1} parent=1 // pred_region
      _
    $region53: #{_nice_forward.1} parent=1 // pred_fallthru
      _
    // Predicated region
    $region54: #{_nice_forward.1} parent=1 // pred_check
      _
    $region55: #{_nice_forward.1} parent=1 // pred_check_branch
      %8942 = sbr.rel (0) target = $region57
    $region56: #{_nice_forward.1} parent=1 // pred_region
      %8943 = dma.done [#allocation3], 16
    $region57: #{_nice_forward.1} parent=1 // pred_fallthru
      _
    %8944 = sfence
    %8945 = vsyncpa [#allocation3], 1

</llo_original>
